<compile_context>
chip_gen: v7x
topology: tpu7x:2x2x1
jax: 0.10.0
libtpu: 0.0.40
codegen_flags: <defaults>
</compile_context>

<pallas_src>
import functools

import jax
import jax.numpy as jnp
from jax.experimental import pallas as pl
from jax.experimental.pallas import tpu as pltpu


CPAD = 128   # all layer outputs stay padded to 128 channels (full lane width)


# -----------------------------------------------------------------------------
# Pallas kernels
# -----------------------------------------------------------------------------

def _mm_bias_act_kernel(x_ref, w_ref, b_ref, o_ref, *, act, slope):
    """o = [leaky_relu](x @ w + b).  Single K block -> no accumulator scratch."""
    acc = jnp.dot(x_ref[...], w_ref[...], preferred_element_type=jnp.float32)
    acc = acc + b_ref[...]                       # (1, 128) broadcast over rows
    if act:
        acc = jnp.where(acc >= 0, acc, slope * acc)
    o_ref[...] = acc.astype(o_ref.dtype)


def _bn_lrelu(acc, g, b, eps, slope):
    """BatchNorm (training-mode batch statistics over ALL rows) + LeakyReLU.

    s1 / s2 are computed on the MXU (ones @ acc), so the VPU/XLU only touch the
    full-size f32 accumulator twice (acc*acc and the normalize pass).
    NOTE: correct only because grid=(1,) — the statistics must span every row.
    Padded output channels have zero weight columns -> acc==0 -> stay exactly 0.
    """
    m_rows = acc.shape[0]
    ones = jnp.ones((1, m_rows), jnp.float32)
    s1 = jnp.dot(ones, acc, preferred_element_type=jnp.float32)          # (1, Nc)
    s2 = jnp.dot(ones, acc * acc, preferred_element_type=jnp.float32)    # (1, Nc)
    inv_m = 1.0 / m_rows
    mean = s1 * inv_m
    var = jnp.maximum(s2 * inv_m - mean * mean, 0.0)     # biased var (PyTorch BN fwd)
    inv = jax.lax.rsqrt(var + eps)
    y = (acc - mean) * (inv * g) + b
    return jnp.where(y >= 0, y, slope * y)


def _mm_bn_lrelu_kernel(x_ref, w_ref, g_ref, b_ref, o_ref, *, eps, slope):
    """o = leaky_relu(batch_norm(x @ w)), fused in the matmul epilogue."""
    acc = jnp.dot(x_ref[...], w_ref[...], preferred_element_type=jnp.float32)
    y = _bn_lrelu(acc, g_ref[...], b_ref[...], eps, slope)
    o_ref[...] = y.astype(o_ref.dtype)


def _mm_bn_lrelu_final_kernel(x_ref, w_ref, g_ref, b_ref, wo_ref, bo_ref,
                              o_ref, y_scr, *, eps, slope, n_batch, n_pos):
    """Last downsampling layer (conv+BN+LReLU) fused with the final 4x4 'valid' conv.

    The final conv's im2col is a pure flatten of the (n_batch, 4, 4, 128)
    activation, so it is expressed as n_pos small (1,128)x(128,128) dots per
    batch row — no sublane->lane relayout, no extra pallas_call, no HBM trip.
    """
    acc = jnp.dot(x_ref[...], w_ref[...], preferred_element_type=jnp.float32)
    y = _bn_lrelu(acc, g_ref[...], b_ref[...], eps, slope)
    y_scr[...] = y.astype(y_scr.dtype)           # (n_batch*n_pos, 128) bf16

    accs = [bo_ref[...] for _ in range(n_batch)]             # (1, Co) f32 each
    for j in range(n_pos):
        wj = wo_ref[j]                                       # (Cpad, Co) bf16
        for n in range(n_batch):
            row = y_scr[pl.ds(n * n_pos + j, 1), :]          # (1, Cpad) bf16
            accs[n] = accs[n] + jnp.dot(row, wj, preferred_element_type=jnp.float32)
    for n in range(n_batch):
        o_ref[pl.ds(n, 1), :] = accs[n]


# -----------------------------------------------------------------------------
# Pallas wrappers
# -----------------------------------------------------------------------------

def mm_bias_act(x, w, b, *, act, out_dtype, m_split=1, slope=0.2):
    """x:(M,K) bf16 @ w:(K,128) bf16 + b:(1,128) f32, optional LeakyReLU."""
    M, K = x.shape
    Nc = w.shape[1]
    if m_split > 1 and M % m_split == 0 and (M // m_split) % 8 == 0:
        grid_m, tm = m_split, M // m_split       # 2 "parallel" steps on v7x only
    else:
        grid_m, tm = 1, M
    kernel = functools.partial(_mm_bias_act_kernel, act=act, slope=slope)
    cost = pl.CostEstimate(
        flops=2 * M * K * Nc,
        transcendentals=0,
        bytes_accessed=M * K * 2 + K * Nc * 2 + Nc * 4
        + M * Nc * jnp.dtype(out_dtype).itemsize)
    return pl.pallas_call(
        kernel,
        out_shape=jax.ShapeDtypeStruct((M, Nc), out_dtype),
        grid=(grid_m,),
        in_specs=[
            pl.BlockSpec((tm, K), lambda i: (i, 0)),
            pl.BlockSpec((K, Nc), lambda i: (0, 0)),
            pl.BlockSpec((1, Nc), lambda i: (0, 0)),
        ],
        out_specs=pl.BlockSpec((tm, Nc), lambda i: (i, 0)),
        compiler_params=pltpu.CompilerParams(
            dimension_semantics=("parallel",)),
        cost_estimate=cost,
    )(x, w, b)


def mm_bn_lrelu(x, w, gamma, beta, *, eps=1e-5, slope=0.2):
    """x:(M,K) bf16 @ w:(K,128) bf16 -> BN(batch stats) -> LeakyReLU, one kernel.

    grid=(1,) is required: BN statistics span the full M rows.
    """
    M, K = x.shape
    Nc = w.shape[1]
    kernel = functools.partial(_mm_bn_lrelu_kernel, eps=eps, slope=slope)
    cost = pl.CostEstimate(
        flops=2 * M * K * Nc + 6 * M * Nc,
        transcendentals=Nc,
        bytes_accessed=M * K * 2 + K * Nc * 2 + 2 * Nc * 4 + M * Nc * 2)
    return pl.pallas_call(
        kernel,
        out_shape=jax.ShapeDtypeStruct((M, Nc), jnp.bfloat16),
        grid=(1,),
        in_specs=[
            pl.BlockSpec((M, K), lambda i: (0, 0)),
            pl.BlockSpec((K, Nc), lambda i: (0, 0)),
            pl.BlockSpec((1, Nc), lambda i: (0, 0)),
            pl.BlockSpec((1, Nc), lambda i: (0, 0)),
        ],
        out_specs=pl.BlockSpec((M, Nc), lambda i: (0, 0)),
        compiler_params=pltpu.CompilerParams(
            dimension_semantics=("arbitrary",)),
        cost_estimate=cost,
    )(x, w, gamma, beta)


def mm_bn_lrelu_final(x, w, gamma, beta, w_out, b_out, *, n_batch, n_pos,
                      eps=1e-5, slope=0.2):
    """Fused: last conv+BN+LReLU layer followed by the final 4x4 valid conv."""
    M, K = x.shape
    Nc = w.shape[1]
    Co = w_out.shape[-1]
    assert M == n_batch * n_pos and w_out.shape == (n_pos, Nc, Co)
    kernel = functools.partial(_mm_bn_lrelu_final_kernel, eps=eps, slope=slope,
                               n_batch=n_batch, n_pos=n_pos)
    cost = pl.CostEstimate(
        flops=2 * M * K * Nc + 2 * M * Nc * Co + 6 * M * Nc,
        transcendentals=Nc,
        bytes_accessed=M * K * 2 + K * Nc * 2 + 2 * Nc * 4
        + n_pos * Nc * Co * 2 + Co * 4 + n_batch * Co * 4)
    return pl.pallas_call(
        kernel,
        out_shape=jax.ShapeDtypeStruct((n_batch, Co), jnp.float32),
        grid=(1,),
        in_specs=[
            pl.BlockSpec((M, K), lambda i: (0, 0)),
            pl.BlockSpec((K, Nc), lambda i: (0, 0)),
            pl.BlockSpec((1, Nc), lambda i: (0, 0)),
            pl.BlockSpec((1, Nc), lambda i: (0, 0)),
            pl.BlockSpec((n_pos, Nc, Co), lambda i: (0, 0, 0)),
            pl.BlockSpec((1, Co), lambda i: (0, 0)),
        ],
        out_specs=pl.BlockSpec((n_batch, Co), lambda i: (0, 0)),
        scratch_shapes=[pltpu.VMEM((M, Nc), jnp.bfloat16)],
        compiler_params=pltpu.CompilerParams(
            dimension_semantics=("arbitrary",)),
        cost_estimate=cost,
    )(x, w, gamma, beta, w_out, b_out)


# -----------------------------------------------------------------------------
# im2col glue (plain JAX, bf16, tiny at these shapes after K de-padding)
# -----------------------------------------------------------------------------

def _im2col(x, k, stride, pad):
    """x:(N,H,W,C) -> (N*Ho*Wo, k*k*C) with feature order (kh, kw, c)."""
    N, H, W, C = x.shape
    Ho = (H + 2 * pad - k) // stride + 1
    Wo = (W + 2 * pad - k) // stride + 1
    xp = jnp.pad(x, ((0, 0), (pad, pad), (pad, pad), (0, 0))) if pad else x
    cols = []
    for kh in range(k):
        for kw in range(k):
            cols.append(jax.lax.slice(
                xp,
                (0, kh, kw, 0),
                (N, kh + stride * (Ho - 1) + 1, kw + stride * (Wo - 1) + 1, C),
                (1, stride, stride, 1)))
    patches = jnp.stack(cols, axis=3).reshape(N, Ho, Wo, k * k * C)
    return patches.reshape(N * Ho * Wo, k * k * C), Ho, Wo


# -----------------------------------------------------------------------------
# Parameters: construction (PyTorch-like) and one-time preparation for the kernels
# -----------------------------------------------------------------------------

def make_encoder_params(key, input_channels=1, dim=16, n_downsamplings=4):
    """Deterministic synthetic parameters (HWIO conv weights), PyTorch-equivalent."""
    params = {}
    k = key

    def conv_w(k, cin, cout, ksz):
        k, sub = jax.random.split(k)
        fan_in = ksz * ksz * cin
        w = jax.random.normal(sub, (ksz, ksz, cin, cout), jnp.float32) / jnp.sqrt(fan_in)
        return k, w

    k, params['w0'] = conv_w(k, input_channels, dim, 4)
    k, sub = jax.random.split(k)
    params['b0'] = 0.01 * jax.random.normal(sub, (dim,), jnp.float32)

    d = dim
    for i in range(n_downsamplings - 1):
        d_last = d
        d = min(dim * 2 ** (i + 1), dim * 8)
        k, params[f'w{i + 1}'] = conv_w(k, d_last, d, 4)
        params[f'g{i + 1}'] = jnp.ones((d,), jnp.float32)
        params[f'be{i + 1}'] = jnp.zeros((d,), jnp.float32)

    k, params['w_out'] = conv_w(k, d, 128, 4)
    k, sub = jax.random.split(k)
    params['b_out'] = 0.01 * jax.random.normal(sub, (128,), jnp.float32)
    params['_n_down'] = n_downsamplings
    return params


def prepare_params(params, cpad=CPAD):
    """Reshape conv weights to matmul form, pad OUTPUT channels to 128, cast bf16.

    The contraction (K) dimension is NOT padded: activations are sliced to the
    true channel count before im2col, so K stays at 16*cin_real.
    """
    n_down = params['_n_down']
    prep = {}

    # layer 0: K = 16*Cin (true), output padded to 128
    w0 = params['w0']                                      # (4,4,Cin,dim)
    kh, kw, cin, cout = w0.shape
    w0m = w0.reshape(kh * kw * cin, cout)
    prep['w0'] = jnp.pad(w0m, ((0, 0), (0, cpad - cout))).astype(jnp.bfloat16)
    prep['b0'] = jnp.pad(params['b0'], (0, cpad - cout)).reshape(1, cpad).astype(jnp.float32)

    # BN blocks: K = 16*cin_real (no K padding), output padded to 128
    for i in range(1, n_down):
        w = params[f'w{i}']                                # (4,4,cin_r,cout_r)
        kh, kw, cin_r, cout_r = w.shape
        wm = w.reshape(kh * kw * cin_r, cout_r)
        prep[f'w{i}'] = jnp.pad(wm, ((0, 0), (0, cpad - cout_r))).astype(jnp.bfloat16)
        prep[f'g{i}'] = jnp.concatenate(
            [params[f'g{i}'], jnp.ones((cpad - cout_r,), jnp.float32)]).reshape(1, cpad)
        prep[f'be{i}'] = jnp.pad(params[f'be{i}'], (0, cpad - cout_r)).reshape(1, cpad)

    # final conv: keep the 16 spatial taps as a leading axis (no sublane->lane
    # flatten needed in-kernel); pad the cin axis to 128 (zero rows hit the
    # exactly-zero padded channels of the previous layer's output).
    w = params['w_out']                                    # (4,4,d,128)
    kh, kw, cin_r, cout_r = w.shape
    wr = w.reshape(kh * kw, cin_r, cout_r)
    wr = jnp.pad(wr, ((0, 0), (0, cpad - cin_r), (0, 0)))
    prep['w_out'] = wr.astype(jnp.bfloat16)                # (16, 128, 128)
    prep['b_out'] = params['b_out'].reshape(1, cout_r).astype(jnp.float32)
    return prep


def _layer0_m_split():
    """2 grid steps for layer 0 only on v7x (2 TensorCores/chip); 1 elsewhere."""
    try:
        kind = jax.devices()[0].device_kind.lower()
    except Exception:
        kind = ""
    return 2 if ("v7" in kind or "7x" in kind) else 1


# -----------------------------------------------------------------------------
# encoder_v3 forward (Pallas)
# -----------------------------------------------------------------------------

def encoder_v3_pallas(x_nchw, prep, *, n_down, m_split0=1):
    assert n_down >= 2
    N = x_nchw.shape[0]
    x = jnp.transpose(x_nchw, (0, 2, 3, 1)).astype(jnp.bfloat16)   # NCHW -> NHWC bf16

    # layer 0: Conv(4,s2,p1,bias) + LeakyReLU, bias+act fused in the matmul epilogue
    p, Ho, Wo = _im2col(x, 4, 2, 1)
    y = mm_bias_act(p, prep['w0'], prep['b0'], act=True,
                    out_dtype=jnp.bfloat16, m_split=m_split0)
    x = y.reshape(N, Ho, Wo, CPAD)

    # middle layers: Conv(4,s2,p1,no bias) + BatchNorm(batch stats) + LeakyReLU
    for i in range(1, n_down - 1):
        cin = prep[f'w{i}'].shape[0] // 16          # true (un-padded) channel count
        p, Ho, Wo = _im2col(x[..., :cin], 4, 2, 1)
        y = mm_bn_lrelu(p, prep[f'w{i}'], prep[f'g{i}'], prep[f'be{i}'])
        x = y.reshape(N, Ho, Wo, CPAD)

    # last downsampling layer + final Conv(4,s1,p0,bias): ONE fused pallas_call
    i = n_down - 1
    cin = prep[f'w{i}'].shape[0] // 16
    p, Ho, Wo = _im2col(x[..., :cin], 4, 2, 1)
    assert (Ho, Wo) == (4, 4), (Ho, Wo)   # final 4x4 valid conv reduces spatial to 1x1
    out = mm_bn_lrelu_final(p, prep[f'w{i}'], prep[f'g{i}'], prep[f'be{i}'],
                            prep['w_out'], prep['b_out'],
                            n_batch=N, n_pos=Ho * Wo)          # (N, 128) f32

    y = out.reshape(N, 1, 1, 128)
    return jnp.transpose(y, (3, 0, 1, 2))       # NHWC -> (C, N, H, W) in one transpose


# -----------------------------------------------------------------------------
# Pure-JAX f32 reference (for correctness check)
# -----------------------------------------------------------------------------

def _lrelu(x):
    return jnp.where(x >= 0, x, 0.2 * x)


def _conv_ref(x, w, b, stride, pad):
    y = jax.lax.conv_general_dilated(
        x, w, (stride, stride), [(pad, pad), (pad, pad)],
        dimension_numbers=('NHWC', 'HWIO', 'NHWC'),
        precision=jax.lax.Precision.HIGHEST)
    return y + b.reshape(1, 1, 1, -1)


def _bn_ref(x, g, b, eps=1e-5):
    mean = jnp.mean(x, axis=(0, 1, 2), keepdims=True)
    var = jnp.mean((x - mean) ** 2, axis=(0, 1, 2), keepdims=True)
    return (x - mean) * jax.lax.rsqrt(var + eps) * g.reshape(1, 1, 1, -1) + b.reshape(1, 1, 1, -1)


def encoder_v3_ref(x_nchw, params):
    n_down = params['_n_down']
    x = jnp.transpose(x_nchw, (0, 2, 3, 1))
    x = _lrelu(_conv_ref(x, params['w0'], params['b0'], 2, 1))
    for i in range(n_down - 1):
        w = params[f'w{i + 1}']
        x = _conv_ref(x, w, jnp.zeros((w.shape[-1],), jnp.float32), 2, 1)
        x = _lrelu(_bn_ref(x, params[f'g{i + 1}'], params[f'be{i + 1}']))
    x = _conv_ref(x, params['w_out'], params['b_out'], 1, 0)
    y = jnp.transpose(x, (0, 3, 1, 2))
    return jnp.transpose(y, (1, 0, 2, 3))


# -----------------------------------------------------------------------------
# Main
# -----------------------------------------------------------------------------

if __name__ == "__main__":
    key = jax.random.PRNGKey(0)
    k_x, k_p = jax.random.split(key)

    # Small configuration: batch=2, input_channels=1, dim=16, 64x64 input.
    # Spatial path: 64 -> 32 -> 16 -> 8 -> 4 -> (4x4 valid conv) -> 1.
    N, Cin, H, W = 2, 1, 64, 64
    x = jax.random.normal(k_x, (N, Cin, H, W), jnp.float32)

    params = make_encoder_params(k_p, input_channels=Cin, dim=16, n_downsamplings=4)
    prep = prepare_params(params)               # one-time weight preprocessing
    m_split0 = _layer0_m_split()                # 2 on v7x, 1 on v5e/v6e

    fwd = jax.jit(encoder_v3_pallas, static_argnames=("n_down", "m_split0"))
    out = jax.block_until_ready(fwd(x, prep, n_down=params['_n_down'],
                                    m_split0=m_split0))

    assert out.shape == (128, N, 1, 1), out.shape
    assert bool(jnp.all(jnp.isfinite(out)))

    ref = jax.block_until_ready(encoder_v3_ref(x, params))
    err = float(jnp.max(jnp.abs(out - ref)))
    scale = float(jnp.max(jnp.abs(ref))) + 1e-6
    # bf16 MXU operands (f32 accumulation) -> slightly looser tolerance.
    assert err / scale < 2.5e-2, (err, scale)

    print("KERNEL_OK")
</pallas_src>

<mosaic_0001>
module attributes {stable_mosaic.version = 11 : i64} {
  func.func @_mm_bias_act_kernel(%arg0: i32, %arg1: memref<2048x16xbf16, #tpu.memory_space<vmem>>, %arg2: memref<16x128xbf16, #tpu.memory_space<vmem>>, %arg3: memref<1x128xf32, #tpu.memory_space<vmem>>, %arg4: memref<2048x128xbf16, #tpu.memory_space<vmem>>) attributes {dimension_semantics = [#tpu.dimension_semantics<parallel>], iteration_bounds = array<i64: 1>, scalar_prefetch = 0 : i64, scratch_operands = 0 : i64, tpu.core_type = #tpu.core_type<tc>, window_params = [{transform_indices = @transform_0, window_bounds = array<i64: 2048, 16>}, {pipeline_mode = #tpu.pipeline_mode<synchronous>, transform_indices = @transform_1, window_bounds = array<i64: 16, 128>}, {pipeline_mode = #tpu.pipeline_mode<synchronous>, transform_indices = @transform_2, window_bounds = array<i64: 1, 128>}, {transform_indices = @transform_3, window_bounds = array<i64: 2048, 128>}]} {
    %c0 = arith.constant 0 : index
    %c0_0 = arith.constant 0 : index
    %0 = vector.load %arg1[%c0, %c0_0] : memref<2048x16xbf16, #tpu.memory_space<vmem>>, vector<2048x16xbf16>
    %c0_1 = arith.constant 0 : index
    %c0_2 = arith.constant 0 : index
    %1 = vector.load %arg2[%c0_1, %c0_2] : memref<16x128xbf16, #tpu.memory_space<vmem>>, vector<16x128xbf16>
    %cst = arith.constant dense<0.000000e+00> : vector<2048x128xf32>
    %2 = tpu.matmul %0, %1, %cst {dimension_numbers = #tpu.dot_dimension_numbers<[1], [0], [0], [1], [0, 0, 1, 1], [], []>} : vector<2048x16xbf16>, vector<16x128xbf16>, vector<2048x128xf32> -> vector<2048x128xf32>
    %c0_3 = arith.constant 0 : index
    %c0_4 = arith.constant 0 : index
    %3 = vector.load %arg3[%c0_3, %c0_4] : memref<1x128xf32, #tpu.memory_space<vmem>>, vector<1x128xf32>
    %4 = vector.broadcast %3 : vector<1x128xf32> to vector<2048x128xf32>
    %5 = arith.addf %2, %4 : vector<2048x128xf32>
    %cst_5 = arith.constant 0.000000e+00 : f32
    %6 = vector.broadcast %cst_5 : f32 to vector<2048x128xf32>
    %7 = arith.cmpf oge, %5, %6 : vector<2048x128xf32>
    %cst_6 = arith.constant 2.000000e-01 : f32
    %8 = vector.broadcast %cst_6 : f32 to vector<2048x128xf32>
    %9 = arith.mulf %8, %5 : vector<2048x128xf32>
    %10 = arith.select %7, %5, %9 : vector<2048x128xi1>, vector<2048x128xf32>
    %11 = arith.truncf %10 : vector<2048x128xf32> to vector<2048x128xbf16>
    %c0_7 = arith.constant 0 : index
    %c0_8 = arith.constant 0 : index
    %12 = vector.load %arg4[%c0_7, %c0_8] : memref<2048x128xbf16, #tpu.memory_space<vmem>>, vector<2048x128xbf16>
    tpu.vector_store %arg4[%c0_7, %c0_8], %11 {strides = array<i32>} : memref<2048x128xbf16, #tpu.memory_space<vmem>>, vector<2048x128xbf16>,
    return
  }
  func.func @transform_0(%arg0: i32) -> (i32, i32) {
    %c0_i32 = arith.constant 0 : i32
    %c0_i32_0 = arith.constant 0 : i32
    return %arg0, %c0_i32 : i32, i32
  }
  func.func @transform_1(%arg0: i32) -> (i32, i32) {
    %c0_i32 = arith.constant 0 : i32
    %c0_i32_0 = arith.constant 0 : i32
    %c0_i32_1 = arith.constant 0 : i32
    return %c0_i32, %c0_i32_0 : i32, i32
  }
  func.func @transform_2(%arg0: i32) -> (i32, i32) {
    %c0_i32 = arith.constant 0 : i32
    %c0_i32_0 = arith.constant 0 : i32
    %c0_i32_1 = arith.constant 0 : i32
    return %c0_i32, %c0_i32_0 : i32, i32
  }
  func.func @transform_3(%arg0: i32) -> (i32, i32) {
    %c0_i32 = arith.constant 0 : i32
    %c0_i32_0 = arith.constant 0 : i32
    return %arg0, %c0_i32 : i32, i32
  }
}

module attributes {stable_mosaic.version = 11 : i64} {
  func.func @_mm_bn_lrelu_kernel(%arg0: i32, %arg1: memref<512x256xbf16, #tpu.memory_space<vmem>>, %arg2: memref<256x128xbf16, #tpu.memory_space<vmem>>, %arg3: memref<1x128xf32, #tpu.memory_space<vmem>>, %arg4: memref<1x128xf32, #tpu.memory_space<vmem>>, %arg5: memref<512x128xbf16, #tpu.memory_space<vmem>>) attributes {dimension_semantics = [#tpu.dimension_semantics<arbitrary>], iteration_bounds = array<i64: 1>, scalar_prefetch = 0 : i64, scratch_operands = 0 : i64, tpu.core_type = #tpu.core_type<tc>, window_params = [{pipeline_mode = #tpu.pipeline_mode<synchronous>, transform_indices = @transform_0, window_bounds = array<i64: 512, 256>}, {pipeline_mode = #tpu.pipeline_mode<synchronous>, transform_indices = @transform_1, window_bounds = array<i64: 256, 128>}, {pipeline_mode = #tpu.pipeline_mode<synchronous>, transform_indices = @transform_2, window_bounds = array<i64: 1, 128>}, {pipeline_mode = #tpu.pipeline_mode<synchronous>, transform_indices = @transform_3, window_bounds = array<i64: 1, 128>}, {pipeline_mode = #tpu.pipeline_mode<synchronous>, transform_indices = @transform_4, window_bounds = array<i64: 512, 128>}]} {
    %c0 = arith.constant 0 : index
    %c0_0 = arith.constant 0 : index
    %0 = vector.load %arg1[%c0, %c0_0] : memref<512x256xbf16, #tpu.memory_space<vmem>>, vector<512x256xbf16>
    %c0_1 = arith.constant 0 : index
    %c0_2 = arith.constant 0 : index
    %1 = vector.load %arg2[%c0_1, %c0_2] : memref<256x128xbf16, #tpu.memory_space<vmem>>, vector<256x128xbf16>
    %cst = arith.constant dense<0.000000e+00> : vector<512x128xf32>
    %2 = tpu.matmul %0, %1, %cst {dimension_numbers = #tpu.dot_dimension_numbers<[1], [0], [0], [1], [0, 0, 1, 1], [], []>} : vector<512x256xbf16>, vector<256x128xbf16>, vector<512x128xf32> -> vector<512x128xf32>
    %c0_3 = arith.constant 0 : index
    %c0_4 = arith.constant 0 : index
    %3 = vector.load %arg3[%c0_3, %c0_4] : memref<1x128xf32, #tpu.memory_space<vmem>>, vector<1x128xf32>
    %c0_5 = arith.constant 0 : index
    %c0_6 = arith.constant 0 : index
    %4 = vector.load %arg4[%c0_5, %c0_6] : memref<1x128xf32, #tpu.memory_space<vmem>>, vector<1x128xf32>
    %cst_7 = arith.constant 1.000000e+00 : f32
    %5 = vector.broadcast %cst_7 : f32 to vector<1x512xf32>
    %cst_8 = arith.constant dense<0.000000e+00> : vector<1x128xf32>
    %6 = tpu.matmul %5, %2, %cst_8 {dimension_numbers = #tpu.dot_dimension_numbers<[1], [0], [0], [1], [0, 0, 1, 1], [], []>} : vector<1x512xf32>, vector<512x128xf32>, vector<1x128xf32> -> vector<1x128xf32>
    %7 = arith.mulf %2, %2 : vector<512x128xf32>
    %cst_9 = arith.constant dense<0.000000e+00> : vector<1x128xf32>
    %8 = tpu.matmul %5, %7, %cst_9 {dimension_numbers = #tpu.dot_dimension_numbers<[1], [0], [0], [1], [0, 0, 1, 1], [], []>} : vector<1x512xf32>, vector<512x128xf32>, vector<1x128xf32> -> vector<1x128xf32>
    %cst_10 = arith.constant 0.001953125 : f32
    %9 = vector.broadcast %cst_10 : f32 to vector<1x128xf32>
    %10 = arith.mulf %6, %9 : vector<1x128xf32>
    %cst_11 = arith.constant 0.001953125 : f32
    %11 = vector.broadcast %cst_11 : f32 to vector<1x128xf32>
    %12 = arith.mulf %8, %11 : vector<1x128xf32>
    %13 = arith.mulf %10, %10 : vector<1x128xf32>
    %14 = arith.subf %12, %13 : vector<1x128xf32>
    %cst_12 = arith.constant 0.000000e+00 : f32
    %15 = vector.broadcast %cst_12 : f32 to vector<1x128xf32>
    %16 = arith.maximumf %14, %15 : vector<1x128xf32>
    %cst_13 = arith.constant 9.99999974E-6 : f32
    %17 = vector.broadcast %cst_13 : f32 to vector<1x128xf32>
    %18 = arith.addf %16, %17 : vector<1x128xf32>
    %19 = math.rsqrt %18 : vector<1x128xf32>
    %20 = vector.broadcast %10 : vector<1x128xf32> to vector<512x128xf32>
    %21 = arith.subf %2, %20 : vector<512x128xf32>
    %22 = arith.mulf %19, %3 : vector<1x128xf32>
    %23 = vector.broadcast %22 : vector<1x128xf32> to vector<512x128xf32>
    %24 = arith.mulf %21, %23 : vector<512x128xf32>
    %25 = vector.broadcast %4 : vector<1x128xf32> to vector<512x128xf32>
    %26 = arith.addf %24, %25 : vector<512x128xf32>
    %cst_14 = arith.constant 0.000000e+00 : f32
    %27 = vector.broadcast %cst_14 : f32 to vector<512x128xf32>
    %28 = arith.cmpf oge, %26, %27 : vector<512x128xf32>
    %cst_15 = arith.constant 2.000000e-01 : f32
    %29 = vector.broadcast %cst_15 : f32 to vector<512x128xf32>
    %30 = arith.mulf %29, %26 : vector<512x128xf32>
    %31 = arith.select %28, %26, %30 : vector<512x128xi1>, vector<512x128xf32>
    %32 = arith.truncf %31 : vector<512x128xf32> to vector<512x128xbf16>
    %c0_16 = arith.constant 0 : index
    %c0_17 = arith.constant 0 : index
    %33 = vector.load %arg5[%c0_16, %c0_17] : memref<512x128xbf16, #tpu.memory_space<vmem>>, vector<512x128xbf16>
    tpu.vector_store %arg5[%c0_16, %c0_17], %32 {strides = array<i32>} : memref<512x128xbf16, #tpu.memory_space<vmem>>, vector<512x128xbf16>,
    return
  }
  func.func @transform_0(%arg0: i32) -> (i32, i32) {
    %c0_i32 = arith.constant 0 : i32
    %c0_i32_0 = arith.constant 0 : i32
    %c0_i32_1 = arith.constant 0 : i32
    return %c0_i32, %c0_i32_0 : i32, i32
  }
  func.func @transform_1(%arg0: i32) -> (i32, i32) {
    %c0_i32 = arith.constant 0 : i32
    %c0_i32_0 = arith.constant 0 : i32
    %c0_i32_1 = arith.constant 0 : i32
    return %c0_i32, %c0_i32_0 : i32, i32
  }
  func.func @transform_2(%arg0: i32) -> (i32, i32) {
    %c0_i32 = arith.constant 0 : i32
    %c0_i32_0 = arith.constant 0 : i32
    %c0_i32_1 = arith.constant 0 : i32
    return %c0_i32, %c0_i32_0 : i32, i32
  }
  func.func @transform_3(%arg0: i32) -> (i32, i32) {
    %c0_i32 = arith.constant 0 : i32
    %c0_i32_0 = arith.constant 0 : i32
    %c0_i32_1 = arith.constant 0 : i32
    return %c0_i32, %c0_i32_0 : i32, i32
  }
  func.func @transform_4(%arg0: i32) -> (i32, i32) {
    %c0_i32 = arith.constant 0 : i32
    %c0_i32_0 = arith.constant 0 : i32
    %c0_i32_1 = arith.constant 0 : i32
    return %c0_i32, %c0_i32_0 : i32, i32
  }
}

module attributes {stable_mosaic.version = 11 : i64} {
  func.func @_mm_bn_lrelu_kernel(%arg0: i32, %arg1: memref<128x512xbf16, #tpu.memory_space<vmem>>, %arg2: memref<512x128xbf16, #tpu.memory_space<vmem>>, %arg3: memref<1x128xf32, #tpu.memory_space<vmem>>, %arg4: memref<1x128xf32, #tpu.memory_space<vmem>>, %arg5: memref<128x128xbf16, #tpu.memory_space<vmem>>) attributes {dimension_semantics = [#tpu.dimension_semantics<arbitrary>], iteration_bounds = array<i64: 1>, scalar_prefetch = 0 : i64, scratch_operands = 0 : i64, tpu.core_type = #tpu.core_type<tc>, window_params = [{pipeline_mode = #tpu.pipeline_mode<synchronous>, transform_indices = @transform_0, window_bounds = array<i64: 128, 512>}, {pipeline_mode = #tpu.pipeline_mode<synchronous>, transform_indices = @transform_1, window_bounds = array<i64: 512, 128>}, {pipeline_mode = #tpu.pipeline_mode<synchronous>, transform_indices = @transform_2, window_bounds = array<i64: 1, 128>}, {pipeline_mode = #tpu.pipeline_mode<synchronous>, transform_indices = @transform_3, window_bounds = array<i64: 1, 128>}, {pipeline_mode = #tpu.pipeline_mode<synchronous>, transform_indices = @transform_4, window_bounds = array<i64: 128, 128>}]} {
    %c0 = arith.constant 0 : index
    %c0_0 = arith.constant 0 : index
    %0 = vector.load %arg1[%c0, %c0_0] : memref<128x512xbf16, #tpu.memory_space<vmem>>, vector<128x512xbf16>
    %c0_1 = arith.constant 0 : index
    %c0_2 = arith.constant 0 : index
    %1 = vector.load %arg2[%c0_1, %c0_2] : memref<512x128xbf16, #tpu.memory_space<vmem>>, vector<512x128xbf16>
    %cst = arith.constant dense<0.000000e+00> : vector<128x128xf32>
    %2 = tpu.matmul %0, %1, %cst {dimension_numbers = #tpu.dot_dimension_numbers<[1], [0], [0], [1], [0, 0, 1, 1], [], []>} : vector<128x512xbf16>, vector<512x128xbf16>, vector<128x128xf32> -> vector<128x128xf32>
    %c0_3 = arith.constant 0 : index
    %c0_4 = arith.constant 0 : index
    %3 = vector.load %arg3[%c0_3, %c0_4] : memref<1x128xf32, #tpu.memory_space<vmem>>, vector<1x128xf32>
    %c0_5 = arith.constant 0 : index
    %c0_6 = arith.constant 0 : index
    %4 = vector.load %arg4[%c0_5, %c0_6] : memref<1x128xf32, #tpu.memory_space<vmem>>, vector<1x128xf32>
    %cst_7 = arith.constant 1.000000e+00 : f32
    %5 = vector.broadcast %cst_7 : f32 to vector<1x128xf32>
    %cst_8 = arith.constant dense<0.000000e+00> : vector<1x128xf32>
    %6 = tpu.matmul %5, %2, %cst_8 {dimension_numbers = #tpu.dot_dimension_numbers<[1], [0], [0], [1], [0, 0, 1, 1], [], []>} : vector<1x128xf32>, vector<128x128xf32>, vector<1x128xf32> -> vector<1x128xf32>
    %7 = arith.mulf %2, %2 : vector<128x128xf32>
    %cst_9 = arith.constant dense<0.000000e+00> : vector<1x128xf32>
    %8 = tpu.matmul %5, %7, %cst_9 {dimension_numbers = #tpu.dot_dimension_numbers<[1], [0], [0], [1], [0, 0, 1, 1], [], []>} : vector<1x128xf32>, vector<128x128xf32>, vector<1x128xf32> -> vector<1x128xf32>
    %cst_10 = arith.constant 7.812500e-03 : f32
    %9 = vector.broadcast %cst_10 : f32 to vector<1x128xf32>
    %10 = arith.mulf %6, %9 : vector<1x128xf32>
    %cst_11 = arith.constant 7.812500e-03 : f32
    %11 = vector.broadcast %cst_11 : f32 to vector<1x128xf32>
    %12 = arith.mulf %8, %11 : vector<1x128xf32>
    %13 = arith.mulf %10, %10 : vector<1x128xf32>
    %14 = arith.subf %12, %13 : vector<1x128xf32>
    %cst_12 = arith.constant 0.000000e+00 : f32
    %15 = vector.broadcast %cst_12 : f32 to vector<1x128xf32>
    %16 = arith.maximumf %14, %15 : vector<1x128xf32>
    %cst_13 = arith.constant 9.99999974E-6 : f32
    %17 = vector.broadcast %cst_13 : f32 to vector<1x128xf32>
    %18 = arith.addf %16, %17 : vector<1x128xf32>
    %19 = math.rsqrt %18 : vector<1x128xf32>
    %20 = vector.broadcast %10 : vector<1x128xf32> to vector<128x128xf32>
    %21 = arith.subf %2, %20 : vector<128x128xf32>
    %22 = arith.mulf %19, %3 : vector<1x128xf32>
    %23 = vector.broadcast %22 : vector<1x128xf32> to vector<128x128xf32>
    %24 = arith.mulf %21, %23 : vector<128x128xf32>
    %25 = vector.broadcast %4 : vector<1x128xf32> to vector<128x128xf32>
    %26 = arith.addf %24, %25 : vector<128x128xf32>
    %cst_14 = arith.constant 0.000000e+00 : f32
    %27 = vector.broadcast %cst_14 : f32 to vector<128x128xf32>
    %28 = arith.cmpf oge, %26, %27 : vector<128x128xf32>
    %cst_15 = arith.constant 2.000000e-01 : f32
    %29 = vector.broadcast %cst_15 : f32 to vector<128x128xf32>
    %30 = arith.mulf %29, %26 : vector<128x128xf32>
    %31 = arith.select %28, %26, %30 : vector<128x128xi1>, vector<128x128xf32>
    %32 = arith.truncf %31 : vector<128x128xf32> to vector<128x128xbf16>
    %c0_16 = arith.constant 0 : index
    %c0_17 = arith.constant 0 : index
    %33 = vector.load %arg5[%c0_16, %c0_17] : memref<128x128xbf16, #tpu.memory_space<vmem>>, vector<128x128xbf16>
    tpu.vector_store %arg5[%c0_16, %c0_17], %32 {strides = array<i32>} : memref<128x128xbf16, #tpu.memory_space<vmem>>, vector<128x128xbf16>,
    return
  }
  func.func @transform_0(%arg0: i32) -> (i32, i32) {
    %c0_i32 = arith.constant 0 : i32
    %c0_i32_0 = arith.constant 0 : i32
    %c0_i32_1 = arith.constant 0 : i32
    return %c0_i32, %c0_i32_0 : i32, i32
  }
  func.func @transform_1(%arg0: i32) -> (i32, i32) {
    %c0_i32 = arith.constant 0 : i32
    %c0_i32_0 = arith.constant 0 : i32
    %c0_i32_1 = arith.constant 0 : i32
    return %c0_i32, %c0_i32_0 : i32, i32
  }
  func.func @transform_2(%arg0: i32) -> (i32, i32) {
    %c0_i32 = arith.constant 0 : i32
    %c0_i32_0 = arith.constant 0 : i32
    %c0_i32_1 = arith.constant 0 : i32
    return %c0_i32, %c0_i32_0 : i32, i32
  }
  func.func @transform_3(%arg0: i32) -> (i32, i32) {
    %c0_i32 = arith.constant 0 : i32
    %c0_i32_0 = arith.constant 0 : i32
    %c0_i32_1 = arith.constant 0 : i32
    return %c0_i32, %c0_i32_0 : i32, i32
  }
  func.func @transform_4(%arg0: i32) -> (i32, i32) {
    %c0_i32 = arith.constant 0 : i32
    %c0_i32_0 = arith.constant 0 : i32
    %c0_i32_1 = arith.constant 0 : i32
    return %c0_i32, %c0_i32_0 : i32, i32
  }
}

module attributes {stable_mosaic.version = 11 : i64} {
  func.func @_mm_bn_lrelu_final_kernel(%arg0: i32, %arg1: memref<32x1024xbf16, #tpu.memory_space<vmem>>, %arg2: memref<1024x128xbf16, #tpu.memory_space<vmem>>, %arg3: memref<1x128xf32, #tpu.memory_space<vmem>>, %arg4: memref<1x128xf32, #tpu.memory_space<vmem>>, %arg5: memref<16x128x128xbf16, #tpu.memory_space<vmem>>, %arg6: memref<1x128xf32, #tpu.memory_space<vmem>>, %arg7: memref<2x128xf32, #tpu.memory_space<vmem>>, %arg8: memref<32x128xbf16, #tpu.memory_space<vmem>>) attributes {dimension_semantics = [#tpu.dimension_semantics<arbitrary>], iteration_bounds = array<i64: 1>, scalar_prefetch = 0 : i64, scratch_operands = 1 : i64, tpu.core_type = #tpu.core_type<tc>, window_params = [{pipeline_mode = #tpu.pipeline_mode<synchronous>, transform_indices = @transform_0, window_bounds = array<i64: 32, 1024>}, {pipeline_mode = #tpu.pipeline_mode<synchronous>, transform_indices = @transform_1, window_bounds = array<i64: 1024, 128>}, {pipeline_mode = #tpu.pipeline_mode<synchronous>, transform_indices = @transform_2, window_bounds = array<i64: 1, 128>}, {pipeline_mode = #tpu.pipeline_mode<synchronous>, transform_indices = @transform_3, window_bounds = array<i64: 1, 128>}, {pipeline_mode = #tpu.pipeline_mode<synchronous>, transform_indices = @transform_4, window_bounds = array<i64: 16, 128, 128>}, {pipeline_mode = #tpu.pipeline_mode<synchronous>, transform_indices = @transform_5, window_bounds = array<i64: 1, 128>}, {pipeline_mode = #tpu.pipeline_mode<synchronous>, transform_indices = @transform_6, window_bounds = array<i64: 2, 128>}]} {
    %c0 = arith.constant 0 : index
    %c0_0 = arith.constant 0 : index
    %0 = vector.load %arg1[%c0, %c0_0] : memref<32x1024xbf16, #tpu.memory_space<vmem>>, vector<32x1024xbf16>
    %c0_1 = arith.constant 0 : index
    %c0_2 = arith.constant 0 : index
    %1 = vector.load %arg2[%c0_1, %c0_2] : memref<1024x128xbf16, #tpu.memory_space<vmem>>, vector<1024x128xbf16>
    %cst = arith.constant dense<0.000000e+00> : vector<32x128xf32>
    %2 = tpu.matmul %0, %1, %cst {dimension_numbers = #tpu.dot_dimension_numbers<[1], [0], [0], [1], [0, 0, 1, 1], [], []>} : vector<32x1024xbf16>, vector<1024x128xbf16>, vector<32x128xf32> -> vector<32x128xf32>
    %c0_3 = arith.constant 0 : index
    %c0_4 = arith.constant 0 : index
    %3 = vector.load %arg3[%c0_3, %c0_4] : memref<1x128xf32, #tpu.memory_space<vmem>>, vector<1x128xf32>
    %c0_5 = arith.constant 0 : index
    %c0_6 = arith.constant 0 : index
    %4 = vector.load %arg4[%c0_5, %c0_6] : memref<1x128xf32, #tpu.memory_space<vmem>>, vector<1x128xf32>
    %cst_7 = arith.constant 1.000000e+00 : f32
    %5 = vector.broadcast %cst_7 : f32 to vector<1x32xf32>
    %cst_8 = arith.constant dense<0.000000e+00> : vector<1x128xf32>
    %6 = tpu.matmul %5, %2, %cst_8 {dimension_numbers = #tpu.dot_dimension_numbers<[1], [0], [0], [1], [0, 0, 1, 1], [], []>} : vector<1x32xf32>, vector<32x128xf32>, vector<1x128xf32> -> vector<1x128xf32>
    %7 = arith.mulf %2, %2 : vector<32x128xf32>
    %cst_9 = arith.constant dense<0.000000e+00> : vector<1x128xf32>
    %8 = tpu.matmul %5, %7, %cst_9 {dimension_numbers = #tpu.dot_dimension_numbers<[1], [0], [0], [1], [0, 0, 1, 1], [], []>} : vector<1x32xf32>, vector<32x128xf32>, vector<1x128xf32> -> vector<1x128xf32>
    %cst_10 = arith.constant 3.125000e-02 : f32
    %9 = vector.broadcast %cst_10 : f32 to vector<1x128xf32>
    %10 = arith.mulf %6, %9 : vector<1x128xf32>
    %cst_11 = arith.constant 3.125000e-02 : f32
    %11 = vector.broadcast %cst_11 : f32 to vector<1x128xf32>
    %12 = arith.mulf %8, %11 : vector<1x128xf32>
    %13 = arith.mulf %10, %10 : vector<1x128xf32>
    %14 = arith.subf %12, %13 : vector<1x128xf32>
    %cst_12 = arith.constant 0.000000e+00 : f32
    %15 = vector.broadcast %cst_12 : f32 to vector<1x128xf32>
    %16 = arith.maximumf %14, %15 : vector<1x128xf32>
    %cst_13 = arith.constant 9.99999974E-6 : f32
    %17 = vector.broadcast %cst_13 : f32 to vector<1x128xf32>
    %18 = arith.addf %16, %17 : vector<1x128xf32>
    %19 = math.rsqrt %18 : vector<1x128xf32>
    %20 = vector.broadcast %10 : vector<1x128xf32> to vector<32x128xf32>
    %21 = arith.subf %2, %20 : vector<32x128xf32>
    %22 = arith.mulf %19, %3 : vector<1x128xf32>
    %23 = vector.broadcast %22 : vector<1x128xf32> to vector<32x128xf32>
    %24 = arith.mulf %21, %23 : vector<32x128xf32>
    %25 = vector.broadcast %4 : vector<1x128xf32> to vector<32x128xf32>
    %26 = arith.addf %24, %25 : vector<32x128xf32>
    %cst_14 = arith.constant 0.000000e+00 : f32
    %27 = vector.broadcast %cst_14 : f32 to vector<32x128xf32>
    %28 = arith.cmpf oge, %26, %27 : vector<32x128xf32>
    %cst_15 = arith.constant 2.000000e-01 : f32
    %29 = vector.broadcast %cst_15 : f32 to vector<32x128xf32>
    %30 = arith.mulf %29, %26 : vector<32x128xf32>
    %31 = arith.select %28, %26, %30 : vector<32x128xi1>, vector<32x128xf32>
    %32 = arith.truncf %31 : vector<32x128xf32> to vector<32x128xbf16>
    %c0_16 = arith.constant 0 : index
    %c0_17 = arith.constant 0 : index
    %33 = vector.load %arg8[%c0_16, %c0_17] : memref<32x128xbf16, #tpu.memory_space<vmem>>, vector<32x128xbf16>
    tpu.vector_store %arg8[%c0_16, %c0_17], %32 {strides = array<i32>} : memref<32x128xbf16, #tpu.memory_space<vmem>>, vector<32x128xbf16>,
    %c0_18 = arith.constant 0 : index
    %c0_19 = arith.constant 0 : index
    %34 = vector.load %arg6[%c0_18, %c0_19] : memref<1x128xf32, #tpu.memory_space<vmem>>, vector<1x128xf32>
    %c0_20 = arith.constant 0 : index
    %c0_21 = arith.constant 0 : index
    %35 = vector.load %arg6[%c0_20, %c0_21] : memref<1x128xf32, #tpu.memory_space<vmem>>, vector<1x128xf32>
    %c0_22 = arith.constant 0 : index
    %c0_23 = arith.constant 0 : index
    %c0_24 = arith.constant 0 : index
    %36 = vector.load %arg5[%c0_22, %c0_23, %c0_24] : memref<16x128x128xbf16, #tpu.memory_space<vmem>>, vector<1x128x128xbf16>
    %37 = vector.shape_cast %36 : vector<1x128x128xbf16> to vector<128x128xbf16>
    %c0_25 = arith.constant 0 : index
    %c0_26 = arith.constant 0 : index
    %38 = vector.load %arg8[%c0_25, %c0_26] : memref<32x128xbf16, #tpu.memory_space<vmem>>, vector<1x128xbf16>
    %cst_27 = arith.constant dense<0.000000e+00> : vector<1x128xf32>
    %39 = tpu.matmul %38, %37, %cst_27 {dimension_numbers = #tpu.dot_dimension_numbers<[1], [0], [0], [1], [0, 0, 1, 1], [], []>} : vector<1x128xbf16>, vector<128x128xbf16>, vector<1x128xf32> -> vector<1x128xf32>
    %40 = arith.addf %34, %39 : vector<1x128xf32>
    %c16 = arith.constant 16 : index
    %c0_28 = arith.constant 0 : index
    %41 = vector.load %arg8[%c16, %c0_28] : memref<32x128xbf16, #tpu.memory_space<vmem>>, vector<1x128xbf16>
    %cst_29 = arith.constant dense<0.000000e+00> : vector<1x128xf32>
    %42 = tpu.matmul %41, %37, %cst_29 {dimension_numbers = #tpu.dot_dimension_numbers<[1], [0], [0], [1], [0, 0, 1, 1], [], []>} : vector<1x128xbf16>, vector<128x128xbf16>, vector<1x128xf32> -> vector<1x128xf32>
    %43 = arith.addf %35, %42 : vector<1x128xf32>
    %c1 = arith.constant 1 : index
    %c0_30 = arith.constant 0 : index
    %c0_31 = arith.constant 0 : index
    %44 = vector.load %arg5[%c1, %c0_30, %c0_31] : memref<16x128x128xbf16, #tpu.memory_space<vmem>>, vector<1x128x128xbf16>
    %45 = vector.shape_cast %44 : vector<1x128x128xbf16> to vector<128x128xbf16>
    %c1_32 = arith.constant 1 : index
    %c0_33 = arith.constant 0 : index
    %46 = vector.load %arg8[%c1_32, %c0_33] : memref<32x128xbf16, #tpu.memory_space<vmem>>, vector<1x128xbf16>
    %cst_34 = arith.constant dense<0.000000e+00> : vector<1x128xf32>
    %47 = tpu.matmul %46, %45, %cst_34 {dimension_numbers = #tpu.dot_dimension_numbers<[1], [0], [0], [1], [0, 0, 1, 1], [], []>} : vector<1x128xbf16>, vector<128x128xbf16>, vector<1x128xf32> -> vector<1x128xf32>
    %48 = arith.addf %40, %47 : vector<1x128xf32>
    %c17 = arith.constant 17 : index
    %c0_35 = arith.constant 0 : index
    %49 = vector.load %arg8[%c17, %c0_35] : memref<32x128xbf16, #tpu.memory_space<vmem>>, vector<1x128xbf16>
    %cst_36 = arith.constant dense<0.000000e+00> : vector<1x128xf32>
    %50 = tpu.matmul %49, %45, %cst_36 {dimension_numbers = #tpu.dot_dimension_numbers<[1], [0], [0], [1], [0, 0, 1, 1], [], []>} : vector<1x128xbf16>, vector<128x128xbf16>, vector<1x128xf32> -> vector<1x128xf32>
    %51 = arith.addf %43, %50 : vector<1x128xf32>
    %c2 = arith.constant 2 : index
    %c0_37 = arith.constant 0 : index
    %c0_38 = arith.constant 0 : index
    %52 = vector.load %arg5[%c2, %c0_37, %c0_38] : memref<16x128x128xbf16, #tpu.memory_space<vmem>>, vector<1x128x128xbf16>
    %53 = vector.shape_cast %52 : vector<1x128x128xbf16> to vector<128x128xbf16>
    %c2_39 = arith.constant 2 : index
    %c0_40 = arith.constant 0 : index
    %54 = vector.load %arg8[%c2_39, %c0_40] : memref<32x128xbf16, #tpu.memory_space<vmem>>, vector<1x128xbf16>
    %cst_41 = arith.constant dense<0.000000e+00> : vector<1x128xf32>
    %55 = tpu.matmul %54, %53, %cst_41 {dimension_numbers = #tpu.dot_dimension_numbers<[1], [0], [0], [1], [0, 0, 1, 1], [], []>} : vector<1x128xbf16>, vector<128x128xbf16>, vector<1x128xf32> -> vector<1x128xf32>
    %56 = arith.addf %48, %55 : vector<1x128xf32>
    %c18 = arith.constant 18 : index
    %c0_42 = arith.constant 0 : index
    %57 = vector.load %arg8[%c18, %c0_42] : memref<32x128xbf16, #tpu.memory_space<vmem>>, vector<1x128xbf16>
    %cst_43 = arith.constant dense<0.000000e+00> : vector<1x128xf32>
    %58 = tpu.matmul %57, %53, %cst_43 {dimension_numbers = #tpu.dot_dimension_numbers<[1], [0], [0], [1], [0, 0, 1, 1], [], []>} : vector<1x128xbf16>, vector<128x128xbf16>, vector<1x128xf32> -> vector<1x128xf32>
    %59 = arith.addf %51, %58 : vector<1x128xf32>
    %c3 = arith.constant 3 : index
    %c0_44 = arith.constant 0 : index
    %c0_45 = arith.constant 0 : index
    %60 = vector.load %arg5[%c3, %c0_44, %c0_45] : memref<16x128x128xbf16, #tpu.memory_space<vmem>>, vector<1x128x128xbf16>
    %61 = vector.shape_cast %60 : vector<1x128x128xbf16> to vector<128x128xbf16>
    %c3_46 = arith.constant 3 : index
    %c0_47 = arith.constant 0 : index
    %62 = vector.load %arg8[%c3_46, %c0_47] : memref<32x128xbf16, #tpu.memory_space<vmem>>, vector<1x128xbf16>
    %cst_48 = arith.constant dense<0.000000e+00> : vector<1x128xf32>
    %63 = tpu.matmul %62, %61, %cst_48 {dimension_numbers = #tpu.dot_dimension_numbers<[1], [0], [0], [1], [0, 0, 1, 1], [], []>} : vector<1x128xbf16>, vector<128x128xbf16>, vector<1x128xf32> -> vector<1x128xf32>
    %64 = arith.addf %56, %63 : vector<1x128xf32>
    %c19 = arith.constant 19 : index
    %c0_49 = arith.constant 0 : index
    %65 = vector.load %arg8[%c19, %c0_49] : memref<32x128xbf16, #tpu.memory_space<vmem>>, vector<1x128xbf16>
    %cst_50 = arith.constant dense<0.000000e+00> : vector<1x128xf32>
    %66 = tpu.matmul %65, %61, %cst_50 {dimension_numbers = #tpu.dot_dimension_numbers<[1], [0], [0], [1], [0, 0, 1, 1], [], []>} : vector<1x128xbf16>, vector<128x128xbf16>, vector<1x128xf32> -> vector<1x128xf32>
    %67 = arith.addf %59, %66 : vector<1x128xf32>
    %c4 = arith.constant 4 : index
    %c0_51 = arith.constant 0 : index
    %c0_52 = arith.constant 0 : index
    %68 = vector.load %arg5[%c4, %c0_51, %c0_52] : memref<16x128x128xbf16, #tpu.memory_space<vmem>>, vector<1x128x128xbf16>
    %69 = vector.shape_cast %68 : vector<1x128x128xbf16> to vector<128x128xbf16>
    %c4_53 = arith.constant 4 : index
    %c0_54 = arith.constant 0 : index
    %70 = vector.load %arg8[%c4_53, %c0_54] : memref<32x128xbf16, #tpu.memory_space<vmem>>, vector<1x128xbf16>
    %cst_55 = arith.constant dense<0.000000e+00> : vector<1x128xf32>
    %71 = tpu.matmul %70, %69, %cst_55 {dimension_numbers = #tpu.dot_dimension_numbers<[1], [0], [0], [1], [0, 0, 1, 1], [], []>} : vector<1x128xbf16>, vector<128x128xbf16>, vector<1x128xf32> -> vector<1x128xf32>
    %72 = arith.addf %64, %71 : vector<1x128xf32>
    %c20 = arith.constant 20 : index
    %c0_56 = arith.constant 0 : index
    %73 = vector.load %arg8[%c20, %c0_56] : memref<32x128xbf16, #tpu.memory_space<vmem>>, vector<1x128xbf16>
    %cst_57 = arith.constant dense<0.000000e+00> : vector<1x128xf32>
    %74 = tpu.matmul %73, %69, %cst_57 {dimension_numbers = #tpu.dot_dimension_numbers<[1], [0], [0], [1], [0, 0, 1, 1], [], []>} : vector<1x128xbf16>, vector<128x128xbf16>, vector<1x128xf32> -> vector<1x128xf32>
    %75 = arith.addf %67, %74 : vector<1x128xf32>
    %c5 = arith.constant 5 : index
    %c0_58 = arith.constant 0 : index
    %c0_59 = arith.constant 0 : index
    %76 = vector.load %arg5[%c5, %c0_58, %c0_59] : memref<16x128x128xbf16, #tpu.memory_space<vmem>>, vector<1x128x128xbf16>
    %77 = vector.shape_cast %76 : vector<1x128x128xbf16> to vector<128x128xbf16>
    %c5_60 = arith.constant 5 : index
    %c0_61 = arith.constant 0 : index
    %78 = vector.load %arg8[%c5_60, %c0_61] : memref<32x128xbf16, #tpu.memory_space<vmem>>, vector<1x128xbf16>
    %cst_62 = arith.constant dense<0.000000e+00> : vector<1x128xf32>
    %79 = tpu.matmul %78, %77, %cst_62 {dimension_numbers = #tpu.dot_dimension_numbers<[1], [0], [0], [1], [0, 0, 1, 1], [], []>} : vector<1x128xbf16>, vector<128x128xbf16>, vector<1x128xf32> -> vector<1x128xf32>
    %80 = arith.addf %72, %79 : vector<1x128xf32>
    %c21 = arith.constant 21 : index
    %c0_63 = arith.constant 0 : index
    %81 = vector.load %arg8[%c21, %c0_63] : memref<32x128xbf16, #tpu.memory_space<vmem>>, vector<1x128xbf16>
    %cst_64 = arith.constant dense<0.000000e+00> : vector<1x128xf32>
    %82 = tpu.matmul %81, %77, %cst_64 {dimension_numbers = #tpu.dot_dimension_numbers<[1], [0], [0], [1], [0, 0, 1, 1], [], []>} : vector<1x128xbf16>, vector<128x128xbf16>, vector<1x128xf32> -> vector<1x128xf32>
    %83 = arith.addf %75, %82 : vector<1x128xf32>
    %c6 = arith.constant 6 : index
    %c0_65 = arith.constant 0 : index
    %c0_66 = arith.constant 0 : index
    %84 = vector.load %arg5[%c6, %c0_65, %c0_66] : memref<16x128x128xbf16, #tpu.memory_space<vmem>>, vector<1x128x128xbf16>
    %85 = vector.shape_cast %84 : vector<1x128x128xbf16> to vector<128x128xbf16>
    %c6_67 = arith.constant 6 : index
    %c0_68 = arith.constant 0 : index
    %86 = vector.load %arg8[%c6_67, %c0_68] : memref<32x128xbf16, #tpu.memory_space<vmem>>, vector<1x128xbf16>
    %cst_69 = arith.constant dense<0.000000e+00> : vector<1x128xf32>
    %87 = tpu.matmul %86, %85, %cst_69 {dimension_numbers = #tpu.dot_dimension_numbers<[1], [0], [0], [1], [0, 0, 1, 1], [], []>} : vector<1x128xbf16>, vector<128x128xbf16>, vector<1x128xf32> -> vector<1x128xf32>
    %88 = arith.addf %80, %87 : vector<1x128xf32>
    %c22 = arith.constant 22 : index
    %c0_70 = arith.constant 0 : index
    %89 = vector.load %arg8[%c22, %c0_70] : memref<32x128xbf16, #tpu.memory_space<vmem>>, vector<1x128xbf16>
    %cst_71 = arith.constant dense<0.000000e+00> : vector<1x128xf32>
    %90 = tpu.matmul %89, %85, %cst_71 {dimension_numbers = #tpu.dot_dimension_numbers<[1], [0], [0], [1], [0, 0, 1, 1], [], []>} : vector<1x128xbf16>, vector<128x128xbf16>, vector<1x128xf32> -> vector<1x128xf32>
    %91 = arith.addf %83, %90 : vector<1x128xf32>
    %c7 = arith.constant 7 : index
    %c0_72 = arith.constant 0 : index
    %c0_73 = arith.constant 0 : index
    %92 = vector.load %arg5[%c7, %c0_72, %c0_73] : memref<16x128x128xbf16, #tpu.memory_space<vmem>>, vector<1x128x128xbf16>
    %93 = vector.shape_cast %92 : vector<1x128x128xbf16> to vector<128x128xbf16>
    %c7_74 = arith.constant 7 : index
    %c0_75 = arith.constant 0 : index
    %94 = vector.load %arg8[%c7_74, %c0_75] : memref<32x128xbf16, #tpu.memory_space<vmem>>, vector<1x128xbf16>
    %cst_76 = arith.constant dense<0.000000e+00> : vector<1x128xf32>
    %95 = tpu.matmul %94, %93, %cst_76 {dimension_numbers = #tpu.dot_dimension_numbers<[1], [0], [0], [1], [0, 0, 1, 1], [], []>} : vector<1x128xbf16>, vector<128x128xbf16>, vector<1x128xf32> -> vector<1x128xf32>
    %96 = arith.addf %88, %95 : vector<1x128xf32>
    %c23 = arith.constant 23 : index
    %c0_77 = arith.constant 0 : index
    %97 = vector.load %arg8[%c23, %c0_77] : memref<32x128xbf16, #tpu.memory_space<vmem>>, vector<1x128xbf16>
    %cst_78 = arith.constant dense<0.000000e+00> : vector<1x128xf32>
    %98 = tpu.matmul %97, %93, %cst_78 {dimension_numbers = #tpu.dot_dimension_numbers<[1], [0], [0], [1], [0, 0, 1, 1], [], []>} : vector<1x128xbf16>, vector<128x128xbf16>, vector<1x128xf32> -> vector<1x128xf32>
    %99 = arith.addf %91, %98 : vector<1x128xf32>
    %c8 = arith.constant 8 : index
    %c0_79 = arith.constant 0 : index
    %c0_80 = arith.constant 0 : index
    %100 = vector.load %arg5[%c8, %c0_79, %c0_80] : memref<16x128x128xbf16, #tpu.memory_space<vmem>>, vector<1x128x128xbf16>
    %101 = vector.shape_cast %100 : vector<1x128x128xbf16> to vector<128x128xbf16>
    %c8_81 = arith.constant 8 : index
    %c0_82 = arith.constant 0 : index
    %102 = vector.load %arg8[%c8_81, %c0_82] : memref<32x128xbf16, #tpu.memory_space<vmem>>, vector<1x128xbf16>
    %cst_83 = arith.constant dense<0.000000e+00> : vector<1x128xf32>
    %103 = tpu.matmul %102, %101, %cst_83 {dimension_numbers = #tpu.dot_dimension_numbers<[1], [0], [0], [1], [0, 0, 1, 1], [], []>} : vector<1x128xbf16>, vector<128x128xbf16>, vector<1x128xf32> -> vector<1x128xf32>
    %104 = arith.addf %96, %103 : vector<1x128xf32>
    %c24 = arith.constant 24 : index
    %c0_84 = arith.constant 0 : index
    %105 = vector.load %arg8[%c24, %c0_84] : memref<32x128xbf16, #tpu.memory_space<vmem>>, vector<1x128xbf16>
    %cst_85 = arith.constant dense<0.000000e+00> : vector<1x128xf32>
    %106 = tpu.matmul %105, %101, %cst_85 {dimension_numbers = #tpu.dot_dimension_numbers<[1], [0], [0], [1], [0, 0, 1, 1], [], []>} : vector<1x128xbf16>, vector<128x128xbf16>, vector<1x128xf32> -> vector<1x128xf32>
    %107 = arith.addf %99, %106 : vector<1x128xf32>
    %c9 = arith.constant 9 : index
    %c0_86 = arith.constant 0 : index
    %c0_87 = arith.constant 0 : index
    %108 = vector.load %arg5[%c9, %c0_86, %c0_87] : memref<16x128x128xbf16, #tpu.memory_space<vmem>>, vector<1x128x128xbf16>
    %109 = vector.shape_cast %108 : vector<1x128x128xbf16> to vector<128x128xbf16>
    %c9_88 = arith.constant 9 : index
    %c0_89 = arith.constant 0 : index
    %110 = vector.load %arg8[%c9_88, %c0_89] : memref<32x128xbf16, #tpu.memory_space<vmem>>, vector<1x128xbf16>
    %cst_90 = arith.constant dense<0.000000e+00> : vector<1x128xf32>
    %111 = tpu.matmul %110, %109, %cst_90 {dimension_numbers = #tpu.dot_dimension_numbers<[1], [0], [0], [1], [0, 0, 1, 1], [], []>} : vector<1x128xbf16>, vector<128x128xbf16>, vector<1x128xf32> -> vector<1x128xf32>
    %112 = arith.addf %104, %111 : vector<1x128xf32>
    %c25 = arith.constant 25 : index
    %c0_91 = arith.constant 0 : index
    %113 = vector.load %arg8[%c25, %c0_91] : memref<32x128xbf16, #tpu.memory_space<vmem>>, vector<1x128xbf16>
    %cst_92 = arith.constant dense<0.000000e+00> : vector<1x128xf32>
    %114 = tpu.matmul %113, %109, %cst_92 {dimension_numbers = #tpu.dot_dimension_numbers<[1], [0], [0], [1], [0, 0, 1, 1], [], []>} : vector<1x128xbf16>, vector<128x128xbf16>, vector<1x128xf32> -> vector<1x128xf32>
    %115 = arith.addf %107, %114 : vector<1x128xf32>
    %c10 = arith.constant 10 : index
    %c0_93 = arith.constant 0 : index
    %c0_94 = arith.constant 0 : index
    %116 = vector.load %arg5[%c10, %c0_93, %c0_94] : memref<16x128x128xbf16, #tpu.memory_space<vmem>>, vector<1x128x128xbf16>
    %117 = vector.shape_cast %116 : vector<1x128x128xbf16> to vector<128x128xbf16>
    %c10_95 = arith.constant 10 : index
    %c0_96 = arith.constant 0 : index
    %118 = vector.load %arg8[%c10_95, %c0_96] : memref<32x128xbf16, #tpu.memory_space<vmem>>, vector<1x128xbf16>
    %cst_97 = arith.constant dense<0.000000e+00> : vector<1x128xf32>
    %119 = tpu.matmul %118, %117, %cst_97 {dimension_numbers = #tpu.dot_dimension_numbers<[1], [0], [0], [1], [0, 0, 1, 1], [], []>} : vector<1x128xbf16>, vector<128x128xbf16>, vector<1x128xf32> -> vector<1x128xf32>
    %120 = arith.addf %112, %119 : vector<1x128xf32>
    %c26 = arith.constant 26 : index
    %c0_98 = arith.constant 0 : index
    %121 = vector.load %arg8[%c26, %c0_98] : memref<32x128xbf16, #tpu.memory_space<vmem>>, vector<1x128xbf16>
    %cst_99 = arith.constant dense<0.000000e+00> : vector<1x128xf32>
    %122 = tpu.matmul %121, %117, %cst_99 {dimension_numbers = #tpu.dot_dimension_numbers<[1], [0], [0], [1], [0, 0, 1, 1], [], []>} : vector<1x128xbf16>, vector<128x128xbf16>, vector<1x128xf32> -> vector<1x128xf32>
    %123 = arith.addf %115, %122 : vector<1x128xf32>
    %c11 = arith.constant 11 : index
    %c0_100 = arith.constant 0 : index
    %c0_101 = arith.constant 0 : index
    %124 = vector.load %arg5[%c11, %c0_100, %c0_101] : memref<16x128x128xbf16, #tpu.memory_space<vmem>>, vector<1x128x128xbf16>
    %125 = vector.shape_cast %124 : vector<1x128x128xbf16> to vector<128x128xbf16>
    %c11_102 = arith.constant 11 : index
    %c0_103 = arith.constant 0 : index
    %126 = vector.load %arg8[%c11_102, %c0_103] : memref<32x128xbf16, #tpu.memory_space<vmem>>, vector<1x128xbf16>
    %cst_104 = arith.constant dense<0.000000e+00> : vector<1x128xf32>
    %127 = tpu.matmul %126, %125, %cst_104 {dimension_numbers = #tpu.dot_dimension_numbers<[1], [0], [0], [1], [0, 0, 1, 1], [], []>} : vector<1x128xbf16>, vector<128x128xbf16>, vector<1x128xf32> -> vector<1x128xf32>
    %128 = arith.addf %120, %127 : vector<1x128xf32>
    %c27 = arith.constant 27 : index
    %c0_105 = arith.constant 0 : index
    %129 = vector.load %arg8[%c27, %c0_105] : memref<32x128xbf16, #tpu.memory_space<vmem>>, vector<1x128xbf16>
    %cst_106 = arith.constant dense<0.000000e+00> : vector<1x128xf32>
    %130 = tpu.matmul %129, %125, %cst_106 {dimension_numbers = #tpu.dot_dimension_numbers<[1], [0], [0], [1], [0, 0, 1, 1], [], []>} : vector<1x128xbf16>, vector<128x128xbf16>, vector<1x128xf32> -> vector<1x128xf32>
    %131 = arith.addf %123, %130 : vector<1x128xf32>
    %c12 = arith.constant 12 : index
    %c0_107 = arith.constant 0 : index
    %c0_108 = arith.constant 0 : index
    %132 = vector.load %arg5[%c12, %c0_107, %c0_108] : memref<16x128x128xbf16, #tpu.memory_space<vmem>>, vector<1x128x128xbf16>
    %133 = vector.shape_cast %132 : vector<1x128x128xbf16> to vector<128x128xbf16>
    %c12_109 = arith.constant 12 : index
    %c0_110 = arith.constant 0 : index
    %134 = vector.load %arg8[%c12_109, %c0_110] : memref<32x128xbf16, #tpu.memory_space<vmem>>, vector<1x128xbf16>
    %cst_111 = arith.constant dense<0.000000e+00> : vector<1x128xf32>
    %135 = tpu.matmul %134, %133, %cst_111 {dimension_numbers = #tpu.dot_dimension_numbers<[1], [0], [0], [1], [0, 0, 1, 1], [], []>} : vector<1x128xbf16>, vector<128x128xbf16>, vector<1x128xf32> -> vector<1x128xf32>
    %136 = arith.addf %128, %135 : vector<1x128xf32>
    %c28 = arith.constant 28 : index
    %c0_112 = arith.constant 0 : index
    %137 = vector.load %arg8[%c28, %c0_112] : memref<32x128xbf16, #tpu.memory_space<vmem>>, vector<1x128xbf16>
    %cst_113 = arith.constant dense<0.000000e+00> : vector<1x128xf32>
    %138 = tpu.matmul %137, %133, %cst_113 {dimension_numbers = #tpu.dot_dimension_numbers<[1], [0], [0], [1], [0, 0, 1, 1], [], []>} : vector<1x128xbf16>, vector<128x128xbf16>, vector<1x128xf32> -> vector<1x128xf32>
    %139 = arith.addf %131, %138 : vector<1x128xf32>
    %c13 = arith.constant 13 : index
    %c0_114 = arith.constant 0 : index
    %c0_115 = arith.constant 0 : index
    %140 = vector.load %arg5[%c13, %c0_114, %c0_115] : memref<16x128x128xbf16, #tpu.memory_space<vmem>>, vector<1x128x128xbf16>
    %141 = vector.shape_cast %140 : vector<1x128x128xbf16> to vector<128x128xbf16>
    %c13_116 = arith.constant 13 : index
    %c0_117 = arith.constant 0 : index
    %142 = vector.load %arg8[%c13_116, %c0_117] : memref<32x128xbf16, #tpu.memory_space<vmem>>, vector<1x128xbf16>
    %cst_118 = arith.constant dense<0.000000e+00> : vector<1x128xf32>
    %143 = tpu.matmul %142, %141, %cst_118 {dimension_numbers = #tpu.dot_dimension_numbers<[1], [0], [0], [1], [0, 0, 1, 1], [], []>} : vector<1x128xbf16>, vector<128x128xbf16>, vector<1x128xf32> -> vector<1x128xf32>
    %144 = arith.addf %136, %143 : vector<1x128xf32>
    %c29 = arith.constant 29 : index
    %c0_119 = arith.constant 0 : index
    %145 = vector.load %arg8[%c29, %c0_119] : memref<32x128xbf16, #tpu.memory_space<vmem>>, vector<1x128xbf16>
    %cst_120 = arith.constant dense<0.000000e+00> : vector<1x128xf32>
    %146 = tpu.matmul %145, %141, %cst_120 {dimension_numbers = #tpu.dot_dimension_numbers<[1], [0], [0], [1], [0, 0, 1, 1], [], []>} : vector<1x128xbf16>, vector<128x128xbf16>, vector<1x128xf32> -> vector<1x128xf32>
    %147 = arith.addf %139, %146 : vector<1x128xf32>
    %c14 = arith.constant 14 : index
    %c0_121 = arith.constant 0 : index
    %c0_122 = arith.constant 0 : index
    %148 = vector.load %arg5[%c14, %c0_121, %c0_122] : memref<16x128x128xbf16, #tpu.memory_space<vmem>>, vector<1x128x128xbf16>
    %149 = vector.shape_cast %148 : vector<1x128x128xbf16> to vector<128x128xbf16>
    %c14_123 = arith.constant 14 : index
    %c0_124 = arith.constant 0 : index
    %150 = vector.load %arg8[%c14_123, %c0_124] : memref<32x128xbf16, #tpu.memory_space<vmem>>, vector<1x128xbf16>
    %cst_125 = arith.constant dense<0.000000e+00> : vector<1x128xf32>
    %151 = tpu.matmul %150, %149, %cst_125 {dimension_numbers = #tpu.dot_dimension_numbers<[1], [0], [0], [1], [0, 0, 1, 1], [], []>} : vector<1x128xbf16>, vector<128x128xbf16>, vector<1x128xf32> -> vector<1x128xf32>
    %152 = arith.addf %144, %151 : vector<1x128xf32>
    %c30 = arith.constant 30 : index
    %c0_126 = arith.constant 0 : index
    %153 = vector.load %arg8[%c30, %c0_126] : memref<32x128xbf16, #tpu.memory_space<vmem>>, vector<1x128xbf16>
    %cst_127 = arith.constant dense<0.000000e+00> : vector<1x128xf32>
    %154 = tpu.matmul %153, %149, %cst_127 {dimension_numbers = #tpu.dot_dimension_numbers<[1], [0], [0], [1], [0, 0, 1, 1], [], []>} : vector<1x128xbf16>, vector<128x128xbf16>, vector<1x128xf32> -> vector<1x128xf32>
    %155 = arith.addf %147, %154 : vector<1x128xf32>
    %c15 = arith.constant 15 : index
    %c0_128 = arith.constant 0 : index
    %c0_129 = arith.constant 0 : index
    %156 = vector.load %arg5[%c15, %c0_128, %c0_129] : memref<16x128x128xbf16, #tpu.memory_space<vmem>>, vector<1x128x128xbf16>
    %157 = vector.shape_cast %156 : vector<1x128x128xbf16> to vector<128x128xbf16>
    %c15_130 = arith.constant 15 : index
    %c0_131 = arith.constant 0 : index
    %158 = vector.load %arg8[%c15_130, %c0_131] : memref<32x128xbf16, #tpu.memory_space<vmem>>, vector<1x128xbf16>
    %cst_132 = arith.constant dense<0.000000e+00> : vector<1x128xf32>
    %159 = tpu.matmul %158, %157, %cst_132 {dimension_numbers = #tpu.dot_dimension_numbers<[1], [0], [0], [1], [0, 0, 1, 1], [], []>} : vector<1x128xbf16>, vector<128x128xbf16>, vector<1x128xf32> -> vector<1x128xf32>
    %160 = arith.addf %152, %159 : vector<1x128xf32>
    %c31 = arith.constant 31 : index
    %c0_133 = arith.constant 0 : index
    %161 = vector.load %arg8[%c31, %c0_133] : memref<32x128xbf16, #tpu.memory_space<vmem>>, vector<1x128xbf16>
    %cst_134 = arith.constant dense<0.000000e+00> : vector<1x128xf32>
    %162 = tpu.matmul %161, %157, %cst_134 {dimension_numbers = #tpu.dot_dimension_numbers<[1], [0], [0], [1], [0, 0, 1, 1], [], []>} : vector<1x128xbf16>, vector<128x128xbf16>, vector<1x128xf32> -> vector<1x128xf32>
    %163 = arith.addf %155, %162 : vector<1x128xf32>
    %c0_135 = arith.constant 0 : index
    %c0_136 = arith.constant 0 : index
    %164 = vector.load %arg7[%c0_135, %c0_136] : memref<2x128xf32, #tpu.memory_space<vmem>>, vector<1x128xf32>
    tpu.vector_store %arg7[%c0_135, %c0_136], %160 {strides = array<i32>} : memref<2x128xf32, #tpu.memory_space<vmem>>, vector<1x128xf32>,
    %c1_137 = arith.constant 1 : index
    %c0_138 = arith.constant 0 : index
    %165 = vector.load %arg7[%c1_137, %c0_138] : memref<2x128xf32, #tpu.memory_space<vmem>>, vector<1x128xf32>
    tpu.vector_store %arg7[%c1_137, %c0_138], %163 {strides = array<i32>} : memref<2x128xf32, #tpu.memory_space<vmem>>, vector<1x128xf32>,
    return
  }
  func.func @transform_0(%arg0: i32) -> (i32, i32) {
    %c0_i32 = arith.constant 0 : i32
    %c0_i32_0 = arith.constant 0 : i32
    %c0_i32_1 = arith.constant 0 : i32
    return %c0_i32, %c0_i32_0 : i32, i32
  }
  func.func @transform_1(%arg0: i32) -> (i32, i32) {
    %c0_i32 = arith.constant 0 : i32
    %c0_i32_0 = arith.constant 0 : i32
    %c0_i32_1 = arith.constant 0 : i32
    return %c0_i32, %c0_i32_0 : i32, i32
  }
  func.func @transform_2(%arg0: i32) -> (i32, i32) {
    %c0_i32 = arith.constant 0 : i32
    %c0_i32_0 = arith.constant 0 : i32
    %c0_i32_1 = arith.constant 0 : i32
    return %c0_i32, %c0_i32_0 : i32, i32
  }
  func.func @transform_3(%arg0: i32) -> (i32, i32) {
    %c0_i32 = arith.constant 0 : i32
    %c0_i32_0 = arith.constant 0 : i32
    %c0_i32_1 = arith.constant 0 : i32
    return %c0_i32, %c0_i32_0 : i32, i32
  }
  func.func @transform_4(%arg0: i32) -> (i32, i32, i32) {
    %c0_i32 = arith.constant 0 : i32
    %c0_i32_0 = arith.constant 0 : i32
    %c0_i32_1 = arith.constant 0 : i32
    %c0_i32_2 = arith.constant 0 : i32
    return %c0_i32, %c0_i32_0, %c0_i32_1 : i32, i32, i32
  }
  func.func @transform_5(%arg0: i32) -> (i32, i32) {
    %c0_i32 = arith.constant 0 : i32
    %c0_i32_0 = arith.constant 0 : i32
    %c0_i32_1 = arith.constant 0 : i32
    return %c0_i32, %c0_i32_0 : i32, i32
  }
  func.func @transform_6(%arg0: i32) -> (i32, i32) {
    %c0_i32 = arith.constant 0 : i32
    %c0_i32_0 = arith.constant 0 : i32
    %c0_i32_1 = arith.constant 0 : i32
    return %c0_i32, %c0_i32_0 : i32, i32
  }
}

</mosaic_0001>

<llo_original>
// kernel: encoder_v3_pallas.4
$region0: #{encoder_v3_pallas.4}
  #allocation0 [shape = 'u32[]', space=smem, size = 0x4, offset = 0x4, fixed_abs, tag = 'smem constant byte address 0x4 - core index']
  #allocation1 [shape = 'u32[144,128]{1,0:T(1,128)}', space=vmem, size = 0x12000, scoped, tag = 'internal scratch']
  %s0 = inlined_call_operand.vmem [shape: bf16[2048,16], index: 0, kind: input, shape index: {}]
  %s1 = inlined_call_operand.hbm [shape: bf16[16,128], index: 1, kind: input, shape index: {}]
  %s2 = inlined_call_operand.hbm [shape: f32[1,128], index: 2, kind: input, shape index: {}]
  %s3 = inlined_call_operand.vmem [shape: bf16[2048,128], index: 3, kind: output, shape index: {}]
  %s4 = sld [smem:[#allocation0]]
  $region30: #{encoder_v3_pallas.4} parent=0
    _
  %s6 = ssub.s32 1, %s4
  %s7 = scalar_select 0, %s6, %s4
  $region1: #{encoder_v3_pallas.4} parent=0
    #allocation2 [shape = 'u8[4096]{0}', space=vmem, size = 0x1000, scoped, tag = 'input window, operand 1, single buffered']
    #allocation3 [shape = 's32[1]{0}', space=sflag, size = 0x4, scoped, tag = 'scoped memory for encoder_v3_pallas.4']
    #allocation4 [shape = 'u8[512]{0}', space=vmem, size = 0x400, scoped, tag = 'input window, operand 2, single buffered']
    #allocation5 [shape = 's32[1]{0}', space=sflag, size = 0x4, scoped, tag = 'scoped memory for encoder_v3_pallas.4']
    %8 = vsyncpa [#allocation3], 0
    %9 = vsyncpa [#allocation5], 0
    // Predicated region
    $region2: #{encoder_v3_pallas.4} parent=1 // pred_check
      _
    $region3: #{encoder_v3_pallas.4} parent=1 // pred_check_branch
      %11 = sbr.rel (0) target = $region5
    $region4: #{encoder_v3_pallas.4} parent=1 // pred_region
      _
    $region5: #{encoder_v3_pallas.4} parent=1 // pred_fallthru
      _
    // Predicated region
    $region6: #{encoder_v3_pallas.4} parent=1 // pred_check
      _
    $region7: #{encoder_v3_pallas.4} parent=1 // pred_check_branch
      %13 = sbr.rel (0) target = $region9
    $region8: #{encoder_v3_pallas.4} parent=1 // pred_region
      %s15 = ssub.s32 128, 128
      %16 = vsyncadd [#allocation3], %s15
      %s17 = sshll.u32 [#allocation2], 4
      %s18 = int_to_ptr.vmem [resolvable:$true] %s17
      %23 = dma.hbm_to_vmem [thread:$0]  %s1, 128, %s18, [#allocation3], 64, 64, 4
    $region9: #{encoder_v3_pallas.4} parent=1 // pred_fallthru
      _
    // Predicated region
    $region10: #{encoder_v3_pallas.4} parent=1 // pred_check
      _
    $region11: #{encoder_v3_pallas.4} parent=1 // pred_check_branch
      %25 = sbr.rel (0) target = $region13
    $region12: #{encoder_v3_pallas.4} parent=1 // pred_region
      %s27 = ssub.s32 16, 16
      %28 = vsyncadd [#allocation5], %s27
      %s30 = sshll.u32 [#allocation4], 4
      %s31 = int_to_ptr.vmem [resolvable:$true] %s30
      %33 = dma.hbm_to_vmem [thread:$0]  %s2, 16, %s31, [#allocation5]
    $region13: #{encoder_v3_pallas.4} parent=1 // pred_fallthru
      _
    // Predicated region
    $region14: #{encoder_v3_pallas.4} parent=1 // pred_check
      _
    $region15: #{encoder_v3_pallas.4} parent=1 // pred_check_branch
      %35 = sbr.rel (0) target = $region17
    $region16: #{encoder_v3_pallas.4} parent=1 // pred_region
      %36 = dma.done [#allocation3], 128
    $region17: #{encoder_v3_pallas.4} parent=1 // pred_fallthru
      _
    // Predicated region
    $region18: #{encoder_v3_pallas.4} parent=1 // pred_check
      _
    $region19: #{encoder_v3_pallas.4} parent=1 // pred_check_branch
      %38 = sbr.rel (0) target = $region21
    $region20: #{encoder_v3_pallas.4} parent=1 // pred_region
      %39 = dma.done [#allocation5], 16
    $region21: #{encoder_v3_pallas.4} parent=1 // pred_fallthru
      _
    %v41 = vld [vmem:[%s0] sm:$0xf]
    %v42 = vld [vmem:[%s0 + $0x4] sm:$0xf]
    %v43 = vld [vmem:[%s0 + $0x8] sm:$0xf]
    %v44 = vld [vmem:[%s0 + $0xc] sm:$0xf]
    %v45 = vld [vmem:[%s0 + $0x10] sm:$0xf]
    %v46 = vld [vmem:[%s0 + $0x14] sm:$0xf]
    %v47 = vld [vmem:[%s0 + $0x18] sm:$0xf]
    %v48 = vld [vmem:[%s0 + $0x1c] sm:$0xf]
    %v49 = vld [vmem:[%s0 + $0x20] sm:$0xf]
    %v50 = vld [vmem:[%s0 + $0x24] sm:$0xf]
    %v51 = vld [vmem:[%s0 + $0x28] sm:$0xf]
    %v52 = vld [vmem:[%s0 + $0x2c] sm:$0xf]
    %v53 = vld [vmem:[%s0 + $0x30] sm:$0xf]
    %v54 = vld [vmem:[%s0 + $0x34] sm:$0xf]
    %v55 = vld [vmem:[%s0 + $0x38] sm:$0xf]
    %v56 = vld [vmem:[%s0 + $0x3c] sm:$0xf]
    %v57 = vld [vmem:[%s0 + $0x40] sm:$0xf]
    %v58 = vld [vmem:[%s0 + $0x44] sm:$0xf]
    %v59 = vld [vmem:[%s0 + $0x48] sm:$0xf]
    %v60 = vld [vmem:[%s0 + $0x4c] sm:$0xf]
    %v61 = vld [vmem:[%s0 + $0x50] sm:$0xf]
    %v62 = vld [vmem:[%s0 + $0x54] sm:$0xf]
    %v63 = vld [vmem:[%s0 + $0x58] sm:$0xf]
    %v64 = vld [vmem:[%s0 + $0x5c] sm:$0xf]
    %v65 = vld [vmem:[%s0 + $0x60] sm:$0xf]
    %v66 = vld [vmem:[%s0 + $0x64] sm:$0xf]
    %v67 = vld [vmem:[%s0 + $0x68] sm:$0xf]
    %v68 = vld [vmem:[%s0 + $0x6c] sm:$0xf]
    %v69 = vld [vmem:[%s0 + $0x70] sm:$0xf]
    %v70 = vld [vmem:[%s0 + $0x74] sm:$0xf]
    %v71 = vld [vmem:[%s0 + $0x78] sm:$0xf]
    %v72 = vld [vmem:[%s0 + $0x7c] sm:$0xf]
    %v73 = vld [vmem:[%s0 + $0x80] sm:$0xf]
    %v74 = vld [vmem:[%s0 + $0x84] sm:$0xf]
    %v75 = vld [vmem:[%s0 + $0x88] sm:$0xf]
    %v76 = vld [vmem:[%s0 + $0x8c] sm:$0xf]
    %v77 = vld [vmem:[%s0 + $0x90] sm:$0xf]
    %v78 = vld [vmem:[%s0 + $0x94] sm:$0xf]
    %v79 = vld [vmem:[%s0 + $0x98] sm:$0xf]
    %v80 = vld [vmem:[%s0 + $0x9c] sm:$0xf]
    %v81 = vld [vmem:[%s0 + $0xa0] sm:$0xf]
    %v82 = vld [vmem:[%s0 + $0xa4] sm:$0xf]
    %v83 = vld [vmem:[%s0 + $0xa8] sm:$0xf]
    %v84 = vld [vmem:[%s0 + $0xac] sm:$0xf]
    %v85 = vld [vmem:[%s0 + $0xb0] sm:$0xf]
    %v86 = vld [vmem:[%s0 + $0xb4] sm:$0xf]
    %v87 = vld [vmem:[%s0 + $0xb8] sm:$0xf]
    %v88 = vld [vmem:[%s0 + $0xbc] sm:$0xf]
    %v89 = vld [vmem:[%s0 + $0xc0] sm:$0xf]
    %v90 = vld [vmem:[%s0 + $0xc4] sm:$0xf]
    %v91 = vld [vmem:[%s0 + $0xc8] sm:$0xf]
    %v92 = vld [vmem:[%s0 + $0xcc] sm:$0xf]
    %v93 = vld [vmem:[%s0 + $0xd0] sm:$0xf]
    %v94 = vld [vmem:[%s0 + $0xd4] sm:$0xf]
    %v95 = vld [vmem:[%s0 + $0xd8] sm:$0xf]
    %v96 = vld [vmem:[%s0 + $0xdc] sm:$0xf]
    %v97 = vld [vmem:[%s0 + $0xe0] sm:$0xf]
    %v98 = vld [vmem:[%s0 + $0xe4] sm:$0xf]
    %v99 = vld [vmem:[%s0 + $0xe8] sm:$0xf]
    %v100 = vld [vmem:[%s0 + $0xec] sm:$0xf]
    %v101 = vld [vmem:[%s0 + $0xf0] sm:$0xf]
    %v102 = vld [vmem:[%s0 + $0xf4] sm:$0xf]
    %v103 = vld [vmem:[%s0 + $0xf8] sm:$0xf]
    %v104 = vld [vmem:[%s0 + $0xfc] sm:$0xf]
    %v105 = vld [vmem:[%s0 + $0x100] sm:$0xf]
    %v106 = vld [vmem:[%s0 + $0x104] sm:$0xf]
    %v107 = vld [vmem:[%s0 + $0x108] sm:$0xf]
    %v108 = vld [vmem:[%s0 + $0x10c] sm:$0xf]
    %v109 = vld [vmem:[%s0 + $0x110] sm:$0xf]
    %v110 = vld [vmem:[%s0 + $0x114] sm:$0xf]
    %v111 = vld [vmem:[%s0 + $0x118] sm:$0xf]
    %v112 = vld [vmem:[%s0 + $0x11c] sm:$0xf]
    %v113 = vld [vmem:[%s0 + $0x120] sm:$0xf]
    %v114 = vld [vmem:[%s0 + $0x124] sm:$0xf]
    %v115 = vld [vmem:[%s0 + $0x128] sm:$0xf]
    %v116 = vld [vmem:[%s0 + $0x12c] sm:$0xf]
    %v117 = vld [vmem:[%s0 + $0x130] sm:$0xf]
    %v118 = vld [vmem:[%s0 + $0x134] sm:$0xf]
    %v119 = vld [vmem:[%s0 + $0x138] sm:$0xf]
    %v120 = vld [vmem:[%s0 + $0x13c] sm:$0xf]
    %v121 = vld [vmem:[%s0 + $0x140] sm:$0xf]
    %v122 = vld [vmem:[%s0 + $0x144] sm:$0xf]
    %v123 = vld [vmem:[%s0 + $0x148] sm:$0xf]
    %v124 = vld [vmem:[%s0 + $0x14c] sm:$0xf]
    %v125 = vld [vmem:[%s0 + $0x150] sm:$0xf]
    %v126 = vld [vmem:[%s0 + $0x154] sm:$0xf]
    %v127 = vld [vmem:[%s0 + $0x158] sm:$0xf]
    %v128 = vld [vmem:[%s0 + $0x15c] sm:$0xf]
    %v129 = vld [vmem:[%s0 + $0x160] sm:$0xf]
    %v130 = vld [vmem:[%s0 + $0x164] sm:$0xf]
    %v131 = vld [vmem:[%s0 + $0x168] sm:$0xf]
    %v132 = vld [vmem:[%s0 + $0x16c] sm:$0xf]
    %v133 = vld [vmem:[%s0 + $0x170] sm:$0xf]
    %v134 = vld [vmem:[%s0 + $0x174] sm:$0xf]
    %v135 = vld [vmem:[%s0 + $0x178] sm:$0xf]
    %v136 = vld [vmem:[%s0 + $0x17c] sm:$0xf]
    %v137 = vld [vmem:[%s0 + $0x180] sm:$0xf]
    %v138 = vld [vmem:[%s0 + $0x184] sm:$0xf]
    %v139 = vld [vmem:[%s0 + $0x188] sm:$0xf]
    %v140 = vld [vmem:[%s0 + $0x18c] sm:$0xf]
    %v141 = vld [vmem:[%s0 + $0x190] sm:$0xf]
    %v142 = vld [vmem:[%s0 + $0x194] sm:$0xf]
    %v143 = vld [vmem:[%s0 + $0x198] sm:$0xf]
    %v144 = vld [vmem:[%s0 + $0x19c] sm:$0xf]
    %v145 = vld [vmem:[%s0 + $0x1a0] sm:$0xf]
    %v146 = vld [vmem:[%s0 + $0x1a4] sm:$0xf]
    %v147 = vld [vmem:[%s0 + $0x1a8] sm:$0xf]
    %v148 = vld [vmem:[%s0 + $0x1ac] sm:$0xf]
    %v149 = vld [vmem:[%s0 + $0x1b0] sm:$0xf]
    %v150 = vld [vmem:[%s0 + $0x1b4] sm:$0xf]
    %v151 = vld [vmem:[%s0 + $0x1b8] sm:$0xf]
    %v152 = vld [vmem:[%s0 + $0x1bc] sm:$0xf]
    %v153 = vld [vmem:[%s0 + $0x1c0] sm:$0xf]
    %v154 = vld [vmem:[%s0 + $0x1c4] sm:$0xf]
    %v155 = vld [vmem:[%s0 + $0x1c8] sm:$0xf]
    %v156 = vld [vmem:[%s0 + $0x1cc] sm:$0xf]
    %v157 = vld [vmem:[%s0 + $0x1d0] sm:$0xf]
    %v158 = vld [vmem:[%s0 + $0x1d4] sm:$0xf]
    %v159 = vld [vmem:[%s0 + $0x1d8] sm:$0xf]
    %v160 = vld [vmem:[%s0 + $0x1dc] sm:$0xf]
    %v161 = vld [vmem:[%s0 + $0x1e0] sm:$0xf]
    %v162 = vld [vmem:[%s0 + $0x1e4] sm:$0xf]
    %v163 = vld [vmem:[%s0 + $0x1e8] sm:$0xf]
    %v164 = vld [vmem:[%s0 + $0x1ec] sm:$0xf]
    %v165 = vld [vmem:[%s0 + $0x1f0] sm:$0xf]
    %v166 = vld [vmem:[%s0 + $0x1f4] sm:$0xf]
    %v167 = vld [vmem:[%s0 + $0x1f8] sm:$0xf]
    %v168 = vld [vmem:[%s0 + $0x1fc] sm:$0xf]
    %v169 = vld [vmem:[%s0 + $0x200] sm:$0xf]
    %v170 = vld [vmem:[%s0 + $0x204] sm:$0xf]
    %v171 = vld [vmem:[%s0 + $0x208] sm:$0xf]
    %v172 = vld [vmem:[%s0 + $0x20c] sm:$0xf]
    %v173 = vld [vmem:[%s0 + $0x210] sm:$0xf]
    %v174 = vld [vmem:[%s0 + $0x214] sm:$0xf]
    %v175 = vld [vmem:[%s0 + $0x218] sm:$0xf]
    %v176 = vld [vmem:[%s0 + $0x21c] sm:$0xf]
    %v177 = vld [vmem:[%s0 + $0x220] sm:$0xf]
    %v178 = vld [vmem:[%s0 + $0x224] sm:$0xf]
    %v179 = vld [vmem:[%s0 + $0x228] sm:$0xf]
    %v180 = vld [vmem:[%s0 + $0x22c] sm:$0xf]
    %v181 = vld [vmem:[%s0 + $0x230] sm:$0xf]
    %v182 = vld [vmem:[%s0 + $0x234] sm:$0xf]
    %v183 = vld [vmem:[%s0 + $0x238] sm:$0xf]
    %v184 = vld [vmem:[%s0 + $0x23c] sm:$0xf]
    %v185 = vld [vmem:[%s0 + $0x240] sm:$0xf]
    %v186 = vld [vmem:[%s0 + $0x244] sm:$0xf]
    %v187 = vld [vmem:[%s0 + $0x248] sm:$0xf]
    %v188 = vld [vmem:[%s0 + $0x24c] sm:$0xf]
    %v189 = vld [vmem:[%s0 + $0x250] sm:$0xf]
    %v190 = vld [vmem:[%s0 + $0x254] sm:$0xf]
    %v191 = vld [vmem:[%s0 + $0x258] sm:$0xf]
    %v192 = vld [vmem:[%s0 + $0x25c] sm:$0xf]
    %v193 = vld [vmem:[%s0 + $0x260] sm:$0xf]
    %v194 = vld [vmem:[%s0 + $0x264] sm:$0xf]
    %v195 = vld [vmem:[%s0 + $0x268] sm:$0xf]
    %v196 = vld [vmem:[%s0 + $0x26c] sm:$0xf]
    %v197 = vld [vmem:[%s0 + $0x270] sm:$0xf]
    %v198 = vld [vmem:[%s0 + $0x274] sm:$0xf]
    %v199 = vld [vmem:[%s0 + $0x278] sm:$0xf]
    %v200 = vld [vmem:[%s0 + $0x27c] sm:$0xf]
    %v201 = vld [vmem:[%s0 + $0x280] sm:$0xf]
    %v202 = vld [vmem:[%s0 + $0x284] sm:$0xf]
    %v203 = vld [vmem:[%s0 + $0x288] sm:$0xf]
    %v204 = vld [vmem:[%s0 + $0x28c] sm:$0xf]
    %v205 = vld [vmem:[%s0 + $0x290] sm:$0xf]
    %v206 = vld [vmem:[%s0 + $0x294] sm:$0xf]
    %v207 = vld [vmem:[%s0 + $0x298] sm:$0xf]
    %v208 = vld [vmem:[%s0 + $0x29c] sm:$0xf]
    %v209 = vld [vmem:[%s0 + $0x2a0] sm:$0xf]
    %v210 = vld [vmem:[%s0 + $0x2a4] sm:$0xf]
    %v211 = vld [vmem:[%s0 + $0x2a8] sm:$0xf]
    %v212 = vld [vmem:[%s0 + $0x2ac] sm:$0xf]
    %v213 = vld [vmem:[%s0 + $0x2b0] sm:$0xf]
    %v214 = vld [vmem:[%s0 + $0x2b4] sm:$0xf]
    %v215 = vld [vmem:[%s0 + $0x2b8] sm:$0xf]
    %v216 = vld [vmem:[%s0 + $0x2bc] sm:$0xf]
    %v217 = vld [vmem:[%s0 + $0x2c0] sm:$0xf]
    %v218 = vld [vmem:[%s0 + $0x2c4] sm:$0xf]
    %v219 = vld [vmem:[%s0 + $0x2c8] sm:$0xf]
    %v220 = vld [vmem:[%s0 + $0x2cc] sm:$0xf]
    %v221 = vld [vmem:[%s0 + $0x2d0] sm:$0xf]
    %v222 = vld [vmem:[%s0 + $0x2d4] sm:$0xf]
    %v223 = vld [vmem:[%s0 + $0x2d8] sm:$0xf]
    %v224 = vld [vmem:[%s0 + $0x2dc] sm:$0xf]
    %v225 = vld [vmem:[%s0 + $0x2e0] sm:$0xf]
    %v226 = vld [vmem:[%s0 + $0x2e4] sm:$0xf]
    %v227 = vld [vmem:[%s0 + $0x2e8] sm:$0xf]
    %v228 = vld [vmem:[%s0 + $0x2ec] sm:$0xf]
    %v229 = vld [vmem:[%s0 + $0x2f0] sm:$0xf]
    %v230 = vld [vmem:[%s0 + $0x2f4] sm:$0xf]
    %v231 = vld [vmem:[%s0 + $0x2f8] sm:$0xf]
    %v232 = vld [vmem:[%s0 + $0x2fc] sm:$0xf]
    %v233 = vld [vmem:[%s0 + $0x300] sm:$0xf]
    %v234 = vld [vmem:[%s0 + $0x304] sm:$0xf]
    %v235 = vld [vmem:[%s0 + $0x308] sm:$0xf]
    %v236 = vld [vmem:[%s0 + $0x30c] sm:$0xf]
    %v237 = vld [vmem:[%s0 + $0x310] sm:$0xf]
    %v238 = vld [vmem:[%s0 + $0x314] sm:$0xf]
    %v239 = vld [vmem:[%s0 + $0x318] sm:$0xf]
    %v240 = vld [vmem:[%s0 + $0x31c] sm:$0xf]
    %v241 = vld [vmem:[%s0 + $0x320] sm:$0xf]
    %v242 = vld [vmem:[%s0 + $0x324] sm:$0xf]
    %v243 = vld [vmem:[%s0 + $0x328] sm:$0xf]
    %v244 = vld [vmem:[%s0 + $0x32c] sm:$0xf]
    %v245 = vld [vmem:[%s0 + $0x330] sm:$0xf]
    %v246 = vld [vmem:[%s0 + $0x334] sm:$0xf]
    %v247 = vld [vmem:[%s0 + $0x338] sm:$0xf]
    %v248 = vld [vmem:[%s0 + $0x33c] sm:$0xf]
    %v249 = vld [vmem:[%s0 + $0x340] sm:$0xf]
    %v250 = vld [vmem:[%s0 + $0x344] sm:$0xf]
    %v251 = vld [vmem:[%s0 + $0x348] sm:$0xf]
    %v252 = vld [vmem:[%s0 + $0x34c] sm:$0xf]
    %v253 = vld [vmem:[%s0 + $0x350] sm:$0xf]
    %v254 = vld [vmem:[%s0 + $0x354] sm:$0xf]
    %v255 = vld [vmem:[%s0 + $0x358] sm:$0xf]
    %v256 = vld [vmem:[%s0 + $0x35c] sm:$0xf]
    %v257 = vld [vmem:[%s0 + $0x360] sm:$0xf]
    %v258 = vld [vmem:[%s0 + $0x364] sm:$0xf]
    %v259 = vld [vmem:[%s0 + $0x368] sm:$0xf]
    %v260 = vld [vmem:[%s0 + $0x36c] sm:$0xf]
    %v261 = vld [vmem:[%s0 + $0x370] sm:$0xf]
    %v262 = vld [vmem:[%s0 + $0x374] sm:$0xf]
    %v263 = vld [vmem:[%s0 + $0x378] sm:$0xf]
    %v264 = vld [vmem:[%s0 + $0x37c] sm:$0xf]
    %v265 = vld [vmem:[%s0 + $0x380] sm:$0xf]
    %v266 = vld [vmem:[%s0 + $0x384] sm:$0xf]
    %v267 = vld [vmem:[%s0 + $0x388] sm:$0xf]
    %v268 = vld [vmem:[%s0 + $0x38c] sm:$0xf]
    %v269 = vld [vmem:[%s0 + $0x390] sm:$0xf]
    %v270 = vld [vmem:[%s0 + $0x394] sm:$0xf]
    %v271 = vld [vmem:[%s0 + $0x398] sm:$0xf]
    %v272 = vld [vmem:[%s0 + $0x39c] sm:$0xf]
    %v273 = vld [vmem:[%s0 + $0x3a0] sm:$0xf]
    %v274 = vld [vmem:[%s0 + $0x3a4] sm:$0xf]
    %v275 = vld [vmem:[%s0 + $0x3a8] sm:$0xf]
    %v276 = vld [vmem:[%s0 + $0x3ac] sm:$0xf]
    %v277 = vld [vmem:[%s0 + $0x3b0] sm:$0xf]
    %v278 = vld [vmem:[%s0 + $0x3b4] sm:$0xf]
    %v279 = vld [vmem:[%s0 + $0x3b8] sm:$0xf]
    %v280 = vld [vmem:[%s0 + $0x3bc] sm:$0xf]
    %v281 = vld [vmem:[%s0 + $0x3c0] sm:$0xf]
    %v282 = vld [vmem:[%s0 + $0x3c4] sm:$0xf]
    %v283 = vld [vmem:[%s0 + $0x3c8] sm:$0xf]
    %v284 = vld [vmem:[%s0 + $0x3cc] sm:$0xf]
    %v285 = vld [vmem:[%s0 + $0x3d0] sm:$0xf]
    %v286 = vld [vmem:[%s0 + $0x3d4] sm:$0xf]
    %v287 = vld [vmem:[%s0 + $0x3d8] sm:$0xf]
    %v288 = vld [vmem:[%s0 + $0x3dc] sm:$0xf]
    %v289 = vld [vmem:[%s0 + $0x3e0] sm:$0xf]
    %v290 = vld [vmem:[%s0 + $0x3e4] sm:$0xf]
    %v291 = vld [vmem:[%s0 + $0x3e8] sm:$0xf]
    %v292 = vld [vmem:[%s0 + $0x3ec] sm:$0xf]
    %v293 = vld [vmem:[%s0 + $0x3f0] sm:$0xf]
    %v294 = vld [vmem:[%s0 + $0x3f4] sm:$0xf]
    %v295 = vld [vmem:[%s0 + $0x3f8] sm:$0xf]
    %v296 = vld [vmem:[%s0 + $0x3fc] sm:$0xf]
    %v297 = vld [vmem:[#allocation2] sm:$0xf]
    %v298 = vld [vmem:[#allocation2 + $0x4] sm:$0xf]
    %v299 = vld [vmem:[#allocation4] sm:$0x1]
    %v301 = vlaneseq
    %v302 = vshrl.u32 %v301, 7
    %v303 = vsub.s32 0, %v302
    %v304 = vrot.slane %v299, %v303
    %v562 = vunpack.c.l.b16 %v41
    %v563 = vunpack.c.l.b16 %v42
    %v564 = vunpack.c.l.b16 %v43
    %v565 = vunpack.c.l.b16 %v44
    %v566 = vunpack.c.l.b16 %v45
    %v567 = vunpack.c.l.b16 %v46
    %v568 = vunpack.c.l.b16 %v47
    %v569 = vunpack.c.l.b16 %v48
    %v570 = vunpack.c.l.b16 %v49
    %v571 = vunpack.c.l.b16 %v50
    %v572 = vunpack.c.l.b16 %v51
    %v573 = vunpack.c.l.b16 %v52
    %v574 = vunpack.c.l.b16 %v53
    %v575 = vunpack.c.l.b16 %v54
    %v576 = vunpack.c.l.b16 %v55
    %v577 = vunpack.c.l.b16 %v56
    %v578 = vunpack.c.l.b16 %v57
    %v579 = vunpack.c.l.b16 %v58
    %v580 = vunpack.c.l.b16 %v59
    %v581 = vunpack.c.l.b16 %v60
    %v582 = vunpack.c.l.b16 %v61
    %v583 = vunpack.c.l.b16 %v62
    %v584 = vunpack.c.l.b16 %v63
    %v585 = vunpack.c.l.b16 %v64
    %v586 = vunpack.c.l.b16 %v65
    %v587 = vunpack.c.l.b16 %v66
    %v588 = vunpack.c.l.b16 %v67
    %v589 = vunpack.c.l.b16 %v68
    %v590 = vunpack.c.l.b16 %v69
    %v591 = vunpack.c.l.b16 %v70
    %v592 = vunpack.c.l.b16 %v71
    %v593 = vunpack.c.l.b16 %v72
    %v594 = vunpack.c.l.b16 %v73
    %v595 = vunpack.c.l.b16 %v74
    %v596 = vunpack.c.l.b16 %v75
    %v597 = vunpack.c.l.b16 %v76
    %v598 = vunpack.c.l.b16 %v77
    %v599 = vunpack.c.l.b16 %v78
    %v600 = vunpack.c.l.b16 %v79
    %v601 = vunpack.c.l.b16 %v80
    %v602 = vunpack.c.l.b16 %v81
    %v603 = vunpack.c.l.b16 %v82
    %v604 = vunpack.c.l.b16 %v83
    %v605 = vunpack.c.l.b16 %v84
    %v606 = vunpack.c.l.b16 %v85
    %v607 = vunpack.c.l.b16 %v86
    %v608 = vunpack.c.l.b16 %v87
    %v609 = vunpack.c.l.b16 %v88
    %v610 = vunpack.c.l.b16 %v89
    %v611 = vunpack.c.l.b16 %v90
    %v612 = vunpack.c.l.b16 %v91
    %v613 = vunpack.c.l.b16 %v92
    %v614 = vunpack.c.l.b16 %v93
    %v615 = vunpack.c.l.b16 %v94
    %v616 = vunpack.c.l.b16 %v95
    %v617 = vunpack.c.l.b16 %v96
    %v618 = vunpack.c.l.b16 %v97
    %v619 = vunpack.c.l.b16 %v98
    %v620 = vunpack.c.l.b16 %v99
    %v621 = vunpack.c.l.b16 %v100
    %v622 = vunpack.c.l.b16 %v101
    %v623 = vunpack.c.l.b16 %v102
    %v624 = vunpack.c.l.b16 %v103
    %v625 = vunpack.c.l.b16 %v104
    %v626 = vunpack.c.l.b16 %v105
    %v627 = vunpack.c.l.b16 %v106
    %v628 = vunpack.c.l.b16 %v107
    %v629 = vunpack.c.l.b16 %v108
    %v630 = vunpack.c.l.b16 %v109
    %v631 = vunpack.c.l.b16 %v110
    %v632 = vunpack.c.l.b16 %v111
    %v633 = vunpack.c.l.b16 %v112
    %v634 = vunpack.c.l.b16 %v113
    %v635 = vunpack.c.l.b16 %v114
    %v636 = vunpack.c.l.b16 %v115
    %v637 = vunpack.c.l.b16 %v116
    %v638 = vunpack.c.l.b16 %v117
    %v639 = vunpack.c.l.b16 %v118
    %v640 = vunpack.c.l.b16 %v119
    %v641 = vunpack.c.l.b16 %v120
    %v642 = vunpack.c.l.b16 %v121
    %v643 = vunpack.c.l.b16 %v122
    %v644 = vunpack.c.l.b16 %v123
    %v645 = vunpack.c.l.b16 %v124
    %v646 = vunpack.c.l.b16 %v125
    %v647 = vunpack.c.l.b16 %v126
    %v648 = vunpack.c.l.b16 %v127
    %v649 = vunpack.c.l.b16 %v128
    %v650 = vunpack.c.l.b16 %v129
    %v651 = vunpack.c.l.b16 %v130
    %v652 = vunpack.c.l.b16 %v131
    %v653 = vunpack.c.l.b16 %v132
    %v654 = vunpack.c.l.b16 %v133
    %v655 = vunpack.c.l.b16 %v134
    %v656 = vunpack.c.l.b16 %v135
    %v657 = vunpack.c.l.b16 %v136
    %v658 = vunpack.c.l.b16 %v137
    %v659 = vunpack.c.l.b16 %v138
    %v660 = vunpack.c.l.b16 %v139
    %v661 = vunpack.c.l.b16 %v140
    %v662 = vunpack.c.l.b16 %v141
    %v663 = vunpack.c.l.b16 %v142
    %v664 = vunpack.c.l.b16 %v143
    %v665 = vunpack.c.l.b16 %v144
    %v666 = vunpack.c.l.b16 %v145
    %v667 = vunpack.c.l.b16 %v146
    %v668 = vunpack.c.l.b16 %v147
    %v669 = vunpack.c.l.b16 %v148
    %v670 = vunpack.c.l.b16 %v149
    %v671 = vunpack.c.l.b16 %v150
    %v672 = vunpack.c.l.b16 %v151
    %v673 = vunpack.c.l.b16 %v152
    %v674 = vunpack.c.l.b16 %v153
    %v675 = vunpack.c.l.b16 %v154
    %v676 = vunpack.c.l.b16 %v155
    %v677 = vunpack.c.l.b16 %v156
    %v678 = vunpack.c.l.b16 %v157
    %v679 = vunpack.c.l.b16 %v158
    %v680 = vunpack.c.l.b16 %v159
    %v681 = vunpack.c.l.b16 %v160
    %v682 = vunpack.c.l.b16 %v161
    %v683 = vunpack.c.l.b16 %v162
    %v684 = vunpack.c.l.b16 %v163
    %v685 = vunpack.c.l.b16 %v164
    %v686 = vunpack.c.l.b16 %v165
    %v687 = vunpack.c.l.b16 %v166
    %v688 = vunpack.c.l.b16 %v167
    %v689 = vunpack.c.l.b16 %v168
    %v690 = vunpack.c.l.b16 %v169
    %v691 = vunpack.c.l.b16 %v170
    %v692 = vunpack.c.l.b16 %v171
    %v693 = vunpack.c.l.b16 %v172
    %v694 = vunpack.c.l.b16 %v173
    %v695 = vunpack.c.l.b16 %v174
    %v696 = vunpack.c.l.b16 %v175
    %v697 = vunpack.c.l.b16 %v176
    %v698 = vunpack.c.l.b16 %v177
    %v699 = vunpack.c.l.b16 %v178
    %v700 = vunpack.c.l.b16 %v179
    %v701 = vunpack.c.l.b16 %v180
    %v702 = vunpack.c.l.b16 %v181
    %v703 = vunpack.c.l.b16 %v182
    %v704 = vunpack.c.l.b16 %v183
    %v705 = vunpack.c.l.b16 %v184
    %v706 = vunpack.c.l.b16 %v185
    %v707 = vunpack.c.l.b16 %v186
    %v708 = vunpack.c.l.b16 %v187
    %v709 = vunpack.c.l.b16 %v188
    %v710 = vunpack.c.l.b16 %v189
    %v711 = vunpack.c.l.b16 %v190
    %v712 = vunpack.c.l.b16 %v191
    %v713 = vunpack.c.l.b16 %v192
    %v714 = vunpack.c.l.b16 %v193
    %v715 = vunpack.c.l.b16 %v194
    %v716 = vunpack.c.l.b16 %v195
    %v717 = vunpack.c.l.b16 %v196
    %v718 = vunpack.c.l.b16 %v197
    %v719 = vunpack.c.l.b16 %v198
    %v720 = vunpack.c.l.b16 %v199
    %v721 = vunpack.c.l.b16 %v200
    %v722 = vunpack.c.l.b16 %v201
    %v723 = vunpack.c.l.b16 %v202
    %v724 = vunpack.c.l.b16 %v203
    %v725 = vunpack.c.l.b16 %v204
    %v726 = vunpack.c.l.b16 %v205
    %v727 = vunpack.c.l.b16 %v206
    %v728 = vunpack.c.l.b16 %v207
    %v729 = vunpack.c.l.b16 %v208
    %v730 = vunpack.c.l.b16 %v209
    %v731 = vunpack.c.l.b16 %v210
    %v732 = vunpack.c.l.b16 %v211
    %v733 = vunpack.c.l.b16 %v212
    %v734 = vunpack.c.l.b16 %v213
    %v735 = vunpack.c.l.b16 %v214
    %v736 = vunpack.c.l.b16 %v215
    %v737 = vunpack.c.l.b16 %v216
    %v738 = vunpack.c.l.b16 %v217
    %v739 = vunpack.c.l.b16 %v218
    %v740 = vunpack.c.l.b16 %v219
    %v741 = vunpack.c.l.b16 %v220
    %v742 = vunpack.c.l.b16 %v221
    %v743 = vunpack.c.l.b16 %v222
    %v744 = vunpack.c.l.b16 %v223
    %v745 = vunpack.c.l.b16 %v224
    %v746 = vunpack.c.l.b16 %v225
    %v747 = vunpack.c.l.b16 %v226
    %v748 = vunpack.c.l.b16 %v227
    %v749 = vunpack.c.l.b16 %v228
    %v750 = vunpack.c.l.b16 %v229
    %v751 = vunpack.c.l.b16 %v230
    %v752 = vunpack.c.l.b16 %v231
    %v753 = vunpack.c.l.b16 %v232
    %v754 = vunpack.c.l.b16 %v233
    %v755 = vunpack.c.l.b16 %v234
    %v756 = vunpack.c.l.b16 %v235
    %v757 = vunpack.c.l.b16 %v236
    %v758 = vunpack.c.l.b16 %v237
    %v759 = vunpack.c.l.b16 %v238
    %v760 = vunpack.c.l.b16 %v239
    %v761 = vunpack.c.l.b16 %v240
    %v762 = vunpack.c.l.b16 %v241
    %v763 = vunpack.c.l.b16 %v242
    %v764 = vunpack.c.l.b16 %v243
    %v765 = vunpack.c.l.b16 %v244
    %v766 = vunpack.c.l.b16 %v245
    %v767 = vunpack.c.l.b16 %v246
    %v768 = vunpack.c.l.b16 %v247
    %v769 = vunpack.c.l.b16 %v248
    %v770 = vunpack.c.l.b16 %v249
    %v771 = vunpack.c.l.b16 %v250
    %v772 = vunpack.c.l.b16 %v251
    %v773 = vunpack.c.l.b16 %v252
    %v774 = vunpack.c.l.b16 %v253
    %v775 = vunpack.c.l.b16 %v254
    %v776 = vunpack.c.l.b16 %v255
    %v777 = vunpack.c.l.b16 %v256
    %v778 = vunpack.c.l.b16 %v257
    %v779 = vunpack.c.l.b16 %v258
    %v780 = vunpack.c.l.b16 %v259
    %v781 = vunpack.c.l.b16 %v260
    %v782 = vunpack.c.l.b16 %v261
    %v783 = vunpack.c.l.b16 %v262
    %v784 = vunpack.c.l.b16 %v263
    %v785 = vunpack.c.l.b16 %v264
    %v786 = vunpack.c.l.b16 %v265
    %v787 = vunpack.c.l.b16 %v266
    %v788 = vunpack.c.l.b16 %v267
    %v789 = vunpack.c.l.b16 %v268
    %v790 = vunpack.c.l.b16 %v269
    %v791 = vunpack.c.l.b16 %v270
    %v792 = vunpack.c.l.b16 %v271
    %v793 = vunpack.c.l.b16 %v272
    %v794 = vunpack.c.l.b16 %v273
    %v795 = vunpack.c.l.b16 %v274
    %v796 = vunpack.c.l.b16 %v275
    %v797 = vunpack.c.l.b16 %v276
    %v798 = vunpack.c.l.b16 %v277
    %v799 = vunpack.c.l.b16 %v278
    %v800 = vunpack.c.l.b16 %v279
    %v801 = vunpack.c.l.b16 %v280
    %v802 = vunpack.c.l.b16 %v281
    %v803 = vunpack.c.l.b16 %v282
    %v804 = vunpack.c.l.b16 %v283
    %v805 = vunpack.c.l.b16 %v284
    %v806 = vunpack.c.l.b16 %v285
    %v807 = vunpack.c.l.b16 %v286
    %v808 = vunpack.c.l.b16 %v287
    %v809 = vunpack.c.l.b16 %v288
    %v810 = vunpack.c.l.b16 %v289
    %v811 = vunpack.c.l.b16 %v290
    %v812 = vunpack.c.l.b16 %v291
    %v813 = vunpack.c.l.b16 %v292
    %v814 = vunpack.c.l.b16 %v293
    %v815 = vunpack.c.l.b16 %v294
    %v816 = vunpack.c.l.b16 %v295
    %v817 = vunpack.c.l.b16 %v296
    %v818 = vpack.c.b16 %v563, %v562
    %v819 = vpack.c.b16 %v565, %v564
    %v820 = vpack.c.b16 %v567, %v566
    %v821 = vpack.c.b16 %v569, %v568
    %v822 = vpack.c.b16 %v571, %v570
    %v823 = vpack.c.b16 %v573, %v572
    %v824 = vpack.c.b16 %v575, %v574
    %v825 = vpack.c.b16 %v577, %v576
    %v826 = vpack.c.b16 %v579, %v578
    %v827 = vpack.c.b16 %v581, %v580
    %v828 = vpack.c.b16 %v583, %v582
    %v829 = vpack.c.b16 %v585, %v584
    %v830 = vpack.c.b16 %v587, %v586
    %v831 = vpack.c.b16 %v589, %v588
    %v832 = vpack.c.b16 %v591, %v590
    %v833 = vpack.c.b16 %v593, %v592
    %v834 = vpack.c.b16 %v595, %v594
    %v835 = vpack.c.b16 %v597, %v596
    %v836 = vpack.c.b16 %v599, %v598
    %v837 = vpack.c.b16 %v601, %v600
    %v838 = vpack.c.b16 %v603, %v602
    %v839 = vpack.c.b16 %v605, %v604
    %v840 = vpack.c.b16 %v607, %v606
    %v841 = vpack.c.b16 %v609, %v608
    %v842 = vpack.c.b16 %v611, %v610
    %v843 = vpack.c.b16 %v613, %v612
    %v844 = vpack.c.b16 %v615, %v614
    %v845 = vpack.c.b16 %v617, %v616
    %v846 = vpack.c.b16 %v619, %v618
    %v847 = vpack.c.b16 %v621, %v620
    %v848 = vpack.c.b16 %v623, %v622
    %v849 = vpack.c.b16 %v625, %v624
    %v850 = vpack.c.b16 %v627, %v626
    %v851 = vpack.c.b16 %v629, %v628
    %v852 = vpack.c.b16 %v631, %v630
    %v853 = vpack.c.b16 %v633, %v632
    %v854 = vpack.c.b16 %v635, %v634
    %v855 = vpack.c.b16 %v637, %v636
    %v856 = vpack.c.b16 %v639, %v638
    %v857 = vpack.c.b16 %v641, %v640
    %v858 = vpack.c.b16 %v643, %v642
    %v859 = vpack.c.b16 %v645, %v644
    %v860 = vpack.c.b16 %v647, %v646
    %v861 = vpack.c.b16 %v649, %v648
    %v862 = vpack.c.b16 %v651, %v650
    %v863 = vpack.c.b16 %v653, %v652
    %v864 = vpack.c.b16 %v655, %v654
    %v865 = vpack.c.b16 %v657, %v656
    %v866 = vpack.c.b16 %v659, %v658
    %v867 = vpack.c.b16 %v661, %v660
    %v868 = vpack.c.b16 %v663, %v662
    %v869 = vpack.c.b16 %v665, %v664
    %v870 = vpack.c.b16 %v667, %v666
    %v871 = vpack.c.b16 %v669, %v668
    %v872 = vpack.c.b16 %v671, %v670
    %v873 = vpack.c.b16 %v673, %v672
    %v874 = vpack.c.b16 %v675, %v674
    %v875 = vpack.c.b16 %v677, %v676
    %v876 = vpack.c.b16 %v679, %v678
    %v877 = vpack.c.b16 %v681, %v680
    %v878 = vpack.c.b16 %v683, %v682
    %v879 = vpack.c.b16 %v685, %v684
    %v880 = vpack.c.b16 %v687, %v686
    %v881 = vpack.c.b16 %v689, %v688
    %v882 = vpack.c.b16 %v691, %v690
    %v883 = vpack.c.b16 %v693, %v692
    %v884 = vpack.c.b16 %v695, %v694
    %v885 = vpack.c.b16 %v697, %v696
    %v886 = vpack.c.b16 %v699, %v698
    %v887 = vpack.c.b16 %v701, %v700
    %v888 = vpack.c.b16 %v703, %v702
    %v889 = vpack.c.b16 %v705, %v704
    %v890 = vpack.c.b16 %v707, %v706
    %v891 = vpack.c.b16 %v709, %v708
    %v892 = vpack.c.b16 %v711, %v710
    %v893 = vpack.c.b16 %v713, %v712
    %v894 = vpack.c.b16 %v715, %v714
    %v895 = vpack.c.b16 %v717, %v716
    %v896 = vpack.c.b16 %v719, %v718
    %v897 = vpack.c.b16 %v721, %v720
    %v898 = vpack.c.b16 %v723, %v722
    %v899 = vpack.c.b16 %v725, %v724
    %v900 = vpack.c.b16 %v727, %v726
    %v901 = vpack.c.b16 %v729, %v728
    %v902 = vpack.c.b16 %v731, %v730
    %v903 = vpack.c.b16 %v733, %v732
    %v904 = vpack.c.b16 %v735, %v734
    %v905 = vpack.c.b16 %v737, %v736
    %v906 = vpack.c.b16 %v739, %v738
    %v907 = vpack.c.b16 %v741, %v740
    %v908 = vpack.c.b16 %v743, %v742
    %v909 = vpack.c.b16 %v745, %v744
    %v910 = vpack.c.b16 %v747, %v746
    %v911 = vpack.c.b16 %v749, %v748
    %v912 = vpack.c.b16 %v751, %v750
    %v913 = vpack.c.b16 %v753, %v752
    %v914 = vpack.c.b16 %v755, %v754
    %v915 = vpack.c.b16 %v757, %v756
    %v916 = vpack.c.b16 %v759, %v758
    %v917 = vpack.c.b16 %v761, %v760
    %v918 = vpack.c.b16 %v763, %v762
    %v919 = vpack.c.b16 %v765, %v764
    %v920 = vpack.c.b16 %v767, %v766
    %v921 = vpack.c.b16 %v769, %v768
    %v922 = vpack.c.b16 %v771, %v770
    %v923 = vpack.c.b16 %v773, %v772
    %v924 = vpack.c.b16 %v775, %v774
    %v925 = vpack.c.b16 %v777, %v776
    %v926 = vpack.c.b16 %v779, %v778
    %v927 = vpack.c.b16 %v781, %v780
    %v928 = vpack.c.b16 %v783, %v782
    %v929 = vpack.c.b16 %v785, %v784
    %v930 = vpack.c.b16 %v787, %v786
    %v931 = vpack.c.b16 %v789, %v788
    %v932 = vpack.c.b16 %v791, %v790
    %v933 = vpack.c.b16 %v793, %v792
    %v934 = vpack.c.b16 %v795, %v794
    %v935 = vpack.c.b16 %v797, %v796
    %v936 = vpack.c.b16 %v799, %v798
    %v937 = vpack.c.b16 %v801, %v800
    %v938 = vpack.c.b16 %v803, %v802
    %v939 = vpack.c.b16 %v805, %v804
    %v940 = vpack.c.b16 %v807, %v806
    %v941 = vpack.c.b16 %v809, %v808
    %v942 = vpack.c.b16 %v811, %v810
    %v943 = vpack.c.b16 %v813, %v812
    %v944 = vpack.c.b16 %v815, %v814
    %v945 = vpack.c.b16 %v817, %v816
    %v948 = vunpack.c.l.b16 %v297
    %v949 = vunpack.c.l.b16 %v298
    %v950 = vpack.c.b16 %v949, %v948
    %vm952 = vcmask 130048
    %v954 = vsel %vm952, %v818, 0
    %v957 = vsel %vm952, %v819, 0
    %v960 = vsel %vm952, %v820, 0
    %v963 = vsel %vm952, %v821, 0
    %v966 = vsel %vm952, %v822, 0
    %v969 = vsel %vm952, %v823, 0
    %v972 = vsel %vm952, %v824, 0
    %v975 = vsel %vm952, %v825, 0
    %v978 = vsel %vm952, %v826, 0
    %v981 = vsel %vm952, %v827, 0
    %v984 = vsel %vm952, %v828, 0
    %v987 = vsel %vm952, %v829, 0
    %v990 = vsel %vm952, %v830, 0
    %v993 = vsel %vm952, %v831, 0
    %v996 = vsel %vm952, %v832, 0
    %v999 = vsel %vm952, %v833, 0
    %v1002 = vsel %vm952, %v834, 0
    %v1005 = vsel %vm952, %v835, 0
    %v1008 = vsel %vm952, %v836, 0
    %v1011 = vsel %vm952, %v837, 0
    %v1014 = vsel %vm952, %v838, 0
    %v1017 = vsel %vm952, %v839, 0
    %v1020 = vsel %vm952, %v840, 0
    %v1023 = vsel %vm952, %v841, 0
    %v1026 = vsel %vm952, %v842, 0
    %v1029 = vsel %vm952, %v843, 0
    %v1032 = vsel %vm952, %v844, 0
    %v1035 = vsel %vm952, %v845, 0
    %v1038 = vsel %vm952, %v846, 0
    %v1041 = vsel %vm952, %v847, 0
    %v1044 = vsel %vm952, %v848, 0
    %v1047 = vsel %vm952, %v849, 0
    %v1050 = vsel %vm952, %v850, 0
    %v1053 = vsel %vm952, %v851, 0
    %v1056 = vsel %vm952, %v852, 0
    %v1059 = vsel %vm952, %v853, 0
    %v1062 = vsel %vm952, %v854, 0
    %v1065 = vsel %vm952, %v855, 0
    %v1068 = vsel %vm952, %v856, 0
    %v1071 = vsel %vm952, %v857, 0
    %v1074 = vsel %vm952, %v858, 0
    %v1077 = vsel %vm952, %v859, 0
    %v1080 = vsel %vm952, %v860, 0
    %v1083 = vsel %vm952, %v861, 0
    %v1086 = vsel %vm952, %v862, 0
    %v1089 = vsel %vm952, %v863, 0
    %v1092 = vsel %vm952, %v864, 0
    %v1095 = vsel %vm952, %v865, 0
    %v1098 = vsel %vm952, %v866, 0
    %v1101 = vsel %vm952, %v867, 0
    %v1104 = vsel %vm952, %v868, 0
    %v1107 = vsel %vm952, %v869, 0
    %v1110 = vsel %vm952, %v870, 0
    %v1113 = vsel %vm952, %v871, 0
    %v1116 = vsel %vm952, %v872, 0
    %v1119 = vsel %vm952, %v873, 0
    %v1122 = vsel %vm952, %v874, 0
    %v1125 = vsel %vm952, %v875, 0
    %v1128 = vsel %vm952, %v876, 0
    %v1131 = vsel %vm952, %v877, 0
    %v1134 = vsel %vm952, %v878, 0
    %v1137 = vsel %vm952, %v879, 0
    %v1140 = vsel %vm952, %v880, 0
    %v1143 = vsel %vm952, %v881, 0
    %v1146 = vsel %vm952, %v882, 0
    %v1149 = vsel %vm952, %v883, 0
    %v1152 = vsel %vm952, %v884, 0
    %v1155 = vsel %vm952, %v885, 0
    %v1158 = vsel %vm952, %v886, 0
    %v1161 = vsel %vm952, %v887, 0
    %v1164 = vsel %vm952, %v888, 0
    %v1167 = vsel %vm952, %v889, 0
    %v1170 = vsel %vm952, %v890, 0
    %v1173 = vsel %vm952, %v891, 0
    %v1176 = vsel %vm952, %v892, 0
    %v1179 = vsel %vm952, %v893, 0
    %v1182 = vsel %vm952, %v894, 0
    %v1185 = vsel %vm952, %v895, 0
    %v1188 = vsel %vm952, %v896, 0
    %v1191 = vsel %vm952, %v897, 0
    %v1194 = vsel %vm952, %v898, 0
    %v1197 = vsel %vm952, %v899, 0
    %v1200 = vsel %vm952, %v900, 0
    %v1203 = vsel %vm952, %v901, 0
    %v1206 = vsel %vm952, %v902, 0
    %v1209 = vsel %vm952, %v903, 0
    %v1212 = vsel %vm952, %v904, 0
    %v1215 = vsel %vm952, %v905, 0
    %v1218 = vsel %vm952, %v906, 0
    %v1221 = vsel %vm952, %v907, 0
    %v1224 = vsel %vm952, %v908, 0
    %v1227 = vsel %vm952, %v909, 0
    %v1230 = vsel %vm952, %v910, 0
    %v1233 = vsel %vm952, %v911, 0
    %v1236 = vsel %vm952, %v912, 0
    %v1239 = vsel %vm952, %v913, 0
    %v1242 = vsel %vm952, %v914, 0
    %v1245 = vsel %vm952, %v915, 0
    %v1248 = vsel %vm952, %v916, 0
    %v1251 = vsel %vm952, %v917, 0
    %v1254 = vsel %vm952, %v918, 0
    %v1257 = vsel %vm952, %v919, 0
    %v1260 = vsel %vm952, %v920, 0
    %v1263 = vsel %vm952, %v921, 0
    %v1266 = vsel %vm952, %v922, 0
    %v1269 = vsel %vm952, %v923, 0
    %v1272 = vsel %vm952, %v924, 0
    %v1275 = vsel %vm952, %v925, 0
    %v1278 = vsel %vm952, %v926, 0
    %v1281 = vsel %vm952, %v927, 0
    %v1284 = vsel %vm952, %v928, 0
    %v1287 = vsel %vm952, %v929, 0
    %v1290 = vsel %vm952, %v930, 0
    %v1293 = vsel %vm952, %v931, 0
    %v1296 = vsel %vm952, %v932, 0
    %v1299 = vsel %vm952, %v933, 0
    %v1302 = vsel %vm952, %v934, 0
    %v1305 = vsel %vm952, %v935, 0
    %v1308 = vsel %vm952, %v936, 0
    %v1311 = vsel %vm952, %v937, 0
    %v1314 = vsel %vm952, %v938, 0
    %v1317 = vsel %vm952, %v939, 0
    %v1320 = vsel %vm952, %v940, 0
    %v1323 = vsel %vm952, %v941, 0
    %v1326 = vsel %vm952, %v942, 0
    %v1329 = vsel %vm952, %v943, 0
    %v1332 = vsel %vm952, %v944, 0
    %v1335 = vsel %vm952, %v945, 0
    %1337 = vmatprep.subr.bf16.mxu0 0
    %1338 = vmatpush1.bf16.msra.mxu0 %v950
    %1339 = vmatprep.subr.bf16.mxu0 0
    %1340 = vmatpush1.bf16.msra.mxu0 0
    %1341 = vmatprep.subr.bf16.mxu0 0
    %1342 = vmatpush1.bf16.msra.mxu0 0
    %1343 = vmatprep.subr.bf16.mxu0 0
    %1344 = vmatpush1.bf16.msra.mxu0 0
    %1345 = vmatprep.subr.bf16.mxu0 0
    %1346 = vmatpush1.bf16.msra.mxu0 0
    %1347 = vmatprep.subr.bf16.mxu0 0
    %1348 = vmatpush1.bf16.msra.mxu0 0
    %1349 = vmatprep.subr.bf16.mxu0 0
    %1350 = vmatpush1.bf16.msra.mxu0 0
    %1351 = vmatprep.subr.bf16.mxu0 0
    %1352 = vmatpush1.bf16.msra.mxu0 0
    %1353 = vmatprep.subr.bf16.mxu0 0
    %1354 = vmatpush1.bf16.msra.mxu0 0
    %1355 = vmatprep.subr.bf16.mxu0 0
    %1356 = vmatpush1.bf16.msra.mxu0 0
    %1357 = vmatprep.subr.bf16.mxu0 0
    %1358 = vmatpush1.bf16.msra.mxu0 0
    %1359 = vmatprep.subr.bf16.mxu0 0
    %1360 = vmatpush1.bf16.msra.mxu0 0
    %1361 = vmatprep.subr.bf16.mxu0 0
    %1362 = vmatpush1.bf16.msra.mxu0 0
    %1363 = vmatprep.subr.bf16.mxu0 0
    %1364 = vmatpush1.bf16.msra.mxu0 0
    %1365 = vmatprep.subr.bf16.mxu0 0
    %1366 = vmatpush1.bf16.msra.mxu0 0
    %1367 = vmatprep.subr.bf16.mxu0 0
    %1368 = vmatpush1.bf16.msra.mxu0 0
    %1369 = vmatprep.mubr.bf16.mxu0 0
    %1370 = vmatmul.mubr.bf16.gmra.mrb[0].mxu0 %v954
    %v1371 = vpop.f32.mrb[0].mxu0
    %v1372 = vadd.f32 %v304, %v1371
    %v1373 = vpop.f32.mrb[0].mxu0
    %v1374 = vpop.f32.mrb[0].mxu0
    %v1375 = vadd.f32 %v304, %v1374
    %v1376 = vpop.f32.mrb[0].mxu0
    %1377 = vmatprep.mubr.bf16.mxu0 0
    %1378 = vmatmul.mubr.bf16.gmra.mrb[0].mxu0 %v957
    %v1379 = vpop.f32.mrb[0].mxu0
    %v1380 = vadd.f32 %v304, %v1379
    %v1381 = vpop.f32.mrb[0].mxu0
    %v1382 = vpop.f32.mrb[0].mxu0
    %v1383 = vadd.f32 %v304, %v1382
    %v1384 = vpop.f32.mrb[0].mxu0
    %1385 = vmatprep.mubr.bf16.mxu0 0
    %1386 = vmatmul.mubr.bf16.gmra.mrb[0].mxu0 %v960
    %v1387 = vpop.f32.mrb[0].mxu0
    %v1388 = vadd.f32 %v304, %v1387
    %v1389 = vpop.f32.mrb[0].mxu0
    %v1390 = vpop.f32.mrb[0].mxu0
    %v1391 = vadd.f32 %v304, %v1390
    %v1392 = vpop.f32.mrb[0].mxu0
    %1393 = vmatprep.mubr.bf16.mxu0 0
    %1394 = vmatmul.mubr.bf16.gmra.mrb[0].mxu0 %v963
    %v1395 = vpop.f32.mrb[0].mxu0
    %v1396 = vadd.f32 %v304, %v1395
    %v1397 = vpop.f32.mrb[0].mxu0
    %v1398 = vpop.f32.mrb[0].mxu0
    %v1399 = vadd.f32 %v304, %v1398
    %v1400 = vpop.f32.mrb[0].mxu0
    %1401 = vmatprep.mubr.bf16.mxu0 0
    %1402 = vmatmul.mubr.bf16.gmra.mrb[0].mxu0 %v966
    %v1403 = vpop.f32.mrb[0].mxu0
    %v1404 = vadd.f32 %v304, %v1403
    %v1405 = vpop.f32.mrb[0].mxu0
    %v1406 = vpop.f32.mrb[0].mxu0
    %v1407 = vadd.f32 %v304, %v1406
    %v1408 = vpop.f32.mrb[0].mxu0
    %1409 = vmatprep.mubr.bf16.mxu0 0
    %1410 = vmatmul.mubr.bf16.gmra.mrb[0].mxu0 %v969
    %v1411 = vpop.f32.mrb[0].mxu0
    %v1412 = vadd.f32 %v304, %v1411
    %v1413 = vpop.f32.mrb[0].mxu0
    %v1414 = vpop.f32.mrb[0].mxu0
    %v1415 = vadd.f32 %v304, %v1414
    %v1416 = vpop.f32.mrb[0].mxu0
    %1417 = vmatprep.mubr.bf16.mxu0 0
    %1418 = vmatmul.mubr.bf16.gmra.mrb[0].mxu0 %v972
    %v1419 = vpop.f32.mrb[0].mxu0
    %v1420 = vadd.f32 %v304, %v1419
    %v1421 = vpop.f32.mrb[0].mxu0
    %v1422 = vpop.f32.mrb[0].mxu0
    %v1423 = vadd.f32 %v304, %v1422
    %v1424 = vpop.f32.mrb[0].mxu0
    %1425 = vmatprep.mubr.bf16.mxu0 0
    %1426 = vmatmul.mubr.bf16.gmra.mrb[0].mxu0 %v975
    %v1427 = vpop.f32.mrb[0].mxu0
    %v1428 = vadd.f32 %v304, %v1427
    %v1429 = vpop.f32.mrb[0].mxu0
    %v1430 = vpop.f32.mrb[0].mxu0
    %v1431 = vadd.f32 %v304, %v1430
    %v1432 = vpop.f32.mrb[0].mxu0
    %1433 = vmatprep.mubr.bf16.mxu0 0
    %1434 = vmatmul.mubr.bf16.gmra.mrb[0].mxu0 %v978
    %v1435 = vpop.f32.mrb[0].mxu0
    %v1436 = vadd.f32 %v304, %v1435
    %v1437 = vpop.f32.mrb[0].mxu0
    %v1438 = vpop.f32.mrb[0].mxu0
    %v1439 = vadd.f32 %v304, %v1438
    %v1440 = vpop.f32.mrb[0].mxu0
    %1441 = vmatprep.mubr.bf16.mxu0 0
    %1442 = vmatmul.mubr.bf16.gmra.mrb[0].mxu0 %v981
    %v1443 = vpop.f32.mrb[0].mxu0
    %v1444 = vadd.f32 %v304, %v1443
    %v1445 = vpop.f32.mrb[0].mxu0
    %v1446 = vpop.f32.mrb[0].mxu0
    %v1447 = vadd.f32 %v304, %v1446
    %v1448 = vpop.f32.mrb[0].mxu0
    %1449 = vmatprep.mubr.bf16.mxu0 0
    %1450 = vmatmul.mubr.bf16.gmra.mrb[0].mxu0 %v984
    %v1451 = vpop.f32.mrb[0].mxu0
    %v1452 = vadd.f32 %v304, %v1451
    %v1453 = vpop.f32.mrb[0].mxu0
    %v1454 = vpop.f32.mrb[0].mxu0
    %v1455 = vadd.f32 %v304, %v1454
    %v1456 = vpop.f32.mrb[0].mxu0
    %1457 = vmatprep.mubr.bf16.mxu0 0
    %1458 = vmatmul.mubr.bf16.gmra.mrb[0].mxu0 %v987
    %v1459 = vpop.f32.mrb[0].mxu0
    %v1460 = vadd.f32 %v304, %v1459
    %v1461 = vpop.f32.mrb[0].mxu0
    %v1462 = vpop.f32.mrb[0].mxu0
    %v1463 = vadd.f32 %v304, %v1462
    %v1464 = vpop.f32.mrb[0].mxu0
    %1465 = vmatprep.mubr.bf16.mxu0 0
    %1466 = vmatmul.mubr.bf16.gmra.mrb[0].mxu0 %v990
    %v1467 = vpop.f32.mrb[0].mxu0
    %v1468 = vadd.f32 %v304, %v1467
    %v1469 = vpop.f32.mrb[0].mxu0
    %v1470 = vpop.f32.mrb[0].mxu0
    %v1471 = vadd.f32 %v304, %v1470
    %v1472 = vpop.f32.mrb[0].mxu0
    %1473 = vmatprep.mubr.bf16.mxu0 0
    %1474 = vmatmul.mubr.bf16.gmra.mrb[0].mxu0 %v993
    %v1475 = vpop.f32.mrb[0].mxu0
    %v1476 = vadd.f32 %v304, %v1475
    %v1477 = vpop.f32.mrb[0].mxu0
    %v1478 = vpop.f32.mrb[0].mxu0
    %v1479 = vadd.f32 %v304, %v1478
    %v1480 = vpop.f32.mrb[0].mxu0
    %1481 = vmatprep.mubr.bf16.mxu0 0
    %1482 = vmatmul.mubr.bf16.gmra.mrb[0].mxu0 %v996
    %v1483 = vpop.f32.mrb[0].mxu0
    %v1484 = vadd.f32 %v304, %v1483
    %v1485 = vpop.f32.mrb[0].mxu0
    %v1486 = vpop.f32.mrb[0].mxu0
    %v1487 = vadd.f32 %v304, %v1486
    %v1488 = vpop.f32.mrb[0].mxu0
    %1489 = vmatprep.mubr.bf16.mxu0 0
    %1490 = vmatmul.mubr.bf16.gmra.mrb[0].mxu0 %v999
    %v1491 = vpop.f32.mrb[0].mxu0
    %v1492 = vadd.f32 %v304, %v1491
    %v1493 = vpop.f32.mrb[0].mxu0
    %v1494 = vpop.f32.mrb[0].mxu0
    %v1495 = vadd.f32 %v304, %v1494
    %v1496 = vpop.f32.mrb[0].mxu0
    %1497 = vmatprep.mubr.bf16.mxu0 0
    %1498 = vmatmul.mubr.bf16.gmra.mrb[0].mxu0 %v1002
    %v1499 = vpop.f32.mrb[0].mxu0
    %v1500 = vadd.f32 %v304, %v1499
    %v1501 = vpop.f32.mrb[0].mxu0
    %v1502 = vpop.f32.mrb[0].mxu0
    %v1503 = vadd.f32 %v304, %v1502
    %v1504 = vpop.f32.mrb[0].mxu0
    %1505 = vmatprep.mubr.bf16.mxu0 0
    %1506 = vmatmul.mubr.bf16.gmra.mrb[0].mxu0 %v1005
    %v1507 = vpop.f32.mrb[0].mxu0
    %v1508 = vadd.f32 %v304, %v1507
    %v1509 = vpop.f32.mrb[0].mxu0
    %v1510 = vpop.f32.mrb[0].mxu0
    %v1511 = vadd.f32 %v304, %v1510
    %v1512 = vpop.f32.mrb[0].mxu0
    %1513 = vmatprep.mubr.bf16.mxu0 0
    %1514 = vmatmul.mubr.bf16.gmra.mrb[0].mxu0 %v1008
    %v1515 = vpop.f32.mrb[0].mxu0
    %v1516 = vadd.f32 %v304, %v1515
    %v1517 = vpop.f32.mrb[0].mxu0
    %v1518 = vpop.f32.mrb[0].mxu0
    %v1519 = vadd.f32 %v304, %v1518
    %v1520 = vpop.f32.mrb[0].mxu0
    %1521 = vmatprep.mubr.bf16.mxu0 0
    %1522 = vmatmul.mubr.bf16.gmra.mrb[0].mxu0 %v1011
    %v1523 = vpop.f32.mrb[0].mxu0
    %v1524 = vadd.f32 %v304, %v1523
    %v1525 = vpop.f32.mrb[0].mxu0
    %v1526 = vpop.f32.mrb[0].mxu0
    %v1527 = vadd.f32 %v304, %v1526
    %v1528 = vpop.f32.mrb[0].mxu0
    %1529 = vmatprep.mubr.bf16.mxu0 0
    %1530 = vmatmul.mubr.bf16.gmra.mrb[0].mxu0 %v1014
    %v1531 = vpop.f32.mrb[0].mxu0
    %v1532 = vadd.f32 %v304, %v1531
    %v1533 = vpop.f32.mrb[0].mxu0
    %v1534 = vpop.f32.mrb[0].mxu0
    %v1535 = vadd.f32 %v304, %v1534
    %v1536 = vpop.f32.mrb[0].mxu0
    %1537 = vmatprep.mubr.bf16.mxu0 0
    %1538 = vmatmul.mubr.bf16.gmra.mrb[0].mxu0 %v1017
    %v1539 = vpop.f32.mrb[0].mxu0
    %v1540 = vadd.f32 %v304, %v1539
    %v1541 = vpop.f32.mrb[0].mxu0
    %v1542 = vpop.f32.mrb[0].mxu0
    %v1543 = vadd.f32 %v304, %v1542
    %v1544 = vpop.f32.mrb[0].mxu0
    %1545 = vmatprep.mubr.bf16.mxu0 0
    %1546 = vmatmul.mubr.bf16.gmra.mrb[0].mxu0 %v1020
    %v1547 = vpop.f32.mrb[0].mxu0
    %v1548 = vadd.f32 %v304, %v1547
    %v1549 = vpop.f32.mrb[0].mxu0
    %v1550 = vpop.f32.mrb[0].mxu0
    %v1551 = vadd.f32 %v304, %v1550
    %v1552 = vpop.f32.mrb[0].mxu0
    %1553 = vmatprep.mubr.bf16.mxu0 0
    %1554 = vmatmul.mubr.bf16.gmra.mrb[0].mxu0 %v1023
    %v1555 = vpop.f32.mrb[0].mxu0
    %v1556 = vadd.f32 %v304, %v1555
    %v1557 = vpop.f32.mrb[0].mxu0
    %v1558 = vpop.f32.mrb[0].mxu0
    %v1559 = vadd.f32 %v304, %v1558
    %v1560 = vpop.f32.mrb[0].mxu0
    %1561 = vmatprep.mubr.bf16.mxu0 0
    %1562 = vmatmul.mubr.bf16.gmra.mrb[0].mxu0 %v1026
    %v1563 = vpop.f32.mrb[0].mxu0
    %v1564 = vadd.f32 %v304, %v1563
    %v1565 = vpop.f32.mrb[0].mxu0
    %v1566 = vpop.f32.mrb[0].mxu0
    %v1567 = vadd.f32 %v304, %v1566
    %v1568 = vpop.f32.mrb[0].mxu0
    %1569 = vmatprep.mubr.bf16.mxu0 0
    %1570 = vmatmul.mubr.bf16.gmra.mrb[0].mxu0 %v1029
    %v1571 = vpop.f32.mrb[0].mxu0
    %v1572 = vadd.f32 %v304, %v1571
    %v1573 = vpop.f32.mrb[0].mxu0
    %v1574 = vpop.f32.mrb[0].mxu0
    %v1575 = vadd.f32 %v304, %v1574
    %v1576 = vpop.f32.mrb[0].mxu0
    %1577 = vmatprep.mubr.bf16.mxu0 0
    %1578 = vmatmul.mubr.bf16.gmra.mrb[0].mxu0 %v1032
    %v1579 = vpop.f32.mrb[0].mxu0
    %v1580 = vadd.f32 %v304, %v1579
    %v1581 = vpop.f32.mrb[0].mxu0
    %v1582 = vpop.f32.mrb[0].mxu0
    %v1583 = vadd.f32 %v304, %v1582
    %v1584 = vpop.f32.mrb[0].mxu0
    %1585 = vmatprep.mubr.bf16.mxu0 0
    %1586 = vmatmul.mubr.bf16.gmra.mrb[0].mxu0 %v1035
    %v1587 = vpop.f32.mrb[0].mxu0
    %v1588 = vadd.f32 %v304, %v1587
    %v1589 = vpop.f32.mrb[0].mxu0
    %v1590 = vpop.f32.mrb[0].mxu0
    %v1591 = vadd.f32 %v304, %v1590
    %v1592 = vpop.f32.mrb[0].mxu0
    %1593 = vmatprep.mubr.bf16.mxu0 0
    %1594 = vmatmul.mubr.bf16.gmra.mrb[0].mxu0 %v1038
    %v1595 = vpop.f32.mrb[0].mxu0
    %v1596 = vadd.f32 %v304, %v1595
    %v1597 = vpop.f32.mrb[0].mxu0
    %v1598 = vpop.f32.mrb[0].mxu0
    %v1599 = vadd.f32 %v304, %v1598
    %v1600 = vpop.f32.mrb[0].mxu0
    %1601 = vmatprep.mubr.bf16.mxu0 0
    %1602 = vmatmul.mubr.bf16.gmra.mrb[0].mxu0 %v1041
    %v1603 = vpop.f32.mrb[0].mxu0
    %v1604 = vadd.f32 %v304, %v1603
    %v1605 = vpop.f32.mrb[0].mxu0
    %v1606 = vpop.f32.mrb[0].mxu0
    %v1607 = vadd.f32 %v304, %v1606
    %v1608 = vpop.f32.mrb[0].mxu0
    %1609 = vmatprep.mubr.bf16.mxu0 0
    %1610 = vmatmul.mubr.bf16.gmra.mrb[0].mxu0 %v1044
    %v1611 = vpop.f32.mrb[0].mxu0
    %v1612 = vadd.f32 %v304, %v1611
    %v1613 = vpop.f32.mrb[0].mxu0
    %v1614 = vpop.f32.mrb[0].mxu0
    %v1615 = vadd.f32 %v304, %v1614
    %v1616 = vpop.f32.mrb[0].mxu0
    %1617 = vmatprep.mubr.bf16.mxu0 0
    %1618 = vmatmul.mubr.bf16.gmra.mrb[0].mxu0 %v1047
    %v1619 = vpop.f32.mrb[0].mxu0
    %v1620 = vadd.f32 %v304, %v1619
    %v1621 = vpop.f32.mrb[0].mxu0
    %v1622 = vpop.f32.mrb[0].mxu0
    %v1623 = vadd.f32 %v304, %v1622
    %v1624 = vpop.f32.mrb[0].mxu0
    %1625 = vmatprep.mubr.bf16.mxu0 0
    %1626 = vmatmul.mubr.bf16.gmra.mrb[0].mxu0 %v1050
    %v1627 = vpop.f32.mrb[0].mxu0
    %v1628 = vadd.f32 %v304, %v1627
    %v1629 = vpop.f32.mrb[0].mxu0
    %v1630 = vpop.f32.mrb[0].mxu0
    %v1631 = vadd.f32 %v304, %v1630
    %v1632 = vpop.f32.mrb[0].mxu0
    %1633 = vmatprep.mubr.bf16.mxu0 0
    %1634 = vmatmul.mubr.bf16.gmra.mrb[0].mxu0 %v1053
    %v1635 = vpop.f32.mrb[0].mxu0
    %v1636 = vadd.f32 %v304, %v1635
    %v1637 = vpop.f32.mrb[0].mxu0
    %v1638 = vpop.f32.mrb[0].mxu0
    %v1639 = vadd.f32 %v304, %v1638
    %v1640 = vpop.f32.mrb[0].mxu0
    %1641 = vmatprep.mubr.bf16.mxu0 0
    %1642 = vmatmul.mubr.bf16.gmra.mrb[0].mxu0 %v1056
    %v1643 = vpop.f32.mrb[0].mxu0
    %v1644 = vadd.f32 %v304, %v1643
    %v1645 = vpop.f32.mrb[0].mxu0
    %v1646 = vpop.f32.mrb[0].mxu0
    %v1647 = vadd.f32 %v304, %v1646
    %v1648 = vpop.f32.mrb[0].mxu0
    %1649 = vmatprep.mubr.bf16.mxu0 0
    %1650 = vmatmul.mubr.bf16.gmra.mrb[0].mxu0 %v1059
    %v1651 = vpop.f32.mrb[0].mxu0
    %v1652 = vadd.f32 %v304, %v1651
    %v1653 = vpop.f32.mrb[0].mxu0
    %v1654 = vpop.f32.mrb[0].mxu0
    %v1655 = vadd.f32 %v304, %v1654
    %v1656 = vpop.f32.mrb[0].mxu0
    %1657 = vmatprep.mubr.bf16.mxu0 0
    %1658 = vmatmul.mubr.bf16.gmra.mrb[0].mxu0 %v1062
    %v1659 = vpop.f32.mrb[0].mxu0
    %v1660 = vadd.f32 %v304, %v1659
    %v1661 = vpop.f32.mrb[0].mxu0
    %v1662 = vpop.f32.mrb[0].mxu0
    %v1663 = vadd.f32 %v304, %v1662
    %v1664 = vpop.f32.mrb[0].mxu0
    %1665 = vmatprep.mubr.bf16.mxu0 0
    %1666 = vmatmul.mubr.bf16.gmra.mrb[0].mxu0 %v1065
    %v1667 = vpop.f32.mrb[0].mxu0
    %v1668 = vadd.f32 %v304, %v1667
    %v1669 = vpop.f32.mrb[0].mxu0
    %v1670 = vpop.f32.mrb[0].mxu0
    %v1671 = vadd.f32 %v304, %v1670
    %v1672 = vpop.f32.mrb[0].mxu0
    %1673 = vmatprep.mubr.bf16.mxu0 0
    %1674 = vmatmul.mubr.bf16.gmra.mrb[0].mxu0 %v1068
    %v1675 = vpop.f32.mrb[0].mxu0
    %v1676 = vadd.f32 %v304, %v1675
    %v1677 = vpop.f32.mrb[0].mxu0
    %v1678 = vpop.f32.mrb[0].mxu0
    %v1679 = vadd.f32 %v304, %v1678
    %v1680 = vpop.f32.mrb[0].mxu0
    %1681 = vmatprep.mubr.bf16.mxu0 0
    %1682 = vmatmul.mubr.bf16.gmra.mrb[0].mxu0 %v1071
    %v1683 = vpop.f32.mrb[0].mxu0
    %v1684 = vadd.f32 %v304, %v1683
    %v1685 = vpop.f32.mrb[0].mxu0
    %v1686 = vpop.f32.mrb[0].mxu0
    %v1687 = vadd.f32 %v304, %v1686
    %v1688 = vpop.f32.mrb[0].mxu0
    %1689 = vmatprep.mubr.bf16.mxu0 0
    %1690 = vmatmul.mubr.bf16.gmra.mrb[0].mxu0 %v1074
    %v1691 = vpop.f32.mrb[0].mxu0
    %v1692 = vadd.f32 %v304, %v1691
    %v1693 = vpop.f32.mrb[0].mxu0
    %v1694 = vpop.f32.mrb[0].mxu0
    %v1695 = vadd.f32 %v304, %v1694
    %v1696 = vpop.f32.mrb[0].mxu0
    %1697 = vmatprep.mubr.bf16.mxu0 0
    %1698 = vmatmul.mubr.bf16.gmra.mrb[0].mxu0 %v1077
    %v1699 = vpop.f32.mrb[0].mxu0
    %v1700 = vadd.f32 %v304, %v1699
    %v1701 = vpop.f32.mrb[0].mxu0
    %v1702 = vpop.f32.mrb[0].mxu0
    %v1703 = vadd.f32 %v304, %v1702
    %v1704 = vpop.f32.mrb[0].mxu0
    %1705 = vmatprep.mubr.bf16.mxu0 0
    %1706 = vmatmul.mubr.bf16.gmra.mrb[0].mxu0 %v1080
    %v1707 = vpop.f32.mrb[0].mxu0
    %v1708 = vadd.f32 %v304, %v1707
    %v1709 = vpop.f32.mrb[0].mxu0
    %v1710 = vpop.f32.mrb[0].mxu0
    %v1711 = vadd.f32 %v304, %v1710
    %v1712 = vpop.f32.mrb[0].mxu0
    %1713 = vmatprep.mubr.bf16.mxu0 0
    %1714 = vmatmul.mubr.bf16.gmra.mrb[0].mxu0 %v1083
    %v1715 = vpop.f32.mrb[0].mxu0
    %v1716 = vadd.f32 %v304, %v1715
    %v1717 = vpop.f32.mrb[0].mxu0
    %v1718 = vpop.f32.mrb[0].mxu0
    %v1719 = vadd.f32 %v304, %v1718
    %v1720 = vpop.f32.mrb[0].mxu0
    %1721 = vmatprep.mubr.bf16.mxu0 0
    %1722 = vmatmul.mubr.bf16.gmra.mrb[0].mxu0 %v1086
    %v1723 = vpop.f32.mrb[0].mxu0
    %v1724 = vadd.f32 %v304, %v1723
    %v1725 = vpop.f32.mrb[0].mxu0
    %v1726 = vpop.f32.mrb[0].mxu0
    %v1727 = vadd.f32 %v304, %v1726
    %v1728 = vpop.f32.mrb[0].mxu0
    %1729 = vmatprep.mubr.bf16.mxu0 0
    %1730 = vmatmul.mubr.bf16.gmra.mrb[0].mxu0 %v1089
    %v1731 = vpop.f32.mrb[0].mxu0
    %v1732 = vadd.f32 %v304, %v1731
    %v1733 = vpop.f32.mrb[0].mxu0
    %v1734 = vpop.f32.mrb[0].mxu0
    %v1735 = vadd.f32 %v304, %v1734
    %v1736 = vpop.f32.mrb[0].mxu0
    %1737 = vmatprep.mubr.bf16.mxu0 0
    %1738 = vmatmul.mubr.bf16.gmra.mrb[0].mxu0 %v1092
    %v1739 = vpop.f32.mrb[0].mxu0
    %v1740 = vadd.f32 %v304, %v1739
    %v1741 = vpop.f32.mrb[0].mxu0
    %v1742 = vpop.f32.mrb[0].mxu0
    %v1743 = vadd.f32 %v304, %v1742
    %v1744 = vpop.f32.mrb[0].mxu0
    %1745 = vmatprep.mubr.bf16.mxu0 0
    %1746 = vmatmul.mubr.bf16.gmra.mrb[0].mxu0 %v1095
    %v1747 = vpop.f32.mrb[0].mxu0
    %v1748 = vadd.f32 %v304, %v1747
    %v1749 = vpop.f32.mrb[0].mxu0
    %v1750 = vpop.f32.mrb[0].mxu0
    %v1751 = vadd.f32 %v304, %v1750
    %v1752 = vpop.f32.mrb[0].mxu0
    %1753 = vmatprep.mubr.bf16.mxu0 0
    %1754 = vmatmul.mubr.bf16.gmra.mrb[0].mxu0 %v1098
    %v1755 = vpop.f32.mrb[0].mxu0
    %v1756 = vadd.f32 %v304, %v1755
    %v1757 = vpop.f32.mrb[0].mxu0
    %v1758 = vpop.f32.mrb[0].mxu0
    %v1759 = vadd.f32 %v304, %v1758
    %v1760 = vpop.f32.mrb[0].mxu0
    %1761 = vmatprep.mubr.bf16.mxu0 0
    %1762 = vmatmul.mubr.bf16.gmra.mrb[0].mxu0 %v1101
    %v1763 = vpop.f32.mrb[0].mxu0
    %v1764 = vadd.f32 %v304, %v1763
    %v1765 = vpop.f32.mrb[0].mxu0
    %v1766 = vpop.f32.mrb[0].mxu0
    %v1767 = vadd.f32 %v304, %v1766
    %v1768 = vpop.f32.mrb[0].mxu0
    %1769 = vmatprep.mubr.bf16.mxu0 0
    %1770 = vmatmul.mubr.bf16.gmra.mrb[0].mxu0 %v1104
    %v1771 = vpop.f32.mrb[0].mxu0
    %v1772 = vadd.f32 %v304, %v1771
    %v1773 = vpop.f32.mrb[0].mxu0
    %v1774 = vpop.f32.mrb[0].mxu0
    %v1775 = vadd.f32 %v304, %v1774
    %v1776 = vpop.f32.mrb[0].mxu0
    %1777 = vmatprep.mubr.bf16.mxu0 0
    %1778 = vmatmul.mubr.bf16.gmra.mrb[0].mxu0 %v1107
    %v1779 = vpop.f32.mrb[0].mxu0
    %v1780 = vadd.f32 %v304, %v1779
    %v1781 = vpop.f32.mrb[0].mxu0
    %v1782 = vpop.f32.mrb[0].mxu0
    %v1783 = vadd.f32 %v304, %v1782
    %v1784 = vpop.f32.mrb[0].mxu0
    %1785 = vmatprep.mubr.bf16.mxu0 0
    %1786 = vmatmul.mubr.bf16.gmra.mrb[0].mxu0 %v1110
    %v1787 = vpop.f32.mrb[0].mxu0
    %v1788 = vadd.f32 %v304, %v1787
    %v1789 = vpop.f32.mrb[0].mxu0
    %v1790 = vpop.f32.mrb[0].mxu0
    %v1791 = vadd.f32 %v304, %v1790
    %v1792 = vpop.f32.mrb[0].mxu0
    %1793 = vmatprep.mubr.bf16.mxu0 0
    %1794 = vmatmul.mubr.bf16.gmra.mrb[0].mxu0 %v1113
    %v1795 = vpop.f32.mrb[0].mxu0
    %v1796 = vadd.f32 %v304, %v1795
    %v1797 = vpop.f32.mrb[0].mxu0
    %v1798 = vpop.f32.mrb[0].mxu0
    %v1799 = vadd.f32 %v304, %v1798
    %v1800 = vpop.f32.mrb[0].mxu0
    %1801 = vmatprep.mubr.bf16.mxu0 0
    %1802 = vmatmul.mubr.bf16.gmra.mrb[0].mxu0 %v1116
    %v1803 = vpop.f32.mrb[0].mxu0
    %v1804 = vadd.f32 %v304, %v1803
    %v1805 = vpop.f32.mrb[0].mxu0
    %v1806 = vpop.f32.mrb[0].mxu0
    %v1807 = vadd.f32 %v304, %v1806
    %v1808 = vpop.f32.mrb[0].mxu0
    %1809 = vmatprep.mubr.bf16.mxu0 0
    %1810 = vmatmul.mubr.bf16.gmra.mrb[0].mxu0 %v1119
    %v1811 = vpop.f32.mrb[0].mxu0
    %v1812 = vadd.f32 %v304, %v1811
    %v1813 = vpop.f32.mrb[0].mxu0
    %v1814 = vpop.f32.mrb[0].mxu0
    %v1815 = vadd.f32 %v304, %v1814
    %v1816 = vpop.f32.mrb[0].mxu0
    %1817 = vmatprep.mubr.bf16.mxu0 0
    %1818 = vmatmul.mubr.bf16.gmra.mrb[0].mxu0 %v1122
    %v1819 = vpop.f32.mrb[0].mxu0
    %v1820 = vadd.f32 %v304, %v1819
    %v1821 = vpop.f32.mrb[0].mxu0
    %v1822 = vpop.f32.mrb[0].mxu0
    %v1823 = vadd.f32 %v304, %v1822
    %v1824 = vpop.f32.mrb[0].mxu0
    %1825 = vmatprep.mubr.bf16.mxu0 0
    %1826 = vmatmul.mubr.bf16.gmra.mrb[0].mxu0 %v1125
    %v1827 = vpop.f32.mrb[0].mxu0
    %v1828 = vadd.f32 %v304, %v1827
    %v1829 = vpop.f32.mrb[0].mxu0
    %v1830 = vpop.f32.mrb[0].mxu0
    %v1831 = vadd.f32 %v304, %v1830
    %v1832 = vpop.f32.mrb[0].mxu0
    %1833 = vmatprep.mubr.bf16.mxu0 0
    %1834 = vmatmul.mubr.bf16.gmra.mrb[0].mxu0 %v1128
    %v1835 = vpop.f32.mrb[0].mxu0
    %v1836 = vadd.f32 %v304, %v1835
    %v1837 = vpop.f32.mrb[0].mxu0
    %v1838 = vpop.f32.mrb[0].mxu0
    %v1839 = vadd.f32 %v304, %v1838
    %v1840 = vpop.f32.mrb[0].mxu0
    %1841 = vmatprep.mubr.bf16.mxu0 0
    %1842 = vmatmul.mubr.bf16.gmra.mrb[0].mxu0 %v1131
    %v1843 = vpop.f32.mrb[0].mxu0
    %v1844 = vadd.f32 %v304, %v1843
    %v1845 = vpop.f32.mrb[0].mxu0
    %v1846 = vpop.f32.mrb[0].mxu0
    %v1847 = vadd.f32 %v304, %v1846
    %v1848 = vpop.f32.mrb[0].mxu0
    %1849 = vmatprep.mubr.bf16.mxu0 0
    %1850 = vmatmul.mubr.bf16.gmra.mrb[0].mxu0 %v1134
    %v1851 = vpop.f32.mrb[0].mxu0
    %v1852 = vadd.f32 %v304, %v1851
    %v1853 = vpop.f32.mrb[0].mxu0
    %v1854 = vpop.f32.mrb[0].mxu0
    %v1855 = vadd.f32 %v304, %v1854
    %v1856 = vpop.f32.mrb[0].mxu0
    %1857 = vmatprep.mubr.bf16.mxu0 0
    %1858 = vmatmul.mubr.bf16.gmra.mrb[0].mxu0 %v1137
    %v1859 = vpop.f32.mrb[0].mxu0
    %v1860 = vadd.f32 %v304, %v1859
    %v1861 = vpop.f32.mrb[0].mxu0
    %v1862 = vpop.f32.mrb[0].mxu0
    %v1863 = vadd.f32 %v304, %v1862
    %v1864 = vpop.f32.mrb[0].mxu0
    %1865 = vmatprep.mubr.bf16.mxu0 0
    %1866 = vmatmul.mubr.bf16.gmra.mrb[0].mxu0 %v1140
    %v1867 = vpop.f32.mrb[0].mxu0
    %v1868 = vadd.f32 %v304, %v1867
    %v1869 = vpop.f32.mrb[0].mxu0
    %v1870 = vpop.f32.mrb[0].mxu0
    %v1871 = vadd.f32 %v304, %v1870
    %v1872 = vpop.f32.mrb[0].mxu0
    %1873 = vmatprep.mubr.bf16.mxu0 0
    %1874 = vmatmul.mubr.bf16.gmra.mrb[0].mxu0 %v1143
    %v1875 = vpop.f32.mrb[0].mxu0
    %v1876 = vadd.f32 %v304, %v1875
    %v1877 = vpop.f32.mrb[0].mxu0
    %v1878 = vpop.f32.mrb[0].mxu0
    %v1879 = vadd.f32 %v304, %v1878
    %v1880 = vpop.f32.mrb[0].mxu0
    %1881 = vmatprep.mubr.bf16.mxu0 0
    %1882 = vmatmul.mubr.bf16.gmra.mrb[0].mxu0 %v1146
    %v1883 = vpop.f32.mrb[0].mxu0
    %v1884 = vadd.f32 %v304, %v1883
    %v1885 = vpop.f32.mrb[0].mxu0
    %v1886 = vpop.f32.mrb[0].mxu0
    %v1887 = vadd.f32 %v304, %v1886
    %v1888 = vpop.f32.mrb[0].mxu0
    %1889 = vmatprep.mubr.bf16.mxu0 0
    %1890 = vmatmul.mubr.bf16.gmra.mrb[0].mxu0 %v1149
    %v1891 = vpop.f32.mrb[0].mxu0
    %v1892 = vadd.f32 %v304, %v1891
    %v1893 = vpop.f32.mrb[0].mxu0
    %v1894 = vpop.f32.mrb[0].mxu0
    %v1895 = vadd.f32 %v304, %v1894
    %v1896 = vpop.f32.mrb[0].mxu0
    %1897 = vmatprep.mubr.bf16.mxu0 0
    %1898 = vmatmul.mubr.bf16.gmra.mrb[0].mxu0 %v1152
    %v1899 = vpop.f32.mrb[0].mxu0
    %v1900 = vadd.f32 %v304, %v1899
    %v1901 = vpop.f32.mrb[0].mxu0
    %v1902 = vpop.f32.mrb[0].mxu0
    %v1903 = vadd.f32 %v304, %v1902
    %v1904 = vpop.f32.mrb[0].mxu0
    %1905 = vmatprep.mubr.bf16.mxu0 0
    %1906 = vmatmul.mubr.bf16.gmra.mrb[0].mxu0 %v1155
    %v1907 = vpop.f32.mrb[0].mxu0
    %v1908 = vadd.f32 %v304, %v1907
    %v1909 = vpop.f32.mrb[0].mxu0
    %v1910 = vpop.f32.mrb[0].mxu0
    %v1911 = vadd.f32 %v304, %v1910
    %v1912 = vpop.f32.mrb[0].mxu0
    %1913 = vmatprep.mubr.bf16.mxu0 0
    %1914 = vmatmul.mubr.bf16.gmra.mrb[0].mxu0 %v1158
    %v1915 = vpop.f32.mrb[0].mxu0
    %v1916 = vadd.f32 %v304, %v1915
    %v1917 = vpop.f32.mrb[0].mxu0
    %v1918 = vpop.f32.mrb[0].mxu0
    %v1919 = vadd.f32 %v304, %v1918
    %v1920 = vpop.f32.mrb[0].mxu0
    %1921 = vmatprep.mubr.bf16.mxu0 0
    %1922 = vmatmul.mubr.bf16.gmra.mrb[0].mxu0 %v1161
    %v1923 = vpop.f32.mrb[0].mxu0
    %v1924 = vadd.f32 %v304, %v1923
    %v1925 = vpop.f32.mrb[0].mxu0
    %v1926 = vpop.f32.mrb[0].mxu0
    %v1927 = vadd.f32 %v304, %v1926
    %v1928 = vpop.f32.mrb[0].mxu0
    %1929 = vmatprep.mubr.bf16.mxu0 0
    %1930 = vmatmul.mubr.bf16.gmra.mrb[0].mxu0 %v1164
    %v1931 = vpop.f32.mrb[0].mxu0
    %v1932 = vadd.f32 %v304, %v1931
    %v1933 = vpop.f32.mrb[0].mxu0
    %v1934 = vpop.f32.mrb[0].mxu0
    %v1935 = vadd.f32 %v304, %v1934
    %v1936 = vpop.f32.mrb[0].mxu0
    %1937 = vmatprep.mubr.bf16.mxu0 0
    %1938 = vmatmul.mubr.bf16.gmra.mrb[0].mxu0 %v1167
    %v1939 = vpop.f32.mrb[0].mxu0
    %v1940 = vadd.f32 %v304, %v1939
    %v1941 = vpop.f32.mrb[0].mxu0
    %v1942 = vpop.f32.mrb[0].mxu0
    %v1943 = vadd.f32 %v304, %v1942
    %v1944 = vpop.f32.mrb[0].mxu0
    %1945 = vmatprep.mubr.bf16.mxu0 0
    %1946 = vmatmul.mubr.bf16.gmra.mrb[0].mxu0 %v1170
    %v1947 = vpop.f32.mrb[0].mxu0
    %v1948 = vadd.f32 %v304, %v1947
    %v1949 = vpop.f32.mrb[0].mxu0
    %v1950 = vpop.f32.mrb[0].mxu0
    %v1951 = vadd.f32 %v304, %v1950
    %v1952 = vpop.f32.mrb[0].mxu0
    %1953 = vmatprep.mubr.bf16.mxu0 0
    %1954 = vmatmul.mubr.bf16.gmra.mrb[0].mxu0 %v1173
    %v1955 = vpop.f32.mrb[0].mxu0
    %v1956 = vadd.f32 %v304, %v1955
    %v1957 = vpop.f32.mrb[0].mxu0
    %v1958 = vpop.f32.mrb[0].mxu0
    %v1959 = vadd.f32 %v304, %v1958
    %v1960 = vpop.f32.mrb[0].mxu0
    %1961 = vmatprep.mubr.bf16.mxu0 0
    %1962 = vmatmul.mubr.bf16.gmra.mrb[0].mxu0 %v1176
    %v1963 = vpop.f32.mrb[0].mxu0
    %v1964 = vadd.f32 %v304, %v1963
    %v1965 = vpop.f32.mrb[0].mxu0
    %v1966 = vpop.f32.mrb[0].mxu0
    %v1967 = vadd.f32 %v304, %v1966
    %v1968 = vpop.f32.mrb[0].mxu0
    %1969 = vmatprep.mubr.bf16.mxu0 0
    %1970 = vmatmul.mubr.bf16.gmra.mrb[0].mxu0 %v1179
    %v1971 = vpop.f32.mrb[0].mxu0
    %v1972 = vadd.f32 %v304, %v1971
    %v1973 = vpop.f32.mrb[0].mxu0
    %v1974 = vpop.f32.mrb[0].mxu0
    %v1975 = vadd.f32 %v304, %v1974
    %v1976 = vpop.f32.mrb[0].mxu0
    %1977 = vmatprep.mubr.bf16.mxu0 0
    %1978 = vmatmul.mubr.bf16.gmra.mrb[0].mxu0 %v1182
    %v1979 = vpop.f32.mrb[0].mxu0
    %v1980 = vadd.f32 %v304, %v1979
    %v1981 = vpop.f32.mrb[0].mxu0
    %v1982 = vpop.f32.mrb[0].mxu0
    %v1983 = vadd.f32 %v304, %v1982
    %v1984 = vpop.f32.mrb[0].mxu0
    %1985 = vmatprep.mubr.bf16.mxu0 0
    %1986 = vmatmul.mubr.bf16.gmra.mrb[0].mxu0 %v1185
    %v1987 = vpop.f32.mrb[0].mxu0
    %v1988 = vadd.f32 %v304, %v1987
    %v1989 = vpop.f32.mrb[0].mxu0
    %v1990 = vpop.f32.mrb[0].mxu0
    %v1991 = vadd.f32 %v304, %v1990
    %v1992 = vpop.f32.mrb[0].mxu0
    %1993 = vmatprep.mubr.bf16.mxu0 0
    %1994 = vmatmul.mubr.bf16.gmra.mrb[0].mxu0 %v1188
    %v1995 = vpop.f32.mrb[0].mxu0
    %v1996 = vadd.f32 %v304, %v1995
    %v1997 = vpop.f32.mrb[0].mxu0
    %v1998 = vpop.f32.mrb[0].mxu0
    %v1999 = vadd.f32 %v304, %v1998
    %v2000 = vpop.f32.mrb[0].mxu0
    %2001 = vmatprep.mubr.bf16.mxu0 0
    %2002 = vmatmul.mubr.bf16.gmra.mrb[0].mxu0 %v1191
    %v2003 = vpop.f32.mrb[0].mxu0
    %v2004 = vadd.f32 %v304, %v2003
    %v2005 = vpop.f32.mrb[0].mxu0
    %v2006 = vpop.f32.mrb[0].mxu0
    %v2007 = vadd.f32 %v304, %v2006
    %v2008 = vpop.f32.mrb[0].mxu0
    %2009 = vmatprep.mubr.bf16.mxu0 0
    %2010 = vmatmul.mubr.bf16.gmra.mrb[0].mxu0 %v1194
    %v2011 = vpop.f32.mrb[0].mxu0
    %v2012 = vadd.f32 %v304, %v2011
    %v2013 = vpop.f32.mrb[0].mxu0
    %v2014 = vpop.f32.mrb[0].mxu0
    %v2015 = vadd.f32 %v304, %v2014
    %v2016 = vpop.f32.mrb[0].mxu0
    %2017 = vmatprep.mubr.bf16.mxu0 0
    %2018 = vmatmul.mubr.bf16.gmra.mrb[0].mxu0 %v1197
    %v2019 = vpop.f32.mrb[0].mxu0
    %v2020 = vadd.f32 %v304, %v2019
    %v2021 = vpop.f32.mrb[0].mxu0
    %v2022 = vpop.f32.mrb[0].mxu0
    %v2023 = vadd.f32 %v304, %v2022
    %v2024 = vpop.f32.mrb[0].mxu0
    %2025 = vmatprep.mubr.bf16.mxu0 0
    %2026 = vmatmul.mubr.bf16.gmra.mrb[0].mxu0 %v1200
    %v2027 = vpop.f32.mrb[0].mxu0
    %v2028 = vadd.f32 %v304, %v2027
    %v2029 = vpop.f32.mrb[0].mxu0
    %v2030 = vpop.f32.mrb[0].mxu0
    %v2031 = vadd.f32 %v304, %v2030
    %v2032 = vpop.f32.mrb[0].mxu0
    %2033 = vmatprep.mubr.bf16.mxu0 0
    %2034 = vmatmul.mubr.bf16.gmra.mrb[0].mxu0 %v1203
    %v2035 = vpop.f32.mrb[0].mxu0
    %v2036 = vadd.f32 %v304, %v2035
    %v2037 = vpop.f32.mrb[0].mxu0
    %v2038 = vpop.f32.mrb[0].mxu0
    %v2039 = vadd.f32 %v304, %v2038
    %v2040 = vpop.f32.mrb[0].mxu0
    %2041 = vmatprep.mubr.bf16.mxu0 0
    %2042 = vmatmul.mubr.bf16.gmra.mrb[0].mxu0 %v1206
    %v2043 = vpop.f32.mrb[0].mxu0
    %v2044 = vadd.f32 %v304, %v2043
    %v2045 = vpop.f32.mrb[0].mxu0
    %v2046 = vpop.f32.mrb[0].mxu0
    %v2047 = vadd.f32 %v304, %v2046
    %v2048 = vpop.f32.mrb[0].mxu0
    %2049 = vmatprep.mubr.bf16.mxu0 0
    %2050 = vmatmul.mubr.bf16.gmra.mrb[0].mxu0 %v1209
    %v2051 = vpop.f32.mrb[0].mxu0
    %v2052 = vadd.f32 %v304, %v2051
    %v2053 = vpop.f32.mrb[0].mxu0
    %v2054 = vpop.f32.mrb[0].mxu0
    %v2055 = vadd.f32 %v304, %v2054
    %v2056 = vpop.f32.mrb[0].mxu0
    %2057 = vmatprep.mubr.bf16.mxu0 0
    %2058 = vmatmul.mubr.bf16.gmra.mrb[0].mxu0 %v1212
    %v2059 = vpop.f32.mrb[0].mxu0
    %v2060 = vadd.f32 %v304, %v2059
    %v2061 = vpop.f32.mrb[0].mxu0
    %v2062 = vpop.f32.mrb[0].mxu0
    %v2063 = vadd.f32 %v304, %v2062
    %v2064 = vpop.f32.mrb[0].mxu0
    %2065 = vmatprep.mubr.bf16.mxu0 0
    %2066 = vmatmul.mubr.bf16.gmra.mrb[0].mxu0 %v1215
    %v2067 = vpop.f32.mrb[0].mxu0
    %v2068 = vadd.f32 %v304, %v2067
    %v2069 = vpop.f32.mrb[0].mxu0
    %v2070 = vpop.f32.mrb[0].mxu0
    %v2071 = vadd.f32 %v304, %v2070
    %v2072 = vpop.f32.mrb[0].mxu0
    %2073 = vmatprep.mubr.bf16.mxu0 0
    %2074 = vmatmul.mubr.bf16.gmra.mrb[0].mxu0 %v1218
    %v2075 = vpop.f32.mrb[0].mxu0
    %v2076 = vadd.f32 %v304, %v2075
    %v2077 = vpop.f32.mrb[0].mxu0
    %v2078 = vpop.f32.mrb[0].mxu0
    %v2079 = vadd.f32 %v304, %v2078
    %v2080 = vpop.f32.mrb[0].mxu0
    %2081 = vmatprep.mubr.bf16.mxu0 0
    %2082 = vmatmul.mubr.bf16.gmra.mrb[0].mxu0 %v1221
    %v2083 = vpop.f32.mrb[0].mxu0
    %v2084 = vadd.f32 %v304, %v2083
    %v2085 = vpop.f32.mrb[0].mxu0
    %v2086 = vpop.f32.mrb[0].mxu0
    %v2087 = vadd.f32 %v304, %v2086
    %v2088 = vpop.f32.mrb[0].mxu0
    %2089 = vmatprep.mubr.bf16.mxu0 0
    %2090 = vmatmul.mubr.bf16.gmra.mrb[0].mxu0 %v1224
    %v2091 = vpop.f32.mrb[0].mxu0
    %v2092 = vadd.f32 %v304, %v2091
    %v2093 = vpop.f32.mrb[0].mxu0
    %v2094 = vpop.f32.mrb[0].mxu0
    %v2095 = vadd.f32 %v304, %v2094
    %v2096 = vpop.f32.mrb[0].mxu0
    %2097 = vmatprep.mubr.bf16.mxu0 0
    %2098 = vmatmul.mubr.bf16.gmra.mrb[0].mxu0 %v1227
    %v2099 = vpop.f32.mrb[0].mxu0
    %v2100 = vadd.f32 %v304, %v2099
    %v2101 = vpop.f32.mrb[0].mxu0
    %v2102 = vpop.f32.mrb[0].mxu0
    %v2103 = vadd.f32 %v304, %v2102
    %v2104 = vpop.f32.mrb[0].mxu0
    %2105 = vmatprep.mubr.bf16.mxu0 0
    %2106 = vmatmul.mubr.bf16.gmra.mrb[0].mxu0 %v1230
    %v2107 = vpop.f32.mrb[0].mxu0
    %v2108 = vadd.f32 %v304, %v2107
    %v2109 = vpop.f32.mrb[0].mxu0
    %v2110 = vpop.f32.mrb[0].mxu0
    %v2111 = vadd.f32 %v304, %v2110
    %v2112 = vpop.f32.mrb[0].mxu0
    %2113 = vmatprep.mubr.bf16.mxu0 0
    %2114 = vmatmul.mubr.bf16.gmra.mrb[0].mxu0 %v1233
    %v2115 = vpop.f32.mrb[0].mxu0
    %v2116 = vadd.f32 %v304, %v2115
    %v2117 = vpop.f32.mrb[0].mxu0
    %v2118 = vpop.f32.mrb[0].mxu0
    %v2119 = vadd.f32 %v304, %v2118
    %v2120 = vpop.f32.mrb[0].mxu0
    %2121 = vmatprep.mubr.bf16.mxu0 0
    %2122 = vmatmul.mubr.bf16.gmra.mrb[0].mxu0 %v1236
    %v2123 = vpop.f32.mrb[0].mxu0
    %v2124 = vadd.f32 %v304, %v2123
    %v2125 = vpop.f32.mrb[0].mxu0
    %v2126 = vpop.f32.mrb[0].mxu0
    %v2127 = vadd.f32 %v304, %v2126
    %v2128 = vpop.f32.mrb[0].mxu0
    %2129 = vmatprep.mubr.bf16.mxu0 0
    %2130 = vmatmul.mubr.bf16.gmra.mrb[0].mxu0 %v1239
    %v2131 = vpop.f32.mrb[0].mxu0
    %v2132 = vadd.f32 %v304, %v2131
    %v2133 = vpop.f32.mrb[0].mxu0
    %v2134 = vpop.f32.mrb[0].mxu0
    %v2135 = vadd.f32 %v304, %v2134
    %v2136 = vpop.f32.mrb[0].mxu0
    %2137 = vmatprep.mubr.bf16.mxu0 0
    %2138 = vmatmul.mubr.bf16.gmra.mrb[0].mxu0 %v1242
    %v2139 = vpop.f32.mrb[0].mxu0
    %v2140 = vadd.f32 %v304, %v2139
    %v2141 = vpop.f32.mrb[0].mxu0
    %v2142 = vpop.f32.mrb[0].mxu0
    %v2143 = vadd.f32 %v304, %v2142
    %v2144 = vpop.f32.mrb[0].mxu0
    %2145 = vmatprep.mubr.bf16.mxu0 0
    %2146 = vmatmul.mubr.bf16.gmra.mrb[0].mxu0 %v1245
    %v2147 = vpop.f32.mrb[0].mxu0
    %v2148 = vadd.f32 %v304, %v2147
    %v2149 = vpop.f32.mrb[0].mxu0
    %v2150 = vpop.f32.mrb[0].mxu0
    %v2151 = vadd.f32 %v304, %v2150
    %v2152 = vpop.f32.mrb[0].mxu0
    %2153 = vmatprep.mubr.bf16.mxu0 0
    %2154 = vmatmul.mubr.bf16.gmra.mrb[0].mxu0 %v1248
    %v2155 = vpop.f32.mrb[0].mxu0
    %v2156 = vadd.f32 %v304, %v2155
    %v2157 = vpop.f32.mrb[0].mxu0
    %v2158 = vpop.f32.mrb[0].mxu0
    %v2159 = vadd.f32 %v304, %v2158
    %v2160 = vpop.f32.mrb[0].mxu0
    %2161 = vmatprep.mubr.bf16.mxu0 0
    %2162 = vmatmul.mubr.bf16.gmra.mrb[0].mxu0 %v1251
    %v2163 = vpop.f32.mrb[0].mxu0
    %v2164 = vadd.f32 %v304, %v2163
    %v2165 = vpop.f32.mrb[0].mxu0
    %v2166 = vpop.f32.mrb[0].mxu0
    %v2167 = vadd.f32 %v304, %v2166
    %v2168 = vpop.f32.mrb[0].mxu0
    %2169 = vmatprep.mubr.bf16.mxu0 0
    %2170 = vmatmul.mubr.bf16.gmra.mrb[0].mxu0 %v1254
    %v2171 = vpop.f32.mrb[0].mxu0
    %v2172 = vadd.f32 %v304, %v2171
    %v2173 = vpop.f32.mrb[0].mxu0
    %v2174 = vpop.f32.mrb[0].mxu0
    %v2175 = vadd.f32 %v304, %v2174
    %v2176 = vpop.f32.mrb[0].mxu0
    %2177 = vmatprep.mubr.bf16.mxu0 0
    %2178 = vmatmul.mubr.bf16.gmra.mrb[0].mxu0 %v1257
    %v2179 = vpop.f32.mrb[0].mxu0
    %v2180 = vadd.f32 %v304, %v2179
    %v2181 = vpop.f32.mrb[0].mxu0
    %v2182 = vpop.f32.mrb[0].mxu0
    %v2183 = vadd.f32 %v304, %v2182
    %v2184 = vpop.f32.mrb[0].mxu0
    %2185 = vmatprep.mubr.bf16.mxu0 0
    %2186 = vmatmul.mubr.bf16.gmra.mrb[0].mxu0 %v1260
    %v2187 = vpop.f32.mrb[0].mxu0
    %v2188 = vadd.f32 %v304, %v2187
    %v2189 = vpop.f32.mrb[0].mxu0
    %v2190 = vpop.f32.mrb[0].mxu0
    %v2191 = vadd.f32 %v304, %v2190
    %v2192 = vpop.f32.mrb[0].mxu0
    %2193 = vmatprep.mubr.bf16.mxu0 0
    %2194 = vmatmul.mubr.bf16.gmra.mrb[0].mxu0 %v1263
    %v2195 = vpop.f32.mrb[0].mxu0
    %v2196 = vadd.f32 %v304, %v2195
    %v2197 = vpop.f32.mrb[0].mxu0
    %v2198 = vpop.f32.mrb[0].mxu0
    %v2199 = vadd.f32 %v304, %v2198
    %v2200 = vpop.f32.mrb[0].mxu0
    %2201 = vmatprep.mubr.bf16.mxu0 0
    %2202 = vmatmul.mubr.bf16.gmra.mrb[0].mxu0 %v1266
    %v2203 = vpop.f32.mrb[0].mxu0
    %v2204 = vadd.f32 %v304, %v2203
    %v2205 = vpop.f32.mrb[0].mxu0
    %v2206 = vpop.f32.mrb[0].mxu0
    %v2207 = vadd.f32 %v304, %v2206
    %v2208 = vpop.f32.mrb[0].mxu0
    %2209 = vmatprep.mubr.bf16.mxu0 0
    %2210 = vmatmul.mubr.bf16.gmra.mrb[0].mxu0 %v1269
    %v2211 = vpop.f32.mrb[0].mxu0
    %v2212 = vadd.f32 %v304, %v2211
    %v2213 = vpop.f32.mrb[0].mxu0
    %v2214 = vpop.f32.mrb[0].mxu0
    %v2215 = vadd.f32 %v304, %v2214
    %v2216 = vpop.f32.mrb[0].mxu0
    %2217 = vmatprep.mubr.bf16.mxu0 0
    %2218 = vmatmul.mubr.bf16.gmra.mrb[0].mxu0 %v1272
    %v2219 = vpop.f32.mrb[0].mxu0
    %v2220 = vadd.f32 %v304, %v2219
    %v2221 = vpop.f32.mrb[0].mxu0
    %v2222 = vpop.f32.mrb[0].mxu0
    %v2223 = vadd.f32 %v304, %v2222
    %v2224 = vpop.f32.mrb[0].mxu0
    %2225 = vmatprep.mubr.bf16.mxu0 0
    %2226 = vmatmul.mubr.bf16.gmra.mrb[0].mxu0 %v1275
    %v2227 = vpop.f32.mrb[0].mxu0
    %v2228 = vadd.f32 %v304, %v2227
    %v2229 = vpop.f32.mrb[0].mxu0
    %v2230 = vpop.f32.mrb[0].mxu0
    %v2231 = vadd.f32 %v304, %v2230
    %v2232 = vpop.f32.mrb[0].mxu0
    %2233 = vmatprep.mubr.bf16.mxu0 0
    %2234 = vmatmul.mubr.bf16.gmra.mrb[0].mxu0 %v1278
    %v2235 = vpop.f32.mrb[0].mxu0
    %v2236 = vadd.f32 %v304, %v2235
    %v2237 = vpop.f32.mrb[0].mxu0
    %v2238 = vpop.f32.mrb[0].mxu0
    %v2239 = vadd.f32 %v304, %v2238
    %v2240 = vpop.f32.mrb[0].mxu0
    %2241 = vmatprep.mubr.bf16.mxu0 0
    %2242 = vmatmul.mubr.bf16.gmra.mrb[0].mxu0 %v1281
    %v2243 = vpop.f32.mrb[0].mxu0
    %v2244 = vadd.f32 %v304, %v2243
    %v2245 = vpop.f32.mrb[0].mxu0
    %v2246 = vpop.f32.mrb[0].mxu0
    %v2247 = vadd.f32 %v304, %v2246
    %v2248 = vpop.f32.mrb[0].mxu0
    %2249 = vmatprep.mubr.bf16.mxu0 0
    %2250 = vmatmul.mubr.bf16.gmra.mrb[0].mxu0 %v1284
    %v2251 = vpop.f32.mrb[0].mxu0
    %v2252 = vadd.f32 %v304, %v2251
    %v2253 = vpop.f32.mrb[0].mxu0
    %v2254 = vpop.f32.mrb[0].mxu0
    %v2255 = vadd.f32 %v304, %v2254
    %v2256 = vpop.f32.mrb[0].mxu0
    %2257 = vmatprep.mubr.bf16.mxu0 0
    %2258 = vmatmul.mubr.bf16.gmra.mrb[0].mxu0 %v1287
    %v2259 = vpop.f32.mrb[0].mxu0
    %v2260 = vadd.f32 %v304, %v2259
    %v2261 = vpop.f32.mrb[0].mxu0
    %v2262 = vpop.f32.mrb[0].mxu0
    %v2263 = vadd.f32 %v304, %v2262
    %v2264 = vpop.f32.mrb[0].mxu0
    %2265 = vmatprep.mubr.bf16.mxu0 0
    %2266 = vmatmul.mubr.bf16.gmra.mrb[0].mxu0 %v1290
    %v2267 = vpop.f32.mrb[0].mxu0
    %v2268 = vadd.f32 %v304, %v2267
    %v2269 = vpop.f32.mrb[0].mxu0
    %v2270 = vpop.f32.mrb[0].mxu0
    %v2271 = vadd.f32 %v304, %v2270
    %v2272 = vpop.f32.mrb[0].mxu0
    %2273 = vmatprep.mubr.bf16.mxu0 0
    %2274 = vmatmul.mubr.bf16.gmra.mrb[0].mxu0 %v1293
    %v2275 = vpop.f32.mrb[0].mxu0
    %v2276 = vadd.f32 %v304, %v2275
    %v2277 = vpop.f32.mrb[0].mxu0
    %v2278 = vpop.f32.mrb[0].mxu0
    %v2279 = vadd.f32 %v304, %v2278
    %v2280 = vpop.f32.mrb[0].mxu0
    %2281 = vmatprep.mubr.bf16.mxu0 0
    %2282 = vmatmul.mubr.bf16.gmra.mrb[0].mxu0 %v1296
    %v2283 = vpop.f32.mrb[0].mxu0
    %v2284 = vadd.f32 %v304, %v2283
    %v2285 = vpop.f32.mrb[0].mxu0
    %v2286 = vpop.f32.mrb[0].mxu0
    %v2287 = vadd.f32 %v304, %v2286
    %v2288 = vpop.f32.mrb[0].mxu0
    %2289 = vmatprep.mubr.bf16.mxu0 0
    %2290 = vmatmul.mubr.bf16.gmra.mrb[0].mxu0 %v1299
    %v2291 = vpop.f32.mrb[0].mxu0
    %v2292 = vadd.f32 %v304, %v2291
    %v2293 = vpop.f32.mrb[0].mxu0
    %v2294 = vpop.f32.mrb[0].mxu0
    %v2295 = vadd.f32 %v304, %v2294
    %v2296 = vpop.f32.mrb[0].mxu0
    %2297 = vmatprep.mubr.bf16.mxu0 0
    %2298 = vmatmul.mubr.bf16.gmra.mrb[0].mxu0 %v1302
    %v2299 = vpop.f32.mrb[0].mxu0
    %v2300 = vadd.f32 %v304, %v2299
    %v2301 = vpop.f32.mrb[0].mxu0
    %v2302 = vpop.f32.mrb[0].mxu0
    %v2303 = vadd.f32 %v304, %v2302
    %v2304 = vpop.f32.mrb[0].mxu0
    %2305 = vmatprep.mubr.bf16.mxu0 0
    %2306 = vmatmul.mubr.bf16.gmra.mrb[0].mxu0 %v1305
    %v2307 = vpop.f32.mrb[0].mxu0
    %v2308 = vadd.f32 %v304, %v2307
    %v2309 = vpop.f32.mrb[0].mxu0
    %v2310 = vpop.f32.mrb[0].mxu0
    %v2311 = vadd.f32 %v304, %v2310
    %v2312 = vpop.f32.mrb[0].mxu0
    %2313 = vmatprep.mubr.bf16.mxu0 0
    %2314 = vmatmul.mubr.bf16.gmra.mrb[0].mxu0 %v1308
    %v2315 = vpop.f32.mrb[0].mxu0
    %v2316 = vadd.f32 %v304, %v2315
    %v2317 = vpop.f32.mrb[0].mxu0
    %v2318 = vpop.f32.mrb[0].mxu0
    %v2319 = vadd.f32 %v304, %v2318
    %v2320 = vpop.f32.mrb[0].mxu0
    %2321 = vmatprep.mubr.bf16.mxu0 0
    %2322 = vmatmul.mubr.bf16.gmra.mrb[0].mxu0 %v1311
    %v2323 = vpop.f32.mrb[0].mxu0
    %v2324 = vadd.f32 %v304, %v2323
    %v2325 = vpop.f32.mrb[0].mxu0
    %v2326 = vpop.f32.mrb[0].mxu0
    %v2327 = vadd.f32 %v304, %v2326
    %v2328 = vpop.f32.mrb[0].mxu0
    %2329 = vmatprep.mubr.bf16.mxu0 0
    %2330 = vmatmul.mubr.bf16.gmra.mrb[0].mxu0 %v1314
    %v2331 = vpop.f32.mrb[0].mxu0
    %v2332 = vadd.f32 %v304, %v2331
    %v2333 = vpop.f32.mrb[0].mxu0
    %v2334 = vpop.f32.mrb[0].mxu0
    %v2335 = vadd.f32 %v304, %v2334
    %v2336 = vpop.f32.mrb[0].mxu0
    %2337 = vmatprep.mubr.bf16.mxu0 0
    %2338 = vmatmul.mubr.bf16.gmra.mrb[0].mxu0 %v1317
    %v2339 = vpop.f32.mrb[0].mxu0
    %v2340 = vadd.f32 %v304, %v2339
    %v2341 = vpop.f32.mrb[0].mxu0
    %v2342 = vpop.f32.mrb[0].mxu0
    %v2343 = vadd.f32 %v304, %v2342
    %v2344 = vpop.f32.mrb[0].mxu0
    %2345 = vmatprep.mubr.bf16.mxu0 0
    %2346 = vmatmul.mubr.bf16.gmra.mrb[0].mxu0 %v1320
    %v2347 = vpop.f32.mrb[0].mxu0
    %v2348 = vadd.f32 %v304, %v2347
    %v2349 = vpop.f32.mrb[0].mxu0
    %v2350 = vpop.f32.mrb[0].mxu0
    %v2351 = vadd.f32 %v304, %v2350
    %v2352 = vpop.f32.mrb[0].mxu0
    %2353 = vmatprep.mubr.bf16.mxu0 0
    %2354 = vmatmul.mubr.bf16.gmra.mrb[0].mxu0 %v1323
    %v2355 = vpop.f32.mrb[0].mxu0
    %v2356 = vadd.f32 %v304, %v2355
    %v2357 = vpop.f32.mrb[0].mxu0
    %v2358 = vpop.f32.mrb[0].mxu0
    %v2359 = vadd.f32 %v304, %v2358
    %v2360 = vpop.f32.mrb[0].mxu0
    %2361 = vmatprep.mubr.bf16.mxu0 0
    %2362 = vmatmul.mubr.bf16.gmra.mrb[0].mxu0 %v1326
    %v2363 = vpop.f32.mrb[0].mxu0
    %v2364 = vadd.f32 %v304, %v2363
    %v2365 = vpop.f32.mrb[0].mxu0
    %v2366 = vpop.f32.mrb[0].mxu0
    %v2367 = vadd.f32 %v304, %v2366
    %v2368 = vpop.f32.mrb[0].mxu0
    %2369 = vmatprep.mubr.bf16.mxu0 0
    %2370 = vmatmul.mubr.bf16.gmra.mrb[0].mxu0 %v1329
    %v2371 = vpop.f32.mrb[0].mxu0
    %v2372 = vadd.f32 %v304, %v2371
    %v2373 = vpop.f32.mrb[0].mxu0
    %v2374 = vpop.f32.mrb[0].mxu0
    %v2375 = vadd.f32 %v304, %v2374
    %v2376 = vpop.f32.mrb[0].mxu0
    %2377 = vmatprep.mubr.bf16.mxu0 0
    %2378 = vmatmul.mubr.bf16.gmra.mrb[0].mxu0 %v1332
    %v2379 = vpop.f32.mrb[0].mxu0
    %v2380 = vadd.f32 %v304, %v2379
    %v2381 = vpop.f32.mrb[0].mxu0
    %v2382 = vpop.f32.mrb[0].mxu0
    %v2383 = vadd.f32 %v304, %v2382
    %v2384 = vpop.f32.mrb[0].mxu0
    %2385 = vmatprep.mubr.bf16.mxu0 0
    %2386 = vmatmul.mubr.bf16.gmra.mrb[0].mxu0 %v1335
    %v2387 = vpop.f32.mrb[0].mxu0
    %v2388 = vadd.f32 %v304, %v2387
    %v2389 = vpop.f32.mrb[0].mxu0
    %v2390 = vpop.f32.mrb[0].mxu0
    %v2391 = vadd.f32 %v304, %v2390
    %v2392 = vpop.f32.mrb[0].mxu0
    %2393 = vdwg.mxu0
    %vm2394 = vcmp.ge.f32.partialorder %v1372, 0.0
    %vm2395 = vcmp.ge.f32.partialorder %v1375, 0.0
    %vm2396 = vcmp.ge.f32.partialorder %v1380, 0.0
    %vm2397 = vcmp.ge.f32.partialorder %v1383, 0.0
    %vm2398 = vcmp.ge.f32.partialorder %v1388, 0.0
    %vm2399 = vcmp.ge.f32.partialorder %v1391, 0.0
    %vm2400 = vcmp.ge.f32.partialorder %v1396, 0.0
    %vm2401 = vcmp.ge.f32.partialorder %v1399, 0.0
    %vm2402 = vcmp.ge.f32.partialorder %v1404, 0.0
    %vm2403 = vcmp.ge.f32.partialorder %v1407, 0.0
    %vm2404 = vcmp.ge.f32.partialorder %v1412, 0.0
    %vm2405 = vcmp.ge.f32.partialorder %v1415, 0.0
    %vm2406 = vcmp.ge.f32.partialorder %v1420, 0.0
    %vm2407 = vcmp.ge.f32.partialorder %v1423, 0.0
    %vm2408 = vcmp.ge.f32.partialorder %v1428, 0.0
    %vm2409 = vcmp.ge.f32.partialorder %v1431, 0.0
    %vm2410 = vcmp.ge.f32.partialorder %v1436, 0.0
    %vm2411 = vcmp.ge.f32.partialorder %v1439, 0.0
    %vm2412 = vcmp.ge.f32.partialorder %v1444, 0.0
    %vm2413 = vcmp.ge.f32.partialorder %v1447, 0.0
    %vm2414 = vcmp.ge.f32.partialorder %v1452, 0.0
    %vm2415 = vcmp.ge.f32.partialorder %v1455, 0.0
    %vm2416 = vcmp.ge.f32.partialorder %v1460, 0.0
    %vm2417 = vcmp.ge.f32.partialorder %v1463, 0.0
    %vm2418 = vcmp.ge.f32.partialorder %v1468, 0.0
    %vm2419 = vcmp.ge.f32.partialorder %v1471, 0.0
    %vm2420 = vcmp.ge.f32.partialorder %v1476, 0.0
    %vm2421 = vcmp.ge.f32.partialorder %v1479, 0.0
    %vm2422 = vcmp.ge.f32.partialorder %v1484, 0.0
    %vm2423 = vcmp.ge.f32.partialorder %v1487, 0.0
    %vm2424 = vcmp.ge.f32.partialorder %v1492, 0.0
    %vm2425 = vcmp.ge.f32.partialorder %v1495, 0.0
    %vm2426 = vcmp.ge.f32.partialorder %v1500, 0.0
    %vm2427 = vcmp.ge.f32.partialorder %v1503, 0.0
    %vm2428 = vcmp.ge.f32.partialorder %v1508, 0.0
    %vm2429 = vcmp.ge.f32.partialorder %v1511, 0.0
    %vm2430 = vcmp.ge.f32.partialorder %v1516, 0.0
    %vm2431 = vcmp.ge.f32.partialorder %v1519, 0.0
    %vm2432 = vcmp.ge.f32.partialorder %v1524, 0.0
    %vm2433 = vcmp.ge.f32.partialorder %v1527, 0.0
    %vm2434 = vcmp.ge.f32.partialorder %v1532, 0.0
    %vm2435 = vcmp.ge.f32.partialorder %v1535, 0.0
    %vm2436 = vcmp.ge.f32.partialorder %v1540, 0.0
    %vm2437 = vcmp.ge.f32.partialorder %v1543, 0.0
    %vm2438 = vcmp.ge.f32.partialorder %v1548, 0.0
    %vm2439 = vcmp.ge.f32.partialorder %v1551, 0.0
    %vm2440 = vcmp.ge.f32.partialorder %v1556, 0.0
    %vm2441 = vcmp.ge.f32.partialorder %v1559, 0.0
    %vm2442 = vcmp.ge.f32.partialorder %v1564, 0.0
    %vm2443 = vcmp.ge.f32.partialorder %v1567, 0.0
    %vm2444 = vcmp.ge.f32.partialorder %v1572, 0.0
    %vm2445 = vcmp.ge.f32.partialorder %v1575, 0.0
    %vm2446 = vcmp.ge.f32.partialorder %v1580, 0.0
    %vm2447 = vcmp.ge.f32.partialorder %v1583, 0.0
    %vm2448 = vcmp.ge.f32.partialorder %v1588, 0.0
    %vm2449 = vcmp.ge.f32.partialorder %v1591, 0.0
    %vm2450 = vcmp.ge.f32.partialorder %v1596, 0.0
    %vm2451 = vcmp.ge.f32.partialorder %v1599, 0.0
    %vm2452 = vcmp.ge.f32.partialorder %v1604, 0.0
    %vm2453 = vcmp.ge.f32.partialorder %v1607, 0.0
    %vm2454 = vcmp.ge.f32.partialorder %v1612, 0.0
    %vm2455 = vcmp.ge.f32.partialorder %v1615, 0.0
    %vm2456 = vcmp.ge.f32.partialorder %v1620, 0.0
    %vm2457 = vcmp.ge.f32.partialorder %v1623, 0.0
    %vm2458 = vcmp.ge.f32.partialorder %v1628, 0.0
    %vm2459 = vcmp.ge.f32.partialorder %v1631, 0.0
    %vm2460 = vcmp.ge.f32.partialorder %v1636, 0.0
    %vm2461 = vcmp.ge.f32.partialorder %v1639, 0.0
    %vm2462 = vcmp.ge.f32.partialorder %v1644, 0.0
    %vm2463 = vcmp.ge.f32.partialorder %v1647, 0.0
    %vm2464 = vcmp.ge.f32.partialorder %v1652, 0.0
    %vm2465 = vcmp.ge.f32.partialorder %v1655, 0.0
    %vm2466 = vcmp.ge.f32.partialorder %v1660, 0.0
    %vm2467 = vcmp.ge.f32.partialorder %v1663, 0.0
    %vm2468 = vcmp.ge.f32.partialorder %v1668, 0.0
    %vm2469 = vcmp.ge.f32.partialorder %v1671, 0.0
    %vm2470 = vcmp.ge.f32.partialorder %v1676, 0.0
    %vm2471 = vcmp.ge.f32.partialorder %v1679, 0.0
    %vm2472 = vcmp.ge.f32.partialorder %v1684, 0.0
    %vm2473 = vcmp.ge.f32.partialorder %v1687, 0.0
    %vm2474 = vcmp.ge.f32.partialorder %v1692, 0.0
    %vm2475 = vcmp.ge.f32.partialorder %v1695, 0.0
    %vm2476 = vcmp.ge.f32.partialorder %v1700, 0.0
    %vm2477 = vcmp.ge.f32.partialorder %v1703, 0.0
    %vm2478 = vcmp.ge.f32.partialorder %v1708, 0.0
    %vm2479 = vcmp.ge.f32.partialorder %v1711, 0.0
    %vm2480 = vcmp.ge.f32.partialorder %v1716, 0.0
    %vm2481 = vcmp.ge.f32.partialorder %v1719, 0.0
    %vm2482 = vcmp.ge.f32.partialorder %v1724, 0.0
    %vm2483 = vcmp.ge.f32.partialorder %v1727, 0.0
    %vm2484 = vcmp.ge.f32.partialorder %v1732, 0.0
    %vm2485 = vcmp.ge.f32.partialorder %v1735, 0.0
    %vm2486 = vcmp.ge.f32.partialorder %v1740, 0.0
    %vm2487 = vcmp.ge.f32.partialorder %v1743, 0.0
    %vm2488 = vcmp.ge.f32.partialorder %v1748, 0.0
    %vm2489 = vcmp.ge.f32.partialorder %v1751, 0.0
    %vm2490 = vcmp.ge.f32.partialorder %v1756, 0.0
    %vm2491 = vcmp.ge.f32.partialorder %v1759, 0.0
    %vm2492 = vcmp.ge.f32.partialorder %v1764, 0.0
    %vm2493 = vcmp.ge.f32.partialorder %v1767, 0.0
    %vm2494 = vcmp.ge.f32.partialorder %v1772, 0.0
    %vm2495 = vcmp.ge.f32.partialorder %v1775, 0.0
    %vm2496 = vcmp.ge.f32.partialorder %v1780, 0.0
    %vm2497 = vcmp.ge.f32.partialorder %v1783, 0.0
    %vm2498 = vcmp.ge.f32.partialorder %v1788, 0.0
    %vm2499 = vcmp.ge.f32.partialorder %v1791, 0.0
    %vm2500 = vcmp.ge.f32.partialorder %v1796, 0.0
    %vm2501 = vcmp.ge.f32.partialorder %v1799, 0.0
    %vm2502 = vcmp.ge.f32.partialorder %v1804, 0.0
    %vm2503 = vcmp.ge.f32.partialorder %v1807, 0.0
    %vm2504 = vcmp.ge.f32.partialorder %v1812, 0.0
    %vm2505 = vcmp.ge.f32.partialorder %v1815, 0.0
    %vm2506 = vcmp.ge.f32.partialorder %v1820, 0.0
    %vm2507 = vcmp.ge.f32.partialorder %v1823, 0.0
    %vm2508 = vcmp.ge.f32.partialorder %v1828, 0.0
    %vm2509 = vcmp.ge.f32.partialorder %v1831, 0.0
    %vm2510 = vcmp.ge.f32.partialorder %v1836, 0.0
    %vm2511 = vcmp.ge.f32.partialorder %v1839, 0.0
    %vm2512 = vcmp.ge.f32.partialorder %v1844, 0.0
    %vm2513 = vcmp.ge.f32.partialorder %v1847, 0.0
    %vm2514 = vcmp.ge.f32.partialorder %v1852, 0.0
    %vm2515 = vcmp.ge.f32.partialorder %v1855, 0.0
    %vm2516 = vcmp.ge.f32.partialorder %v1860, 0.0
    %vm2517 = vcmp.ge.f32.partialorder %v1863, 0.0
    %vm2518 = vcmp.ge.f32.partialorder %v1868, 0.0
    %vm2519 = vcmp.ge.f32.partialorder %v1871, 0.0
    %vm2520 = vcmp.ge.f32.partialorder %v1876, 0.0
    %vm2521 = vcmp.ge.f32.partialorder %v1879, 0.0
    %vm2522 = vcmp.ge.f32.partialorder %v1884, 0.0
    %vm2523 = vcmp.ge.f32.partialorder %v1887, 0.0
    %vm2524 = vcmp.ge.f32.partialorder %v1892, 0.0
    %vm2525 = vcmp.ge.f32.partialorder %v1895, 0.0
    %vm2526 = vcmp.ge.f32.partialorder %v1900, 0.0
    %vm2527 = vcmp.ge.f32.partialorder %v1903, 0.0
    %vm2528 = vcmp.ge.f32.partialorder %v1908, 0.0
    %vm2529 = vcmp.ge.f32.partialorder %v1911, 0.0
    %vm2530 = vcmp.ge.f32.partialorder %v1916, 0.0
    %vm2531 = vcmp.ge.f32.partialorder %v1919, 0.0
    %vm2532 = vcmp.ge.f32.partialorder %v1924, 0.0
    %vm2533 = vcmp.ge.f32.partialorder %v1927, 0.0
    %vm2534 = vcmp.ge.f32.partialorder %v1932, 0.0
    %vm2535 = vcmp.ge.f32.partialorder %v1935, 0.0
    %vm2536 = vcmp.ge.f32.partialorder %v1940, 0.0
    %vm2537 = vcmp.ge.f32.partialorder %v1943, 0.0
    %vm2538 = vcmp.ge.f32.partialorder %v1948, 0.0
    %vm2539 = vcmp.ge.f32.partialorder %v1951, 0.0
    %vm2540 = vcmp.ge.f32.partialorder %v1956, 0.0
    %vm2541 = vcmp.ge.f32.partialorder %v1959, 0.0
    %vm2542 = vcmp.ge.f32.partialorder %v1964, 0.0
    %vm2543 = vcmp.ge.f32.partialorder %v1967, 0.0
    %vm2544 = vcmp.ge.f32.partialorder %v1972, 0.0
    %vm2545 = vcmp.ge.f32.partialorder %v1975, 0.0
    %vm2546 = vcmp.ge.f32.partialorder %v1980, 0.0
    %vm2547 = vcmp.ge.f32.partialorder %v1983, 0.0
    %vm2548 = vcmp.ge.f32.partialorder %v1988, 0.0
    %vm2549 = vcmp.ge.f32.partialorder %v1991, 0.0
    %vm2550 = vcmp.ge.f32.partialorder %v1996, 0.0
    %vm2551 = vcmp.ge.f32.partialorder %v1999, 0.0
    %vm2552 = vcmp.ge.f32.partialorder %v2004, 0.0
    %vm2553 = vcmp.ge.f32.partialorder %v2007, 0.0
    %vm2554 = vcmp.ge.f32.partialorder %v2012, 0.0
    %vm2555 = vcmp.ge.f32.partialorder %v2015, 0.0
    %vm2556 = vcmp.ge.f32.partialorder %v2020, 0.0
    %vm2557 = vcmp.ge.f32.partialorder %v2023, 0.0
    %vm2558 = vcmp.ge.f32.partialorder %v2028, 0.0
    %vm2559 = vcmp.ge.f32.partialorder %v2031, 0.0
    %vm2560 = vcmp.ge.f32.partialorder %v2036, 0.0
    %vm2561 = vcmp.ge.f32.partialorder %v2039, 0.0
    %vm2562 = vcmp.ge.f32.partialorder %v2044, 0.0
    %vm2563 = vcmp.ge.f32.partialorder %v2047, 0.0
    %vm2564 = vcmp.ge.f32.partialorder %v2052, 0.0
    %vm2565 = vcmp.ge.f32.partialorder %v2055, 0.0
    %vm2566 = vcmp.ge.f32.partialorder %v2060, 0.0
    %vm2567 = vcmp.ge.f32.partialorder %v2063, 0.0
    %vm2568 = vcmp.ge.f32.partialorder %v2068, 0.0
    %vm2569 = vcmp.ge.f32.partialorder %v2071, 0.0
    %vm2570 = vcmp.ge.f32.partialorder %v2076, 0.0
    %vm2571 = vcmp.ge.f32.partialorder %v2079, 0.0
    %vm2572 = vcmp.ge.f32.partialorder %v2084, 0.0
    %vm2573 = vcmp.ge.f32.partialorder %v2087, 0.0
    %vm2574 = vcmp.ge.f32.partialorder %v2092, 0.0
    %vm2575 = vcmp.ge.f32.partialorder %v2095, 0.0
    %vm2576 = vcmp.ge.f32.partialorder %v2100, 0.0
    %vm2577 = vcmp.ge.f32.partialorder %v2103, 0.0
    %vm2578 = vcmp.ge.f32.partialorder %v2108, 0.0
    %vm2579 = vcmp.ge.f32.partialorder %v2111, 0.0
    %vm2580 = vcmp.ge.f32.partialorder %v2116, 0.0
    %vm2581 = vcmp.ge.f32.partialorder %v2119, 0.0
    %vm2582 = vcmp.ge.f32.partialorder %v2124, 0.0
    %vm2583 = vcmp.ge.f32.partialorder %v2127, 0.0
    %vm2584 = vcmp.ge.f32.partialorder %v2132, 0.0
    %vm2585 = vcmp.ge.f32.partialorder %v2135, 0.0
    %vm2586 = vcmp.ge.f32.partialorder %v2140, 0.0
    %vm2587 = vcmp.ge.f32.partialorder %v2143, 0.0
    %vm2588 = vcmp.ge.f32.partialorder %v2148, 0.0
    %vm2589 = vcmp.ge.f32.partialorder %v2151, 0.0
    %vm2590 = vcmp.ge.f32.partialorder %v2156, 0.0
    %vm2591 = vcmp.ge.f32.partialorder %v2159, 0.0
    %vm2592 = vcmp.ge.f32.partialorder %v2164, 0.0
    %vm2593 = vcmp.ge.f32.partialorder %v2167, 0.0
    %vm2594 = vcmp.ge.f32.partialorder %v2172, 0.0
    %vm2595 = vcmp.ge.f32.partialorder %v2175, 0.0
    %vm2596 = vcmp.ge.f32.partialorder %v2180, 0.0
    %vm2597 = vcmp.ge.f32.partialorder %v2183, 0.0
    %vm2598 = vcmp.ge.f32.partialorder %v2188, 0.0
    %vm2599 = vcmp.ge.f32.partialorder %v2191, 0.0
    %vm2600 = vcmp.ge.f32.partialorder %v2196, 0.0
    %vm2601 = vcmp.ge.f32.partialorder %v2199, 0.0
    %vm2602 = vcmp.ge.f32.partialorder %v2204, 0.0
    %vm2603 = vcmp.ge.f32.partialorder %v2207, 0.0
    %vm2604 = vcmp.ge.f32.partialorder %v2212, 0.0
    %vm2605 = vcmp.ge.f32.partialorder %v2215, 0.0
    %vm2606 = vcmp.ge.f32.partialorder %v2220, 0.0
    %vm2607 = vcmp.ge.f32.partialorder %v2223, 0.0
    %vm2608 = vcmp.ge.f32.partialorder %v2228, 0.0
    %vm2609 = vcmp.ge.f32.partialorder %v2231, 0.0
    %vm2610 = vcmp.ge.f32.partialorder %v2236, 0.0
    %vm2611 = vcmp.ge.f32.partialorder %v2239, 0.0
    %vm2612 = vcmp.ge.f32.partialorder %v2244, 0.0
    %vm2613 = vcmp.ge.f32.partialorder %v2247, 0.0
    %vm2614 = vcmp.ge.f32.partialorder %v2252, 0.0
    %vm2615 = vcmp.ge.f32.partialorder %v2255, 0.0
    %vm2616 = vcmp.ge.f32.partialorder %v2260, 0.0
    %vm2617 = vcmp.ge.f32.partialorder %v2263, 0.0
    %vm2618 = vcmp.ge.f32.partialorder %v2268, 0.0
    %vm2619 = vcmp.ge.f32.partialorder %v2271, 0.0
    %vm2620 = vcmp.ge.f32.partialorder %v2276, 0.0
    %vm2621 = vcmp.ge.f32.partialorder %v2279, 0.0
    %vm2622 = vcmp.ge.f32.partialorder %v2284, 0.0
    %vm2623 = vcmp.ge.f32.partialorder %v2287, 0.0
    %vm2624 = vcmp.ge.f32.partialorder %v2292, 0.0
    %vm2625 = vcmp.ge.f32.partialorder %v2295, 0.0
    %vm2626 = vcmp.ge.f32.partialorder %v2300, 0.0
    %vm2627 = vcmp.ge.f32.partialorder %v2303, 0.0
    %vm2628 = vcmp.ge.f32.partialorder %v2308, 0.0
    %vm2629 = vcmp.ge.f32.partialorder %v2311, 0.0
    %vm2630 = vcmp.ge.f32.partialorder %v2316, 0.0
    %vm2631 = vcmp.ge.f32.partialorder %v2319, 0.0
    %vm2632 = vcmp.ge.f32.partialorder %v2324, 0.0
    %vm2633 = vcmp.ge.f32.partialorder %v2327, 0.0
    %vm2634 = vcmp.ge.f32.partialorder %v2332, 0.0
    %vm2635 = vcmp.ge.f32.partialorder %v2335, 0.0
    %vm2636 = vcmp.ge.f32.partialorder %v2340, 0.0
    %vm2637 = vcmp.ge.f32.partialorder %v2343, 0.0
    %vm2638 = vcmp.ge.f32.partialorder %v2348, 0.0
    %vm2639 = vcmp.ge.f32.partialorder %v2351, 0.0
    %vm2640 = vcmp.ge.f32.partialorder %v2356, 0.0
    %vm2641 = vcmp.ge.f32.partialorder %v2359, 0.0
    %vm2642 = vcmp.ge.f32.partialorder %v2364, 0.0
    %vm2643 = vcmp.ge.f32.partialorder %v2367, 0.0
    %vm2644 = vcmp.ge.f32.partialorder %v2372, 0.0
    %vm2645 = vcmp.ge.f32.partialorder %v2375, 0.0
    %vm2646 = vcmp.ge.f32.partialorder %v2380, 0.0
    %vm2647 = vcmp.ge.f32.partialorder %v2383, 0.0
    %vm2648 = vcmp.ge.f32.partialorder %v2388, 0.0
    %vm2649 = vcmp.ge.f32.partialorder %v2391, 0.0
    %v2650 = vmul.f32 %v1372, 0.2
    %v2651 = vmul.f32 %v1375, 0.2
    %v2652 = vmul.f32 %v1380, 0.2
    %v2653 = vmul.f32 %v1383, 0.2
    %v2654 = vmul.f32 %v1388, 0.2
    %v2655 = vmul.f32 %v1391, 0.2
    %v2656 = vmul.f32 %v1396, 0.2
    %v2657 = vmul.f32 %v1399, 0.2
    %v2658 = vmul.f32 %v1404, 0.2
    %v2659 = vmul.f32 %v1407, 0.2
    %v2660 = vmul.f32 %v1412, 0.2
    %v2661 = vmul.f32 %v1415, 0.2
    %v2662 = vmul.f32 %v1420, 0.2
    %v2663 = vmul.f32 %v1423, 0.2
    %v2664 = vmul.f32 %v1428, 0.2
    %v2665 = vmul.f32 %v1431, 0.2
    %v2666 = vmul.f32 %v1436, 0.2
    %v2667 = vmul.f32 %v1439, 0.2
    %v2668 = vmul.f32 %v1444, 0.2
    %v2669 = vmul.f32 %v1447, 0.2
    %v2670 = vmul.f32 %v1452, 0.2
    %v2671 = vmul.f32 %v1455, 0.2
    %v2672 = vmul.f32 %v1460, 0.2
    %v2673 = vmul.f32 %v1463, 0.2
    %v2674 = vmul.f32 %v1468, 0.2
    %v2675 = vmul.f32 %v1471, 0.2
    %v2676 = vmul.f32 %v1476, 0.2
    %v2677 = vmul.f32 %v1479, 0.2
    %v2678 = vmul.f32 %v1484, 0.2
    %v2679 = vmul.f32 %v1487, 0.2
    %v2680 = vmul.f32 %v1492, 0.2
    %v2681 = vmul.f32 %v1495, 0.2
    %v2682 = vmul.f32 %v1500, 0.2
    %v2683 = vmul.f32 %v1503, 0.2
    %v2684 = vmul.f32 %v1508, 0.2
    %v2685 = vmul.f32 %v1511, 0.2
    %v2686 = vmul.f32 %v1516, 0.2
    %v2687 = vmul.f32 %v1519, 0.2
    %v2688 = vmul.f32 %v1524, 0.2
    %v2689 = vmul.f32 %v1527, 0.2
    %v2690 = vmul.f32 %v1532, 0.2
    %v2691 = vmul.f32 %v1535, 0.2
    %v2692 = vmul.f32 %v1540, 0.2
    %v2693 = vmul.f32 %v1543, 0.2
    %v2694 = vmul.f32 %v1548, 0.2
    %v2695 = vmul.f32 %v1551, 0.2
    %v2696 = vmul.f32 %v1556, 0.2
    %v2697 = vmul.f32 %v1559, 0.2
    %v2698 = vmul.f32 %v1564, 0.2
    %v2699 = vmul.f32 %v1567, 0.2
    %v2700 = vmul.f32 %v1572, 0.2
    %v2701 = vmul.f32 %v1575, 0.2
    %v2702 = vmul.f32 %v1580, 0.2
    %v2703 = vmul.f32 %v1583, 0.2
    %v2704 = vmul.f32 %v1588, 0.2
    %v2705 = vmul.f32 %v1591, 0.2
    %v2706 = vmul.f32 %v1596, 0.2
    %v2707 = vmul.f32 %v1599, 0.2
    %v2708 = vmul.f32 %v1604, 0.2
    %v2709 = vmul.f32 %v1607, 0.2
    %v2710 = vmul.f32 %v1612, 0.2
    %v2711 = vmul.f32 %v1615, 0.2
    %v2712 = vmul.f32 %v1620, 0.2
    %v2713 = vmul.f32 %v1623, 0.2
    %v2714 = vmul.f32 %v1628, 0.2
    %v2715 = vmul.f32 %v1631, 0.2
    %v2716 = vmul.f32 %v1636, 0.2
    %v2717 = vmul.f32 %v1639, 0.2
    %v2718 = vmul.f32 %v1644, 0.2
    %v2719 = vmul.f32 %v1647, 0.2
    %v2720 = vmul.f32 %v1652, 0.2
    %v2721 = vmul.f32 %v1655, 0.2
    %v2722 = vmul.f32 %v1660, 0.2
    %v2723 = vmul.f32 %v1663, 0.2
    %v2724 = vmul.f32 %v1668, 0.2
    %v2725 = vmul.f32 %v1671, 0.2
    %v2726 = vmul.f32 %v1676, 0.2
    %v2727 = vmul.f32 %v1679, 0.2
    %v2728 = vmul.f32 %v1684, 0.2
    %v2729 = vmul.f32 %v1687, 0.2
    %v2730 = vmul.f32 %v1692, 0.2
    %v2731 = vmul.f32 %v1695, 0.2
    %v2732 = vmul.f32 %v1700, 0.2
    %v2733 = vmul.f32 %v1703, 0.2
    %v2734 = vmul.f32 %v1708, 0.2
    %v2735 = vmul.f32 %v1711, 0.2
    %v2736 = vmul.f32 %v1716, 0.2
    %v2737 = vmul.f32 %v1719, 0.2
    %v2738 = vmul.f32 %v1724, 0.2
    %v2739 = vmul.f32 %v1727, 0.2
    %v2740 = vmul.f32 %v1732, 0.2
    %v2741 = vmul.f32 %v1735, 0.2
    %v2742 = vmul.f32 %v1740, 0.2
    %v2743 = vmul.f32 %v1743, 0.2
    %v2744 = vmul.f32 %v1748, 0.2
    %v2745 = vmul.f32 %v1751, 0.2
    %v2746 = vmul.f32 %v1756, 0.2
    %v2747 = vmul.f32 %v1759, 0.2
    %v2748 = vmul.f32 %v1764, 0.2
    %v2749 = vmul.f32 %v1767, 0.2
    %v2750 = vmul.f32 %v1772, 0.2
    %v2751 = vmul.f32 %v1775, 0.2
    %v2752 = vmul.f32 %v1780, 0.2
    %v2753 = vmul.f32 %v1783, 0.2
    %v2754 = vmul.f32 %v1788, 0.2
    %v2755 = vmul.f32 %v1791, 0.2
    %v2756 = vmul.f32 %v1796, 0.2
    %v2757 = vmul.f32 %v1799, 0.2
    %v2758 = vmul.f32 %v1804, 0.2
    %v2759 = vmul.f32 %v1807, 0.2
    %v2760 = vmul.f32 %v1812, 0.2
    %v2761 = vmul.f32 %v1815, 0.2
    %v2762 = vmul.f32 %v1820, 0.2
    %v2763 = vmul.f32 %v1823, 0.2
    %v2764 = vmul.f32 %v1828, 0.2
    %v2765 = vmul.f32 %v1831, 0.2
    %v2766 = vmul.f32 %v1836, 0.2
    %v2767 = vmul.f32 %v1839, 0.2
    %v2768 = vmul.f32 %v1844, 0.2
    %v2769 = vmul.f32 %v1847, 0.2
    %v2770 = vmul.f32 %v1852, 0.2
    %v2771 = vmul.f32 %v1855, 0.2
    %v2772 = vmul.f32 %v1860, 0.2
    %v2773 = vmul.f32 %v1863, 0.2
    %v2774 = vmul.f32 %v1868, 0.2
    %v2775 = vmul.f32 %v1871, 0.2
    %v2776 = vmul.f32 %v1876, 0.2
    %v2777 = vmul.f32 %v1879, 0.2
    %v2778 = vmul.f32 %v1884, 0.2
    %v2779 = vmul.f32 %v1887, 0.2
    %v2780 = vmul.f32 %v1892, 0.2
    %v2781 = vmul.f32 %v1895, 0.2
    %v2782 = vmul.f32 %v1900, 0.2
    %v2783 = vmul.f32 %v1903, 0.2
    %v2784 = vmul.f32 %v1908, 0.2
    %v2785 = vmul.f32 %v1911, 0.2
    %v2786 = vmul.f32 %v1916, 0.2
    %v2787 = vmul.f32 %v1919, 0.2
    %v2788 = vmul.f32 %v1924, 0.2
    %v2789 = vmul.f32 %v1927, 0.2
    %v2790 = vmul.f32 %v1932, 0.2
    %v2791 = vmul.f32 %v1935, 0.2
    %v2792 = vmul.f32 %v1940, 0.2
    %v2793 = vmul.f32 %v1943, 0.2
    %v2794 = vmul.f32 %v1948, 0.2
    %v2795 = vmul.f32 %v1951, 0.2
    %v2796 = vmul.f32 %v1956, 0.2
    %v2797 = vmul.f32 %v1959, 0.2
    %v2798 = vmul.f32 %v1964, 0.2
    %v2799 = vmul.f32 %v1967, 0.2
    %v2800 = vmul.f32 %v1972, 0.2
    %v2801 = vmul.f32 %v1975, 0.2
    %v2802 = vmul.f32 %v1980, 0.2
    %v2803 = vmul.f32 %v1983, 0.2
    %v2804 = vmul.f32 %v1988, 0.2
    %v2805 = vmul.f32 %v1991, 0.2
    %v2806 = vmul.f32 %v1996, 0.2
    %v2807 = vmul.f32 %v1999, 0.2
    %v2808 = vmul.f32 %v2004, 0.2
    %v2809 = vmul.f32 %v2007, 0.2
    %v2810 = vmul.f32 %v2012, 0.2
    %v2811 = vmul.f32 %v2015, 0.2
    %v2812 = vmul.f32 %v2020, 0.2
    %v2813 = vmul.f32 %v2023, 0.2
    %v2814 = vmul.f32 %v2028, 0.2
    %v2815 = vmul.f32 %v2031, 0.2
    %v2816 = vmul.f32 %v2036, 0.2
    %v2817 = vmul.f32 %v2039, 0.2
    %v2818 = vmul.f32 %v2044, 0.2
    %v2819 = vmul.f32 %v2047, 0.2
    %v2820 = vmul.f32 %v2052, 0.2
    %v2821 = vmul.f32 %v2055, 0.2
    %v2822 = vmul.f32 %v2060, 0.2
    %v2823 = vmul.f32 %v2063, 0.2
    %v2824 = vmul.f32 %v2068, 0.2
    %v2825 = vmul.f32 %v2071, 0.2
    %v2826 = vmul.f32 %v2076, 0.2
    %v2827 = vmul.f32 %v2079, 0.2
    %v2828 = vmul.f32 %v2084, 0.2
    %v2829 = vmul.f32 %v2087, 0.2
    %v2830 = vmul.f32 %v2092, 0.2
    %v2831 = vmul.f32 %v2095, 0.2
    %v2832 = vmul.f32 %v2100, 0.2
    %v2833 = vmul.f32 %v2103, 0.2
    %v2834 = vmul.f32 %v2108, 0.2
    %v2835 = vmul.f32 %v2111, 0.2
    %v2836 = vmul.f32 %v2116, 0.2
    %v2837 = vmul.f32 %v2119, 0.2
    %v2838 = vmul.f32 %v2124, 0.2
    %v2839 = vmul.f32 %v2127, 0.2
    %v2840 = vmul.f32 %v2132, 0.2
    %v2841 = vmul.f32 %v2135, 0.2
    %v2842 = vmul.f32 %v2140, 0.2
    %v2843 = vmul.f32 %v2143, 0.2
    %v2844 = vmul.f32 %v2148, 0.2
    %v2845 = vmul.f32 %v2151, 0.2
    %v2846 = vmul.f32 %v2156, 0.2
    %v2847 = vmul.f32 %v2159, 0.2
    %v2848 = vmul.f32 %v2164, 0.2
    %v2849 = vmul.f32 %v2167, 0.2
    %v2850 = vmul.f32 %v2172, 0.2
    %v2851 = vmul.f32 %v2175, 0.2
    %v2852 = vmul.f32 %v2180, 0.2
    %v2853 = vmul.f32 %v2183, 0.2
    %v2854 = vmul.f32 %v2188, 0.2
    %v2855 = vmul.f32 %v2191, 0.2
    %v2856 = vmul.f32 %v2196, 0.2
    %v2857 = vmul.f32 %v2199, 0.2
    %v2858 = vmul.f32 %v2204, 0.2
    %v2859 = vmul.f32 %v2207, 0.2
    %v2860 = vmul.f32 %v2212, 0.2
    %v2861 = vmul.f32 %v2215, 0.2
    %v2862 = vmul.f32 %v2220, 0.2
    %v2863 = vmul.f32 %v2223, 0.2
    %v2864 = vmul.f32 %v2228, 0.2
    %v2865 = vmul.f32 %v2231, 0.2
    %v2866 = vmul.f32 %v2236, 0.2
    %v2867 = vmul.f32 %v2239, 0.2
    %v2868 = vmul.f32 %v2244, 0.2
    %v2869 = vmul.f32 %v2247, 0.2
    %v2870 = vmul.f32 %v2252, 0.2
    %v2871 = vmul.f32 %v2255, 0.2
    %v2872 = vmul.f32 %v2260, 0.2
    %v2873 = vmul.f32 %v2263, 0.2
    %v2874 = vmul.f32 %v2268, 0.2
    %v2875 = vmul.f32 %v2271, 0.2
    %v2876 = vmul.f32 %v2276, 0.2
    %v2877 = vmul.f32 %v2279, 0.2
    %v2878 = vmul.f32 %v2284, 0.2
    %v2879 = vmul.f32 %v2287, 0.2
    %v2880 = vmul.f32 %v2292, 0.2
    %v2881 = vmul.f32 %v2295, 0.2
    %v2882 = vmul.f32 %v2300, 0.2
    %v2883 = vmul.f32 %v2303, 0.2
    %v2884 = vmul.f32 %v2308, 0.2
    %v2885 = vmul.f32 %v2311, 0.2
    %v2886 = vmul.f32 %v2316, 0.2
    %v2887 = vmul.f32 %v2319, 0.2
    %v2888 = vmul.f32 %v2324, 0.2
    %v2889 = vmul.f32 %v2327, 0.2
    %v2890 = vmul.f32 %v2332, 0.2
    %v2891 = vmul.f32 %v2335, 0.2
    %v2892 = vmul.f32 %v2340, 0.2
    %v2893 = vmul.f32 %v2343, 0.2
    %v2894 = vmul.f32 %v2348, 0.2
    %v2895 = vmul.f32 %v2351, 0.2
    %v2896 = vmul.f32 %v2356, 0.2
    %v2897 = vmul.f32 %v2359, 0.2
    %v2898 = vmul.f32 %v2364, 0.2
    %v2899 = vmul.f32 %v2367, 0.2
    %v2900 = vmul.f32 %v2372, 0.2
    %v2901 = vmul.f32 %v2375, 0.2
    %v2902 = vmul.f32 %v2380, 0.2
    %v2903 = vmul.f32 %v2383, 0.2
    %v2904 = vmul.f32 %v2388, 0.2
    %v2905 = vmul.f32 %v2391, 0.2
    %v2906 = vsel %vm2394, %v1372, %v2650
    %v2907 = vsel %vm2395, %v1375, %v2651
    %v2908 = vsel %vm2396, %v1380, %v2652
    %v2909 = vsel %vm2397, %v1383, %v2653
    %v2910 = vsel %vm2398, %v1388, %v2654
    %v2911 = vsel %vm2399, %v1391, %v2655
    %v2912 = vsel %vm2400, %v1396, %v2656
    %v2913 = vsel %vm2401, %v1399, %v2657
    %v2914 = vsel %vm2402, %v1404, %v2658
    %v2915 = vsel %vm2403, %v1407, %v2659
    %v2916 = vsel %vm2404, %v1412, %v2660
    %v2917 = vsel %vm2405, %v1415, %v2661
    %v2918 = vsel %vm2406, %v1420, %v2662
    %v2919 = vsel %vm2407, %v1423, %v2663
    %v2920 = vsel %vm2408, %v1428, %v2664
    %v2921 = vsel %vm2409, %v1431, %v2665
    %v2922 = vsel %vm2410, %v1436, %v2666
    %v2923 = vsel %vm2411, %v1439, %v2667
    %v2924 = vsel %vm2412, %v1444, %v2668
    %v2925 = vsel %vm2413, %v1447, %v2669
    %v2926 = vsel %vm2414, %v1452, %v2670
    %v2927 = vsel %vm2415, %v1455, %v2671
    %v2928 = vsel %vm2416, %v1460, %v2672
    %v2929 = vsel %vm2417, %v1463, %v2673
    %v2930 = vsel %vm2418, %v1468, %v2674
    %v2931 = vsel %vm2419, %v1471, %v2675
    %v2932 = vsel %vm2420, %v1476, %v2676
    %v2933 = vsel %vm2421, %v1479, %v2677
    %v2934 = vsel %vm2422, %v1484, %v2678
    %v2935 = vsel %vm2423, %v1487, %v2679
    %v2936 = vsel %vm2424, %v1492, %v2680
    %v2937 = vsel %vm2425, %v1495, %v2681
    %v2938 = vsel %vm2426, %v1500, %v2682
    %v2939 = vsel %vm2427, %v1503, %v2683
    %v2940 = vsel %vm2428, %v1508, %v2684
    %v2941 = vsel %vm2429, %v1511, %v2685
    %v2942 = vsel %vm2430, %v1516, %v2686
    %v2943 = vsel %vm2431, %v1519, %v2687
    %v2944 = vsel %vm2432, %v1524, %v2688
    %v2945 = vsel %vm2433, %v1527, %v2689
    %v2946 = vsel %vm2434, %v1532, %v2690
    %v2947 = vsel %vm2435, %v1535, %v2691
    %v2948 = vsel %vm2436, %v1540, %v2692
    %v2949 = vsel %vm2437, %v1543, %v2693
    %v2950 = vsel %vm2438, %v1548, %v2694
    %v2951 = vsel %vm2439, %v1551, %v2695
    %v2952 = vsel %vm2440, %v1556, %v2696
    %v2953 = vsel %vm2441, %v1559, %v2697
    %v2954 = vsel %vm2442, %v1564, %v2698
    %v2955 = vsel %vm2443, %v1567, %v2699
    %v2956 = vsel %vm2444, %v1572, %v2700
    %v2957 = vsel %vm2445, %v1575, %v2701
    %v2958 = vsel %vm2446, %v1580, %v2702
    %v2959 = vsel %vm2447, %v1583, %v2703
    %v2960 = vsel %vm2448, %v1588, %v2704
    %v2961 = vsel %vm2449, %v1591, %v2705
    %v2962 = vsel %vm2450, %v1596, %v2706
    %v2963 = vsel %vm2451, %v1599, %v2707
    %v2964 = vsel %vm2452, %v1604, %v2708
    %v2965 = vsel %vm2453, %v1607, %v2709
    %v2966 = vsel %vm2454, %v1612, %v2710
    %v2967 = vsel %vm2455, %v1615, %v2711
    %v2968 = vsel %vm2456, %v1620, %v2712
    %v2969 = vsel %vm2457, %v1623, %v2713
    %v2970 = vsel %vm2458, %v1628, %v2714
    %v2971 = vsel %vm2459, %v1631, %v2715
    %v2972 = vsel %vm2460, %v1636, %v2716
    %v2973 = vsel %vm2461, %v1639, %v2717
    %v2974 = vsel %vm2462, %v1644, %v2718
    %v2975 = vsel %vm2463, %v1647, %v2719
    %v2976 = vsel %vm2464, %v1652, %v2720
    %v2977 = vsel %vm2465, %v1655, %v2721
    %v2978 = vsel %vm2466, %v1660, %v2722
    %v2979 = vsel %vm2467, %v1663, %v2723
    %v2980 = vsel %vm2468, %v1668, %v2724
    %v2981 = vsel %vm2469, %v1671, %v2725
    %v2982 = vsel %vm2470, %v1676, %v2726
    %v2983 = vsel %vm2471, %v1679, %v2727
    %v2984 = vsel %vm2472, %v1684, %v2728
    %v2985 = vsel %vm2473, %v1687, %v2729
    %v2986 = vsel %vm2474, %v1692, %v2730
    %v2987 = vsel %vm2475, %v1695, %v2731
    %v2988 = vsel %vm2476, %v1700, %v2732
    %v2989 = vsel %vm2477, %v1703, %v2733
    %v2990 = vsel %vm2478, %v1708, %v2734
    %v2991 = vsel %vm2479, %v1711, %v2735
    %v2992 = vsel %vm2480, %v1716, %v2736
    %v2993 = vsel %vm2481, %v1719, %v2737
    %v2994 = vsel %vm2482, %v1724, %v2738
    %v2995 = vsel %vm2483, %v1727, %v2739
    %v2996 = vsel %vm2484, %v1732, %v2740
    %v2997 = vsel %vm2485, %v1735, %v2741
    %v2998 = vsel %vm2486, %v1740, %v2742
    %v2999 = vsel %vm2487, %v1743, %v2743
    %v3000 = vsel %vm2488, %v1748, %v2744
    %v3001 = vsel %vm2489, %v1751, %v2745
    %v3002 = vsel %vm2490, %v1756, %v2746
    %v3003 = vsel %vm2491, %v1759, %v2747
    %v3004 = vsel %vm2492, %v1764, %v2748
    %v3005 = vsel %vm2493, %v1767, %v2749
    %v3006 = vsel %vm2494, %v1772, %v2750
    %v3007 = vsel %vm2495, %v1775, %v2751
    %v3008 = vsel %vm2496, %v1780, %v2752
    %v3009 = vsel %vm2497, %v1783, %v2753
    %v3010 = vsel %vm2498, %v1788, %v2754
    %v3011 = vsel %vm2499, %v1791, %v2755
    %v3012 = vsel %vm2500, %v1796, %v2756
    %v3013 = vsel %vm2501, %v1799, %v2757
    %v3014 = vsel %vm2502, %v1804, %v2758
    %v3015 = vsel %vm2503, %v1807, %v2759
    %v3016 = vsel %vm2504, %v1812, %v2760
    %v3017 = vsel %vm2505, %v1815, %v2761
    %v3018 = vsel %vm2506, %v1820, %v2762
    %v3019 = vsel %vm2507, %v1823, %v2763
    %v3020 = vsel %vm2508, %v1828, %v2764
    %v3021 = vsel %vm2509, %v1831, %v2765
    %v3022 = vsel %vm2510, %v1836, %v2766
    %v3023 = vsel %vm2511, %v1839, %v2767
    %v3024 = vsel %vm2512, %v1844, %v2768
    %v3025 = vsel %vm2513, %v1847, %v2769
    %v3026 = vsel %vm2514, %v1852, %v2770
    %v3027 = vsel %vm2515, %v1855, %v2771
    %v3028 = vsel %vm2516, %v1860, %v2772
    %v3029 = vsel %vm2517, %v1863, %v2773
    %v3030 = vsel %vm2518, %v1868, %v2774
    %v3031 = vsel %vm2519, %v1871, %v2775
    %v3032 = vsel %vm2520, %v1876, %v2776
    %v3033 = vsel %vm2521, %v1879, %v2777
    %v3034 = vsel %vm2522, %v1884, %v2778
    %v3035 = vsel %vm2523, %v1887, %v2779
    %v3036 = vsel %vm2524, %v1892, %v2780
    %v3037 = vsel %vm2525, %v1895, %v2781
    %v3038 = vsel %vm2526, %v1900, %v2782
    %v3039 = vsel %vm2527, %v1903, %v2783
    %v3040 = vsel %vm2528, %v1908, %v2784
    %v3041 = vsel %vm2529, %v1911, %v2785
    %v3042 = vsel %vm2530, %v1916, %v2786
    %v3043 = vsel %vm2531, %v1919, %v2787
    %v3044 = vsel %vm2532, %v1924, %v2788
    %v3045 = vsel %vm2533, %v1927, %v2789
    %v3046 = vsel %vm2534, %v1932, %v2790
    %v3047 = vsel %vm2535, %v1935, %v2791
    %v3048 = vsel %vm2536, %v1940, %v2792
    %v3049 = vsel %vm2537, %v1943, %v2793
    %v3050 = vsel %vm2538, %v1948, %v2794
    %v3051 = vsel %vm2539, %v1951, %v2795
    %v3052 = vsel %vm2540, %v1956, %v2796
    %v3053 = vsel %vm2541, %v1959, %v2797
    %v3054 = vsel %vm2542, %v1964, %v2798
    %v3055 = vsel %vm2543, %v1967, %v2799
    %v3056 = vsel %vm2544, %v1972, %v2800
    %v3057 = vsel %vm2545, %v1975, %v2801
    %v3058 = vsel %vm2546, %v1980, %v2802
    %v3059 = vsel %vm2547, %v1983, %v2803
    %v3060 = vsel %vm2548, %v1988, %v2804
    %v3061 = vsel %vm2549, %v1991, %v2805
    %v3062 = vsel %vm2550, %v1996, %v2806
    %v3063 = vsel %vm2551, %v1999, %v2807
    %v3064 = vsel %vm2552, %v2004, %v2808
    %v3065 = vsel %vm2553, %v2007, %v2809
    %v3066 = vsel %vm2554, %v2012, %v2810
    %v3067 = vsel %vm2555, %v2015, %v2811
    %v3068 = vsel %vm2556, %v2020, %v2812
    %v3069 = vsel %vm2557, %v2023, %v2813
    %v3070 = vsel %vm2558, %v2028, %v2814
    %v3071 = vsel %vm2559, %v2031, %v2815
    %v3072 = vsel %vm2560, %v2036, %v2816
    %v3073 = vsel %vm2561, %v2039, %v2817
    %v3074 = vsel %vm2562, %v2044, %v2818
    %v3075 = vsel %vm2563, %v2047, %v2819
    %v3076 = vsel %vm2564, %v2052, %v2820
    %v3077 = vsel %vm2565, %v2055, %v2821
    %v3078 = vsel %vm2566, %v2060, %v2822
    %v3079 = vsel %vm2567, %v2063, %v2823
    %v3080 = vsel %vm2568, %v2068, %v2824
    %v3081 = vsel %vm2569, %v2071, %v2825
    %v3082 = vsel %vm2570, %v2076, %v2826
    %v3083 = vsel %vm2571, %v2079, %v2827
    %v3084 = vsel %vm2572, %v2084, %v2828
    %v3085 = vsel %vm2573, %v2087, %v2829
    %v3086 = vsel %vm2574, %v2092, %v2830
    %v3087 = vsel %vm2575, %v2095, %v2831
    %v3088 = vsel %vm2576, %v2100, %v2832
    %v3089 = vsel %vm2577, %v2103, %v2833
    %v3090 = vsel %vm2578, %v2108, %v2834
    %v3091 = vsel %vm2579, %v2111, %v2835
    %v3092 = vsel %vm2580, %v2116, %v2836
    %v3093 = vsel %vm2581, %v2119, %v2837
    %v3094 = vsel %vm2582, %v2124, %v2838
    %v3095 = vsel %vm2583, %v2127, %v2839
    %v3096 = vsel %vm2584, %v2132, %v2840
    %v3097 = vsel %vm2585, %v2135, %v2841
    %v3098 = vsel %vm2586, %v2140, %v2842
    %v3099 = vsel %vm2587, %v2143, %v2843
    %v3100 = vsel %vm2588, %v2148, %v2844
    %v3101 = vsel %vm2589, %v2151, %v2845
    %v3102 = vsel %vm2590, %v2156, %v2846
    %v3103 = vsel %vm2591, %v2159, %v2847
    %v3104 = vsel %vm2592, %v2164, %v2848
    %v3105 = vsel %vm2593, %v2167, %v2849
    %v3106 = vsel %vm2594, %v2172, %v2850
    %v3107 = vsel %vm2595, %v2175, %v2851
    %v3108 = vsel %vm2596, %v2180, %v2852
    %v3109 = vsel %vm2597, %v2183, %v2853
    %v3110 = vsel %vm2598, %v2188, %v2854
    %v3111 = vsel %vm2599, %v2191, %v2855
    %v3112 = vsel %vm2600, %v2196, %v2856
    %v3113 = vsel %vm2601, %v2199, %v2857
    %v3114 = vsel %vm2602, %v2204, %v2858
    %v3115 = vsel %vm2603, %v2207, %v2859
    %v3116 = vsel %vm2604, %v2212, %v2860
    %v3117 = vsel %vm2605, %v2215, %v2861
    %v3118 = vsel %vm2606, %v2220, %v2862
    %v3119 = vsel %vm2607, %v2223, %v2863
    %v3120 = vsel %vm2608, %v2228, %v2864
    %v3121 = vsel %vm2609, %v2231, %v2865
    %v3122 = vsel %vm2610, %v2236, %v2866
    %v3123 = vsel %vm2611, %v2239, %v2867
    %v3124 = vsel %vm2612, %v2244, %v2868
    %v3125 = vsel %vm2613, %v2247, %v2869
    %v3126 = vsel %vm2614, %v2252, %v2870
    %v3127 = vsel %vm2615, %v2255, %v2871
    %v3128 = vsel %vm2616, %v2260, %v2872
    %v3129 = vsel %vm2617, %v2263, %v2873
    %v3130 = vsel %vm2618, %v2268, %v2874
    %v3131 = vsel %vm2619, %v2271, %v2875
    %v3132 = vsel %vm2620, %v2276, %v2876
    %v3133 = vsel %vm2621, %v2279, %v2877
    %v3134 = vsel %vm2622, %v2284, %v2878
    %v3135 = vsel %vm2623, %v2287, %v2879
    %v3136 = vsel %vm2624, %v2292, %v2880
    %v3137 = vsel %vm2625, %v2295, %v2881
    %v3138 = vsel %vm2626, %v2300, %v2882
    %v3139 = vsel %vm2627, %v2303, %v2883
    %v3140 = vsel %vm2628, %v2308, %v2884
    %v3141 = vsel %vm2629, %v2311, %v2885
    %v3142 = vsel %vm2630, %v2316, %v2886
    %v3143 = vsel %vm2631, %v2319, %v2887
    %v3144 = vsel %vm2632, %v2324, %v2888
    %v3145 = vsel %vm2633, %v2327, %v2889
    %v3146 = vsel %vm2634, %v2332, %v2890
    %v3147 = vsel %vm2635, %v2335, %v2891
    %v3148 = vsel %vm2636, %v2340, %v2892
    %v3149 = vsel %vm2637, %v2343, %v2893
    %v3150 = vsel %vm2638, %v2348, %v2894
    %v3151 = vsel %vm2639, %v2351, %v2895
    %v3152 = vsel %vm2640, %v2356, %v2896
    %v3153 = vsel %vm2641, %v2359, %v2897
    %v3154 = vsel %vm2642, %v2364, %v2898
    %v3155 = vsel %vm2643, %v2367, %v2899
    %v3156 = vsel %vm2644, %v2372, %v2900
    %v3157 = vsel %vm2645, %v2375, %v2901
    %v3158 = vsel %vm2646, %v2380, %v2902
    %v3159 = vsel %vm2647, %v2383, %v2903
    %v3160 = vsel %vm2648, %v2388, %v2904
    %v3161 = vsel %vm2649, %v2391, %v2905
    %v3162 = vpack.c.bf16 %v2907, %v2906
    %v3163 = vpack.c.bf16 %v2909, %v2908
    %v3164 = vpack.c.bf16 %v2911, %v2910
    %v3165 = vpack.c.bf16 %v2913, %v2912
    %v3166 = vpack.c.bf16 %v2915, %v2914
    %v3167 = vpack.c.bf16 %v2917, %v2916
    %v3168 = vpack.c.bf16 %v2919, %v2918
    %v3169 = vpack.c.bf16 %v2921, %v2920
    %v3170 = vpack.c.bf16 %v2923, %v2922
    %v3171 = vpack.c.bf16 %v2925, %v2924
    %v3172 = vpack.c.bf16 %v2927, %v2926
    %v3173 = vpack.c.bf16 %v2929, %v2928
    %v3174 = vpack.c.bf16 %v2931, %v2930
    %v3175 = vpack.c.bf16 %v2933, %v2932
    %v3176 = vpack.c.bf16 %v2935, %v2934
    %v3177 = vpack.c.bf16 %v2937, %v2936
    %v3178 = vpack.c.bf16 %v2939, %v2938
    %v3179 = vpack.c.bf16 %v2941, %v2940
    %v3180 = vpack.c.bf16 %v2943, %v2942
    %v3181 = vpack.c.bf16 %v2945, %v2944
    %v3182 = vpack.c.bf16 %v2947, %v2946
    %v3183 = vpack.c.bf16 %v2949, %v2948
    %v3184 = vpack.c.bf16 %v2951, %v2950
    %v3185 = vpack.c.bf16 %v2953, %v2952
    %v3186 = vpack.c.bf16 %v2955, %v2954
    %v3187 = vpack.c.bf16 %v2957, %v2956
    %v3188 = vpack.c.bf16 %v2959, %v2958
    %v3189 = vpack.c.bf16 %v2961, %v2960
    %v3190 = vpack.c.bf16 %v2963, %v2962
    %v3191 = vpack.c.bf16 %v2965, %v2964
    %v3192 = vpack.c.bf16 %v2967, %v2966
    %v3193 = vpack.c.bf16 %v2969, %v2968
    %v3194 = vpack.c.bf16 %v2971, %v2970
    %v3195 = vpack.c.bf16 %v2973, %v2972
    %v3196 = vpack.c.bf16 %v2975, %v2974
    %v3197 = vpack.c.bf16 %v2977, %v2976
    %v3198 = vpack.c.bf16 %v2979, %v2978
    %v3199 = vpack.c.bf16 %v2981, %v2980
    %v3200 = vpack.c.bf16 %v2983, %v2982
    %v3201 = vpack.c.bf16 %v2985, %v2984
    %v3202 = vpack.c.bf16 %v2987, %v2986
    %v3203 = vpack.c.bf16 %v2989, %v2988
    %v3204 = vpack.c.bf16 %v2991, %v2990
    %v3205 = vpack.c.bf16 %v2993, %v2992
    %v3206 = vpack.c.bf16 %v2995, %v2994
    %v3207 = vpack.c.bf16 %v2997, %v2996
    %v3208 = vpack.c.bf16 %v2999, %v2998
    %v3209 = vpack.c.bf16 %v3001, %v3000
    %v3210 = vpack.c.bf16 %v3003, %v3002
    %v3211 = vpack.c.bf16 %v3005, %v3004
    %v3212 = vpack.c.bf16 %v3007, %v3006
    %v3213 = vpack.c.bf16 %v3009, %v3008
    %v3214 = vpack.c.bf16 %v3011, %v3010
    %v3215 = vpack.c.bf16 %v3013, %v3012
    %v3216 = vpack.c.bf16 %v3015, %v3014
    %v3217 = vpack.c.bf16 %v3017, %v3016
    %v3218 = vpack.c.bf16 %v3019, %v3018
    %v3219 = vpack.c.bf16 %v3021, %v3020
    %v3220 = vpack.c.bf16 %v3023, %v3022
    %v3221 = vpack.c.bf16 %v3025, %v3024
    %v3222 = vpack.c.bf16 %v3027, %v3026
    %v3223 = vpack.c.bf16 %v3029, %v3028
    %v3224 = vpack.c.bf16 %v3031, %v3030
    %v3225 = vpack.c.bf16 %v3033, %v3032
    %v3226 = vpack.c.bf16 %v3035, %v3034
    %v3227 = vpack.c.bf16 %v3037, %v3036
    %v3228 = vpack.c.bf16 %v3039, %v3038
    %v3229 = vpack.c.bf16 %v3041, %v3040
    %v3230 = vpack.c.bf16 %v3043, %v3042
    %v3231 = vpack.c.bf16 %v3045, %v3044
    %v3232 = vpack.c.bf16 %v3047, %v3046
    %v3233 = vpack.c.bf16 %v3049, %v3048
    %v3234 = vpack.c.bf16 %v3051, %v3050
    %v3235 = vpack.c.bf16 %v3053, %v3052
    %v3236 = vpack.c.bf16 %v3055, %v3054
    %v3237 = vpack.c.bf16 %v3057, %v3056
    %v3238 = vpack.c.bf16 %v3059, %v3058
    %v3239 = vpack.c.bf16 %v3061, %v3060
    %v3240 = vpack.c.bf16 %v3063, %v3062
    %v3241 = vpack.c.bf16 %v3065, %v3064
    %v3242 = vpack.c.bf16 %v3067, %v3066
    %v3243 = vpack.c.bf16 %v3069, %v3068
    %v3244 = vpack.c.bf16 %v3071, %v3070
    %v3245 = vpack.c.bf16 %v3073, %v3072
    %v3246 = vpack.c.bf16 %v3075, %v3074
    %v3247 = vpack.c.bf16 %v3077, %v3076
    %v3248 = vpack.c.bf16 %v3079, %v3078
    %v3249 = vpack.c.bf16 %v3081, %v3080
    %v3250 = vpack.c.bf16 %v3083, %v3082
    %v3251 = vpack.c.bf16 %v3085, %v3084
    %v3252 = vpack.c.bf16 %v3087, %v3086
    %v3253 = vpack.c.bf16 %v3089, %v3088
    %v3254 = vpack.c.bf16 %v3091, %v3090
    %v3255 = vpack.c.bf16 %v3093, %v3092
    %v3256 = vpack.c.bf16 %v3095, %v3094
    %v3257 = vpack.c.bf16 %v3097, %v3096
    %v3258 = vpack.c.bf16 %v3099, %v3098
    %v3259 = vpack.c.bf16 %v3101, %v3100
    %v3260 = vpack.c.bf16 %v3103, %v3102
    %v3261 = vpack.c.bf16 %v3105, %v3104
    %v3262 = vpack.c.bf16 %v3107, %v3106
    %v3263 = vpack.c.bf16 %v3109, %v3108
    %v3264 = vpack.c.bf16 %v3111, %v3110
    %v3265 = vpack.c.bf16 %v3113, %v3112
    %v3266 = vpack.c.bf16 %v3115, %v3114
    %v3267 = vpack.c.bf16 %v3117, %v3116
    %v3268 = vpack.c.bf16 %v3119, %v3118
    %v3269 = vpack.c.bf16 %v3121, %v3120
    %v3270 = vpack.c.bf16 %v3123, %v3122
    %v3271 = vpack.c.bf16 %v3125, %v3124
    %v3272 = vpack.c.bf16 %v3127, %v3126
    %v3273 = vpack.c.bf16 %v3129, %v3128
    %v3274 = vpack.c.bf16 %v3131, %v3130
    %v3275 = vpack.c.bf16 %v3133, %v3132
    %v3276 = vpack.c.bf16 %v3135, %v3134
    %v3277 = vpack.c.bf16 %v3137, %v3136
    %v3278 = vpack.c.bf16 %v3139, %v3138
    %v3279 = vpack.c.bf16 %v3141, %v3140
    %v3280 = vpack.c.bf16 %v3143, %v3142
    %v3281 = vpack.c.bf16 %v3145, %v3144
    %v3282 = vpack.c.bf16 %v3147, %v3146
    %v3283 = vpack.c.bf16 %v3149, %v3148
    %v3284 = vpack.c.bf16 %v3151, %v3150
    %v3285 = vpack.c.bf16 %v3153, %v3152
    %v3286 = vpack.c.bf16 %v3155, %v3154
    %v3287 = vpack.c.bf16 %v3157, %v3156
    %v3288 = vpack.c.bf16 %v3159, %v3158
    %v3289 = vpack.c.bf16 %v3161, %v3160
    %v3418 = vunpack.c.l.b16 %v3162
    %v3419 = vunpack.c.h.b16 %v3162
    %v3420 = vunpack.c.l.b16 %v3163
    %v3421 = vunpack.c.h.b16 %v3163
    %v3422 = vunpack.c.l.b16 %v3164
    %v3423 = vunpack.c.h.b16 %v3164
    %v3424 = vunpack.c.l.b16 %v3165
    %v3425 = vunpack.c.h.b16 %v3165
    %v3426 = vunpack.c.l.b16 %v3166
    %v3427 = vunpack.c.h.b16 %v3166
    %v3428 = vunpack.c.l.b16 %v3167
    %v3429 = vunpack.c.h.b16 %v3167
    %v3430 = vunpack.c.l.b16 %v3168
    %v3431 = vunpack.c.h.b16 %v3168
    %v3432 = vunpack.c.l.b16 %v3169
    %v3433 = vunpack.c.h.b16 %v3169
    %v3434 = vunpack.c.l.b16 %v3170
    %v3435 = vunpack.c.h.b16 %v3170
    %v3436 = vunpack.c.l.b16 %v3171
    %v3437 = vunpack.c.h.b16 %v3171
    %v3438 = vunpack.c.l.b16 %v3172
    %v3439 = vunpack.c.h.b16 %v3172
    %v3440 = vunpack.c.l.b16 %v3173
    %v3441 = vunpack.c.h.b16 %v3173
    %v3442 = vunpack.c.l.b16 %v3174
    %v3443 = vunpack.c.h.b16 %v3174
    %v3444 = vunpack.c.l.b16 %v3175
    %v3445 = vunpack.c.h.b16 %v3175
    %v3446 = vunpack.c.l.b16 %v3176
    %v3447 = vunpack.c.h.b16 %v3176
    %v3448 = vunpack.c.l.b16 %v3177
    %v3449 = vunpack.c.h.b16 %v3177
    %v3450 = vunpack.c.l.b16 %v3178
    %v3451 = vunpack.c.h.b16 %v3178
    %v3452 = vunpack.c.l.b16 %v3179
    %v3453 = vunpack.c.h.b16 %v3179
    %v3454 = vunpack.c.l.b16 %v3180
    %v3455 = vunpack.c.h.b16 %v3180
    %v3456 = vunpack.c.l.b16 %v3181
    %v3457 = vunpack.c.h.b16 %v3181
    %v3458 = vunpack.c.l.b16 %v3182
    %v3459 = vunpack.c.h.b16 %v3182
    %v3460 = vunpack.c.l.b16 %v3183
    %v3461 = vunpack.c.h.b16 %v3183
    %v3462 = vunpack.c.l.b16 %v3184
    %v3463 = vunpack.c.h.b16 %v3184
    %v3464 = vunpack.c.l.b16 %v3185
    %v3465 = vunpack.c.h.b16 %v3185
    %v3466 = vunpack.c.l.b16 %v3186
    %v3467 = vunpack.c.h.b16 %v3186
    %v3468 = vunpack.c.l.b16 %v3187
    %v3469 = vunpack.c.h.b16 %v3187
    %v3470 = vunpack.c.l.b16 %v3188
    %v3471 = vunpack.c.h.b16 %v3188
    %v3472 = vunpack.c.l.b16 %v3189
    %v3473 = vunpack.c.h.b16 %v3189
    %v3474 = vunpack.c.l.b16 %v3190
    %v3475 = vunpack.c.h.b16 %v3190
    %v3476 = vunpack.c.l.b16 %v3191
    %v3477 = vunpack.c.h.b16 %v3191
    %v3478 = vunpack.c.l.b16 %v3192
    %v3479 = vunpack.c.h.b16 %v3192
    %v3480 = vunpack.c.l.b16 %v3193
    %v3481 = vunpack.c.h.b16 %v3193
    %v3482 = vunpack.c.l.b16 %v3194
    %v3483 = vunpack.c.h.b16 %v3194
    %v3484 = vunpack.c.l.b16 %v3195
    %v3485 = vunpack.c.h.b16 %v3195
    %v3486 = vunpack.c.l.b16 %v3196
    %v3487 = vunpack.c.h.b16 %v3196
    %v3488 = vunpack.c.l.b16 %v3197
    %v3489 = vunpack.c.h.b16 %v3197
    %v3490 = vunpack.c.l.b16 %v3198
    %v3491 = vunpack.c.h.b16 %v3198
    %v3492 = vunpack.c.l.b16 %v3199
    %v3493 = vunpack.c.h.b16 %v3199
    %v3494 = vunpack.c.l.b16 %v3200
    %v3495 = vunpack.c.h.b16 %v3200
    %v3496 = vunpack.c.l.b16 %v3201
    %v3497 = vunpack.c.h.b16 %v3201
    %v3498 = vunpack.c.l.b16 %v3202
    %v3499 = vunpack.c.h.b16 %v3202
    %v3500 = vunpack.c.l.b16 %v3203
    %v3501 = vunpack.c.h.b16 %v3203
    %v3502 = vunpack.c.l.b16 %v3204
    %v3503 = vunpack.c.h.b16 %v3204
    %v3504 = vunpack.c.l.b16 %v3205
    %v3505 = vunpack.c.h.b16 %v3205
    %v3506 = vunpack.c.l.b16 %v3206
    %v3507 = vunpack.c.h.b16 %v3206
    %v3508 = vunpack.c.l.b16 %v3207
    %v3509 = vunpack.c.h.b16 %v3207
    %v3510 = vunpack.c.l.b16 %v3208
    %v3511 = vunpack.c.h.b16 %v3208
    %v3512 = vunpack.c.l.b16 %v3209
    %v3513 = vunpack.c.h.b16 %v3209
    %v3514 = vunpack.c.l.b16 %v3210
    %v3515 = vunpack.c.h.b16 %v3210
    %v3516 = vunpack.c.l.b16 %v3211
    %v3517 = vunpack.c.h.b16 %v3211
    %v3518 = vunpack.c.l.b16 %v3212
    %v3519 = vunpack.c.h.b16 %v3212
    %v3520 = vunpack.c.l.b16 %v3213
    %v3521 = vunpack.c.h.b16 %v3213
    %v3522 = vunpack.c.l.b16 %v3214
    %v3523 = vunpack.c.h.b16 %v3214
    %v3524 = vunpack.c.l.b16 %v3215
    %v3525 = vunpack.c.h.b16 %v3215
    %v3526 = vunpack.c.l.b16 %v3216
    %v3527 = vunpack.c.h.b16 %v3216
    %v3528 = vunpack.c.l.b16 %v3217
    %v3529 = vunpack.c.h.b16 %v3217
    %v3530 = vunpack.c.l.b16 %v3218
    %v3531 = vunpack.c.h.b16 %v3218
    %v3532 = vunpack.c.l.b16 %v3219
    %v3533 = vunpack.c.h.b16 %v3219
    %v3534 = vunpack.c.l.b16 %v3220
    %v3535 = vunpack.c.h.b16 %v3220
    %v3536 = vunpack.c.l.b16 %v3221
    %v3537 = vunpack.c.h.b16 %v3221
    %v3538 = vunpack.c.l.b16 %v3222
    %v3539 = vunpack.c.h.b16 %v3222
    %v3540 = vunpack.c.l.b16 %v3223
    %v3541 = vunpack.c.h.b16 %v3223
    %v3542 = vunpack.c.l.b16 %v3224
    %v3543 = vunpack.c.h.b16 %v3224
    %v3544 = vunpack.c.l.b16 %v3225
    %v3545 = vunpack.c.h.b16 %v3225
    %v3546 = vunpack.c.l.b16 %v3226
    %v3547 = vunpack.c.h.b16 %v3226
    %v3548 = vunpack.c.l.b16 %v3227
    %v3549 = vunpack.c.h.b16 %v3227
    %v3550 = vunpack.c.l.b16 %v3228
    %v3551 = vunpack.c.h.b16 %v3228
    %v3552 = vunpack.c.l.b16 %v3229
    %v3553 = vunpack.c.h.b16 %v3229
    %v3554 = vunpack.c.l.b16 %v3230
    %v3555 = vunpack.c.h.b16 %v3230
    %v3556 = vunpack.c.l.b16 %v3231
    %v3557 = vunpack.c.h.b16 %v3231
    %v3558 = vunpack.c.l.b16 %v3232
    %v3559 = vunpack.c.h.b16 %v3232
    %v3560 = vunpack.c.l.b16 %v3233
    %v3561 = vunpack.c.h.b16 %v3233
    %v3562 = vunpack.c.l.b16 %v3234
    %v3563 = vunpack.c.h.b16 %v3234
    %v3564 = vunpack.c.l.b16 %v3235
    %v3565 = vunpack.c.h.b16 %v3235
    %v3566 = vunpack.c.l.b16 %v3236
    %v3567 = vunpack.c.h.b16 %v3236
    %v3568 = vunpack.c.l.b16 %v3237
    %v3569 = vunpack.c.h.b16 %v3237
    %v3570 = vunpack.c.l.b16 %v3238
    %v3571 = vunpack.c.h.b16 %v3238
    %v3572 = vunpack.c.l.b16 %v3239
    %v3573 = vunpack.c.h.b16 %v3239
    %v3574 = vunpack.c.l.b16 %v3240
    %v3575 = vunpack.c.h.b16 %v3240
    %v3576 = vunpack.c.l.b16 %v3241
    %v3577 = vunpack.c.h.b16 %v3241
    %v3578 = vunpack.c.l.b16 %v3242
    %v3579 = vunpack.c.h.b16 %v3242
    %v3580 = vunpack.c.l.b16 %v3243
    %v3581 = vunpack.c.h.b16 %v3243
    %v3582 = vunpack.c.l.b16 %v3244
    %v3583 = vunpack.c.h.b16 %v3244
    %v3584 = vunpack.c.l.b16 %v3245
    %v3585 = vunpack.c.h.b16 %v3245
    %v3586 = vunpack.c.l.b16 %v3246
    %v3587 = vunpack.c.h.b16 %v3246
    %v3588 = vunpack.c.l.b16 %v3247
    %v3589 = vunpack.c.h.b16 %v3247
    %v3590 = vunpack.c.l.b16 %v3248
    %v3591 = vunpack.c.h.b16 %v3248
    %v3592 = vunpack.c.l.b16 %v3249
    %v3593 = vunpack.c.h.b16 %v3249
    %v3594 = vunpack.c.l.b16 %v3250
    %v3595 = vunpack.c.h.b16 %v3250
    %v3596 = vunpack.c.l.b16 %v3251
    %v3597 = vunpack.c.h.b16 %v3251
    %v3598 = vunpack.c.l.b16 %v3252
    %v3599 = vunpack.c.h.b16 %v3252
    %v3600 = vunpack.c.l.b16 %v3253
    %v3601 = vunpack.c.h.b16 %v3253
    %v3602 = vunpack.c.l.b16 %v3254
    %v3603 = vunpack.c.h.b16 %v3254
    %v3604 = vunpack.c.l.b16 %v3255
    %v3605 = vunpack.c.h.b16 %v3255
    %v3606 = vunpack.c.l.b16 %v3256
    %v3607 = vunpack.c.h.b16 %v3256
    %v3608 = vunpack.c.l.b16 %v3257
    %v3609 = vunpack.c.h.b16 %v3257
    %v3610 = vunpack.c.l.b16 %v3258
    %v3611 = vunpack.c.h.b16 %v3258
    %v3612 = vunpack.c.l.b16 %v3259
    %v3613 = vunpack.c.h.b16 %v3259
    %v3614 = vunpack.c.l.b16 %v3260
    %v3615 = vunpack.c.h.b16 %v3260
    %v3616 = vunpack.c.l.b16 %v3261
    %v3617 = vunpack.c.h.b16 %v3261
    %v3618 = vunpack.c.l.b16 %v3262
    %v3619 = vunpack.c.h.b16 %v3262
    %v3620 = vunpack.c.l.b16 %v3263
    %v3621 = vunpack.c.h.b16 %v3263
    %v3622 = vunpack.c.l.b16 %v3264
    %v3623 = vunpack.c.h.b16 %v3264
    %v3624 = vunpack.c.l.b16 %v3265
    %v3625 = vunpack.c.h.b16 %v3265
    %v3626 = vunpack.c.l.b16 %v3266
    %v3627 = vunpack.c.h.b16 %v3266
    %v3628 = vunpack.c.l.b16 %v3267
    %v3629 = vunpack.c.h.b16 %v3267
    %v3630 = vunpack.c.l.b16 %v3268
    %v3631 = vunpack.c.h.b16 %v3268
    %v3632 = vunpack.c.l.b16 %v3269
    %v3633 = vunpack.c.h.b16 %v3269
    %v3634 = vunpack.c.l.b16 %v3270
    %v3635 = vunpack.c.h.b16 %v3270
    %v3636 = vunpack.c.l.b16 %v3271
    %v3637 = vunpack.c.h.b16 %v3271
    %v3638 = vunpack.c.l.b16 %v3272
    %v3639 = vunpack.c.h.b16 %v3272
    %v3640 = vunpack.c.l.b16 %v3273
    %v3641 = vunpack.c.h.b16 %v3273
    %v3642 = vunpack.c.l.b16 %v3274
    %v3643 = vunpack.c.h.b16 %v3274
    %v3644 = vunpack.c.l.b16 %v3275
    %v3645 = vunpack.c.h.b16 %v3275
    %v3646 = vunpack.c.l.b16 %v3276
    %v3647 = vunpack.c.h.b16 %v3276
    %v3648 = vunpack.c.l.b16 %v3277
    %v3649 = vunpack.c.h.b16 %v3277
    %v3650 = vunpack.c.l.b16 %v3278
    %v3651 = vunpack.c.h.b16 %v3278
    %v3652 = vunpack.c.l.b16 %v3279
    %v3653 = vunpack.c.h.b16 %v3279
    %v3654 = vunpack.c.l.b16 %v3280
    %v3655 = vunpack.c.h.b16 %v3280
    %v3656 = vunpack.c.l.b16 %v3281
    %v3657 = vunpack.c.h.b16 %v3281
    %v3658 = vunpack.c.l.b16 %v3282
    %v3659 = vunpack.c.h.b16 %v3282
    %v3660 = vunpack.c.l.b16 %v3283
    %v3661 = vunpack.c.h.b16 %v3283
    %v3662 = vunpack.c.l.b16 %v3284
    %v3663 = vunpack.c.h.b16 %v3284
    %v3664 = vunpack.c.l.b16 %v3285
    %v3665 = vunpack.c.h.b16 %v3285
    %v3666 = vunpack.c.l.b16 %v3286
    %v3667 = vunpack.c.h.b16 %v3286
    %v3668 = vunpack.c.l.b16 %v3287
    %v3669 = vunpack.c.h.b16 %v3287
    %v3670 = vunpack.c.l.b16 %v3288
    %v3671 = vunpack.c.h.b16 %v3288
    %v3672 = vunpack.c.l.b16 %v3289
    %v3673 = vunpack.c.h.b16 %v3289
    %v3674 = vpack.c.b16 %v3418, %v3418
    %v3675 = vpack.c.b16 %v3419, %v3419
    %v3676 = vpack.c.b16 %v3420, %v3420
    %v3677 = vpack.c.b16 %v3421, %v3421
    %v3678 = vpack.c.b16 %v3422, %v3422
    %v3679 = vpack.c.b16 %v3423, %v3423
    %v3680 = vpack.c.b16 %v3424, %v3424
    %v3681 = vpack.c.b16 %v3425, %v3425
    %v3682 = vpack.c.b16 %v3426, %v3426
    %v3683 = vpack.c.b16 %v3427, %v3427
    %v3684 = vpack.c.b16 %v3428, %v3428
    %v3685 = vpack.c.b16 %v3429, %v3429
    %v3686 = vpack.c.b16 %v3430, %v3430
    %v3687 = vpack.c.b16 %v3431, %v3431
    %v3688 = vpack.c.b16 %v3432, %v3432
    %v3689 = vpack.c.b16 %v3433, %v3433
    %v3690 = vpack.c.b16 %v3434, %v3434
    %v3691 = vpack.c.b16 %v3435, %v3435
    %v3692 = vpack.c.b16 %v3436, %v3436
    %v3693 = vpack.c.b16 %v3437, %v3437
    %v3694 = vpack.c.b16 %v3438, %v3438
    %v3695 = vpack.c.b16 %v3439, %v3439
    %v3696 = vpack.c.b16 %v3440, %v3440
    %v3697 = vpack.c.b16 %v3441, %v3441
    %v3698 = vpack.c.b16 %v3442, %v3442
    %v3699 = vpack.c.b16 %v3443, %v3443
    %v3700 = vpack.c.b16 %v3444, %v3444
    %v3701 = vpack.c.b16 %v3445, %v3445
    %v3702 = vpack.c.b16 %v3446, %v3446
    %v3703 = vpack.c.b16 %v3447, %v3447
    %v3704 = vpack.c.b16 %v3448, %v3448
    %v3705 = vpack.c.b16 %v3449, %v3449
    %v3706 = vpack.c.b16 %v3450, %v3450
    %v3707 = vpack.c.b16 %v3451, %v3451
    %v3708 = vpack.c.b16 %v3452, %v3452
    %v3709 = vpack.c.b16 %v3453, %v3453
    %v3710 = vpack.c.b16 %v3454, %v3454
    %v3711 = vpack.c.b16 %v3455, %v3455
    %v3712 = vpack.c.b16 %v3456, %v3456
    %v3713 = vpack.c.b16 %v3457, %v3457
    %v3714 = vpack.c.b16 %v3458, %v3458
    %v3715 = vpack.c.b16 %v3459, %v3459
    %v3716 = vpack.c.b16 %v3460, %v3460
    %v3717 = vpack.c.b16 %v3461, %v3461
    %v3718 = vpack.c.b16 %v3462, %v3462
    %v3719 = vpack.c.b16 %v3463, %v3463
    %v3720 = vpack.c.b16 %v3464, %v3464
    %v3721 = vpack.c.b16 %v3465, %v3465
    %v3722 = vpack.c.b16 %v3466, %v3466
    %v3723 = vpack.c.b16 %v3467, %v3467
    %v3724 = vpack.c.b16 %v3468, %v3468
    %v3725 = vpack.c.b16 %v3469, %v3469
    %v3726 = vpack.c.b16 %v3470, %v3470
    %v3727 = vpack.c.b16 %v3471, %v3471
    %v3728 = vpack.c.b16 %v3472, %v3472
    %v3729 = vpack.c.b16 %v3473, %v3473
    %v3730 = vpack.c.b16 %v3474, %v3474
    %v3731 = vpack.c.b16 %v3475, %v3475
    %v3732 = vpack.c.b16 %v3476, %v3476
    %v3733 = vpack.c.b16 %v3477, %v3477
    %v3734 = vpack.c.b16 %v3478, %v3478
    %v3735 = vpack.c.b16 %v3479, %v3479
    %v3736 = vpack.c.b16 %v3480, %v3480
    %v3737 = vpack.c.b16 %v3481, %v3481
    %v3738 = vpack.c.b16 %v3482, %v3482
    %v3739 = vpack.c.b16 %v3483, %v3483
    %v3740 = vpack.c.b16 %v3484, %v3484
    %v3741 = vpack.c.b16 %v3485, %v3485
    %v3742 = vpack.c.b16 %v3486, %v3486
    %v3743 = vpack.c.b16 %v3487, %v3487
    %v3744 = vpack.c.b16 %v3488, %v3488
    %v3745 = vpack.c.b16 %v3489, %v3489
    %v3746 = vpack.c.b16 %v3490, %v3490
    %v3747 = vpack.c.b16 %v3491, %v3491
    %v3748 = vpack.c.b16 %v3492, %v3492
    %v3749 = vpack.c.b16 %v3493, %v3493
    %v3750 = vpack.c.b16 %v3494, %v3494
    %v3751 = vpack.c.b16 %v3495, %v3495
    %v3752 = vpack.c.b16 %v3496, %v3496
    %v3753 = vpack.c.b16 %v3497, %v3497
    %v3754 = vpack.c.b16 %v3498, %v3498
    %v3755 = vpack.c.b16 %v3499, %v3499
    %v3756 = vpack.c.b16 %v3500, %v3500
    %v3757 = vpack.c.b16 %v3501, %v3501
    %v3758 = vpack.c.b16 %v3502, %v3502
    %v3759 = vpack.c.b16 %v3503, %v3503
    %v3760 = vpack.c.b16 %v3504, %v3504
    %v3761 = vpack.c.b16 %v3505, %v3505
    %v3762 = vpack.c.b16 %v3506, %v3506
    %v3763 = vpack.c.b16 %v3507, %v3507
    %v3764 = vpack.c.b16 %v3508, %v3508
    %v3765 = vpack.c.b16 %v3509, %v3509
    %v3766 = vpack.c.b16 %v3510, %v3510
    %v3767 = vpack.c.b16 %v3511, %v3511
    %v3768 = vpack.c.b16 %v3512, %v3512
    %v3769 = vpack.c.b16 %v3513, %v3513
    %v3770 = vpack.c.b16 %v3514, %v3514
    %v3771 = vpack.c.b16 %v3515, %v3515
    %v3772 = vpack.c.b16 %v3516, %v3516
    %v3773 = vpack.c.b16 %v3517, %v3517
    %v3774 = vpack.c.b16 %v3518, %v3518
    %v3775 = vpack.c.b16 %v3519, %v3519
    %v3776 = vpack.c.b16 %v3520, %v3520
    %v3777 = vpack.c.b16 %v3521, %v3521
    %v3778 = vpack.c.b16 %v3522, %v3522
    %v3779 = vpack.c.b16 %v3523, %v3523
    %v3780 = vpack.c.b16 %v3524, %v3524
    %v3781 = vpack.c.b16 %v3525, %v3525
    %v3782 = vpack.c.b16 %v3526, %v3526
    %v3783 = vpack.c.b16 %v3527, %v3527
    %v3784 = vpack.c.b16 %v3528, %v3528
    %v3785 = vpack.c.b16 %v3529, %v3529
    %v3786 = vpack.c.b16 %v3530, %v3530
    %v3787 = vpack.c.b16 %v3531, %v3531
    %v3788 = vpack.c.b16 %v3532, %v3532
    %v3789 = vpack.c.b16 %v3533, %v3533
    %v3790 = vpack.c.b16 %v3534, %v3534
    %v3791 = vpack.c.b16 %v3535, %v3535
    %v3792 = vpack.c.b16 %v3536, %v3536
    %v3793 = vpack.c.b16 %v3537, %v3537
    %v3794 = vpack.c.b16 %v3538, %v3538
    %v3795 = vpack.c.b16 %v3539, %v3539
    %v3796 = vpack.c.b16 %v3540, %v3540
    %v3797 = vpack.c.b16 %v3541, %v3541
    %v3798 = vpack.c.b16 %v3542, %v3542
    %v3799 = vpack.c.b16 %v3543, %v3543
    %v3800 = vpack.c.b16 %v3544, %v3544
    %v3801 = vpack.c.b16 %v3545, %v3545
    %v3802 = vpack.c.b16 %v3546, %v3546
    %v3803 = vpack.c.b16 %v3547, %v3547
    %v3804 = vpack.c.b16 %v3548, %v3548
    %v3805 = vpack.c.b16 %v3549, %v3549
    %v3806 = vpack.c.b16 %v3550, %v3550
    %v3807 = vpack.c.b16 %v3551, %v3551
    %v3808 = vpack.c.b16 %v3552, %v3552
    %v3809 = vpack.c.b16 %v3553, %v3553
    %v3810 = vpack.c.b16 %v3554, %v3554
    %v3811 = vpack.c.b16 %v3555, %v3555
    %v3812 = vpack.c.b16 %v3556, %v3556
    %v3813 = vpack.c.b16 %v3557, %v3557
    %v3814 = vpack.c.b16 %v3558, %v3558
    %v3815 = vpack.c.b16 %v3559, %v3559
    %v3816 = vpack.c.b16 %v3560, %v3560
    %v3817 = vpack.c.b16 %v3561, %v3561
    %v3818 = vpack.c.b16 %v3562, %v3562
    %v3819 = vpack.c.b16 %v3563, %v3563
    %v3820 = vpack.c.b16 %v3564, %v3564
    %v3821 = vpack.c.b16 %v3565, %v3565
    %v3822 = vpack.c.b16 %v3566, %v3566
    %v3823 = vpack.c.b16 %v3567, %v3567
    %v3824 = vpack.c.b16 %v3568, %v3568
    %v3825 = vpack.c.b16 %v3569, %v3569
    %v3826 = vpack.c.b16 %v3570, %v3570
    %v3827 = vpack.c.b16 %v3571, %v3571
    %v3828 = vpack.c.b16 %v3572, %v3572
    %v3829 = vpack.c.b16 %v3573, %v3573
    %v3830 = vpack.c.b16 %v3574, %v3574
    %v3831 = vpack.c.b16 %v3575, %v3575
    %v3832 = vpack.c.b16 %v3576, %v3576
    %v3833 = vpack.c.b16 %v3577, %v3577
    %v3834 = vpack.c.b16 %v3578, %v3578
    %v3835 = vpack.c.b16 %v3579, %v3579
    %v3836 = vpack.c.b16 %v3580, %v3580
    %v3837 = vpack.c.b16 %v3581, %v3581
    %v3838 = vpack.c.b16 %v3582, %v3582
    %v3839 = vpack.c.b16 %v3583, %v3583
    %v3840 = vpack.c.b16 %v3584, %v3584
    %v3841 = vpack.c.b16 %v3585, %v3585
    %v3842 = vpack.c.b16 %v3586, %v3586
    %v3843 = vpack.c.b16 %v3587, %v3587
    %v3844 = vpack.c.b16 %v3588, %v3588
    %v3845 = vpack.c.b16 %v3589, %v3589
    %v3846 = vpack.c.b16 %v3590, %v3590
    %v3847 = vpack.c.b16 %v3591, %v3591
    %v3848 = vpack.c.b16 %v3592, %v3592
    %v3849 = vpack.c.b16 %v3593, %v3593
    %v3850 = vpack.c.b16 %v3594, %v3594
    %v3851 = vpack.c.b16 %v3595, %v3595
    %v3852 = vpack.c.b16 %v3596, %v3596
    %v3853 = vpack.c.b16 %v3597, %v3597
    %v3854 = vpack.c.b16 %v3598, %v3598
    %v3855 = vpack.c.b16 %v3599, %v3599
    %v3856 = vpack.c.b16 %v3600, %v3600
    %v3857 = vpack.c.b16 %v3601, %v3601
    %v3858 = vpack.c.b16 %v3602, %v3602
    %v3859 = vpack.c.b16 %v3603, %v3603
    %v3860 = vpack.c.b16 %v3604, %v3604
    %v3861 = vpack.c.b16 %v3605, %v3605
    %v3862 = vpack.c.b16 %v3606, %v3606
    %v3863 = vpack.c.b16 %v3607, %v3607
    %v3864 = vpack.c.b16 %v3608, %v3608
    %v3865 = vpack.c.b16 %v3609, %v3609
    %v3866 = vpack.c.b16 %v3610, %v3610
    %v3867 = vpack.c.b16 %v3611, %v3611
    %v3868 = vpack.c.b16 %v3612, %v3612
    %v3869 = vpack.c.b16 %v3613, %v3613
    %v3870 = vpack.c.b16 %v3614, %v3614
    %v3871 = vpack.c.b16 %v3615, %v3615
    %v3872 = vpack.c.b16 %v3616, %v3616
    %v3873 = vpack.c.b16 %v3617, %v3617
    %v3874 = vpack.c.b16 %v3618, %v3618
    %v3875 = vpack.c.b16 %v3619, %v3619
    %v3876 = vpack.c.b16 %v3620, %v3620
    %v3877 = vpack.c.b16 %v3621, %v3621
    %v3878 = vpack.c.b16 %v3622, %v3622
    %v3879 = vpack.c.b16 %v3623, %v3623
    %v3880 = vpack.c.b16 %v3624, %v3624
    %v3881 = vpack.c.b16 %v3625, %v3625
    %v3882 = vpack.c.b16 %v3626, %v3626
    %v3883 = vpack.c.b16 %v3627, %v3627
    %v3884 = vpack.c.b16 %v3628, %v3628
    %v3885 = vpack.c.b16 %v3629, %v3629
    %v3886 = vpack.c.b16 %v3630, %v3630
    %v3887 = vpack.c.b16 %v3631, %v3631
    %v3888 = vpack.c.b16 %v3632, %v3632
    %v3889 = vpack.c.b16 %v3633, %v3633
    %v3890 = vpack.c.b16 %v3634, %v3634
    %v3891 = vpack.c.b16 %v3635, %v3635
    %v3892 = vpack.c.b16 %v3636, %v3636
    %v3893 = vpack.c.b16 %v3637, %v3637
    %v3894 = vpack.c.b16 %v3638, %v3638
    %v3895 = vpack.c.b16 %v3639, %v3639
    %v3896 = vpack.c.b16 %v3640, %v3640
    %v3897 = vpack.c.b16 %v3641, %v3641
    %v3898 = vpack.c.b16 %v3642, %v3642
    %v3899 = vpack.c.b16 %v3643, %v3643
    %v3900 = vpack.c.b16 %v3644, %v3644
    %v3901 = vpack.c.b16 %v3645, %v3645
    %v3902 = vpack.c.b16 %v3646, %v3646
    %v3903 = vpack.c.b16 %v3647, %v3647
    %v3904 = vpack.c.b16 %v3648, %v3648
    %v3905 = vpack.c.b16 %v3649, %v3649
    %v3906 = vpack.c.b16 %v3650, %v3650
    %v3907 = vpack.c.b16 %v3651, %v3651
    %v3908 = vpack.c.b16 %v3652, %v3652
    %v3909 = vpack.c.b16 %v3653, %v3653
    %v3910 = vpack.c.b16 %v3654, %v3654
    %v3911 = vpack.c.b16 %v3655, %v3655
    %v3912 = vpack.c.b16 %v3656, %v3656
    %v3913 = vpack.c.b16 %v3657, %v3657
    %v3914 = vpack.c.b16 %v3658, %v3658
    %v3915 = vpack.c.b16 %v3659, %v3659
    %v3916 = vpack.c.b16 %v3660, %v3660
    %v3917 = vpack.c.b16 %v3661, %v3661
    %v3918 = vpack.c.b16 %v3662, %v3662
    %v3919 = vpack.c.b16 %v3663, %v3663
    %v3920 = vpack.c.b16 %v3664, %v3664
    %v3921 = vpack.c.b16 %v3665, %v3665
    %v3922 = vpack.c.b16 %v3666, %v3666
    %v3923 = vpack.c.b16 %v3667, %v3667
    %v3924 = vpack.c.b16 %v3668, %v3668
    %v3925 = vpack.c.b16 %v3669, %v3669
    %v3926 = vpack.c.b16 %v3670, %v3670
    %v3927 = vpack.c.b16 %v3671, %v3671
    %v3928 = vpack.c.b16 %v3672, %v3672
    %v3929 = vpack.c.b16 %v3673, %v3673
    %4186 = vst [vmem:[%s3] sm:$0xf] %v3674
    %4187 = vst [vmem:[%s3 + $0x4] sm:$0xf] %v3675
    %4188 = vst [vmem:[%s3 + $0x8] sm:$0xf] %v3676
    %4189 = vst [vmem:[%s3 + $0xc] sm:$0xf] %v3677
    %4190 = vst [vmem:[%s3 + $0x10] sm:$0xf] %v3678
    %4191 = vst [vmem:[%s3 + $0x14] sm:$0xf] %v3679
    %4192 = vst [vmem:[%s3 + $0x18] sm:$0xf] %v3680
    %4193 = vst [vmem:[%s3 + $0x1c] sm:$0xf] %v3681
    %4194 = vst [vmem:[%s3 + $0x20] sm:$0xf] %v3682
    %4195 = vst [vmem:[%s3 + $0x24] sm:$0xf] %v3683
    %4196 = vst [vmem:[%s3 + $0x28] sm:$0xf] %v3684
    %4197 = vst [vmem:[%s3 + $0x2c] sm:$0xf] %v3685
    %4198 = vst [vmem:[%s3 + $0x30] sm:$0xf] %v3686
    %4199 = vst [vmem:[%s3 + $0x34] sm:$0xf] %v3687
    %4200 = vst [vmem:[%s3 + $0x38] sm:$0xf] %v3688
    %4201 = vst [vmem:[%s3 + $0x3c] sm:$0xf] %v3689
    %4202 = vst [vmem:[%s3 + $0x40] sm:$0xf] %v3690
    %4203 = vst [vmem:[%s3 + $0x44] sm:$0xf] %v3691
    %4204 = vst [vmem:[%s3 + $0x48] sm:$0xf] %v3692
    %4205 = vst [vmem:[%s3 + $0x4c] sm:$0xf] %v3693
    %4206 = vst [vmem:[%s3 + $0x50] sm:$0xf] %v3694
    %4207 = vst [vmem:[%s3 + $0x54] sm:$0xf] %v3695
    %4208 = vst [vmem:[%s3 + $0x58] sm:$0xf] %v3696
    %4209 = vst [vmem:[%s3 + $0x5c] sm:$0xf] %v3697
    %4210 = vst [vmem:[%s3 + $0x60] sm:$0xf] %v3698
    %4211 = vst [vmem:[%s3 + $0x64] sm:$0xf] %v3699
    %4212 = vst [vmem:[%s3 + $0x68] sm:$0xf] %v3700
    %4213 = vst [vmem:[%s3 + $0x6c] sm:$0xf] %v3701
    %4214 = vst [vmem:[%s3 + $0x70] sm:$0xf] %v3702
    %4215 = vst [vmem:[%s3 + $0x74] sm:$0xf] %v3703
    %4216 = vst [vmem:[%s3 + $0x78] sm:$0xf] %v3704
    %4217 = vst [vmem:[%s3 + $0x7c] sm:$0xf] %v3705
    %4218 = vst [vmem:[%s3 + $0x80] sm:$0xf] %v3706
    %4219 = vst [vmem:[%s3 + $0x84] sm:$0xf] %v3707
    %4220 = vst [vmem:[%s3 + $0x88] sm:$0xf] %v3708
    %4221 = vst [vmem:[%s3 + $0x8c] sm:$0xf] %v3709
    %4222 = vst [vmem:[%s3 + $0x90] sm:$0xf] %v3710
    %4223 = vst [vmem:[%s3 + $0x94] sm:$0xf] %v3711
    %4224 = vst [vmem:[%s3 + $0x98] sm:$0xf] %v3712
    %4225 = vst [vmem:[%s3 + $0x9c] sm:$0xf] %v3713
    %4226 = vst [vmem:[%s3 + $0xa0] sm:$0xf] %v3714
    %4227 = vst [vmem:[%s3 + $0xa4] sm:$0xf] %v3715
    %4228 = vst [vmem:[%s3 + $0xa8] sm:$0xf] %v3716
    %4229 = vst [vmem:[%s3 + $0xac] sm:$0xf] %v3717
    %4230 = vst [vmem:[%s3 + $0xb0] sm:$0xf] %v3718
    %4231 = vst [vmem:[%s3 + $0xb4] sm:$0xf] %v3719
    %4232 = vst [vmem:[%s3 + $0xb8] sm:$0xf] %v3720
    %4233 = vst [vmem:[%s3 + $0xbc] sm:$0xf] %v3721
    %4234 = vst [vmem:[%s3 + $0xc0] sm:$0xf] %v3722
    %4235 = vst [vmem:[%s3 + $0xc4] sm:$0xf] %v3723
    %4236 = vst [vmem:[%s3 + $0xc8] sm:$0xf] %v3724
    %4237 = vst [vmem:[%s3 + $0xcc] sm:$0xf] %v3725
    %4238 = vst [vmem:[%s3 + $0xd0] sm:$0xf] %v3726
    %4239 = vst [vmem:[%s3 + $0xd4] sm:$0xf] %v3727
    %4240 = vst [vmem:[%s3 + $0xd8] sm:$0xf] %v3728
    %4241 = vst [vmem:[%s3 + $0xdc] sm:$0xf] %v3729
    %4242 = vst [vmem:[%s3 + $0xe0] sm:$0xf] %v3730
    %4243 = vst [vmem:[%s3 + $0xe4] sm:$0xf] %v3731
    %4244 = vst [vmem:[%s3 + $0xe8] sm:$0xf] %v3732
    %4245 = vst [vmem:[%s3 + $0xec] sm:$0xf] %v3733
    %4246 = vst [vmem:[%s3 + $0xf0] sm:$0xf] %v3734
    %4247 = vst [vmem:[%s3 + $0xf4] sm:$0xf] %v3735
    %4248 = vst [vmem:[%s3 + $0xf8] sm:$0xf] %v3736
    %4249 = vst [vmem:[%s3 + $0xfc] sm:$0xf] %v3737
    %4250 = vst [vmem:[%s3 + $0x100] sm:$0xf] %v3738
    %4251 = vst [vmem:[%s3 + $0x104] sm:$0xf] %v3739
    %4252 = vst [vmem:[%s3 + $0x108] sm:$0xf] %v3740
    %4253 = vst [vmem:[%s3 + $0x10c] sm:$0xf] %v3741
    %4254 = vst [vmem:[%s3 + $0x110] sm:$0xf] %v3742
    %4255 = vst [vmem:[%s3 + $0x114] sm:$0xf] %v3743
    %4256 = vst [vmem:[%s3 + $0x118] sm:$0xf] %v3744
    %4257 = vst [vmem:[%s3 + $0x11c] sm:$0xf] %v3745
    %4258 = vst [vmem:[%s3 + $0x120] sm:$0xf] %v3746
    %4259 = vst [vmem:[%s3 + $0x124] sm:$0xf] %v3747
    %4260 = vst [vmem:[%s3 + $0x128] sm:$0xf] %v3748
    %4261 = vst [vmem:[%s3 + $0x12c] sm:$0xf] %v3749
    %4262 = vst [vmem:[%s3 + $0x130] sm:$0xf] %v3750
    %4263 = vst [vmem:[%s3 + $0x134] sm:$0xf] %v3751
    %4264 = vst [vmem:[%s3 + $0x138] sm:$0xf] %v3752
    %4265 = vst [vmem:[%s3 + $0x13c] sm:$0xf] %v3753
    %4266 = vst [vmem:[%s3 + $0x140] sm:$0xf] %v3754
    %4267 = vst [vmem:[%s3 + $0x144] sm:$0xf] %v3755
    %4268 = vst [vmem:[%s3 + $0x148] sm:$0xf] %v3756
    %4269 = vst [vmem:[%s3 + $0x14c] sm:$0xf] %v3757
    %4270 = vst [vmem:[%s3 + $0x150] sm:$0xf] %v3758
    %4271 = vst [vmem:[%s3 + $0x154] sm:$0xf] %v3759
    %4272 = vst [vmem:[%s3 + $0x158] sm:$0xf] %v3760
    %4273 = vst [vmem:[%s3 + $0x15c] sm:$0xf] %v3761
    %4274 = vst [vmem:[%s3 + $0x160] sm:$0xf] %v3762
    %4275 = vst [vmem:[%s3 + $0x164] sm:$0xf] %v3763
    %4276 = vst [vmem:[%s3 + $0x168] sm:$0xf] %v3764
    %4277 = vst [vmem:[%s3 + $0x16c] sm:$0xf] %v3765
    %4278 = vst [vmem:[%s3 + $0x170] sm:$0xf] %v3766
    %4279 = vst [vmem:[%s3 + $0x174] sm:$0xf] %v3767
    %4280 = vst [vmem:[%s3 + $0x178] sm:$0xf] %v3768
    %4281 = vst [vmem:[%s3 + $0x17c] sm:$0xf] %v3769
    %4282 = vst [vmem:[%s3 + $0x180] sm:$0xf] %v3770
    %4283 = vst [vmem:[%s3 + $0x184] sm:$0xf] %v3771
    %4284 = vst [vmem:[%s3 + $0x188] sm:$0xf] %v3772
    %4285 = vst [vmem:[%s3 + $0x18c] sm:$0xf] %v3773
    %4286 = vst [vmem:[%s3 + $0x190] sm:$0xf] %v3774
    %4287 = vst [vmem:[%s3 + $0x194] sm:$0xf] %v3775
    %4288 = vst [vmem:[%s3 + $0x198] sm:$0xf] %v3776
    %4289 = vst [vmem:[%s3 + $0x19c] sm:$0xf] %v3777
    %4290 = vst [vmem:[%s3 + $0x1a0] sm:$0xf] %v3778
    %4291 = vst [vmem:[%s3 + $0x1a4] sm:$0xf] %v3779
    %4292 = vst [vmem:[%s3 + $0x1a8] sm:$0xf] %v3780
    %4293 = vst [vmem:[%s3 + $0x1ac] sm:$0xf] %v3781
    %4294 = vst [vmem:[%s3 + $0x1b0] sm:$0xf] %v3782
    %4295 = vst [vmem:[%s3 + $0x1b4] sm:$0xf] %v3783
    %4296 = vst [vmem:[%s3 + $0x1b8] sm:$0xf] %v3784
    %4297 = vst [vmem:[%s3 + $0x1bc] sm:$0xf] %v3785
    %4298 = vst [vmem:[%s3 + $0x1c0] sm:$0xf] %v3786
    %4299 = vst [vmem:[%s3 + $0x1c4] sm:$0xf] %v3787
    %4300 = vst [vmem:[%s3 + $0x1c8] sm:$0xf] %v3788
    %4301 = vst [vmem:[%s3 + $0x1cc] sm:$0xf] %v3789
    %4302 = vst [vmem:[%s3 + $0x1d0] sm:$0xf] %v3790
    %4303 = vst [vmem:[%s3 + $0x1d4] sm:$0xf] %v3791
    %4304 = vst [vmem:[%s3 + $0x1d8] sm:$0xf] %v3792
    %4305 = vst [vmem:[%s3 + $0x1dc] sm:$0xf] %v3793
    %4306 = vst [vmem:[%s3 + $0x1e0] sm:$0xf] %v3794
    %4307 = vst [vmem:[%s3 + $0x1e4] sm:$0xf] %v3795
    %4308 = vst [vmem:[%s3 + $0x1e8] sm:$0xf] %v3796
    %4309 = vst [vmem:[%s3 + $0x1ec] sm:$0xf] %v3797
    %4310 = vst [vmem:[%s3 + $0x1f0] sm:$0xf] %v3798
    %4311 = vst [vmem:[%s3 + $0x1f4] sm:$0xf] %v3799
    %4312 = vst [vmem:[%s3 + $0x1f8] sm:$0xf] %v3800
    %4313 = vst [vmem:[%s3 + $0x1fc] sm:$0xf] %v3801
    %4314 = vst [vmem:[%s3 + $0x200] sm:$0xf] %v3802
    %4315 = vst [vmem:[%s3 + $0x204] sm:$0xf] %v3803
    %4316 = vst [vmem:[%s3 + $0x208] sm:$0xf] %v3804
    %4317 = vst [vmem:[%s3 + $0x20c] sm:$0xf] %v3805
    %4318 = vst [vmem:[%s3 + $0x210] sm:$0xf] %v3806
    %4319 = vst [vmem:[%s3 + $0x214] sm:$0xf] %v3807
    %4320 = vst [vmem:[%s3 + $0x218] sm:$0xf] %v3808
    %4321 = vst [vmem:[%s3 + $0x21c] sm:$0xf] %v3809
    %4322 = vst [vmem:[%s3 + $0x220] sm:$0xf] %v3810
    %4323 = vst [vmem:[%s3 + $0x224] sm:$0xf] %v3811
    %4324 = vst [vmem:[%s3 + $0x228] sm:$0xf] %v3812
    %4325 = vst [vmem:[%s3 + $0x22c] sm:$0xf] %v3813
    %4326 = vst [vmem:[%s3 + $0x230] sm:$0xf] %v3814
    %4327 = vst [vmem:[%s3 + $0x234] sm:$0xf] %v3815
    %4328 = vst [vmem:[%s3 + $0x238] sm:$0xf] %v3816
    %4329 = vst [vmem:[%s3 + $0x23c] sm:$0xf] %v3817
    %4330 = vst [vmem:[%s3 + $0x240] sm:$0xf] %v3818
    %4331 = vst [vmem:[%s3 + $0x244] sm:$0xf] %v3819
    %4332 = vst [vmem:[%s3 + $0x248] sm:$0xf] %v3820
    %4333 = vst [vmem:[%s3 + $0x24c] sm:$0xf] %v3821
    %4334 = vst [vmem:[%s3 + $0x250] sm:$0xf] %v3822
    %4335 = vst [vmem:[%s3 + $0x254] sm:$0xf] %v3823
    %4336 = vst [vmem:[%s3 + $0x258] sm:$0xf] %v3824
    %4337 = vst [vmem:[%s3 + $0x25c] sm:$0xf] %v3825
    %4338 = vst [vmem:[%s3 + $0x260] sm:$0xf] %v3826
    %4339 = vst [vmem:[%s3 + $0x264] sm:$0xf] %v3827
    %4340 = vst [vmem:[%s3 + $0x268] sm:$0xf] %v3828
    %4341 = vst [vmem:[%s3 + $0x26c] sm:$0xf] %v3829
    %4342 = vst [vmem:[%s3 + $0x270] sm:$0xf] %v3830
    %4343 = vst [vmem:[%s3 + $0x274] sm:$0xf] %v3831
    %4344 = vst [vmem:[%s3 + $0x278] sm:$0xf] %v3832
    %4345 = vst [vmem:[%s3 + $0x27c] sm:$0xf] %v3833
    %4346 = vst [vmem:[%s3 + $0x280] sm:$0xf] %v3834
    %4347 = vst [vmem:[%s3 + $0x284] sm:$0xf] %v3835
    %4348 = vst [vmem:[%s3 + $0x288] sm:$0xf] %v3836
    %4349 = vst [vmem:[%s3 + $0x28c] sm:$0xf] %v3837
    %4350 = vst [vmem:[%s3 + $0x290] sm:$0xf] %v3838
    %4351 = vst [vmem:[%s3 + $0x294] sm:$0xf] %v3839
    %4352 = vst [vmem:[%s3 + $0x298] sm:$0xf] %v3840
    %4353 = vst [vmem:[%s3 + $0x29c] sm:$0xf] %v3841
    %4354 = vst [vmem:[%s3 + $0x2a0] sm:$0xf] %v3842
    %4355 = vst [vmem:[%s3 + $0x2a4] sm:$0xf] %v3843
    %4356 = vst [vmem:[%s3 + $0x2a8] sm:$0xf] %v3844
    %4357 = vst [vmem:[%s3 + $0x2ac] sm:$0xf] %v3845
    %4358 = vst [vmem:[%s3 + $0x2b0] sm:$0xf] %v3846
    %4359 = vst [vmem:[%s3 + $0x2b4] sm:$0xf] %v3847
    %4360 = vst [vmem:[%s3 + $0x2b8] sm:$0xf] %v3848
    %4361 = vst [vmem:[%s3 + $0x2bc] sm:$0xf] %v3849
    %4362 = vst [vmem:[%s3 + $0x2c0] sm:$0xf] %v3850
    %4363 = vst [vmem:[%s3 + $0x2c4] sm:$0xf] %v3851
    %4364 = vst [vmem:[%s3 + $0x2c8] sm:$0xf] %v3852
    %4365 = vst [vmem:[%s3 + $0x2cc] sm:$0xf] %v3853
    %4366 = vst [vmem:[%s3 + $0x2d0] sm:$0xf] %v3854
    %4367 = vst [vmem:[%s3 + $0x2d4] sm:$0xf] %v3855
    %4368 = vst [vmem:[%s3 + $0x2d8] sm:$0xf] %v3856
    %4369 = vst [vmem:[%s3 + $0x2dc] sm:$0xf] %v3857
    %4370 = vst [vmem:[%s3 + $0x2e0] sm:$0xf] %v3858
    %4371 = vst [vmem:[%s3 + $0x2e4] sm:$0xf] %v3859
    %4372 = vst [vmem:[%s3 + $0x2e8] sm:$0xf] %v3860
    %4373 = vst [vmem:[%s3 + $0x2ec] sm:$0xf] %v3861
    %4374 = vst [vmem:[%s3 + $0x2f0] sm:$0xf] %v3862
    %4375 = vst [vmem:[%s3 + $0x2f4] sm:$0xf] %v3863
    %4376 = vst [vmem:[%s3 + $0x2f8] sm:$0xf] %v3864
    %4377 = vst [vmem:[%s3 + $0x2fc] sm:$0xf] %v3865
    %4378 = vst [vmem:[%s3 + $0x300] sm:$0xf] %v3866
    %4379 = vst [vmem:[%s3 + $0x304] sm:$0xf] %v3867
    %4380 = vst [vmem:[%s3 + $0x308] sm:$0xf] %v3868
    %4381 = vst [vmem:[%s3 + $0x30c] sm:$0xf] %v3869
    %4382 = vst [vmem:[%s3 + $0x310] sm:$0xf] %v3870
    %4383 = vst [vmem:[%s3 + $0x314] sm:$0xf] %v3871
    %4384 = vst [vmem:[%s3 + $0x318] sm:$0xf] %v3872
    %4385 = vst [vmem:[%s3 + $0x31c] sm:$0xf] %v3873
    %4386 = vst [vmem:[%s3 + $0x320] sm:$0xf] %v3874
    %4387 = vst [vmem:[%s3 + $0x324] sm:$0xf] %v3875
    %4388 = vst [vmem:[%s3 + $0x328] sm:$0xf] %v3876
    %4389 = vst [vmem:[%s3 + $0x32c] sm:$0xf] %v3877
    %4390 = vst [vmem:[%s3 + $0x330] sm:$0xf] %v3878
    %4391 = vst [vmem:[%s3 + $0x334] sm:$0xf] %v3879
    %4392 = vst [vmem:[%s3 + $0x338] sm:$0xf] %v3880
    %4393 = vst [vmem:[%s3 + $0x33c] sm:$0xf] %v3881
    %4394 = vst [vmem:[%s3 + $0x340] sm:$0xf] %v3882
    %4395 = vst [vmem:[%s3 + $0x344] sm:$0xf] %v3883
    %4396 = vst [vmem:[%s3 + $0x348] sm:$0xf] %v3884
    %4397 = vst [vmem:[%s3 + $0x34c] sm:$0xf] %v3885
    %4398 = vst [vmem:[%s3 + $0x350] sm:$0xf] %v3886
    %4399 = vst [vmem:[%s3 + $0x354] sm:$0xf] %v3887
    %4400 = vst [vmem:[%s3 + $0x358] sm:$0xf] %v3888
    %4401 = vst [vmem:[%s3 + $0x35c] sm:$0xf] %v3889
    %4402 = vst [vmem:[%s3 + $0x360] sm:$0xf] %v3890
    %4403 = vst [vmem:[%s3 + $0x364] sm:$0xf] %v3891
    %4404 = vst [vmem:[%s3 + $0x368] sm:$0xf] %v3892
    %4405 = vst [vmem:[%s3 + $0x36c] sm:$0xf] %v3893
    %4406 = vst [vmem:[%s3 + $0x370] sm:$0xf] %v3894
    %4407 = vst [vmem:[%s3 + $0x374] sm:$0xf] %v3895
    %4408 = vst [vmem:[%s3 + $0x378] sm:$0xf] %v3896
    %4409 = vst [vmem:[%s3 + $0x37c] sm:$0xf] %v3897
    %4410 = vst [vmem:[%s3 + $0x380] sm:$0xf] %v3898
    %4411 = vst [vmem:[%s3 + $0x384] sm:$0xf] %v3899
    %4412 = vst [vmem:[%s3 + $0x388] sm:$0xf] %v3900
    %4413 = vst [vmem:[%s3 + $0x38c] sm:$0xf] %v3901
    %4414 = vst [vmem:[%s3 + $0x390] sm:$0xf] %v3902
    %4415 = vst [vmem:[%s3 + $0x394] sm:$0xf] %v3903
    %4416 = vst [vmem:[%s3 + $0x398] sm:$0xf] %v3904
    %4417 = vst [vmem:[%s3 + $0x39c] sm:$0xf] %v3905
    %4418 = vst [vmem:[%s3 + $0x3a0] sm:$0xf] %v3906
    %4419 = vst [vmem:[%s3 + $0x3a4] sm:$0xf] %v3907
    %4420 = vst [vmem:[%s3 + $0x3a8] sm:$0xf] %v3908
    %4421 = vst [vmem:[%s3 + $0x3ac] sm:$0xf] %v3909
    %4422 = vst [vmem:[%s3 + $0x3b0] sm:$0xf] %v3910
    %4423 = vst [vmem:[%s3 + $0x3b4] sm:$0xf] %v3911
    %4424 = vst [vmem:[%s3 + $0x3b8] sm:$0xf] %v3912
    %4425 = vst [vmem:[%s3 + $0x3bc] sm:$0xf] %v3913
    %4426 = vst [vmem:[%s3 + $0x3c0] sm:$0xf] %v3914
    %4427 = vst [vmem:[%s3 + $0x3c4] sm:$0xf] %v3915
    %4428 = vst [vmem:[%s3 + $0x3c8] sm:$0xf] %v3916
    %4429 = vst [vmem:[%s3 + $0x3cc] sm:$0xf] %v3917
    %4430 = vst [vmem:[%s3 + $0x3d0] sm:$0xf] %v3918
    %4431 = vst [vmem:[%s3 + $0x3d4] sm:$0xf] %v3919
    %4432 = vst [vmem:[%s3 + $0x3d8] sm:$0xf] %v3920
    %4433 = vst [vmem:[%s3 + $0x3dc] sm:$0xf] %v3921
    %4434 = vst [vmem:[%s3 + $0x3e0] sm:$0xf] %v3922
    %4435 = vst [vmem:[%s3 + $0x3e4] sm:$0xf] %v3923
    %4436 = vst [vmem:[%s3 + $0x3e8] sm:$0xf] %v3924
    %4437 = vst [vmem:[%s3 + $0x3ec] sm:$0xf] %v3925
    %4438 = vst [vmem:[%s3 + $0x3f0] sm:$0xf] %v3926
    %4439 = vst [vmem:[%s3 + $0x3f4] sm:$0xf] %v3927
    %4440 = vst [vmem:[%s3 + $0x3f8] sm:$0xf] %v3928
    %4441 = vst [vmem:[%s3 + $0x3fc] sm:$0xf] %v3929
    // Predicated region
    $region22: #{encoder_v3_pallas.4} parent=1 // pred_check
      _
    $region23: #{encoder_v3_pallas.4} parent=1 // pred_check_branch
      %4443 = sbr.rel (0) target = $region25
    $region24: #{encoder_v3_pallas.4} parent=1 // pred_region
      _
    $region25: #{encoder_v3_pallas.4} parent=1 // pred_fallthru
      _
    // Predicated region
    $region26: #{encoder_v3_pallas.4} parent=1 // pred_check
      _
    $region27: #{encoder_v3_pallas.4} parent=1 // pred_check_branch
      %4445 = sbr.rel (0) target = $region29
    $region28: #{encoder_v3_pallas.4} parent=1 // pred_region
      _
    $region29: #{encoder_v3_pallas.4} parent=1 // pred_fallthru
      _
    %4446 = vsyncpa [#allocation3], 1
    %4447 = vsyncpa [#allocation5], 1

// kernel: encoder_v3_pallas.5
$region0: #{encoder_v3_pallas.5}
  #allocation0 [shape = 'u32[]', space=smem, size = 0x4, offset = 0x4, fixed_abs, tag = 'smem constant byte address 0x4 - core index']
  #allocation1 [shape = 'u32[144,128]{1,0:T(1,128)}', space=vmem, size = 0x12000, scoped, tag = 'internal scratch']
  %s0 = inlined_call_operand.vmem [shape: bf16[512,256], index: 0, kind: input, shape index: {}]
  %s1 = inlined_call_operand.vmem [shape: bf16[256,128], index: 1, kind: input, shape index: {}]
  %s2 = inlined_call_operand.vmem [shape: f32[1,128], index: 2, kind: input, shape index: {}]
  %s3 = inlined_call_operand.vmem [shape: f32[1,128], index: 3, kind: input, shape index: {}]
  %s4 = inlined_call_operand.vmem [shape: bf16[512,128], index: 4, kind: output, shape index: {}]
  %s5 = sld [smem:[#allocation0]]
  $region26: #{encoder_v3_pallas.5} parent=0
    _
  %s7 = ssub.s32 1, %s5
  %s8 = scalar_select 0, %s7, %s5
  // Predicated region
  $region2: #{encoder_v3_pallas.5} parent=0 // pred_check
    _
  $region3: #{encoder_v3_pallas.5} parent=0 // pred_check_branch
    %10 = sbr.rel (0) target = $region5
  $region4: #{encoder_v3_pallas.5} parent=0 // pred_region
    _
  $region5: #{encoder_v3_pallas.5} parent=0 // pred_fallthru
    _
  // Predicated region
  $region6: #{encoder_v3_pallas.5} parent=0 // pred_check
    _
  $region7: #{encoder_v3_pallas.5} parent=0 // pred_check_branch
    %12 = sbr.rel (0) target = $region9
  $region8: #{encoder_v3_pallas.5} parent=0 // pred_region
    _
  $region9: #{encoder_v3_pallas.5} parent=0 // pred_fallthru
    _
  // Predicated region
  $region10: #{encoder_v3_pallas.5} parent=0 // pred_check
    _
  $region11: #{encoder_v3_pallas.5} parent=0 // pred_check_branch
    %14 = sbr.rel (0) target = $region13
  $region12: #{encoder_v3_pallas.5} parent=0 // pred_region
    _
  $region13: #{encoder_v3_pallas.5} parent=0 // pred_fallthru
    _
  // Predicated region
  $region14: #{encoder_v3_pallas.5} parent=0 // pred_check
    _
  $region15: #{encoder_v3_pallas.5} parent=0 // pred_check_branch
    %16 = sbr.rel (0) target = $region17
  $region16: #{encoder_v3_pallas.5} parent=0 // pred_region
    _
  $region17: #{encoder_v3_pallas.5} parent=0 // pred_fallthru
    _
  %v18 = vld [vmem:[%s0] sm:$0xff]
  %v19 = vld [vmem:[%s0 + $0x8] sm:$0xff]
  %v20 = vld [vmem:[%s0 + $0x10] sm:$0xff]
  %v21 = vld [vmem:[%s0 + $0x18] sm:$0xff]
  %v22 = vld [vmem:[%s0 + $0x20] sm:$0xff]
  %v23 = vld [vmem:[%s0 + $0x28] sm:$0xff]
  %v24 = vld [vmem:[%s0 + $0x30] sm:$0xff]
  %v25 = vld [vmem:[%s0 + $0x38] sm:$0xff]
  %v26 = vld [vmem:[%s0 + $0x40] sm:$0xff]
  %v27 = vld [vmem:[%s0 + $0x48] sm:$0xff]
  %v28 = vld [vmem:[%s0 + $0x50] sm:$0xff]
  %v29 = vld [vmem:[%s0 + $0x58] sm:$0xff]
  %v30 = vld [vmem:[%s0 + $0x60] sm:$0xff]
  %v31 = vld [vmem:[%s0 + $0x68] sm:$0xff]
  %v32 = vld [vmem:[%s0 + $0x70] sm:$0xff]
  %v33 = vld [vmem:[%s0 + $0x78] sm:$0xff]
  %v34 = vld [vmem:[%s0 + $0x80] sm:$0xff]
  %v35 = vld [vmem:[%s0 + $0x88] sm:$0xff]
  %v36 = vld [vmem:[%s0 + $0x90] sm:$0xff]
  %v37 = vld [vmem:[%s0 + $0x98] sm:$0xff]
  %v38 = vld [vmem:[%s0 + $0xa0] sm:$0xff]
  %v39 = vld [vmem:[%s0 + $0xa8] sm:$0xff]
  %v40 = vld [vmem:[%s0 + $0xb0] sm:$0xff]
  %v41 = vld [vmem:[%s0 + $0xb8] sm:$0xff]
  %v42 = vld [vmem:[%s0 + $0xc0] sm:$0xff]
  %v43 = vld [vmem:[%s0 + $0xc8] sm:$0xff]
  %v44 = vld [vmem:[%s0 + $0xd0] sm:$0xff]
  %v45 = vld [vmem:[%s0 + $0xd8] sm:$0xff]
  %v46 = vld [vmem:[%s0 + $0xe0] sm:$0xff]
  %v47 = vld [vmem:[%s0 + $0xe8] sm:$0xff]
  %v48 = vld [vmem:[%s0 + $0xf0] sm:$0xff]
  %v49 = vld [vmem:[%s0 + $0xf8] sm:$0xff]
  %v50 = vld [vmem:[%s0 + $0x100] sm:$0xff]
  %v51 = vld [vmem:[%s0 + $0x108] sm:$0xff]
  %v52 = vld [vmem:[%s0 + $0x110] sm:$0xff]
  %v53 = vld [vmem:[%s0 + $0x118] sm:$0xff]
  %v54 = vld [vmem:[%s0 + $0x120] sm:$0xff]
  %v55 = vld [vmem:[%s0 + $0x128] sm:$0xff]
  %v56 = vld [vmem:[%s0 + $0x130] sm:$0xff]
  %v57 = vld [vmem:[%s0 + $0x138] sm:$0xff]
  %v58 = vld [vmem:[%s0 + $0x140] sm:$0xff]
  %v59 = vld [vmem:[%s0 + $0x148] sm:$0xff]
  %v60 = vld [vmem:[%s0 + $0x150] sm:$0xff]
  %v61 = vld [vmem:[%s0 + $0x158] sm:$0xff]
  %v62 = vld [vmem:[%s0 + $0x160] sm:$0xff]
  %v63 = vld [vmem:[%s0 + $0x168] sm:$0xff]
  %v64 = vld [vmem:[%s0 + $0x170] sm:$0xff]
  %v65 = vld [vmem:[%s0 + $0x178] sm:$0xff]
  %v66 = vld [vmem:[%s0 + $0x180] sm:$0xff]
  %v67 = vld [vmem:[%s0 + $0x188] sm:$0xff]
  %v68 = vld [vmem:[%s0 + $0x190] sm:$0xff]
  %v69 = vld [vmem:[%s0 + $0x198] sm:$0xff]
  %v70 = vld [vmem:[%s0 + $0x1a0] sm:$0xff]
  %v71 = vld [vmem:[%s0 + $0x1a8] sm:$0xff]
  %v72 = vld [vmem:[%s0 + $0x1b0] sm:$0xff]
  %v73 = vld [vmem:[%s0 + $0x1b8] sm:$0xff]
  %v74 = vld [vmem:[%s0 + $0x1c0] sm:$0xff]
  %v75 = vld [vmem:[%s0 + $0x1c8] sm:$0xff]
  %v76 = vld [vmem:[%s0 + $0x1d0] sm:$0xff]
  %v77 = vld [vmem:[%s0 + $0x1d8] sm:$0xff]
  %v78 = vld [vmem:[%s0 + $0x1e0] sm:$0xff]
  %v79 = vld [vmem:[%s0 + $0x1e8] sm:$0xff]
  %v80 = vld [vmem:[%s0 + $0x1f0] sm:$0xff]
  %v81 = vld [vmem:[%s0 + $0x1f8] sm:$0xff]
  %v82 = vld [vmem:[%s1] sm:$0xf]
  %v83 = vld [vmem:[%s1 + $0x4] sm:$0xf]
  %v84 = vld [vmem:[%s1 + $0x8] sm:$0xf]
  %v85 = vld [vmem:[%s1 + $0xc] sm:$0xf]
  %v86 = vld [vmem:[%s1 + $0x10] sm:$0xf]
  %v87 = vld [vmem:[%s1 + $0x14] sm:$0xf]
  %v88 = vld [vmem:[%s1 + $0x18] sm:$0xf]
  %v89 = vld [vmem:[%s1 + $0x1c] sm:$0xf]
  %v90 = vld [vmem:[%s1 + $0x20] sm:$0xf]
  %v91 = vld [vmem:[%s1 + $0x24] sm:$0xf]
  %v92 = vld [vmem:[%s1 + $0x28] sm:$0xf]
  %v93 = vld [vmem:[%s1 + $0x2c] sm:$0xf]
  %v94 = vld [vmem:[%s1 + $0x30] sm:$0xf]
  %v95 = vld [vmem:[%s1 + $0x34] sm:$0xf]
  %v96 = vld [vmem:[%s1 + $0x38] sm:$0xf]
  %v97 = vld [vmem:[%s1 + $0x3c] sm:$0xf]
  %v98 = vld [vmem:[%s1 + $0x40] sm:$0xf]
  %v99 = vld [vmem:[%s1 + $0x44] sm:$0xf]
  %v100 = vld [vmem:[%s1 + $0x48] sm:$0xf]
  %v101 = vld [vmem:[%s1 + $0x4c] sm:$0xf]
  %v102 = vld [vmem:[%s1 + $0x50] sm:$0xf]
  %v103 = vld [vmem:[%s1 + $0x54] sm:$0xf]
  %v104 = vld [vmem:[%s1 + $0x58] sm:$0xf]
  %v105 = vld [vmem:[%s1 + $0x5c] sm:$0xf]
  %v106 = vld [vmem:[%s1 + $0x60] sm:$0xf]
  %v107 = vld [vmem:[%s1 + $0x64] sm:$0xf]
  %v108 = vld [vmem:[%s1 + $0x68] sm:$0xf]
  %v109 = vld [vmem:[%s1 + $0x6c] sm:$0xf]
  %v110 = vld [vmem:[%s1 + $0x70] sm:$0xf]
  %v111 = vld [vmem:[%s1 + $0x74] sm:$0xf]
  %v112 = vld [vmem:[%s1 + $0x78] sm:$0xf]
  %v113 = vld [vmem:[%s1 + $0x7c] sm:$0xf]
  %v178 = vunpack.c.l.b16 %v18
  %v179 = vunpack.c.h.b16 %v18
  %v180 = vunpack.c.l.b16 %v19
  %v181 = vunpack.c.h.b16 %v19
  %v182 = vunpack.c.l.b16 %v20
  %v183 = vunpack.c.h.b16 %v20
  %v184 = vunpack.c.l.b16 %v21
  %v185 = vunpack.c.h.b16 %v21
  %v186 = vunpack.c.l.b16 %v22
  %v187 = vunpack.c.h.b16 %v22
  %v188 = vunpack.c.l.b16 %v23
  %v189 = vunpack.c.h.b16 %v23
  %v190 = vunpack.c.l.b16 %v24
  %v191 = vunpack.c.h.b16 %v24
  %v192 = vunpack.c.l.b16 %v25
  %v193 = vunpack.c.h.b16 %v25
  %v194 = vunpack.c.l.b16 %v26
  %v195 = vunpack.c.h.b16 %v26
  %v196 = vunpack.c.l.b16 %v27
  %v197 = vunpack.c.h.b16 %v27
  %v198 = vunpack.c.l.b16 %v28
  %v199 = vunpack.c.h.b16 %v28
  %v200 = vunpack.c.l.b16 %v29
  %v201 = vunpack.c.h.b16 %v29
  %v202 = vunpack.c.l.b16 %v30
  %v203 = vunpack.c.h.b16 %v30
  %v204 = vunpack.c.l.b16 %v31
  %v205 = vunpack.c.h.b16 %v31
  %v206 = vunpack.c.l.b16 %v32
  %v207 = vunpack.c.h.b16 %v32
  %v208 = vunpack.c.l.b16 %v33
  %v209 = vunpack.c.h.b16 %v33
  %v210 = vunpack.c.l.b16 %v34
  %v211 = vunpack.c.h.b16 %v34
  %v212 = vunpack.c.l.b16 %v35
  %v213 = vunpack.c.h.b16 %v35
  %v214 = vunpack.c.l.b16 %v36
  %v215 = vunpack.c.h.b16 %v36
  %v216 = vunpack.c.l.b16 %v37
  %v217 = vunpack.c.h.b16 %v37
  %v218 = vunpack.c.l.b16 %v38
  %v219 = vunpack.c.h.b16 %v38
  %v220 = vunpack.c.l.b16 %v39
  %v221 = vunpack.c.h.b16 %v39
  %v222 = vunpack.c.l.b16 %v40
  %v223 = vunpack.c.h.b16 %v40
  %v224 = vunpack.c.l.b16 %v41
  %v225 = vunpack.c.h.b16 %v41
  %v226 = vunpack.c.l.b16 %v42
  %v227 = vunpack.c.h.b16 %v42
  %v228 = vunpack.c.l.b16 %v43
  %v229 = vunpack.c.h.b16 %v43
  %v230 = vunpack.c.l.b16 %v44
  %v231 = vunpack.c.h.b16 %v44
  %v232 = vunpack.c.l.b16 %v45
  %v233 = vunpack.c.h.b16 %v45
  %v234 = vunpack.c.l.b16 %v46
  %v235 = vunpack.c.h.b16 %v46
  %v236 = vunpack.c.l.b16 %v47
  %v237 = vunpack.c.h.b16 %v47
  %v238 = vunpack.c.l.b16 %v48
  %v239 = vunpack.c.h.b16 %v48
  %v240 = vunpack.c.l.b16 %v49
  %v241 = vunpack.c.h.b16 %v49
  %v242 = vunpack.c.l.b16 %v50
  %v243 = vunpack.c.h.b16 %v50
  %v244 = vunpack.c.l.b16 %v51
  %v245 = vunpack.c.h.b16 %v51
  %v246 = vunpack.c.l.b16 %v52
  %v247 = vunpack.c.h.b16 %v52
  %v248 = vunpack.c.l.b16 %v53
  %v249 = vunpack.c.h.b16 %v53
  %v250 = vunpack.c.l.b16 %v54
  %v251 = vunpack.c.h.b16 %v54
  %v252 = vunpack.c.l.b16 %v55
  %v253 = vunpack.c.h.b16 %v55
  %v254 = vunpack.c.l.b16 %v56
  %v255 = vunpack.c.h.b16 %v56
  %v256 = vunpack.c.l.b16 %v57
  %v257 = vunpack.c.h.b16 %v57
  %v258 = vunpack.c.l.b16 %v58
  %v259 = vunpack.c.h.b16 %v58
  %v260 = vunpack.c.l.b16 %v59
  %v261 = vunpack.c.h.b16 %v59
  %v262 = vunpack.c.l.b16 %v60
  %v263 = vunpack.c.h.b16 %v60
  %v264 = vunpack.c.l.b16 %v61
  %v265 = vunpack.c.h.b16 %v61
  %v266 = vunpack.c.l.b16 %v62
  %v267 = vunpack.c.h.b16 %v62
  %v268 = vunpack.c.l.b16 %v63
  %v269 = vunpack.c.h.b16 %v63
  %v270 = vunpack.c.l.b16 %v64
  %v271 = vunpack.c.h.b16 %v64
  %v272 = vunpack.c.l.b16 %v65
  %v273 = vunpack.c.h.b16 %v65
  %v274 = vunpack.c.l.b16 %v66
  %v275 = vunpack.c.h.b16 %v66
  %v276 = vunpack.c.l.b16 %v67
  %v277 = vunpack.c.h.b16 %v67
  %v278 = vunpack.c.l.b16 %v68
  %v279 = vunpack.c.h.b16 %v68
  %v280 = vunpack.c.l.b16 %v69
  %v281 = vunpack.c.h.b16 %v69
  %v282 = vunpack.c.l.b16 %v70
  %v283 = vunpack.c.h.b16 %v70
  %v284 = vunpack.c.l.b16 %v71
  %v285 = vunpack.c.h.b16 %v71
  %v286 = vunpack.c.l.b16 %v72
  %v287 = vunpack.c.h.b16 %v72
  %v288 = vunpack.c.l.b16 %v73
  %v289 = vunpack.c.h.b16 %v73
  %v290 = vunpack.c.l.b16 %v74
  %v291 = vunpack.c.h.b16 %v74
  %v292 = vunpack.c.l.b16 %v75
  %v293 = vunpack.c.h.b16 %v75
  %v294 = vunpack.c.l.b16 %v76
  %v295 = vunpack.c.h.b16 %v76
  %v296 = vunpack.c.l.b16 %v77
  %v297 = vunpack.c.h.b16 %v77
  %v298 = vunpack.c.l.b16 %v78
  %v299 = vunpack.c.h.b16 %v78
  %v300 = vunpack.c.l.b16 %v79
  %v301 = vunpack.c.h.b16 %v79
  %v302 = vunpack.c.l.b16 %v80
  %v303 = vunpack.c.h.b16 %v80
  %v304 = vunpack.c.l.b16 %v81
  %v305 = vunpack.c.h.b16 %v81
  %v306 = vpack.c.b16 %v180, %v178
  %v307 = vpack.c.b16 %v181, %v179
  %v308 = vpack.c.b16 %v184, %v182
  %v309 = vpack.c.b16 %v185, %v183
  %v310 = vpack.c.b16 %v188, %v186
  %v311 = vpack.c.b16 %v189, %v187
  %v312 = vpack.c.b16 %v192, %v190
  %v313 = vpack.c.b16 %v193, %v191
  %v314 = vpack.c.b16 %v196, %v194
  %v315 = vpack.c.b16 %v197, %v195
  %v316 = vpack.c.b16 %v200, %v198
  %v317 = vpack.c.b16 %v201, %v199
  %v318 = vpack.c.b16 %v204, %v202
  %v319 = vpack.c.b16 %v205, %v203
  %v320 = vpack.c.b16 %v208, %v206
  %v321 = vpack.c.b16 %v209, %v207
  %v322 = vpack.c.b16 %v212, %v210
  %v323 = vpack.c.b16 %v213, %v211
  %v324 = vpack.c.b16 %v216, %v214
  %v325 = vpack.c.b16 %v217, %v215
  %v326 = vpack.c.b16 %v220, %v218
  %v327 = vpack.c.b16 %v221, %v219
  %v328 = vpack.c.b16 %v224, %v222
  %v329 = vpack.c.b16 %v225, %v223
  %v330 = vpack.c.b16 %v228, %v226
  %v331 = vpack.c.b16 %v229, %v227
  %v332 = vpack.c.b16 %v232, %v230
  %v333 = vpack.c.b16 %v233, %v231
  %v334 = vpack.c.b16 %v236, %v234
  %v335 = vpack.c.b16 %v237, %v235
  %v336 = vpack.c.b16 %v240, %v238
  %v337 = vpack.c.b16 %v241, %v239
  %v338 = vpack.c.b16 %v244, %v242
  %v339 = vpack.c.b16 %v245, %v243
  %v340 = vpack.c.b16 %v248, %v246
  %v341 = vpack.c.b16 %v249, %v247
  %v342 = vpack.c.b16 %v252, %v250
  %v343 = vpack.c.b16 %v253, %v251
  %v344 = vpack.c.b16 %v256, %v254
  %v345 = vpack.c.b16 %v257, %v255
  %v346 = vpack.c.b16 %v260, %v258
  %v347 = vpack.c.b16 %v261, %v259
  %v348 = vpack.c.b16 %v264, %v262
  %v349 = vpack.c.b16 %v265, %v263
  %v350 = vpack.c.b16 %v268, %v266
  %v351 = vpack.c.b16 %v269, %v267
  %v352 = vpack.c.b16 %v272, %v270
  %v353 = vpack.c.b16 %v273, %v271
  %v354 = vpack.c.b16 %v276, %v274
  %v355 = vpack.c.b16 %v277, %v275
  %v356 = vpack.c.b16 %v280, %v278
  %v357 = vpack.c.b16 %v281, %v279
  %v358 = vpack.c.b16 %v284, %v282
  %v359 = vpack.c.b16 %v285, %v283
  %v360 = vpack.c.b16 %v288, %v286
  %v361 = vpack.c.b16 %v289, %v287
  %v362 = vpack.c.b16 %v292, %v290
  %v363 = vpack.c.b16 %v293, %v291
  %v364 = vpack.c.b16 %v296, %v294
  %v365 = vpack.c.b16 %v297, %v295
  %v366 = vpack.c.b16 %v300, %v298
  %v367 = vpack.c.b16 %v301, %v299
  %v368 = vpack.c.b16 %v304, %v302
  %v369 = vpack.c.b16 %v305, %v303
  %v466 = vunpack.c.l.b16 %v82
  %v467 = vunpack.c.l.b16 %v83
  %v468 = vunpack.c.l.b16 %v84
  %v469 = vunpack.c.l.b16 %v85
  %v470 = vunpack.c.l.b16 %v86
  %v471 = vunpack.c.l.b16 %v87
  %v472 = vunpack.c.l.b16 %v88
  %v473 = vunpack.c.l.b16 %v89
  %v474 = vunpack.c.l.b16 %v90
  %v475 = vunpack.c.l.b16 %v91
  %v476 = vunpack.c.l.b16 %v92
  %v477 = vunpack.c.l.b16 %v93
  %v478 = vunpack.c.l.b16 %v94
  %v479 = vunpack.c.l.b16 %v95
  %v480 = vunpack.c.l.b16 %v96
  %v481 = vunpack.c.l.b16 %v97
  %v482 = vunpack.c.l.b16 %v98
  %v483 = vunpack.c.l.b16 %v99
  %v484 = vunpack.c.l.b16 %v100
  %v485 = vunpack.c.l.b16 %v101
  %v486 = vunpack.c.l.b16 %v102
  %v487 = vunpack.c.l.b16 %v103
  %v488 = vunpack.c.l.b16 %v104
  %v489 = vunpack.c.l.b16 %v105
  %v490 = vunpack.c.l.b16 %v106
  %v491 = vunpack.c.l.b16 %v107
  %v492 = vunpack.c.l.b16 %v108
  %v493 = vunpack.c.l.b16 %v109
  %v494 = vunpack.c.l.b16 %v110
  %v495 = vunpack.c.l.b16 %v111
  %v496 = vunpack.c.l.b16 %v112
  %v497 = vunpack.c.l.b16 %v113
  %v498 = vpack.c.b16 %v467, %v466
  %v499 = vpack.c.b16 %v469, %v468
  %v500 = vpack.c.b16 %v471, %v470
  %v501 = vpack.c.b16 %v473, %v472
  %v502 = vpack.c.b16 %v475, %v474
  %v503 = vpack.c.b16 %v477, %v476
  %v504 = vpack.c.b16 %v479, %v478
  %v505 = vpack.c.b16 %v481, %v480
  %v506 = vpack.c.b16 %v483, %v482
  %v507 = vpack.c.b16 %v485, %v484
  %v508 = vpack.c.b16 %v487, %v486
  %v509 = vpack.c.b16 %v489, %v488
  %v510 = vpack.c.b16 %v491, %v490
  %v511 = vpack.c.b16 %v493, %v492
  %v512 = vpack.c.b16 %v495, %v494
  %v513 = vpack.c.b16 %v497, %v496
  %530 = vmatprep.subr.bf16.mxu0 0
  %531 = vmatpush1.bf16.msra.mxu0 %v498
  %532 = vmatprep.subr.bf16.mxu0 0
  %533 = vmatpush1.bf16.msra.mxu0 %v499
  %534 = vmatprep.subr.bf16.mxu0 0
  %535 = vmatpush1.bf16.msra.mxu0 %v500
  %536 = vmatprep.subr.bf16.mxu0 0
  %537 = vmatpush1.bf16.msra.mxu0 %v501
  %538 = vmatprep.subr.bf16.mxu0 0
  %539 = vmatpush1.bf16.msra.mxu0 %v502
  %540 = vmatprep.subr.bf16.mxu0 0
  %541 = vmatpush1.bf16.msra.mxu0 %v503
  %542 = vmatprep.subr.bf16.mxu0 0
  %543 = vmatpush1.bf16.msra.mxu0 %v504
  %544 = vmatprep.subr.bf16.mxu0 0
  %545 = vmatpush1.bf16.msra.mxu0 %v505
  %546 = vmatprep.subr.bf16.mxu0 0
  %547 = vmatpush1.bf16.msra.mxu0 %v506
  %548 = vmatprep.subr.bf16.mxu0 0
  %549 = vmatpush1.bf16.msra.mxu0 %v507
  %550 = vmatprep.subr.bf16.mxu0 0
  %551 = vmatpush1.bf16.msra.mxu0 %v508
  %552 = vmatprep.subr.bf16.mxu0 0
  %553 = vmatpush1.bf16.msra.mxu0 %v509
  %554 = vmatprep.subr.bf16.mxu0 0
  %555 = vmatpush1.bf16.msra.mxu0 %v510
  %556 = vmatprep.subr.bf16.mxu0 0
  %557 = vmatpush1.bf16.msra.mxu0 %v511
  %558 = vmatprep.subr.bf16.mxu0 0
  %559 = vmatpush1.bf16.msra.mxu0 %v512
  %560 = vmatprep.subr.bf16.mxu0 0
  %561 = vmatpush1.bf16.msra.mxu0 %v513
  %562 = vmatprep.mubr.bf16.mxu0 %v307
  %563 = vmatmul.mubr.bf16.gmra.mrb[0].mxu0 %v306
  %v564 = vpop.f32.mrb[0].mxu0
  %v565 = vadd.f32 0.0, %v564
  %v566 = vpop.f32.mrb[0].mxu0
  %v567 = vpop.f32.mrb[0].mxu0
  %v568 = vadd.f32 0.0, %v567
  %v569 = vpop.f32.mrb[0].mxu0
  %570 = vmatprep.mubr.bf16.mxu0 %v309
  %571 = vmatmul.mubr.bf16.gmra.mrb[0].mxu0 %v308
  %v572 = vpop.f32.mrb[0].mxu0
  %v573 = vadd.f32 0.0, %v572
  %v574 = vpop.f32.mrb[0].mxu0
  %v575 = vpop.f32.mrb[0].mxu0
  %v576 = vadd.f32 0.0, %v575
  %v577 = vpop.f32.mrb[0].mxu0
  %578 = vmatprep.mubr.bf16.mxu0 %v311
  %579 = vmatmul.mubr.bf16.gmra.mrb[0].mxu0 %v310
  %v580 = vpop.f32.mrb[0].mxu0
  %v581 = vadd.f32 0.0, %v580
  %v582 = vpop.f32.mrb[0].mxu0
  %v583 = vpop.f32.mrb[0].mxu0
  %v584 = vadd.f32 0.0, %v583
  %v585 = vpop.f32.mrb[0].mxu0
  %586 = vmatprep.mubr.bf16.mxu0 %v313
  %587 = vmatmul.mubr.bf16.gmra.mrb[0].mxu0 %v312
  %v588 = vpop.f32.mrb[0].mxu0
  %v589 = vadd.f32 0.0, %v588
  %v590 = vpop.f32.mrb[0].mxu0
  %v591 = vpop.f32.mrb[0].mxu0
  %v592 = vadd.f32 0.0, %v591
  %v593 = vpop.f32.mrb[0].mxu0
  %594 = vmatprep.mubr.bf16.mxu0 %v315
  %595 = vmatmul.mubr.bf16.gmra.mrb[0].mxu0 %v314
  %v596 = vpop.f32.mrb[0].mxu0
  %v597 = vadd.f32 0.0, %v596
  %v598 = vpop.f32.mrb[0].mxu0
  %v599 = vpop.f32.mrb[0].mxu0
  %v600 = vadd.f32 0.0, %v599
  %v601 = vpop.f32.mrb[0].mxu0
  %602 = vmatprep.mubr.bf16.mxu0 %v317
  %603 = vmatmul.mubr.bf16.gmra.mrb[0].mxu0 %v316
  %v604 = vpop.f32.mrb[0].mxu0
  %v605 = vadd.f32 0.0, %v604
  %v606 = vpop.f32.mrb[0].mxu0
  %v607 = vpop.f32.mrb[0].mxu0
  %v608 = vadd.f32 0.0, %v607
  %v609 = vpop.f32.mrb[0].mxu0
  %610 = vmatprep.mubr.bf16.mxu0 %v319
  %611 = vmatmul.mubr.bf16.gmra.mrb[0].mxu0 %v318
  %v612 = vpop.f32.mrb[0].mxu0
  %v613 = vadd.f32 0.0, %v612
  %v614 = vpop.f32.mrb[0].mxu0
  %v615 = vpop.f32.mrb[0].mxu0
  %v616 = vadd.f32 0.0, %v615
  %v617 = vpop.f32.mrb[0].mxu0
  %618 = vmatprep.mubr.bf16.mxu0 %v321
  %619 = vmatmul.mubr.bf16.gmra.mrb[0].mxu0 %v320
  %v620 = vpop.f32.mrb[0].mxu0
  %v621 = vadd.f32 0.0, %v620
  %v622 = vpop.f32.mrb[0].mxu0
  %v623 = vpop.f32.mrb[0].mxu0
  %v624 = vadd.f32 0.0, %v623
  %v625 = vpop.f32.mrb[0].mxu0
  %626 = vmatprep.mubr.bf16.mxu0 %v323
  %627 = vmatmul.mubr.bf16.gmra.mrb[0].mxu0 %v322
  %v628 = vpop.f32.mrb[0].mxu0
  %v629 = vadd.f32 0.0, %v628
  %v630 = vpop.f32.mrb[0].mxu0
  %v631 = vpop.f32.mrb[0].mxu0
  %v632 = vadd.f32 0.0, %v631
  %v633 = vpop.f32.mrb[0].mxu0
  %634 = vmatprep.mubr.bf16.mxu0 %v325
  %635 = vmatmul.mubr.bf16.gmra.mrb[0].mxu0 %v324
  %v636 = vpop.f32.mrb[0].mxu0
  %v637 = vadd.f32 0.0, %v636
  %v638 = vpop.f32.mrb[0].mxu0
  %v639 = vpop.f32.mrb[0].mxu0
  %v640 = vadd.f32 0.0, %v639
  %v641 = vpop.f32.mrb[0].mxu0
  %642 = vmatprep.mubr.bf16.mxu0 %v327
  %643 = vmatmul.mubr.bf16.gmra.mrb[0].mxu0 %v326
  %v644 = vpop.f32.mrb[0].mxu0
  %v645 = vadd.f32 0.0, %v644
  %v646 = vpop.f32.mrb[0].mxu0
  %v647 = vpop.f32.mrb[0].mxu0
  %v648 = vadd.f32 0.0, %v647
  %v649 = vpop.f32.mrb[0].mxu0
  %650 = vmatprep.mubr.bf16.mxu0 %v329
  %651 = vmatmul.mubr.bf16.gmra.mrb[0].mxu0 %v328
  %v652 = vpop.f32.mrb[0].mxu0
  %v653 = vadd.f32 0.0, %v652
  %v654 = vpop.f32.mrb[0].mxu0
  %v655 = vpop.f32.mrb[0].mxu0
  %v656 = vadd.f32 0.0, %v655
  %v657 = vpop.f32.mrb[0].mxu0
  %658 = vmatprep.mubr.bf16.mxu0 %v331
  %659 = vmatmul.mubr.bf16.gmra.mrb[0].mxu0 %v330
  %v660 = vpop.f32.mrb[0].mxu0
  %v661 = vadd.f32 0.0, %v660
  %v662 = vpop.f32.mrb[0].mxu0
  %v663 = vpop.f32.mrb[0].mxu0
  %v664 = vadd.f32 0.0, %v663
  %v665 = vpop.f32.mrb[0].mxu0
  %666 = vmatprep.mubr.bf16.mxu0 %v333
  %667 = vmatmul.mubr.bf16.gmra.mrb[0].mxu0 %v332
  %v668 = vpop.f32.mrb[0].mxu0
  %v669 = vadd.f32 0.0, %v668
  %v670 = vpop.f32.mrb[0].mxu0
  %v671 = vpop.f32.mrb[0].mxu0
  %v672 = vadd.f32 0.0, %v671
  %v673 = vpop.f32.mrb[0].mxu0
  %674 = vmatprep.mubr.bf16.mxu0 %v335
  %675 = vmatmul.mubr.bf16.gmra.mrb[0].mxu0 %v334
  %v676 = vpop.f32.mrb[0].mxu0
  %v677 = vadd.f32 0.0, %v676
  %v678 = vpop.f32.mrb[0].mxu0
  %v679 = vpop.f32.mrb[0].mxu0
  %v680 = vadd.f32 0.0, %v679
  %v681 = vpop.f32.mrb[0].mxu0
  %682 = vmatprep.mubr.bf16.mxu0 %v337
  %683 = vmatmul.mubr.bf16.gmra.mrb[0].mxu0 %v336
  %v684 = vpop.f32.mrb[0].mxu0
  %v685 = vadd.f32 0.0, %v684
  %v686 = vpop.f32.mrb[0].mxu0
  %v687 = vpop.f32.mrb[0].mxu0
  %v688 = vadd.f32 0.0, %v687
  %v689 = vpop.f32.mrb[0].mxu0
  %690 = vmatprep.mubr.bf16.mxu0 %v339
  %691 = vmatmul.mubr.bf16.gmra.mrb[0].mxu0 %v338
  %v692 = vpop.f32.mrb[0].mxu0
  %v693 = vadd.f32 0.0, %v692
  %v694 = vpop.f32.mrb[0].mxu0
  %v695 = vpop.f32.mrb[0].mxu0
  %v696 = vadd.f32 0.0, %v695
  %v697 = vpop.f32.mrb[0].mxu0
  %698 = vmatprep.mubr.bf16.mxu0 %v341
  %699 = vmatmul.mubr.bf16.gmra.mrb[0].mxu0 %v340
  %v700 = vpop.f32.mrb[0].mxu0
  %v701 = vadd.f32 0.0, %v700
  %v702 = vpop.f32.mrb[0].mxu0
  %v703 = vpop.f32.mrb[0].mxu0
  %v704 = vadd.f32 0.0, %v703
  %v705 = vpop.f32.mrb[0].mxu0
  %706 = vmatprep.mubr.bf16.mxu0 %v343
  %707 = vmatmul.mubr.bf16.gmra.mrb[0].mxu0 %v342
  %v708 = vpop.f32.mrb[0].mxu0
  %v709 = vadd.f32 0.0, %v708
  %v710 = vpop.f32.mrb[0].mxu0
  %v711 = vpop.f32.mrb[0].mxu0
  %v712 = vadd.f32 0.0, %v711
  %v713 = vpop.f32.mrb[0].mxu0
  %714 = vmatprep.mubr.bf16.mxu0 %v345
  %715 = vmatmul.mubr.bf16.gmra.mrb[0].mxu0 %v344
  %v716 = vpop.f32.mrb[0].mxu0
  %v717 = vadd.f32 0.0, %v716
  %v718 = vpop.f32.mrb[0].mxu0
  %v719 = vpop.f32.mrb[0].mxu0
  %v720 = vadd.f32 0.0, %v719
  %v721 = vpop.f32.mrb[0].mxu0
  %722 = vmatprep.mubr.bf16.mxu0 %v347
  %723 = vmatmul.mubr.bf16.gmra.mrb[0].mxu0 %v346
  %v724 = vpop.f32.mrb[0].mxu0
  %v725 = vadd.f32 0.0, %v724
  %v726 = vpop.f32.mrb[0].mxu0
  %v727 = vpop.f32.mrb[0].mxu0
  %v728 = vadd.f32 0.0, %v727
  %v729 = vpop.f32.mrb[0].mxu0
  %730 = vmatprep.mubr.bf16.mxu0 %v349
  %731 = vmatmul.mubr.bf16.gmra.mrb[0].mxu0 %v348
  %v732 = vpop.f32.mrb[0].mxu0
  %v733 = vadd.f32 0.0, %v732
  %v734 = vpop.f32.mrb[0].mxu0
  %v735 = vpop.f32.mrb[0].mxu0
  %v736 = vadd.f32 0.0, %v735
  %v737 = vpop.f32.mrb[0].mxu0
  %738 = vmatprep.mubr.bf16.mxu0 %v351
  %739 = vmatmul.mubr.bf16.gmra.mrb[0].mxu0 %v350
  %v740 = vpop.f32.mrb[0].mxu0
  %v741 = vadd.f32 0.0, %v740
  %v742 = vpop.f32.mrb[0].mxu0
  %v743 = vpop.f32.mrb[0].mxu0
  %v744 = vadd.f32 0.0, %v743
  %v745 = vpop.f32.mrb[0].mxu0
  %746 = vmatprep.mubr.bf16.mxu0 %v353
  %747 = vmatmul.mubr.bf16.gmra.mrb[0].mxu0 %v352
  %v748 = vpop.f32.mrb[0].mxu0
  %v749 = vadd.f32 0.0, %v748
  %v750 = vpop.f32.mrb[0].mxu0
  %v751 = vpop.f32.mrb[0].mxu0
  %v752 = vadd.f32 0.0, %v751
  %v753 = vpop.f32.mrb[0].mxu0
  %754 = vmatprep.mubr.bf16.mxu0 %v355
  %755 = vmatmul.mubr.bf16.gmra.mrb[0].mxu0 %v354
  %v756 = vpop.f32.mrb[0].mxu0
  %v757 = vadd.f32 0.0, %v756
  %v758 = vpop.f32.mrb[0].mxu0
  %v759 = vpop.f32.mrb[0].mxu0
  %v760 = vadd.f32 0.0, %v759
  %v761 = vpop.f32.mrb[0].mxu0
  %762 = vmatprep.mubr.bf16.mxu0 %v357
  %763 = vmatmul.mubr.bf16.gmra.mrb[0].mxu0 %v356
  %v764 = vpop.f32.mrb[0].mxu0
  %v765 = vadd.f32 0.0, %v764
  %v766 = vpop.f32.mrb[0].mxu0
  %v767 = vpop.f32.mrb[0].mxu0
  %v768 = vadd.f32 0.0, %v767
  %v769 = vpop.f32.mrb[0].mxu0
  %770 = vmatprep.mubr.bf16.mxu0 %v359
  %771 = vmatmul.mubr.bf16.gmra.mrb[0].mxu0 %v358
  %v772 = vpop.f32.mrb[0].mxu0
  %v773 = vadd.f32 0.0, %v772
  %v774 = vpop.f32.mrb[0].mxu0
  %v775 = vpop.f32.mrb[0].mxu0
  %v776 = vadd.f32 0.0, %v775
  %v777 = vpop.f32.mrb[0].mxu0
  %778 = vmatprep.mubr.bf16.mxu0 %v361
  %779 = vmatmul.mubr.bf16.gmra.mrb[0].mxu0 %v360
  %v780 = vpop.f32.mrb[0].mxu0
  %v781 = vadd.f32 0.0, %v780
  %v782 = vpop.f32.mrb[0].mxu0
  %v783 = vpop.f32.mrb[0].mxu0
  %v784 = vadd.f32 0.0, %v783
  %v785 = vpop.f32.mrb[0].mxu0
  %786 = vmatprep.mubr.bf16.mxu0 %v363
  %787 = vmatmul.mubr.bf16.gmra.mrb[0].mxu0 %v362
  %v788 = vpop.f32.mrb[0].mxu0
  %v789 = vadd.f32 0.0, %v788
  %v790 = vpop.f32.mrb[0].mxu0
  %v791 = vpop.f32.mrb[0].mxu0
  %v792 = vadd.f32 0.0, %v791
  %v793 = vpop.f32.mrb[0].mxu0
  %794 = vmatprep.mubr.bf16.mxu0 %v365
  %795 = vmatmul.mubr.bf16.gmra.mrb[0].mxu0 %v364
  %v796 = vpop.f32.mrb[0].mxu0
  %v797 = vadd.f32 0.0, %v796
  %v798 = vpop.f32.mrb[0].mxu0
  %v799 = vpop.f32.mrb[0].mxu0
  %v800 = vadd.f32 0.0, %v799
  %v801 = vpop.f32.mrb[0].mxu0
  %802 = vmatprep.mubr.bf16.mxu0 %v367
  %803 = vmatmul.mubr.bf16.gmra.mrb[0].mxu0 %v366
  %v804 = vpop.f32.mrb[0].mxu0
  %v805 = vadd.f32 0.0, %v804
  %v806 = vpop.f32.mrb[0].mxu0
  %v807 = vpop.f32.mrb[0].mxu0
  %v808 = vadd.f32 0.0, %v807
  %v809 = vpop.f32.mrb[0].mxu0
  %810 = vmatprep.mubr.bf16.mxu0 %v369
  %811 = vmatmul.mubr.bf16.gmra.mrb[0].mxu0 %v368
  %v812 = vpop.f32.mrb[0].mxu0
  %v813 = vadd.f32 0.0, %v812
  %v814 = vpop.f32.mrb[0].mxu0
  %v815 = vpop.f32.mrb[0].mxu0
  %v816 = vadd.f32 0.0, %v815
  %v817 = vpop.f32.mrb[0].mxu0
  %818 = vdwg.mxu0
  %v819 = vld [vmem:[%s2] sm:$0x1]
  %v820 = vld [vmem:[%s3] sm:$0x1]
  %821 = vmatprep.subr.mxu0 0.0
  %822 = vmatpush1.msra.mxu0 %v565
  %823 = vmatprep.subr.mxu0 0.0
  %824 = vmatpush1.msra.mxu0 %v568
  %825 = vmatprep.subr.mxu0 0.0
  %826 = vmatpush1.msra.mxu0 %v573
  %827 = vmatprep.subr.mxu0 0.0
  %828 = vmatpush1.msra.mxu0 %v576
  %829 = vmatprep.subr.mxu0 0.0
  %830 = vmatpush1.msra.mxu0 %v581
  %831 = vmatprep.subr.mxu0 0.0
  %832 = vmatpush1.msra.mxu0 %v584
  %833 = vmatprep.subr.mxu0 0.0
  %834 = vmatpush1.msra.mxu0 %v589
  %835 = vmatprep.subr.mxu0 0.0
  %836 = vmatpush1.msra.mxu0 %v592
  %837 = vmatprep.subr.mxu0 0.0
  %838 = vmatpush1.msra.mxu0 %v597
  %839 = vmatprep.subr.mxu0 0.0
  %840 = vmatpush1.msra.mxu0 %v600
  %841 = vmatprep.subr.mxu0 0.0
  %842 = vmatpush1.msra.mxu0 %v605
  %843 = vmatprep.subr.mxu0 0.0
  %844 = vmatpush1.msra.mxu0 %v608
  %845 = vmatprep.subr.mxu0 0.0
  %846 = vmatpush1.msra.mxu0 %v613
  %847 = vmatprep.subr.mxu0 0.0
  %848 = vmatpush1.msra.mxu0 %v616
  %849 = vmatprep.subr.mxu0 0.0
  %850 = vmatpush1.msra.mxu0 %v621
  %851 = vmatprep.subr.mxu0 0.0
  %852 = vmatpush1.msra.mxu0 %v624
  %853 = vmatprep.subr.mxu0 0.0
  %854 = vmatpush1.msra.mxu0 %v629
  %855 = vmatprep.subr.mxu0 0.0
  %856 = vmatpush1.msra.mxu0 %v632
  %857 = vmatprep.subr.mxu0 0.0
  %858 = vmatpush1.msra.mxu0 %v637
  %859 = vmatprep.subr.mxu0 0.0
  %860 = vmatpush1.msra.mxu0 %v640
  %861 = vmatprep.subr.mxu0 0.0
  %862 = vmatpush1.msra.mxu0 %v645
  %863 = vmatprep.subr.mxu0 0.0
  %864 = vmatpush1.msra.mxu0 %v648
  %865 = vmatprep.subr.mxu0 0.0
  %866 = vmatpush1.msra.mxu0 %v653
  %867 = vmatprep.subr.mxu0 0.0
  %868 = vmatpush1.msra.mxu0 %v656
  %869 = vmatprep.subr.mxu0 0.0
  %870 = vmatpush1.msra.mxu0 %v661
  %871 = vmatprep.subr.mxu0 0.0
  %872 = vmatpush1.msra.mxu0 %v664
  %873 = vmatprep.subr.mxu0 0.0
  %874 = vmatpush1.msra.mxu0 %v669
  %875 = vmatprep.subr.mxu0 0.0
  %876 = vmatpush1.msra.mxu0 %v672
  %877 = vmatprep.subr.mxu0 0.0
  %878 = vmatpush1.msra.mxu0 %v677
  %879 = vmatprep.subr.mxu0 0.0
  %880 = vmatpush1.msra.mxu0 %v680
  %881 = vmatprep.subr.mxu0 0.0
  %882 = vmatpush1.msra.mxu0 %v685
  %883 = vmatprep.subr.mxu0 0.0
  %884 = vmatpush1.msra.mxu0 %v688
  %885 = vmatprep.mubr.f32.mxu0 1.0
  %886 = vmatmul.mubr.f32.gmra.mrb[0].mxu0 1.0
  %v887 = vpop.f32.mrb[0].mxu0
  %v888 = vadd.f32 0.0, %v887
  %v889 = vpop.f32.mrb[0].mxu0
  %890 = vdwg.mxu0
  %891 = vmatprep.subr.mxu0 0.0
  %892 = vmatpush1.msra.mxu0 %v693
  %893 = vmatprep.subr.mxu0 0.0
  %894 = vmatpush1.msra.mxu0 %v696
  %895 = vmatprep.subr.mxu0 0.0
  %896 = vmatpush1.msra.mxu0 %v701
  %897 = vmatprep.subr.mxu0 0.0
  %898 = vmatpush1.msra.mxu0 %v704
  %899 = vmatprep.subr.mxu0 0.0
  %900 = vmatpush1.msra.mxu0 %v709
  %901 = vmatprep.subr.mxu0 0.0
  %902 = vmatpush1.msra.mxu0 %v712
  %903 = vmatprep.subr.mxu0 0.0
  %904 = vmatpush1.msra.mxu0 %v717
  %905 = vmatprep.subr.mxu0 0.0
  %906 = vmatpush1.msra.mxu0 %v720
  %907 = vmatprep.subr.mxu0 0.0
  %908 = vmatpush1.msra.mxu0 %v725
  %909 = vmatprep.subr.mxu0 0.0
  %910 = vmatpush1.msra.mxu0 %v728
  %911 = vmatprep.subr.mxu0 0.0
  %912 = vmatpush1.msra.mxu0 %v733
  %913 = vmatprep.subr.mxu0 0.0
  %914 = vmatpush1.msra.mxu0 %v736
  %915 = vmatprep.subr.mxu0 0.0
  %916 = vmatpush1.msra.mxu0 %v741
  %917 = vmatprep.subr.mxu0 0.0
  %918 = vmatpush1.msra.mxu0 %v744
  %919 = vmatprep.subr.mxu0 0.0
  %920 = vmatpush1.msra.mxu0 %v749
  %921 = vmatprep.subr.mxu0 0.0
  %922 = vmatpush1.msra.mxu0 %v752
  %923 = vmatprep.subr.mxu0 0.0
  %924 = vmatpush1.msra.mxu0 %v757
  %925 = vmatprep.subr.mxu0 0.0
  %926 = vmatpush1.msra.mxu0 %v760
  %927 = vmatprep.subr.mxu0 0.0
  %928 = vmatpush1.msra.mxu0 %v765
  %929 = vmatprep.subr.mxu0 0.0
  %930 = vmatpush1.msra.mxu0 %v768
  %931 = vmatprep.subr.mxu0 0.0
  %932 = vmatpush1.msra.mxu0 %v773
  %933 = vmatprep.subr.mxu0 0.0
  %934 = vmatpush1.msra.mxu0 %v776
  %935 = vmatprep.subr.mxu0 0.0
  %936 = vmatpush1.msra.mxu0 %v781
  %937 = vmatprep.subr.mxu0 0.0
  %938 = vmatpush1.msra.mxu0 %v784
  %939 = vmatprep.subr.mxu0 0.0
  %940 = vmatpush1.msra.mxu0 %v789
  %941 = vmatprep.subr.mxu0 0.0
  %942 = vmatpush1.msra.mxu0 %v792
  %943 = vmatprep.subr.mxu0 0.0
  %944 = vmatpush1.msra.mxu0 %v797
  %945 = vmatprep.subr.mxu0 0.0
  %946 = vmatpush1.msra.mxu0 %v800
  %947 = vmatprep.subr.mxu0 0.0
  %948 = vmatpush1.msra.mxu0 %v805
  %949 = vmatprep.subr.mxu0 0.0
  %950 = vmatpush1.msra.mxu0 %v808
  %951 = vmatprep.subr.mxu0 0.0
  %952 = vmatpush1.msra.mxu0 %v813
  %953 = vmatprep.subr.mxu0 0.0
  %954 = vmatpush1.msra.mxu0 %v816
  %955 = vmatprep.mubr.f32.mxu0 1.0
  %956 = vmatmul.mubr.f32.gmra.mrb[0].mxu0 1.0
  %v957 = vpop.f32.mrb[0].mxu0
  %v958 = vadd.f32 %v888, %v957
  %v959 = vpop.f32.mrb[0].mxu0
  %960 = vdwg.mxu0
  %v961 = vmul.f32 %v565, %v565
  %v962 = vmul.f32 %v568, %v568
  %v963 = vmul.f32 %v573, %v573
  %v964 = vmul.f32 %v576, %v576
  %v965 = vmul.f32 %v581, %v581
  %v966 = vmul.f32 %v584, %v584
  %v967 = vmul.f32 %v589, %v589
  %v968 = vmul.f32 %v592, %v592
  %v969 = vmul.f32 %v597, %v597
  %v970 = vmul.f32 %v600, %v600
  %v971 = vmul.f32 %v605, %v605
  %v972 = vmul.f32 %v608, %v608
  %v973 = vmul.f32 %v613, %v613
  %v974 = vmul.f32 %v616, %v616
  %v975 = vmul.f32 %v621, %v621
  %v976 = vmul.f32 %v624, %v624
  %v977 = vmul.f32 %v629, %v629
  %v978 = vmul.f32 %v632, %v632
  %v979 = vmul.f32 %v637, %v637
  %v980 = vmul.f32 %v640, %v640
  %v981 = vmul.f32 %v645, %v645
  %v982 = vmul.f32 %v648, %v648
  %v983 = vmul.f32 %v653, %v653
  %v984 = vmul.f32 %v656, %v656
  %v985 = vmul.f32 %v661, %v661
  %v986 = vmul.f32 %v664, %v664
  %v987 = vmul.f32 %v669, %v669
  %v988 = vmul.f32 %v672, %v672
  %v989 = vmul.f32 %v677, %v677
  %v990 = vmul.f32 %v680, %v680
  %v991 = vmul.f32 %v685, %v685
  %v992 = vmul.f32 %v688, %v688
  %v993 = vmul.f32 %v693, %v693
  %v994 = vmul.f32 %v696, %v696
  %v995 = vmul.f32 %v701, %v701
  %v996 = vmul.f32 %v704, %v704
  %v997 = vmul.f32 %v709, %v709
  %v998 = vmul.f32 %v712, %v712
  %v999 = vmul.f32 %v717, %v717
  %v1000 = vmul.f32 %v720, %v720
  %v1001 = vmul.f32 %v725, %v725
  %v1002 = vmul.f32 %v728, %v728
  %v1003 = vmul.f32 %v733, %v733
  %v1004 = vmul.f32 %v736, %v736
  %v1005 = vmul.f32 %v741, %v741
  %v1006 = vmul.f32 %v744, %v744
  %v1007 = vmul.f32 %v749, %v749
  %v1008 = vmul.f32 %v752, %v752
  %v1009 = vmul.f32 %v757, %v757
  %v1010 = vmul.f32 %v760, %v760
  %v1011 = vmul.f32 %v765, %v765
  %v1012 = vmul.f32 %v768, %v768
  %v1013 = vmul.f32 %v773, %v773
  %v1014 = vmul.f32 %v776, %v776
  %v1015 = vmul.f32 %v781, %v781
  %v1016 = vmul.f32 %v784, %v784
  %v1017 = vmul.f32 %v789, %v789
  %v1018 = vmul.f32 %v792, %v792
  %v1019 = vmul.f32 %v797, %v797
  %v1020 = vmul.f32 %v800, %v800
  %v1021 = vmul.f32 %v805, %v805
  %v1022 = vmul.f32 %v808, %v808
  %v1023 = vmul.f32 %v813, %v813
  %v1024 = vmul.f32 %v816, %v816
  %1025 = vmatprep.subr.mxu0 0.0
  %1026 = vmatpush1.msra.mxu0 %v961
  %1027 = vmatprep.subr.mxu0 0.0
  %1028 = vmatpush1.msra.mxu0 %v962
  %1029 = vmatprep.subr.mxu0 0.0
  %1030 = vmatpush1.msra.mxu0 %v963
  %1031 = vmatprep.subr.mxu0 0.0
  %1032 = vmatpush1.msra.mxu0 %v964
  %1033 = vmatprep.subr.mxu0 0.0
  %1034 = vmatpush1.msra.mxu0 %v965
  %1035 = vmatprep.subr.mxu0 0.0
  %1036 = vmatpush1.msra.mxu0 %v966
  %1037 = vmatprep.subr.mxu0 0.0
  %1038 = vmatpush1.msra.mxu0 %v967
  %1039 = vmatprep.subr.mxu0 0.0
  %1040 = vmatpush1.msra.mxu0 %v968
  %1041 = vmatprep.subr.mxu0 0.0
  %1042 = vmatpush1.msra.mxu0 %v969
  %1043 = vmatprep.subr.mxu0 0.0
  %1044 = vmatpush1.msra.mxu0 %v970
  %1045 = vmatprep.subr.mxu0 0.0
  %1046 = vmatpush1.msra.mxu0 %v971
  %1047 = vmatprep.subr.mxu0 0.0
  %1048 = vmatpush1.msra.mxu0 %v972
  %1049 = vmatprep.subr.mxu0 0.0
  %1050 = vmatpush1.msra.mxu0 %v973
  %1051 = vmatprep.subr.mxu0 0.0
  %1052 = vmatpush1.msra.mxu0 %v974
  %1053 = vmatprep.subr.mxu0 0.0
  %1054 = vmatpush1.msra.mxu0 %v975
  %1055 = vmatprep.subr.mxu0 0.0
  %1056 = vmatpush1.msra.mxu0 %v976
  %1057 = vmatprep.subr.mxu0 0.0
  %1058 = vmatpush1.msra.mxu0 %v977
  %1059 = vmatprep.subr.mxu0 0.0
  %1060 = vmatpush1.msra.mxu0 %v978
  %1061 = vmatprep.subr.mxu0 0.0
  %1062 = vmatpush1.msra.mxu0 %v979
  %1063 = vmatprep.subr.mxu0 0.0
  %1064 = vmatpush1.msra.mxu0 %v980
  %1065 = vmatprep.subr.mxu0 0.0
  %1066 = vmatpush1.msra.mxu0 %v981
  %1067 = vmatprep.subr.mxu0 0.0
  %1068 = vmatpush1.msra.mxu0 %v982
  %1069 = vmatprep.subr.mxu0 0.0
  %1070 = vmatpush1.msra.mxu0 %v983
  %1071 = vmatprep.subr.mxu0 0.0
  %1072 = vmatpush1.msra.mxu0 %v984
  %1073 = vmatprep.subr.mxu0 0.0
  %1074 = vmatpush1.msra.mxu0 %v985
  %1075 = vmatprep.subr.mxu0 0.0
  %1076 = vmatpush1.msra.mxu0 %v986
  %1077 = vmatprep.subr.mxu0 0.0
  %1078 = vmatpush1.msra.mxu0 %v987
  %1079 = vmatprep.subr.mxu0 0.0
  %1080 = vmatpush1.msra.mxu0 %v988
  %1081 = vmatprep.subr.mxu0 0.0
  %1082 = vmatpush1.msra.mxu0 %v989
  %1083 = vmatprep.subr.mxu0 0.0
  %1084 = vmatpush1.msra.mxu0 %v990
  %1085 = vmatprep.subr.mxu0 0.0
  %1086 = vmatpush1.msra.mxu0 %v991
  %1087 = vmatprep.subr.mxu0 0.0
  %1088 = vmatpush1.msra.mxu0 %v992
  %1089 = vmatprep.mubr.f32.mxu0 1.0
  %1090 = vmatmul.mubr.f32.gmra.mrb[0].mxu0 1.0
  %v1091 = vpop.f32.mrb[0].mxu0
  %v1092 = vadd.f32 0.0, %v1091
  %v1093 = vpop.f32.mrb[0].mxu0
  %1094 = vdwg.mxu0
  %1095 = vmatprep.subr.mxu0 0.0
  %1096 = vmatpush1.msra.mxu0 %v993
  %1097 = vmatprep.subr.mxu0 0.0
  %1098 = vmatpush1.msra.mxu0 %v994
  %1099 = vmatprep.subr.mxu0 0.0
  %1100 = vmatpush1.msra.mxu0 %v995
  %1101 = vmatprep.subr.mxu0 0.0
  %1102 = vmatpush1.msra.mxu0 %v996
  %1103 = vmatprep.subr.mxu0 0.0
  %1104 = vmatpush1.msra.mxu0 %v997
  %1105 = vmatprep.subr.mxu0 0.0
  %1106 = vmatpush1.msra.mxu0 %v998
  %1107 = vmatprep.subr.mxu0 0.0
  %1108 = vmatpush1.msra.mxu0 %v999
  %1109 = vmatprep.subr.mxu0 0.0
  %1110 = vmatpush1.msra.mxu0 %v1000
  %1111 = vmatprep.subr.mxu0 0.0
  %1112 = vmatpush1.msra.mxu0 %v1001
  %1113 = vmatprep.subr.mxu0 0.0
  %1114 = vmatpush1.msra.mxu0 %v1002
  %1115 = vmatprep.subr.mxu0 0.0
  %1116 = vmatpush1.msra.mxu0 %v1003
  %1117 = vmatprep.subr.mxu0 0.0
  %1118 = vmatpush1.msra.mxu0 %v1004
  %1119 = vmatprep.subr.mxu0 0.0
  %1120 = vmatpush1.msra.mxu0 %v1005
  %1121 = vmatprep.subr.mxu0 0.0
  %1122 = vmatpush1.msra.mxu0 %v1006
  %1123 = vmatprep.subr.mxu0 0.0
  %1124 = vmatpush1.msra.mxu0 %v1007
  %1125 = vmatprep.subr.mxu0 0.0
  %1126 = vmatpush1.msra.mxu0 %v1008
  %1127 = vmatprep.subr.mxu0 0.0
  %1128 = vmatpush1.msra.mxu0 %v1009
  %1129 = vmatprep.subr.mxu0 0.0
  %1130 = vmatpush1.msra.mxu0 %v1010
  %1131 = vmatprep.subr.mxu0 0.0
  %1132 = vmatpush1.msra.mxu0 %v1011
  %1133 = vmatprep.subr.mxu0 0.0
  %1134 = vmatpush1.msra.mxu0 %v1012
  %1135 = vmatprep.subr.mxu0 0.0
  %1136 = vmatpush1.msra.mxu0 %v1013
  %1137 = vmatprep.subr.mxu0 0.0
  %1138 = vmatpush1.msra.mxu0 %v1014
  %1139 = vmatprep.subr.mxu0 0.0
  %1140 = vmatpush1.msra.mxu0 %v1015
  %1141 = vmatprep.subr.mxu0 0.0
  %1142 = vmatpush1.msra.mxu0 %v1016
  %1143 = vmatprep.subr.mxu0 0.0
  %1144 = vmatpush1.msra.mxu0 %v1017
  %1145 = vmatprep.subr.mxu0 0.0
  %1146 = vmatpush1.msra.mxu0 %v1018
  %1147 = vmatprep.subr.mxu0 0.0
  %1148 = vmatpush1.msra.mxu0 %v1019
  %1149 = vmatprep.subr.mxu0 0.0
  %1150 = vmatpush1.msra.mxu0 %v1020
  %1151 = vmatprep.subr.mxu0 0.0
  %1152 = vmatpush1.msra.mxu0 %v1021
  %1153 = vmatprep.subr.mxu0 0.0
  %1154 = vmatpush1.msra.mxu0 %v1022
  %1155 = vmatprep.subr.mxu0 0.0
  %1156 = vmatpush1.msra.mxu0 %v1023
  %1157 = vmatprep.subr.mxu0 0.0
  %1158 = vmatpush1.msra.mxu0 %v1024
  %1159 = vmatprep.mubr.f32.mxu0 1.0
  %1160 = vmatmul.mubr.f32.gmra.mrb[0].mxu0 1.0
  %v1161 = vpop.f32.mrb[0].mxu0
  %v1162 = vadd.f32 %v1092, %v1161
  %v1163 = vpop.f32.mrb[0].mxu0
  %1164 = vdwg.mxu0
  %v1165 = vmul.f32 %v958, 0.001953125
  %v1166 = vmul.f32 %v1162, 0.001953125
  %v1167 = vmul.f32 %v1165, %v1165
  %v1168 = vsub.f32 %v1166, %v1167
  %v1169 = vmax.f32 %v1168, 0.0
  %v1170 = vadd.f32 %v1169, 1e-05
  %v1171 = vrsqrt.pop %v1170
  %v1172 = vlaneseq
  %v1173 = vshrl.u32 %v1172, 7
  %v1174 = vsub.s32 0, %v1173
  %v1175 = vrot.slane %v1165, %v1174
  %v1176 = vsub.f32 %v565, %v1175
  %v1177 = vsub.f32 %v568, %v1175
  %v1178 = vsub.f32 %v573, %v1175
  %v1179 = vsub.f32 %v576, %v1175
  %v1180 = vsub.f32 %v581, %v1175
  %v1181 = vsub.f32 %v584, %v1175
  %v1182 = vsub.f32 %v589, %v1175
  %v1183 = vsub.f32 %v592, %v1175
  %v1184 = vsub.f32 %v597, %v1175
  %v1185 = vsub.f32 %v600, %v1175
  %v1186 = vsub.f32 %v605, %v1175
  %v1187 = vsub.f32 %v608, %v1175
  %v1188 = vsub.f32 %v613, %v1175
  %v1189 = vsub.f32 %v616, %v1175
  %v1190 = vsub.f32 %v621, %v1175
  %v1191 = vsub.f32 %v624, %v1175
  %v1192 = vsub.f32 %v629, %v1175
  %v1193 = vsub.f32 %v632, %v1175
  %v1194 = vsub.f32 %v637, %v1175
  %v1195 = vsub.f32 %v640, %v1175
  %v1196 = vsub.f32 %v645, %v1175
  %v1197 = vsub.f32 %v648, %v1175
  %v1198 = vsub.f32 %v653, %v1175
  %v1199 = vsub.f32 %v656, %v1175
  %v1200 = vsub.f32 %v661, %v1175
  %v1201 = vsub.f32 %v664, %v1175
  %v1202 = vsub.f32 %v669, %v1175
  %v1203 = vsub.f32 %v672, %v1175
  %v1204 = vsub.f32 %v677, %v1175
  %v1205 = vsub.f32 %v680, %v1175
  %v1206 = vsub.f32 %v685, %v1175
  %v1207 = vsub.f32 %v688, %v1175
  %v1208 = vsub.f32 %v693, %v1175
  %v1209 = vsub.f32 %v696, %v1175
  %v1210 = vsub.f32 %v701, %v1175
  %v1211 = vsub.f32 %v704, %v1175
  %v1212 = vsub.f32 %v709, %v1175
  %v1213 = vsub.f32 %v712, %v1175
  %v1214 = vsub.f32 %v717, %v1175
  %v1215 = vsub.f32 %v720, %v1175
  %v1216 = vsub.f32 %v725, %v1175
  %v1217 = vsub.f32 %v728, %v1175
  %v1218 = vsub.f32 %v733, %v1175
  %v1219 = vsub.f32 %v736, %v1175
  %v1220 = vsub.f32 %v741, %v1175
  %v1221 = vsub.f32 %v744, %v1175
  %v1222 = vsub.f32 %v749, %v1175
  %v1223 = vsub.f32 %v752, %v1175
  %v1224 = vsub.f32 %v757, %v1175
  %v1225 = vsub.f32 %v760, %v1175
  %v1226 = vsub.f32 %v765, %v1175
  %v1227 = vsub.f32 %v768, %v1175
  %v1228 = vsub.f32 %v773, %v1175
  %v1229 = vsub.f32 %v776, %v1175
  %v1230 = vsub.f32 %v781, %v1175
  %v1231 = vsub.f32 %v784, %v1175
  %v1232 = vsub.f32 %v789, %v1175
  %v1233 = vsub.f32 %v792, %v1175
  %v1234 = vsub.f32 %v797, %v1175
  %v1235 = vsub.f32 %v800, %v1175
  %v1236 = vsub.f32 %v805, %v1175
  %v1237 = vsub.f32 %v808, %v1175
  %v1238 = vsub.f32 %v813, %v1175
  %v1239 = vsub.f32 %v816, %v1175
  %v1240 = vmul.f32 %v1171, %v819
  %v1241 = vlaneseq
  %v1242 = vshrl.u32 %v1241, 7
  %v1243 = vsub.s32 0, %v1242
  %v1244 = vrot.slane %v1240, %v1243
  %v1245 = vmul.f32 %v1176, %v1244
  %v1246 = vmul.f32 %v1177, %v1244
  %v1247 = vmul.f32 %v1178, %v1244
  %v1248 = vmul.f32 %v1179, %v1244
  %v1249 = vmul.f32 %v1180, %v1244
  %v1250 = vmul.f32 %v1181, %v1244
  %v1251 = vmul.f32 %v1182, %v1244
  %v1252 = vmul.f32 %v1183, %v1244
  %v1253 = vmul.f32 %v1184, %v1244
  %v1254 = vmul.f32 %v1185, %v1244
  %v1255 = vmul.f32 %v1186, %v1244
  %v1256 = vmul.f32 %v1187, %v1244
  %v1257 = vmul.f32 %v1188, %v1244
  %v1258 = vmul.f32 %v1189, %v1244
  %v1259 = vmul.f32 %v1190, %v1244
  %v1260 = vmul.f32 %v1191, %v1244
  %v1261 = vmul.f32 %v1192, %v1244
  %v1262 = vmul.f32 %v1193, %v1244
  %v1263 = vmul.f32 %v1194, %v1244
  %v1264 = vmul.f32 %v1195, %v1244
  %v1265 = vmul.f32 %v1196, %v1244
  %v1266 = vmul.f32 %v1197, %v1244
  %v1267 = vmul.f32 %v1198, %v1244
  %v1268 = vmul.f32 %v1199, %v1244
  %v1269 = vmul.f32 %v1200, %v1244
  %v1270 = vmul.f32 %v1201, %v1244
  %v1271 = vmul.f32 %v1202, %v1244
  %v1272 = vmul.f32 %v1203, %v1244
  %v1273 = vmul.f32 %v1204, %v1244
  %v1274 = vmul.f32 %v1205, %v1244
  %v1275 = vmul.f32 %v1206, %v1244
  %v1276 = vmul.f32 %v1207, %v1244
  %v1277 = vmul.f32 %v1208, %v1244
  %v1278 = vmul.f32 %v1209, %v1244
  %v1279 = vmul.f32 %v1210, %v1244
  %v1280 = vmul.f32 %v1211, %v1244
  %v1281 = vmul.f32 %v1212, %v1244
  %v1282 = vmul.f32 %v1213, %v1244
  %v1283 = vmul.f32 %v1214, %v1244
  %v1284 = vmul.f32 %v1215, %v1244
  %v1285 = vmul.f32 %v1216, %v1244
  %v1286 = vmul.f32 %v1217, %v1244
  %v1287 = vmul.f32 %v1218, %v1244
  %v1288 = vmul.f32 %v1219, %v1244
  %v1289 = vmul.f32 %v1220, %v1244
  %v1290 = vmul.f32 %v1221, %v1244
  %v1291 = vmul.f32 %v1222, %v1244
  %v1292 = vmul.f32 %v1223, %v1244
  %v1293 = vmul.f32 %v1224, %v1244
  %v1294 = vmul.f32 %v1225, %v1244
  %v1295 = vmul.f32 %v1226, %v1244
  %v1296 = vmul.f32 %v1227, %v1244
  %v1297 = vmul.f32 %v1228, %v1244
  %v1298 = vmul.f32 %v1229, %v1244
  %v1299 = vmul.f32 %v1230, %v1244
  %v1300 = vmul.f32 %v1231, %v1244
  %v1301 = vmul.f32 %v1232, %v1244
  %v1302 = vmul.f32 %v1233, %v1244
  %v1303 = vmul.f32 %v1234, %v1244
  %v1304 = vmul.f32 %v1235, %v1244
  %v1305 = vmul.f32 %v1236, %v1244
  %v1306 = vmul.f32 %v1237, %v1244
  %v1307 = vmul.f32 %v1238, %v1244
  %v1308 = vmul.f32 %v1239, %v1244
  %v1310 = vlaneseq
  %v1311 = vshrl.u32 %v1310, 7
  %v1312 = vsub.s32 0, %v1311
  %v1313 = vrot.slane %v820, %v1312
  %v1315 = vadd.f32 %v1245, %v1313
  %v1316 = vadd.f32 %v1246, %v1313
  %v1317 = vadd.f32 %v1247, %v1313
  %v1318 = vadd.f32 %v1248, %v1313
  %v1319 = vadd.f32 %v1249, %v1313
  %v1320 = vadd.f32 %v1250, %v1313
  %v1321 = vadd.f32 %v1251, %v1313
  %v1322 = vadd.f32 %v1252, %v1313
  %v1323 = vadd.f32 %v1253, %v1313
  %v1324 = vadd.f32 %v1254, %v1313
  %v1325 = vadd.f32 %v1255, %v1313
  %v1326 = vadd.f32 %v1256, %v1313
  %v1327 = vadd.f32 %v1257, %v1313
  %v1328 = vadd.f32 %v1258, %v1313
  %v1329 = vadd.f32 %v1259, %v1313
  %v1330 = vadd.f32 %v1260, %v1313
  %v1331 = vadd.f32 %v1261, %v1313
  %v1332 = vadd.f32 %v1262, %v1313
  %v1333 = vadd.f32 %v1263, %v1313
  %v1334 = vadd.f32 %v1264, %v1313
  %v1335 = vadd.f32 %v1265, %v1313
  %v1336 = vadd.f32 %v1266, %v1313
  %v1337 = vadd.f32 %v1267, %v1313
  %v1338 = vadd.f32 %v1268, %v1313
  %v1339 = vadd.f32 %v1269, %v1313
  %v1340 = vadd.f32 %v1270, %v1313
  %v1341 = vadd.f32 %v1271, %v1313
  %v1342 = vadd.f32 %v1272, %v1313
  %v1343 = vadd.f32 %v1273, %v1313
  %v1344 = vadd.f32 %v1274, %v1313
  %v1345 = vadd.f32 %v1275, %v1313
  %v1346 = vadd.f32 %v1276, %v1313
  %v1347 = vadd.f32 %v1277, %v1313
  %v1348 = vadd.f32 %v1278, %v1313
  %v1349 = vadd.f32 %v1279, %v1313
  %v1350 = vadd.f32 %v1280, %v1313
  %v1351 = vadd.f32 %v1281, %v1313
  %v1352 = vadd.f32 %v1282, %v1313
  %v1353 = vadd.f32 %v1283, %v1313
  %v1354 = vadd.f32 %v1284, %v1313
  %v1355 = vadd.f32 %v1285, %v1313
  %v1356 = vadd.f32 %v1286, %v1313
  %v1357 = vadd.f32 %v1287, %v1313
  %v1358 = vadd.f32 %v1288, %v1313
  %v1359 = vadd.f32 %v1289, %v1313
  %v1360 = vadd.f32 %v1290, %v1313
  %v1361 = vadd.f32 %v1291, %v1313
  %v1362 = vadd.f32 %v1292, %v1313
  %v1363 = vadd.f32 %v1293, %v1313
  %v1364 = vadd.f32 %v1294, %v1313
  %v1365 = vadd.f32 %v1295, %v1313
  %v1366 = vadd.f32 %v1296, %v1313
  %v1367 = vadd.f32 %v1297, %v1313
  %v1368 = vadd.f32 %v1298, %v1313
  %v1369 = vadd.f32 %v1299, %v1313
  %v1370 = vadd.f32 %v1300, %v1313
  %v1371 = vadd.f32 %v1301, %v1313
  %v1372 = vadd.f32 %v1302, %v1313
  %v1373 = vadd.f32 %v1303, %v1313
  %v1374 = vadd.f32 %v1304, %v1313
  %v1375 = vadd.f32 %v1305, %v1313
  %v1376 = vadd.f32 %v1306, %v1313
  %v1377 = vadd.f32 %v1307, %v1313
  %v1378 = vadd.f32 %v1308, %v1313
  %vm1379 = vcmp.ge.f32.partialorder %v1315, 0.0
  %vm1380 = vcmp.ge.f32.partialorder %v1316, 0.0
  %vm1381 = vcmp.ge.f32.partialorder %v1317, 0.0
  %vm1382 = vcmp.ge.f32.partialorder %v1318, 0.0
  %vm1383 = vcmp.ge.f32.partialorder %v1319, 0.0
  %vm1384 = vcmp.ge.f32.partialorder %v1320, 0.0
  %vm1385 = vcmp.ge.f32.partialorder %v1321, 0.0
  %vm1386 = vcmp.ge.f32.partialorder %v1322, 0.0
  %vm1387 = vcmp.ge.f32.partialorder %v1323, 0.0
  %vm1388 = vcmp.ge.f32.partialorder %v1324, 0.0
  %vm1389 = vcmp.ge.f32.partialorder %v1325, 0.0
  %vm1390 = vcmp.ge.f32.partialorder %v1326, 0.0
  %vm1391 = vcmp.ge.f32.partialorder %v1327, 0.0
  %vm1392 = vcmp.ge.f32.partialorder %v1328, 0.0
  %vm1393 = vcmp.ge.f32.partialorder %v1329, 0.0
  %vm1394 = vcmp.ge.f32.partialorder %v1330, 0.0
  %vm1395 = vcmp.ge.f32.partialorder %v1331, 0.0
  %vm1396 = vcmp.ge.f32.partialorder %v1332, 0.0
  %vm1397 = vcmp.ge.f32.partialorder %v1333, 0.0
  %vm1398 = vcmp.ge.f32.partialorder %v1334, 0.0
  %vm1399 = vcmp.ge.f32.partialorder %v1335, 0.0
  %vm1400 = vcmp.ge.f32.partialorder %v1336, 0.0
  %vm1401 = vcmp.ge.f32.partialorder %v1337, 0.0
  %vm1402 = vcmp.ge.f32.partialorder %v1338, 0.0
  %vm1403 = vcmp.ge.f32.partialorder %v1339, 0.0
  %vm1404 = vcmp.ge.f32.partialorder %v1340, 0.0
  %vm1405 = vcmp.ge.f32.partialorder %v1341, 0.0
  %vm1406 = vcmp.ge.f32.partialorder %v1342, 0.0
  %vm1407 = vcmp.ge.f32.partialorder %v1343, 0.0
  %vm1408 = vcmp.ge.f32.partialorder %v1344, 0.0
  %vm1409 = vcmp.ge.f32.partialorder %v1345, 0.0
  %vm1410 = vcmp.ge.f32.partialorder %v1346, 0.0
  %vm1411 = vcmp.ge.f32.partialorder %v1347, 0.0
  %vm1412 = vcmp.ge.f32.partialorder %v1348, 0.0
  %vm1413 = vcmp.ge.f32.partialorder %v1349, 0.0
  %vm1414 = vcmp.ge.f32.partialorder %v1350, 0.0
  %vm1415 = vcmp.ge.f32.partialorder %v1351, 0.0
  %vm1416 = vcmp.ge.f32.partialorder %v1352, 0.0
  %vm1417 = vcmp.ge.f32.partialorder %v1353, 0.0
  %vm1418 = vcmp.ge.f32.partialorder %v1354, 0.0
  %vm1419 = vcmp.ge.f32.partialorder %v1355, 0.0
  %vm1420 = vcmp.ge.f32.partialorder %v1356, 0.0
  %vm1421 = vcmp.ge.f32.partialorder %v1357, 0.0
  %vm1422 = vcmp.ge.f32.partialorder %v1358, 0.0
  %vm1423 = vcmp.ge.f32.partialorder %v1359, 0.0
  %vm1424 = vcmp.ge.f32.partialorder %v1360, 0.0
  %vm1425 = vcmp.ge.f32.partialorder %v1361, 0.0
  %vm1426 = vcmp.ge.f32.partialorder %v1362, 0.0
  %vm1427 = vcmp.ge.f32.partialorder %v1363, 0.0
  %vm1428 = vcmp.ge.f32.partialorder %v1364, 0.0
  %vm1429 = vcmp.ge.f32.partialorder %v1365, 0.0
  %vm1430 = vcmp.ge.f32.partialorder %v1366, 0.0
  %vm1431 = vcmp.ge.f32.partialorder %v1367, 0.0
  %vm1432 = vcmp.ge.f32.partialorder %v1368, 0.0
  %vm1433 = vcmp.ge.f32.partialorder %v1369, 0.0
  %vm1434 = vcmp.ge.f32.partialorder %v1370, 0.0
  %vm1435 = vcmp.ge.f32.partialorder %v1371, 0.0
  %vm1436 = vcmp.ge.f32.partialorder %v1372, 0.0
  %vm1437 = vcmp.ge.f32.partialorder %v1373, 0.0
  %vm1438 = vcmp.ge.f32.partialorder %v1374, 0.0
  %vm1439 = vcmp.ge.f32.partialorder %v1375, 0.0
  %vm1440 = vcmp.ge.f32.partialorder %v1376, 0.0
  %vm1441 = vcmp.ge.f32.partialorder %v1377, 0.0
  %vm1442 = vcmp.ge.f32.partialorder %v1378, 0.0
  %v1443 = vmul.f32 %v1315, 0.2
  %v1444 = vmul.f32 %v1316, 0.2
  %v1445 = vmul.f32 %v1317, 0.2
  %v1446 = vmul.f32 %v1318, 0.2
  %v1447 = vmul.f32 %v1319, 0.2
  %v1448 = vmul.f32 %v1320, 0.2
  %v1449 = vmul.f32 %v1321, 0.2
  %v1450 = vmul.f32 %v1322, 0.2
  %v1451 = vmul.f32 %v1323, 0.2
  %v1452 = vmul.f32 %v1324, 0.2
  %v1453 = vmul.f32 %v1325, 0.2
  %v1454 = vmul.f32 %v1326, 0.2
  %v1455 = vmul.f32 %v1327, 0.2
  %v1456 = vmul.f32 %v1328, 0.2
  %v1457 = vmul.f32 %v1329, 0.2
  %v1458 = vmul.f32 %v1330, 0.2
  %v1459 = vmul.f32 %v1331, 0.2
  %v1460 = vmul.f32 %v1332, 0.2
  %v1461 = vmul.f32 %v1333, 0.2
  %v1462 = vmul.f32 %v1334, 0.2
  %v1463 = vmul.f32 %v1335, 0.2
  %v1464 = vmul.f32 %v1336, 0.2
  %v1465 = vmul.f32 %v1337, 0.2
  %v1466 = vmul.f32 %v1338, 0.2
  %v1467 = vmul.f32 %v1339, 0.2
  %v1468 = vmul.f32 %v1340, 0.2
  %v1469 = vmul.f32 %v1341, 0.2
  %v1470 = vmul.f32 %v1342, 0.2
  %v1471 = vmul.f32 %v1343, 0.2
  %v1472 = vmul.f32 %v1344, 0.2
  %v1473 = vmul.f32 %v1345, 0.2
  %v1474 = vmul.f32 %v1346, 0.2
  %v1475 = vmul.f32 %v1347, 0.2
  %v1476 = vmul.f32 %v1348, 0.2
  %v1477 = vmul.f32 %v1349, 0.2
  %v1478 = vmul.f32 %v1350, 0.2
  %v1479 = vmul.f32 %v1351, 0.2
  %v1480 = vmul.f32 %v1352, 0.2
  %v1481 = vmul.f32 %v1353, 0.2
  %v1482 = vmul.f32 %v1354, 0.2
  %v1483 = vmul.f32 %v1355, 0.2
  %v1484 = vmul.f32 %v1356, 0.2
  %v1485 = vmul.f32 %v1357, 0.2
  %v1486 = vmul.f32 %v1358, 0.2
  %v1487 = vmul.f32 %v1359, 0.2
  %v1488 = vmul.f32 %v1360, 0.2
  %v1489 = vmul.f32 %v1361, 0.2
  %v1490 = vmul.f32 %v1362, 0.2
  %v1491 = vmul.f32 %v1363, 0.2
  %v1492 = vmul.f32 %v1364, 0.2
  %v1493 = vmul.f32 %v1365, 0.2
  %v1494 = vmul.f32 %v1366, 0.2
  %v1495 = vmul.f32 %v1367, 0.2
  %v1496 = vmul.f32 %v1368, 0.2
  %v1497 = vmul.f32 %v1369, 0.2
  %v1498 = vmul.f32 %v1370, 0.2
  %v1499 = vmul.f32 %v1371, 0.2
  %v1500 = vmul.f32 %v1372, 0.2
  %v1501 = vmul.f32 %v1373, 0.2
  %v1502 = vmul.f32 %v1374, 0.2
  %v1503 = vmul.f32 %v1375, 0.2
  %v1504 = vmul.f32 %v1376, 0.2
  %v1505 = vmul.f32 %v1377, 0.2
  %v1506 = vmul.f32 %v1378, 0.2
  %v1507 = vsel %vm1379, %v1315, %v1443
  %v1508 = vsel %vm1380, %v1316, %v1444
  %v1509 = vsel %vm1381, %v1317, %v1445
  %v1510 = vsel %vm1382, %v1318, %v1446
  %v1511 = vsel %vm1383, %v1319, %v1447
  %v1512 = vsel %vm1384, %v1320, %v1448
  %v1513 = vsel %vm1385, %v1321, %v1449
  %v1514 = vsel %vm1386, %v1322, %v1450
  %v1515 = vsel %vm1387, %v1323, %v1451
  %v1516 = vsel %vm1388, %v1324, %v1452
  %v1517 = vsel %vm1389, %v1325, %v1453
  %v1518 = vsel %vm1390, %v1326, %v1454
  %v1519 = vsel %vm1391, %v1327, %v1455
  %v1520 = vsel %vm1392, %v1328, %v1456
  %v1521 = vsel %vm1393, %v1329, %v1457
  %v1522 = vsel %vm1394, %v1330, %v1458
  %v1523 = vsel %vm1395, %v1331, %v1459
  %v1524 = vsel %vm1396, %v1332, %v1460
  %v1525 = vsel %vm1397, %v1333, %v1461
  %v1526 = vsel %vm1398, %v1334, %v1462
  %v1527 = vsel %vm1399, %v1335, %v1463
  %v1528 = vsel %vm1400, %v1336, %v1464
  %v1529 = vsel %vm1401, %v1337, %v1465
  %v1530 = vsel %vm1402, %v1338, %v1466
  %v1531 = vsel %vm1403, %v1339, %v1467
  %v1532 = vsel %vm1404, %v1340, %v1468
  %v1533 = vsel %vm1405, %v1341, %v1469
  %v1534 = vsel %vm1406, %v1342, %v1470
  %v1535 = vsel %vm1407, %v1343, %v1471
  %v1536 = vsel %vm1408, %v1344, %v1472
  %v1537 = vsel %vm1409, %v1345, %v1473
  %v1538 = vsel %vm1410, %v1346, %v1474
  %v1539 = vsel %vm1411, %v1347, %v1475
  %v1540 = vsel %vm1412, %v1348, %v1476
  %v1541 = vsel %vm1413, %v1349, %v1477
  %v1542 = vsel %vm1414, %v1350, %v1478
  %v1543 = vsel %vm1415, %v1351, %v1479
  %v1544 = vsel %vm1416, %v1352, %v1480
  %v1545 = vsel %vm1417, %v1353, %v1481
  %v1546 = vsel %vm1418, %v1354, %v1482
  %v1547 = vsel %vm1419, %v1355, %v1483
  %v1548 = vsel %vm1420, %v1356, %v1484
  %v1549 = vsel %vm1421, %v1357, %v1485
  %v1550 = vsel %vm1422, %v1358, %v1486
  %v1551 = vsel %vm1423, %v1359, %v1487
  %v1552 = vsel %vm1424, %v1360, %v1488
  %v1553 = vsel %vm1425, %v1361, %v1489
  %v1554 = vsel %vm1426, %v1362, %v1490
  %v1555 = vsel %vm1427, %v1363, %v1491
  %v1556 = vsel %vm1428, %v1364, %v1492
  %v1557 = vsel %vm1429, %v1365, %v1493
  %v1558 = vsel %vm1430, %v1366, %v1494
  %v1559 = vsel %vm1431, %v1367, %v1495
  %v1560 = vsel %vm1432, %v1368, %v1496
  %v1561 = vsel %vm1433, %v1369, %v1497
  %v1562 = vsel %vm1434, %v1370, %v1498
  %v1563 = vsel %vm1435, %v1371, %v1499
  %v1564 = vsel %vm1436, %v1372, %v1500
  %v1565 = vsel %vm1437, %v1373, %v1501
  %v1566 = vsel %vm1438, %v1374, %v1502
  %v1567 = vsel %vm1439, %v1375, %v1503
  %v1568 = vsel %vm1440, %v1376, %v1504
  %v1569 = vsel %vm1441, %v1377, %v1505
  %v1570 = vsel %vm1442, %v1378, %v1506
  %v1571 = vpack.c.bf16 %v1508, %v1507
  %v1572 = vpack.c.bf16 %v1510, %v1509
  %v1573 = vpack.c.bf16 %v1512, %v1511
  %v1574 = vpack.c.bf16 %v1514, %v1513
  %v1575 = vpack.c.bf16 %v1516, %v1515
  %v1576 = vpack.c.bf16 %v1518, %v1517
  %v1577 = vpack.c.bf16 %v1520, %v1519
  %v1578 = vpack.c.bf16 %v1522, %v1521
  %v1579 = vpack.c.bf16 %v1524, %v1523
  %v1580 = vpack.c.bf16 %v1526, %v1525
  %v1581 = vpack.c.bf16 %v1528, %v1527
  %v1582 = vpack.c.bf16 %v1530, %v1529
  %v1583 = vpack.c.bf16 %v1532, %v1531
  %v1584 = vpack.c.bf16 %v1534, %v1533
  %v1585 = vpack.c.bf16 %v1536, %v1535
  %v1586 = vpack.c.bf16 %v1538, %v1537
  %v1587 = vpack.c.bf16 %v1540, %v1539
  %v1588 = vpack.c.bf16 %v1542, %v1541
  %v1589 = vpack.c.bf16 %v1544, %v1543
  %v1590 = vpack.c.bf16 %v1546, %v1545
  %v1591 = vpack.c.bf16 %v1548, %v1547
  %v1592 = vpack.c.bf16 %v1550, %v1549
  %v1593 = vpack.c.bf16 %v1552, %v1551
  %v1594 = vpack.c.bf16 %v1554, %v1553
  %v1595 = vpack.c.bf16 %v1556, %v1555
  %v1596 = vpack.c.bf16 %v1558, %v1557
  %v1597 = vpack.c.bf16 %v1560, %v1559
  %v1598 = vpack.c.bf16 %v1562, %v1561
  %v1599 = vpack.c.bf16 %v1564, %v1563
  %v1600 = vpack.c.bf16 %v1566, %v1565
  %v1601 = vpack.c.bf16 %v1568, %v1567
  %v1602 = vpack.c.bf16 %v1570, %v1569
  %v1635 = vunpack.c.l.b16 %v1571
  %v1636 = vunpack.c.h.b16 %v1571
  %v1637 = vunpack.c.l.b16 %v1572
  %v1638 = vunpack.c.h.b16 %v1572
  %v1639 = vunpack.c.l.b16 %v1573
  %v1640 = vunpack.c.h.b16 %v1573
  %v1641 = vunpack.c.l.b16 %v1574
  %v1642 = vunpack.c.h.b16 %v1574
  %v1643 = vunpack.c.l.b16 %v1575
  %v1644 = vunpack.c.h.b16 %v1575
  %v1645 = vunpack.c.l.b16 %v1576
  %v1646 = vunpack.c.h.b16 %v1576
  %v1647 = vunpack.c.l.b16 %v1577
  %v1648 = vunpack.c.h.b16 %v1577
  %v1649 = vunpack.c.l.b16 %v1578
  %v1650 = vunpack.c.h.b16 %v1578
  %v1651 = vunpack.c.l.b16 %v1579
  %v1652 = vunpack.c.h.b16 %v1579
  %v1653 = vunpack.c.l.b16 %v1580
  %v1654 = vunpack.c.h.b16 %v1580
  %v1655 = vunpack.c.l.b16 %v1581
  %v1656 = vunpack.c.h.b16 %v1581
  %v1657 = vunpack.c.l.b16 %v1582
  %v1658 = vunpack.c.h.b16 %v1582
  %v1659 = vunpack.c.l.b16 %v1583
  %v1660 = vunpack.c.h.b16 %v1583
  %v1661 = vunpack.c.l.b16 %v1584
  %v1662 = vunpack.c.h.b16 %v1584
  %v1663 = vunpack.c.l.b16 %v1585
  %v1664 = vunpack.c.h.b16 %v1585
  %v1665 = vunpack.c.l.b16 %v1586
  %v1666 = vunpack.c.h.b16 %v1586
  %v1667 = vunpack.c.l.b16 %v1587
  %v1668 = vunpack.c.h.b16 %v1587
  %v1669 = vunpack.c.l.b16 %v1588
  %v1670 = vunpack.c.h.b16 %v1588
  %v1671 = vunpack.c.l.b16 %v1589
  %v1672 = vunpack.c.h.b16 %v1589
  %v1673 = vunpack.c.l.b16 %v1590
  %v1674 = vunpack.c.h.b16 %v1590
  %v1675 = vunpack.c.l.b16 %v1591
  %v1676 = vunpack.c.h.b16 %v1591
  %v1677 = vunpack.c.l.b16 %v1592
  %v1678 = vunpack.c.h.b16 %v1592
  %v1679 = vunpack.c.l.b16 %v1593
  %v1680 = vunpack.c.h.b16 %v1593
  %v1681 = vunpack.c.l.b16 %v1594
  %v1682 = vunpack.c.h.b16 %v1594
  %v1683 = vunpack.c.l.b16 %v1595
  %v1684 = vunpack.c.h.b16 %v1595
  %v1685 = vunpack.c.l.b16 %v1596
  %v1686 = vunpack.c.h.b16 %v1596
  %v1687 = vunpack.c.l.b16 %v1597
  %v1688 = vunpack.c.h.b16 %v1597
  %v1689 = vunpack.c.l.b16 %v1598
  %v1690 = vunpack.c.h.b16 %v1598
  %v1691 = vunpack.c.l.b16 %v1599
  %v1692 = vunpack.c.h.b16 %v1599
  %v1693 = vunpack.c.l.b16 %v1600
  %v1694 = vunpack.c.h.b16 %v1600
  %v1695 = vunpack.c.l.b16 %v1601
  %v1696 = vunpack.c.h.b16 %v1601
  %v1697 = vunpack.c.l.b16 %v1602
  %v1698 = vunpack.c.h.b16 %v1602
  %v1699 = vpack.c.b16 %v1635, %v1635
  %v1700 = vpack.c.b16 %v1636, %v1636
  %v1701 = vpack.c.b16 %v1637, %v1637
  %v1702 = vpack.c.b16 %v1638, %v1638
  %v1703 = vpack.c.b16 %v1639, %v1639
  %v1704 = vpack.c.b16 %v1640, %v1640
  %v1705 = vpack.c.b16 %v1641, %v1641
  %v1706 = vpack.c.b16 %v1642, %v1642
  %v1707 = vpack.c.b16 %v1643, %v1643
  %v1708 = vpack.c.b16 %v1644, %v1644
  %v1709 = vpack.c.b16 %v1645, %v1645
  %v1710 = vpack.c.b16 %v1646, %v1646
  %v1711 = vpack.c.b16 %v1647, %v1647
  %v1712 = vpack.c.b16 %v1648, %v1648
  %v1713 = vpack.c.b16 %v1649, %v1649
  %v1714 = vpack.c.b16 %v1650, %v1650
  %v1715 = vpack.c.b16 %v1651, %v1651
  %v1716 = vpack.c.b16 %v1652, %v1652
  %v1717 = vpack.c.b16 %v1653, %v1653
  %v1718 = vpack.c.b16 %v1654, %v1654
  %v1719 = vpack.c.b16 %v1655, %v1655
  %v1720 = vpack.c.b16 %v1656, %v1656
  %v1721 = vpack.c.b16 %v1657, %v1657
  %v1722 = vpack.c.b16 %v1658, %v1658
  %v1723 = vpack.c.b16 %v1659, %v1659
  %v1724 = vpack.c.b16 %v1660, %v1660
  %v1725 = vpack.c.b16 %v1661, %v1661
  %v1726 = vpack.c.b16 %v1662, %v1662
  %v1727 = vpack.c.b16 %v1663, %v1663
  %v1728 = vpack.c.b16 %v1664, %v1664
  %v1729 = vpack.c.b16 %v1665, %v1665
  %v1730 = vpack.c.b16 %v1666, %v1666
  %v1731 = vpack.c.b16 %v1667, %v1667
  %v1732 = vpack.c.b16 %v1668, %v1668
  %v1733 = vpack.c.b16 %v1669, %v1669
  %v1734 = vpack.c.b16 %v1670, %v1670
  %v1735 = vpack.c.b16 %v1671, %v1671
  %v1736 = vpack.c.b16 %v1672, %v1672
  %v1737 = vpack.c.b16 %v1673, %v1673
  %v1738 = vpack.c.b16 %v1674, %v1674
  %v1739 = vpack.c.b16 %v1675, %v1675
  %v1740 = vpack.c.b16 %v1676, %v1676
  %v1741 = vpack.c.b16 %v1677, %v1677
  %v1742 = vpack.c.b16 %v1678, %v1678
  %v1743 = vpack.c.b16 %v1679, %v1679
  %v1744 = vpack.c.b16 %v1680, %v1680
  %v1745 = vpack.c.b16 %v1681, %v1681
  %v1746 = vpack.c.b16 %v1682, %v1682
  %v1747 = vpack.c.b16 %v1683, %v1683
  %v1748 = vpack.c.b16 %v1684, %v1684
  %v1749 = vpack.c.b16 %v1685, %v1685
  %v1750 = vpack.c.b16 %v1686, %v1686
  %v1751 = vpack.c.b16 %v1687, %v1687
  %v1752 = vpack.c.b16 %v1688, %v1688
  %v1753 = vpack.c.b16 %v1689, %v1689
  %v1754 = vpack.c.b16 %v1690, %v1690
  %v1755 = vpack.c.b16 %v1691, %v1691
  %v1756 = vpack.c.b16 %v1692, %v1692
  %v1757 = vpack.c.b16 %v1693, %v1693
  %v1758 = vpack.c.b16 %v1694, %v1694
  %v1759 = vpack.c.b16 %v1695, %v1695
  %v1760 = vpack.c.b16 %v1696, %v1696
  %v1761 = vpack.c.b16 %v1697, %v1697
  %v1762 = vpack.c.b16 %v1698, %v1698
  %1827 = vst [vmem:[%s4] sm:$0xf] %v1699
  %1828 = vst [vmem:[%s4 + $0x4] sm:$0xf] %v1700
  %1829 = vst [vmem:[%s4 + $0x8] sm:$0xf] %v1701
  %1830 = vst [vmem:[%s4 + $0xc] sm:$0xf] %v1702
  %1831 = vst [vmem:[%s4 + $0x10] sm:$0xf] %v1703
  %1832 = vst [vmem:[%s4 + $0x14] sm:$0xf] %v1704
  %1833 = vst [vmem:[%s4 + $0x18] sm:$0xf] %v1705
  %1834 = vst [vmem:[%s4 + $0x1c] sm:$0xf] %v1706
  %1835 = vst [vmem:[%s4 + $0x20] sm:$0xf] %v1707
  %1836 = vst [vmem:[%s4 + $0x24] sm:$0xf] %v1708
  %1837 = vst [vmem:[%s4 + $0x28] sm:$0xf] %v1709
  %1838 = vst [vmem:[%s4 + $0x2c] sm:$0xf] %v1710
  %1839 = vst [vmem:[%s4 + $0x30] sm:$0xf] %v1711
  %1840 = vst [vmem:[%s4 + $0x34] sm:$0xf] %v1712
  %1841 = vst [vmem:[%s4 + $0x38] sm:$0xf] %v1713
  %1842 = vst [vmem:[%s4 + $0x3c] sm:$0xf] %v1714
  %1843 = vst [vmem:[%s4 + $0x40] sm:$0xf] %v1715
  %1844 = vst [vmem:[%s4 + $0x44] sm:$0xf] %v1716
  %1845 = vst [vmem:[%s4 + $0x48] sm:$0xf] %v1717
  %1846 = vst [vmem:[%s4 + $0x4c] sm:$0xf] %v1718
  %1847 = vst [vmem:[%s4 + $0x50] sm:$0xf] %v1719
  %1848 = vst [vmem:[%s4 + $0x54] sm:$0xf] %v1720
  %1849 = vst [vmem:[%s4 + $0x58] sm:$0xf] %v1721
  %1850 = vst [vmem:[%s4 + $0x5c] sm:$0xf] %v1722
  %1851 = vst [vmem:[%s4 + $0x60] sm:$0xf] %v1723
  %1852 = vst [vmem:[%s4 + $0x64] sm:$0xf] %v1724
  %1853 = vst [vmem:[%s4 + $0x68] sm:$0xf] %v1725
  %1854 = vst [vmem:[%s4 + $0x6c] sm:$0xf] %v1726
  %1855 = vst [vmem:[%s4 + $0x70] sm:$0xf] %v1727
  %1856 = vst [vmem:[%s4 + $0x74] sm:$0xf] %v1728
  %1857 = vst [vmem:[%s4 + $0x78] sm:$0xf] %v1729
  %1858 = vst [vmem:[%s4 + $0x7c] sm:$0xf] %v1730
  %1859 = vst [vmem:[%s4 + $0x80] sm:$0xf] %v1731
  %1860 = vst [vmem:[%s4 + $0x84] sm:$0xf] %v1732
  %1861 = vst [vmem:[%s4 + $0x88] sm:$0xf] %v1733
  %1862 = vst [vmem:[%s4 + $0x8c] sm:$0xf] %v1734
  %1863 = vst [vmem:[%s4 + $0x90] sm:$0xf] %v1735
  %1864 = vst [vmem:[%s4 + $0x94] sm:$0xf] %v1736
  %1865 = vst [vmem:[%s4 + $0x98] sm:$0xf] %v1737
  %1866 = vst [vmem:[%s4 + $0x9c] sm:$0xf] %v1738
  %1867 = vst [vmem:[%s4 + $0xa0] sm:$0xf] %v1739
  %1868 = vst [vmem:[%s4 + $0xa4] sm:$0xf] %v1740
  %1869 = vst [vmem:[%s4 + $0xa8] sm:$0xf] %v1741
  %1870 = vst [vmem:[%s4 + $0xac] sm:$0xf] %v1742
  %1871 = vst [vmem:[%s4 + $0xb0] sm:$0xf] %v1743
  %1872 = vst [vmem:[%s4 + $0xb4] sm:$0xf] %v1744
  %1873 = vst [vmem:[%s4 + $0xb8] sm:$0xf] %v1745
  %1874 = vst [vmem:[%s4 + $0xbc] sm:$0xf] %v1746
  %1875 = vst [vmem:[%s4 + $0xc0] sm:$0xf] %v1747
  %1876 = vst [vmem:[%s4 + $0xc4] sm:$0xf] %v1748
  %1877 = vst [vmem:[%s4 + $0xc8] sm:$0xf] %v1749
  %1878 = vst [vmem:[%s4 + $0xcc] sm:$0xf] %v1750
  %1879 = vst [vmem:[%s4 + $0xd0] sm:$0xf] %v1751
  %1880 = vst [vmem:[%s4 + $0xd4] sm:$0xf] %v1752
  %1881 = vst [vmem:[%s4 + $0xd8] sm:$0xf] %v1753
  %1882 = vst [vmem:[%s4 + $0xdc] sm:$0xf] %v1754
  %1883 = vst [vmem:[%s4 + $0xe0] sm:$0xf] %v1755
  %1884 = vst [vmem:[%s4 + $0xe4] sm:$0xf] %v1756
  %1885 = vst [vmem:[%s4 + $0xe8] sm:$0xf] %v1757
  %1886 = vst [vmem:[%s4 + $0xec] sm:$0xf] %v1758
  %1887 = vst [vmem:[%s4 + $0xf0] sm:$0xf] %v1759
  %1888 = vst [vmem:[%s4 + $0xf4] sm:$0xf] %v1760
  %1889 = vst [vmem:[%s4 + $0xf8] sm:$0xf] %v1761
  %1890 = vst [vmem:[%s4 + $0xfc] sm:$0xf] %v1762
  // Predicated region
  $region18: #{encoder_v3_pallas.5} parent=0 // pred_check
    _
  $region19: #{encoder_v3_pallas.5} parent=0 // pred_check_branch
    %1892 = sbr.rel (0) target = $region21
  $region20: #{encoder_v3_pallas.5} parent=0 // pred_region
    _
  $region21: #{encoder_v3_pallas.5} parent=0 // pred_fallthru
    _
  // Predicated region
  $region22: #{encoder_v3_pallas.5} parent=0 // pred_check
    _
  $region23: #{encoder_v3_pallas.5} parent=0 // pred_check_branch
    %1894 = sbr.rel (0) target = $region25
  $region24: #{encoder_v3_pallas.5} parent=0 // pred_region
    _
  $region25: #{encoder_v3_pallas.5} parent=0 // pred_fallthru
    _

// kernel: encoder_v3_pallas.6
$region0: #{encoder_v3_pallas.6}
  #allocation0 [shape = 'u32[]', space=smem, size = 0x4, offset = 0x4, fixed_abs, tag = 'smem constant byte address 0x4 - core index']
  #allocation1 [shape = 'u32[144,128]{1,0:T(1,128)}', space=vmem, size = 0x12000, scoped, tag = 'internal scratch']
  %s0 = inlined_call_operand.vmem [shape: bf16[128,512], index: 0, kind: input, shape index: {}]
  %s1 = inlined_call_operand.vmem [shape: bf16[512,128], index: 1, kind: input, shape index: {}]
  %s2 = inlined_call_operand.vmem [shape: f32[1,128], index: 2, kind: input, shape index: {}]
  %s3 = inlined_call_operand.vmem [shape: f32[1,128], index: 3, kind: input, shape index: {}]
  %s4 = inlined_call_operand.vmem [shape: bf16[128,128], index: 4, kind: output, shape index: {}]
  %s5 = sld [smem:[#allocation0]]
  $region26: #{encoder_v3_pallas.6} parent=0
    _
  %s7 = ssub.s32 1, %s5
  %s8 = scalar_select 0, %s7, %s5
  // Predicated region
  $region2: #{encoder_v3_pallas.6} parent=0 // pred_check
    _
  $region3: #{encoder_v3_pallas.6} parent=0 // pred_check_branch
    %10 = sbr.rel (0) target = $region5
  $region4: #{encoder_v3_pallas.6} parent=0 // pred_region
    _
  $region5: #{encoder_v3_pallas.6} parent=0 // pred_fallthru
    _
  // Predicated region
  $region6: #{encoder_v3_pallas.6} parent=0 // pred_check
    _
  $region7: #{encoder_v3_pallas.6} parent=0 // pred_check_branch
    %12 = sbr.rel (0) target = $region9
  $region8: #{encoder_v3_pallas.6} parent=0 // pred_region
    _
  $region9: #{encoder_v3_pallas.6} parent=0 // pred_fallthru
    _
  // Predicated region
  $region10: #{encoder_v3_pallas.6} parent=0 // pred_check
    _
  $region11: #{encoder_v3_pallas.6} parent=0 // pred_check_branch
    %14 = sbr.rel (0) target = $region13
  $region12: #{encoder_v3_pallas.6} parent=0 // pred_region
    _
  $region13: #{encoder_v3_pallas.6} parent=0 // pred_fallthru
    _
  // Predicated region
  $region14: #{encoder_v3_pallas.6} parent=0 // pred_check
    _
  $region15: #{encoder_v3_pallas.6} parent=0 // pred_check_branch
    %16 = sbr.rel (0) target = $region17
  $region16: #{encoder_v3_pallas.6} parent=0 // pred_region
    _
  $region17: #{encoder_v3_pallas.6} parent=0 // pred_fallthru
    _
  %v18 = vld [vmem:[%s0] sm:$0xff]
  %v19 = vld [vmem:[%s0 + $0x8] sm:$0xff]
  %v20 = vld [vmem:[%s0 + $0x10] sm:$0xff]
  %v21 = vld [vmem:[%s0 + $0x18] sm:$0xff]
  %v22 = vld [vmem:[%s0 + $0x20] sm:$0xff]
  %v23 = vld [vmem:[%s0 + $0x28] sm:$0xff]
  %v24 = vld [vmem:[%s0 + $0x30] sm:$0xff]
  %v25 = vld [vmem:[%s0 + $0x38] sm:$0xff]
  %v26 = vld [vmem:[%s0 + $0x40] sm:$0xff]
  %v27 = vld [vmem:[%s0 + $0x48] sm:$0xff]
  %v28 = vld [vmem:[%s0 + $0x50] sm:$0xff]
  %v29 = vld [vmem:[%s0 + $0x58] sm:$0xff]
  %v30 = vld [vmem:[%s0 + $0x60] sm:$0xff]
  %v31 = vld [vmem:[%s0 + $0x68] sm:$0xff]
  %v32 = vld [vmem:[%s0 + $0x70] sm:$0xff]
  %v33 = vld [vmem:[%s0 + $0x78] sm:$0xff]
  %v34 = vld [vmem:[%s0 + $0x80] sm:$0xff]
  %v35 = vld [vmem:[%s0 + $0x88] sm:$0xff]
  %v36 = vld [vmem:[%s0 + $0x90] sm:$0xff]
  %v37 = vld [vmem:[%s0 + $0x98] sm:$0xff]
  %v38 = vld [vmem:[%s0 + $0xa0] sm:$0xff]
  %v39 = vld [vmem:[%s0 + $0xa8] sm:$0xff]
  %v40 = vld [vmem:[%s0 + $0xb0] sm:$0xff]
  %v41 = vld [vmem:[%s0 + $0xb8] sm:$0xff]
  %v42 = vld [vmem:[%s0 + $0xc0] sm:$0xff]
  %v43 = vld [vmem:[%s0 + $0xc8] sm:$0xff]
  %v44 = vld [vmem:[%s0 + $0xd0] sm:$0xff]
  %v45 = vld [vmem:[%s0 + $0xd8] sm:$0xff]
  %v46 = vld [vmem:[%s0 + $0xe0] sm:$0xff]
  %v47 = vld [vmem:[%s0 + $0xe8] sm:$0xff]
  %v48 = vld [vmem:[%s0 + $0xf0] sm:$0xff]
  %v49 = vld [vmem:[%s0 + $0xf8] sm:$0xff]
  %v50 = vld [vmem:[%s1] sm:$0xf]
  %v51 = vld [vmem:[%s1 + $0x4] sm:$0xf]
  %v52 = vld [vmem:[%s1 + $0x8] sm:$0xf]
  %v53 = vld [vmem:[%s1 + $0xc] sm:$0xf]
  %v54 = vld [vmem:[%s1 + $0x10] sm:$0xf]
  %v55 = vld [vmem:[%s1 + $0x14] sm:$0xf]
  %v56 = vld [vmem:[%s1 + $0x18] sm:$0xf]
  %v57 = vld [vmem:[%s1 + $0x1c] sm:$0xf]
  %v58 = vld [vmem:[%s1 + $0x20] sm:$0xf]
  %v59 = vld [vmem:[%s1 + $0x24] sm:$0xf]
  %v60 = vld [vmem:[%s1 + $0x28] sm:$0xf]
  %v61 = vld [vmem:[%s1 + $0x2c] sm:$0xf]
  %v62 = vld [vmem:[%s1 + $0x30] sm:$0xf]
  %v63 = vld [vmem:[%s1 + $0x34] sm:$0xf]
  %v64 = vld [vmem:[%s1 + $0x38] sm:$0xf]
  %v65 = vld [vmem:[%s1 + $0x3c] sm:$0xf]
  %v66 = vld [vmem:[%s1 + $0x40] sm:$0xf]
  %v67 = vld [vmem:[%s1 + $0x44] sm:$0xf]
  %v68 = vld [vmem:[%s1 + $0x48] sm:$0xf]
  %v69 = vld [vmem:[%s1 + $0x4c] sm:$0xf]
  %v70 = vld [vmem:[%s1 + $0x50] sm:$0xf]
  %v71 = vld [vmem:[%s1 + $0x54] sm:$0xf]
  %v72 = vld [vmem:[%s1 + $0x58] sm:$0xf]
  %v73 = vld [vmem:[%s1 + $0x5c] sm:$0xf]
  %v74 = vld [vmem:[%s1 + $0x60] sm:$0xf]
  %v75 = vld [vmem:[%s1 + $0x64] sm:$0xf]
  %v76 = vld [vmem:[%s1 + $0x68] sm:$0xf]
  %v77 = vld [vmem:[%s1 + $0x6c] sm:$0xf]
  %v78 = vld [vmem:[%s1 + $0x70] sm:$0xf]
  %v79 = vld [vmem:[%s1 + $0x74] sm:$0xf]
  %v80 = vld [vmem:[%s1 + $0x78] sm:$0xf]
  %v81 = vld [vmem:[%s1 + $0x7c] sm:$0xf]
  %v82 = vld [vmem:[%s1 + $0x80] sm:$0xf]
  %v83 = vld [vmem:[%s1 + $0x84] sm:$0xf]
  %v84 = vld [vmem:[%s1 + $0x88] sm:$0xf]
  %v85 = vld [vmem:[%s1 + $0x8c] sm:$0xf]
  %v86 = vld [vmem:[%s1 + $0x90] sm:$0xf]
  %v87 = vld [vmem:[%s1 + $0x94] sm:$0xf]
  %v88 = vld [vmem:[%s1 + $0x98] sm:$0xf]
  %v89 = vld [vmem:[%s1 + $0x9c] sm:$0xf]
  %v90 = vld [vmem:[%s1 + $0xa0] sm:$0xf]
  %v91 = vld [vmem:[%s1 + $0xa4] sm:$0xf]
  %v92 = vld [vmem:[%s1 + $0xa8] sm:$0xf]
  %v93 = vld [vmem:[%s1 + $0xac] sm:$0xf]
  %v94 = vld [vmem:[%s1 + $0xb0] sm:$0xf]
  %v95 = vld [vmem:[%s1 + $0xb4] sm:$0xf]
  %v96 = vld [vmem:[%s1 + $0xb8] sm:$0xf]
  %v97 = vld [vmem:[%s1 + $0xbc] sm:$0xf]
  %v98 = vld [vmem:[%s1 + $0xc0] sm:$0xf]
  %v99 = vld [vmem:[%s1 + $0xc4] sm:$0xf]
  %v100 = vld [vmem:[%s1 + $0xc8] sm:$0xf]
  %v101 = vld [vmem:[%s1 + $0xcc] sm:$0xf]
  %v102 = vld [vmem:[%s1 + $0xd0] sm:$0xf]
  %v103 = vld [vmem:[%s1 + $0xd4] sm:$0xf]
  %v104 = vld [vmem:[%s1 + $0xd8] sm:$0xf]
  %v105 = vld [vmem:[%s1 + $0xdc] sm:$0xf]
  %v106 = vld [vmem:[%s1 + $0xe0] sm:$0xf]
  %v107 = vld [vmem:[%s1 + $0xe4] sm:$0xf]
  %v108 = vld [vmem:[%s1 + $0xe8] sm:$0xf]
  %v109 = vld [vmem:[%s1 + $0xec] sm:$0xf]
  %v110 = vld [vmem:[%s1 + $0xf0] sm:$0xf]
  %v111 = vld [vmem:[%s1 + $0xf4] sm:$0xf]
  %v112 = vld [vmem:[%s1 + $0xf8] sm:$0xf]
  %v113 = vld [vmem:[%s1 + $0xfc] sm:$0xf]
  %v146 = vunpack.c.l.b16 %v18
  %v147 = vunpack.c.h.b16 %v18
  %v148 = vunpack.c.l.b16 %v19
  %v149 = vunpack.c.h.b16 %v19
  %v150 = vunpack.c.l.b16 %v20
  %v151 = vunpack.c.h.b16 %v20
  %v152 = vunpack.c.l.b16 %v21
  %v153 = vunpack.c.h.b16 %v21
  %v154 = vunpack.c.l.b16 %v22
  %v155 = vunpack.c.h.b16 %v22
  %v156 = vunpack.c.l.b16 %v23
  %v157 = vunpack.c.h.b16 %v23
  %v158 = vunpack.c.l.b16 %v24
  %v159 = vunpack.c.h.b16 %v24
  %v160 = vunpack.c.l.b16 %v25
  %v161 = vunpack.c.h.b16 %v25
  %v162 = vunpack.c.l.b16 %v26
  %v163 = vunpack.c.h.b16 %v26
  %v164 = vunpack.c.l.b16 %v27
  %v165 = vunpack.c.h.b16 %v27
  %v166 = vunpack.c.l.b16 %v28
  %v167 = vunpack.c.h.b16 %v28
  %v168 = vunpack.c.l.b16 %v29
  %v169 = vunpack.c.h.b16 %v29
  %v170 = vunpack.c.l.b16 %v30
  %v171 = vunpack.c.h.b16 %v30
  %v172 = vunpack.c.l.b16 %v31
  %v173 = vunpack.c.h.b16 %v31
  %v174 = vunpack.c.l.b16 %v32
  %v175 = vunpack.c.h.b16 %v32
  %v176 = vunpack.c.l.b16 %v33
  %v177 = vunpack.c.h.b16 %v33
  %v178 = vunpack.c.l.b16 %v34
  %v179 = vunpack.c.h.b16 %v34
  %v180 = vunpack.c.l.b16 %v35
  %v181 = vunpack.c.h.b16 %v35
  %v182 = vunpack.c.l.b16 %v36
  %v183 = vunpack.c.h.b16 %v36
  %v184 = vunpack.c.l.b16 %v37
  %v185 = vunpack.c.h.b16 %v37
  %v186 = vunpack.c.l.b16 %v38
  %v187 = vunpack.c.h.b16 %v38
  %v188 = vunpack.c.l.b16 %v39
  %v189 = vunpack.c.h.b16 %v39
  %v190 = vunpack.c.l.b16 %v40
  %v191 = vunpack.c.h.b16 %v40
  %v192 = vunpack.c.l.b16 %v41
  %v193 = vunpack.c.h.b16 %v41
  %v194 = vunpack.c.l.b16 %v42
  %v195 = vunpack.c.h.b16 %v42
  %v196 = vunpack.c.l.b16 %v43
  %v197 = vunpack.c.h.b16 %v43
  %v198 = vunpack.c.l.b16 %v44
  %v199 = vunpack.c.h.b16 %v44
  %v200 = vunpack.c.l.b16 %v45
  %v201 = vunpack.c.h.b16 %v45
  %v202 = vunpack.c.l.b16 %v46
  %v203 = vunpack.c.h.b16 %v46
  %v204 = vunpack.c.l.b16 %v47
  %v205 = vunpack.c.h.b16 %v47
  %v206 = vunpack.c.l.b16 %v48
  %v207 = vunpack.c.h.b16 %v48
  %v208 = vunpack.c.l.b16 %v49
  %v209 = vunpack.c.h.b16 %v49
  %v210 = vpack.c.b16 %v150, %v146
  %v211 = vpack.c.b16 %v151, %v147
  %v212 = vpack.c.b16 %v152, %v148
  %v213 = vpack.c.b16 %v153, %v149
  %v214 = vpack.c.b16 %v158, %v154
  %v215 = vpack.c.b16 %v159, %v155
  %v216 = vpack.c.b16 %v160, %v156
  %v217 = vpack.c.b16 %v161, %v157
  %v218 = vpack.c.b16 %v166, %v162
  %v219 = vpack.c.b16 %v167, %v163
  %v220 = vpack.c.b16 %v168, %v164
  %v221 = vpack.c.b16 %v169, %v165
  %v222 = vpack.c.b16 %v174, %v170
  %v223 = vpack.c.b16 %v175, %v171
  %v224 = vpack.c.b16 %v176, %v172
  %v225 = vpack.c.b16 %v177, %v173
  %v226 = vpack.c.b16 %v182, %v178
  %v227 = vpack.c.b16 %v183, %v179
  %v228 = vpack.c.b16 %v184, %v180
  %v229 = vpack.c.b16 %v185, %v181
  %v230 = vpack.c.b16 %v190, %v186
  %v231 = vpack.c.b16 %v191, %v187
  %v232 = vpack.c.b16 %v192, %v188
  %v233 = vpack.c.b16 %v193, %v189
  %v234 = vpack.c.b16 %v198, %v194
  %v235 = vpack.c.b16 %v199, %v195
  %v236 = vpack.c.b16 %v200, %v196
  %v237 = vpack.c.b16 %v201, %v197
  %v238 = vpack.c.b16 %v206, %v202
  %v239 = vpack.c.b16 %v207, %v203
  %v240 = vpack.c.b16 %v208, %v204
  %v241 = vpack.c.b16 %v209, %v205
  %v338 = vunpack.c.l.b16 %v50
  %v339 = vunpack.c.l.b16 %v51
  %v340 = vunpack.c.l.b16 %v52
  %v341 = vunpack.c.l.b16 %v53
  %v342 = vunpack.c.l.b16 %v54
  %v343 = vunpack.c.l.b16 %v55
  %v344 = vunpack.c.l.b16 %v56
  %v345 = vunpack.c.l.b16 %v57
  %v346 = vunpack.c.l.b16 %v58
  %v347 = vunpack.c.l.b16 %v59
  %v348 = vunpack.c.l.b16 %v60
  %v349 = vunpack.c.l.b16 %v61
  %v350 = vunpack.c.l.b16 %v62
  %v351 = vunpack.c.l.b16 %v63
  %v352 = vunpack.c.l.b16 %v64
  %v353 = vunpack.c.l.b16 %v65
  %v354 = vunpack.c.l.b16 %v66
  %v355 = vunpack.c.l.b16 %v67
  %v356 = vunpack.c.l.b16 %v68
  %v357 = vunpack.c.l.b16 %v69
  %v358 = vunpack.c.l.b16 %v70
  %v359 = vunpack.c.l.b16 %v71
  %v360 = vunpack.c.l.b16 %v72
  %v361 = vunpack.c.l.b16 %v73
  %v362 = vunpack.c.l.b16 %v74
  %v363 = vunpack.c.l.b16 %v75
  %v364 = vunpack.c.l.b16 %v76
  %v365 = vunpack.c.l.b16 %v77
  %v366 = vunpack.c.l.b16 %v78
  %v367 = vunpack.c.l.b16 %v79
  %v368 = vunpack.c.l.b16 %v80
  %v369 = vunpack.c.l.b16 %v81
  %v370 = vunpack.c.l.b16 %v82
  %v371 = vunpack.c.l.b16 %v83
  %v372 = vunpack.c.l.b16 %v84
  %v373 = vunpack.c.l.b16 %v85
  %v374 = vunpack.c.l.b16 %v86
  %v375 = vunpack.c.l.b16 %v87
  %v376 = vunpack.c.l.b16 %v88
  %v377 = vunpack.c.l.b16 %v89
  %v378 = vunpack.c.l.b16 %v90
  %v379 = vunpack.c.l.b16 %v91
  %v380 = vunpack.c.l.b16 %v92
  %v381 = vunpack.c.l.b16 %v93
  %v382 = vunpack.c.l.b16 %v94
  %v383 = vunpack.c.l.b16 %v95
  %v384 = vunpack.c.l.b16 %v96
  %v385 = vunpack.c.l.b16 %v97
  %v386 = vunpack.c.l.b16 %v98
  %v387 = vunpack.c.l.b16 %v99
  %v388 = vunpack.c.l.b16 %v100
  %v389 = vunpack.c.l.b16 %v101
  %v390 = vunpack.c.l.b16 %v102
  %v391 = vunpack.c.l.b16 %v103
  %v392 = vunpack.c.l.b16 %v104
  %v393 = vunpack.c.l.b16 %v105
  %v394 = vunpack.c.l.b16 %v106
  %v395 = vunpack.c.l.b16 %v107
  %v396 = vunpack.c.l.b16 %v108
  %v397 = vunpack.c.l.b16 %v109
  %v398 = vunpack.c.l.b16 %v110
  %v399 = vunpack.c.l.b16 %v111
  %v400 = vunpack.c.l.b16 %v112
  %v401 = vunpack.c.l.b16 %v113
  %v402 = vpack.c.b16 %v339, %v338
  %v403 = vpack.c.b16 %v341, %v340
  %v404 = vpack.c.b16 %v343, %v342
  %v405 = vpack.c.b16 %v345, %v344
  %v406 = vpack.c.b16 %v347, %v346
  %v407 = vpack.c.b16 %v349, %v348
  %v408 = vpack.c.b16 %v351, %v350
  %v409 = vpack.c.b16 %v353, %v352
  %v410 = vpack.c.b16 %v355, %v354
  %v411 = vpack.c.b16 %v357, %v356
  %v412 = vpack.c.b16 %v359, %v358
  %v413 = vpack.c.b16 %v361, %v360
  %v414 = vpack.c.b16 %v363, %v362
  %v415 = vpack.c.b16 %v365, %v364
  %v416 = vpack.c.b16 %v367, %v366
  %v417 = vpack.c.b16 %v369, %v368
  %v418 = vpack.c.b16 %v371, %v370
  %v419 = vpack.c.b16 %v373, %v372
  %v420 = vpack.c.b16 %v375, %v374
  %v421 = vpack.c.b16 %v377, %v376
  %v422 = vpack.c.b16 %v379, %v378
  %v423 = vpack.c.b16 %v381, %v380
  %v424 = vpack.c.b16 %v383, %v382
  %v425 = vpack.c.b16 %v385, %v384
  %v426 = vpack.c.b16 %v387, %v386
  %v427 = vpack.c.b16 %v389, %v388
  %v428 = vpack.c.b16 %v391, %v390
  %v429 = vpack.c.b16 %v393, %v392
  %v430 = vpack.c.b16 %v395, %v394
  %v431 = vpack.c.b16 %v397, %v396
  %v432 = vpack.c.b16 %v399, %v398
  %v433 = vpack.c.b16 %v401, %v400
  %466 = vmatprep.subr.bf16.mxu0 0
  %467 = vmatpush1.bf16.msra.mxu0 %v402
  %468 = vmatprep.subr.bf16.mxu0 0
  %469 = vmatpush1.bf16.msra.mxu0 %v403
  %470 = vmatprep.subr.bf16.mxu0 0
  %471 = vmatpush1.bf16.msra.mxu0 %v404
  %472 = vmatprep.subr.bf16.mxu0 0
  %473 = vmatpush1.bf16.msra.mxu0 %v405
  %474 = vmatprep.subr.bf16.mxu0 0
  %475 = vmatpush1.bf16.msra.mxu0 %v406
  %476 = vmatprep.subr.bf16.mxu0 0
  %477 = vmatpush1.bf16.msra.mxu0 %v407
  %478 = vmatprep.subr.bf16.mxu0 0
  %479 = vmatpush1.bf16.msra.mxu0 %v408
  %480 = vmatprep.subr.bf16.mxu0 0
  %481 = vmatpush1.bf16.msra.mxu0 %v409
  %482 = vmatprep.subr.bf16.mxu0 0
  %483 = vmatpush1.bf16.msra.mxu0 %v410
  %484 = vmatprep.subr.bf16.mxu0 0
  %485 = vmatpush1.bf16.msra.mxu0 %v411
  %486 = vmatprep.subr.bf16.mxu0 0
  %487 = vmatpush1.bf16.msra.mxu0 %v412
  %488 = vmatprep.subr.bf16.mxu0 0
  %489 = vmatpush1.bf16.msra.mxu0 %v413
  %490 = vmatprep.subr.bf16.mxu0 0
  %491 = vmatpush1.bf16.msra.mxu0 %v414
  %492 = vmatprep.subr.bf16.mxu0 0
  %493 = vmatpush1.bf16.msra.mxu0 %v415
  %494 = vmatprep.subr.bf16.mxu0 0
  %495 = vmatpush1.bf16.msra.mxu0 %v416
  %496 = vmatprep.subr.bf16.mxu0 0
  %497 = vmatpush1.bf16.msra.mxu0 %v417
  %498 = vmatprep.mubr.bf16.mxu0 %v211
  %499 = vmatmul.mubr.bf16.gmra.mrb[0].mxu0 %v210
  %v500 = vpop.f32.mrb[0].mxu0
  %v501 = vadd.f32 0.0, %v500
  %v502 = vpop.f32.mrb[0].mxu0
  %v503 = vpop.f32.mrb[0].mxu0
  %v504 = vadd.f32 0.0, %v503
  %v505 = vpop.f32.mrb[0].mxu0
  %506 = vmatprep.mubr.bf16.mxu0 %v215
  %507 = vmatmul.mubr.bf16.gmra.mrb[0].mxu0 %v214
  %v508 = vpop.f32.mrb[0].mxu0
  %v509 = vadd.f32 0.0, %v508
  %v510 = vpop.f32.mrb[0].mxu0
  %v511 = vpop.f32.mrb[0].mxu0
  %v512 = vadd.f32 0.0, %v511
  %v513 = vpop.f32.mrb[0].mxu0
  %514 = vmatprep.mubr.bf16.mxu0 %v219
  %515 = vmatmul.mubr.bf16.gmra.mrb[0].mxu0 %v218
  %v516 = vpop.f32.mrb[0].mxu0
  %v517 = vadd.f32 0.0, %v516
  %v518 = vpop.f32.mrb[0].mxu0
  %v519 = vpop.f32.mrb[0].mxu0
  %v520 = vadd.f32 0.0, %v519
  %v521 = vpop.f32.mrb[0].mxu0
  %522 = vmatprep.mubr.bf16.mxu0 %v223
  %523 = vmatmul.mubr.bf16.gmra.mrb[0].mxu0 %v222
  %v524 = vpop.f32.mrb[0].mxu0
  %v525 = vadd.f32 0.0, %v524
  %v526 = vpop.f32.mrb[0].mxu0
  %v527 = vpop.f32.mrb[0].mxu0
  %v528 = vadd.f32 0.0, %v527
  %v529 = vpop.f32.mrb[0].mxu0
  %530 = vmatprep.mubr.bf16.mxu0 %v227
  %531 = vmatmul.mubr.bf16.gmra.mrb[0].mxu0 %v226
  %v532 = vpop.f32.mrb[0].mxu0
  %v533 = vadd.f32 0.0, %v532
  %v534 = vpop.f32.mrb[0].mxu0
  %v535 = vpop.f32.mrb[0].mxu0
  %v536 = vadd.f32 0.0, %v535
  %v537 = vpop.f32.mrb[0].mxu0
  %538 = vmatprep.mubr.bf16.mxu0 %v231
  %539 = vmatmul.mubr.bf16.gmra.mrb[0].mxu0 %v230
  %v540 = vpop.f32.mrb[0].mxu0
  %v541 = vadd.f32 0.0, %v540
  %v542 = vpop.f32.mrb[0].mxu0
  %v543 = vpop.f32.mrb[0].mxu0
  %v544 = vadd.f32 0.0, %v543
  %v545 = vpop.f32.mrb[0].mxu0
  %546 = vmatprep.mubr.bf16.mxu0 %v235
  %547 = vmatmul.mubr.bf16.gmra.mrb[0].mxu0 %v234
  %v548 = vpop.f32.mrb[0].mxu0
  %v549 = vadd.f32 0.0, %v548
  %v550 = vpop.f32.mrb[0].mxu0
  %v551 = vpop.f32.mrb[0].mxu0
  %v552 = vadd.f32 0.0, %v551
  %v553 = vpop.f32.mrb[0].mxu0
  %554 = vmatprep.mubr.bf16.mxu0 %v239
  %555 = vmatmul.mubr.bf16.gmra.mrb[0].mxu0 %v238
  %v556 = vpop.f32.mrb[0].mxu0
  %v557 = vadd.f32 0.0, %v556
  %v558 = vpop.f32.mrb[0].mxu0
  %v559 = vpop.f32.mrb[0].mxu0
  %v560 = vadd.f32 0.0, %v559
  %v561 = vpop.f32.mrb[0].mxu0
  %562 = vdwg.mxu0
  %563 = vmatprep.subr.bf16.mxu0 0
  %564 = vmatpush1.bf16.msra.mxu0 %v418
  %565 = vmatprep.subr.bf16.mxu0 0
  %566 = vmatpush1.bf16.msra.mxu0 %v419
  %567 = vmatprep.subr.bf16.mxu0 0
  %568 = vmatpush1.bf16.msra.mxu0 %v420
  %569 = vmatprep.subr.bf16.mxu0 0
  %570 = vmatpush1.bf16.msra.mxu0 %v421
  %571 = vmatprep.subr.bf16.mxu0 0
  %572 = vmatpush1.bf16.msra.mxu0 %v422
  %573 = vmatprep.subr.bf16.mxu0 0
  %574 = vmatpush1.bf16.msra.mxu0 %v423
  %575 = vmatprep.subr.bf16.mxu0 0
  %576 = vmatpush1.bf16.msra.mxu0 %v424
  %577 = vmatprep.subr.bf16.mxu0 0
  %578 = vmatpush1.bf16.msra.mxu0 %v425
  %579 = vmatprep.subr.bf16.mxu0 0
  %580 = vmatpush1.bf16.msra.mxu0 %v426
  %581 = vmatprep.subr.bf16.mxu0 0
  %582 = vmatpush1.bf16.msra.mxu0 %v427
  %583 = vmatprep.subr.bf16.mxu0 0
  %584 = vmatpush1.bf16.msra.mxu0 %v428
  %585 = vmatprep.subr.bf16.mxu0 0
  %586 = vmatpush1.bf16.msra.mxu0 %v429
  %587 = vmatprep.subr.bf16.mxu0 0
  %588 = vmatpush1.bf16.msra.mxu0 %v430
  %589 = vmatprep.subr.bf16.mxu0 0
  %590 = vmatpush1.bf16.msra.mxu0 %v431
  %591 = vmatprep.subr.bf16.mxu0 0
  %592 = vmatpush1.bf16.msra.mxu0 %v432
  %593 = vmatprep.subr.bf16.mxu0 0
  %594 = vmatpush1.bf16.msra.mxu0 %v433
  %595 = vmatprep.mubr.bf16.mxu0 %v213
  %596 = vmatmul.mubr.bf16.gmra.mrb[0].mxu0 %v212
  %v597 = vpop.f32.mrb[0].mxu0
  %v598 = vadd.f32 %v501, %v597
  %v599 = vpop.f32.mrb[0].mxu0
  %v600 = vpop.f32.mrb[0].mxu0
  %v601 = vadd.f32 %v504, %v600
  %v602 = vpop.f32.mrb[0].mxu0
  %603 = vmatprep.mubr.bf16.mxu0 %v217
  %604 = vmatmul.mubr.bf16.gmra.mrb[0].mxu0 %v216
  %v605 = vpop.f32.mrb[0].mxu0
  %v606 = vadd.f32 %v509, %v605
  %v607 = vpop.f32.mrb[0].mxu0
  %v608 = vpop.f32.mrb[0].mxu0
  %v609 = vadd.f32 %v512, %v608
  %v610 = vpop.f32.mrb[0].mxu0
  %611 = vmatprep.mubr.bf16.mxu0 %v221
  %612 = vmatmul.mubr.bf16.gmra.mrb[0].mxu0 %v220
  %v613 = vpop.f32.mrb[0].mxu0
  %v614 = vadd.f32 %v517, %v613
  %v615 = vpop.f32.mrb[0].mxu0
  %v616 = vpop.f32.mrb[0].mxu0
  %v617 = vadd.f32 %v520, %v616
  %v618 = vpop.f32.mrb[0].mxu0
  %619 = vmatprep.mubr.bf16.mxu0 %v225
  %620 = vmatmul.mubr.bf16.gmra.mrb[0].mxu0 %v224
  %v621 = vpop.f32.mrb[0].mxu0
  %v622 = vadd.f32 %v525, %v621
  %v623 = vpop.f32.mrb[0].mxu0
  %v624 = vpop.f32.mrb[0].mxu0
  %v625 = vadd.f32 %v528, %v624
  %v626 = vpop.f32.mrb[0].mxu0
  %627 = vmatprep.mubr.bf16.mxu0 %v229
  %628 = vmatmul.mubr.bf16.gmra.mrb[0].mxu0 %v228
  %v629 = vpop.f32.mrb[0].mxu0
  %v630 = vadd.f32 %v533, %v629
  %v631 = vpop.f32.mrb[0].mxu0
  %v632 = vpop.f32.mrb[0].mxu0
  %v633 = vadd.f32 %v536, %v632
  %v634 = vpop.f32.mrb[0].mxu0
  %635 = vmatprep.mubr.bf16.mxu0 %v233
  %636 = vmatmul.mubr.bf16.gmra.mrb[0].mxu0 %v232
  %v637 = vpop.f32.mrb[0].mxu0
  %v638 = vadd.f32 %v541, %v637
  %v639 = vpop.f32.mrb[0].mxu0
  %v640 = vpop.f32.mrb[0].mxu0
  %v641 = vadd.f32 %v544, %v640
  %v642 = vpop.f32.mrb[0].mxu0
  %643 = vmatprep.mubr.bf16.mxu0 %v237
  %644 = vmatmul.mubr.bf16.gmra.mrb[0].mxu0 %v236
  %v645 = vpop.f32.mrb[0].mxu0
  %v646 = vadd.f32 %v549, %v645
  %v647 = vpop.f32.mrb[0].mxu0
  %v648 = vpop.f32.mrb[0].mxu0
  %v649 = vadd.f32 %v552, %v648
  %v650 = vpop.f32.mrb[0].mxu0
  %651 = vmatprep.mubr.bf16.mxu0 %v241
  %652 = vmatmul.mubr.bf16.gmra.mrb[0].mxu0 %v240
  %v653 = vpop.f32.mrb[0].mxu0
  %v654 = vadd.f32 %v557, %v653
  %v655 = vpop.f32.mrb[0].mxu0
  %v656 = vpop.f32.mrb[0].mxu0
  %v657 = vadd.f32 %v560, %v656
  %v658 = vpop.f32.mrb[0].mxu0
  %659 = vdwg.mxu0
  %v660 = vld [vmem:[%s2] sm:$0x1]
  %v661 = vld [vmem:[%s3] sm:$0x1]
  %662 = vmatprep.subr.mxu0 0.0
  %663 = vmatpush1.msra.mxu0 %v598
  %664 = vmatprep.subr.mxu0 0.0
  %665 = vmatpush1.msra.mxu0 %v601
  %666 = vmatprep.subr.mxu0 0.0
  %667 = vmatpush1.msra.mxu0 %v606
  %668 = vmatprep.subr.mxu0 0.0
  %669 = vmatpush1.msra.mxu0 %v609
  %670 = vmatprep.subr.mxu0 0.0
  %671 = vmatpush1.msra.mxu0 %v614
  %672 = vmatprep.subr.mxu0 0.0
  %673 = vmatpush1.msra.mxu0 %v617
  %674 = vmatprep.subr.mxu0 0.0
  %675 = vmatpush1.msra.mxu0 %v622
  %676 = vmatprep.subr.mxu0 0.0
  %677 = vmatpush1.msra.mxu0 %v625
  %678 = vmatprep.subr.mxu0 0.0
  %679 = vmatpush1.msra.mxu0 %v630
  %680 = vmatprep.subr.mxu0 0.0
  %681 = vmatpush1.msra.mxu0 %v633
  %682 = vmatprep.subr.mxu0 0.0
  %683 = vmatpush1.msra.mxu0 %v638
  %684 = vmatprep.subr.mxu0 0.0
  %685 = vmatpush1.msra.mxu0 %v641
  %686 = vmatprep.subr.mxu0 0.0
  %687 = vmatpush1.msra.mxu0 %v646
  %688 = vmatprep.subr.mxu0 0.0
  %689 = vmatpush1.msra.mxu0 %v649
  %690 = vmatprep.subr.mxu0 0.0
  %691 = vmatpush1.msra.mxu0 %v654
  %692 = vmatprep.subr.mxu0 0.0
  %693 = vmatpush1.msra.mxu0 %v657
  %694 = vmatprep.subr.mxu0 0.0
  %695 = vmatpush1.msra.mxu0 0.0
  %696 = vmatprep.subr.mxu0 0.0
  %697 = vmatpush1.msra.mxu0 0.0
  %698 = vmatprep.subr.mxu0 0.0
  %699 = vmatpush1.msra.mxu0 0.0
  %700 = vmatprep.subr.mxu0 0.0
  %701 = vmatpush1.msra.mxu0 0.0
  %702 = vmatprep.subr.mxu0 0.0
  %703 = vmatpush1.msra.mxu0 0.0
  %704 = vmatprep.subr.mxu0 0.0
  %705 = vmatpush1.msra.mxu0 0.0
  %706 = vmatprep.subr.mxu0 0.0
  %707 = vmatpush1.msra.mxu0 0.0
  %708 = vmatprep.subr.mxu0 0.0
  %709 = vmatpush1.msra.mxu0 0.0
  %710 = vmatprep.subr.mxu0 0.0
  %711 = vmatpush1.msra.mxu0 0.0
  %712 = vmatprep.subr.mxu0 0.0
  %713 = vmatpush1.msra.mxu0 0.0
  %714 = vmatprep.subr.mxu0 0.0
  %715 = vmatpush1.msra.mxu0 0.0
  %716 = vmatprep.subr.mxu0 0.0
  %717 = vmatpush1.msra.mxu0 0.0
  %718 = vmatprep.subr.mxu0 0.0
  %719 = vmatpush1.msra.mxu0 0.0
  %720 = vmatprep.subr.mxu0 0.0
  %721 = vmatpush1.msra.mxu0 0.0
  %722 = vmatprep.subr.mxu0 0.0
  %723 = vmatpush1.msra.mxu0 0.0
  %724 = vmatprep.subr.mxu0 0.0
  %725 = vmatpush1.msra.mxu0 0.0
  %726 = vmatprep.mubr.f32.mxu0 0.0
  %727 = vmatmul.mubr.f32.gmra.mrb[0].mxu0 1.0
  %v728 = vpop.f32.mrb[0].mxu0
  %v729 = vadd.f32 0.0, %v728
  %v730 = vpop.f32.mrb[0].mxu0
  %731 = vdwg.mxu0
  %v732 = vmul.f32 %v598, %v598
  %v733 = vmul.f32 %v601, %v601
  %v734 = vmul.f32 %v606, %v606
  %v735 = vmul.f32 %v609, %v609
  %v736 = vmul.f32 %v614, %v614
  %v737 = vmul.f32 %v617, %v617
  %v738 = vmul.f32 %v622, %v622
  %v739 = vmul.f32 %v625, %v625
  %v740 = vmul.f32 %v630, %v630
  %v741 = vmul.f32 %v633, %v633
  %v742 = vmul.f32 %v638, %v638
  %v743 = vmul.f32 %v641, %v641
  %v744 = vmul.f32 %v646, %v646
  %v745 = vmul.f32 %v649, %v649
  %v746 = vmul.f32 %v654, %v654
  %v747 = vmul.f32 %v657, %v657
  %748 = vmatprep.subr.mxu0 0.0
  %749 = vmatpush1.msra.mxu0 %v732
  %750 = vmatprep.subr.mxu0 0.0
  %751 = vmatpush1.msra.mxu0 %v733
  %752 = vmatprep.subr.mxu0 0.0
  %753 = vmatpush1.msra.mxu0 %v734
  %754 = vmatprep.subr.mxu0 0.0
  %755 = vmatpush1.msra.mxu0 %v735
  %756 = vmatprep.subr.mxu0 0.0
  %757 = vmatpush1.msra.mxu0 %v736
  %758 = vmatprep.subr.mxu0 0.0
  %759 = vmatpush1.msra.mxu0 %v737
  %760 = vmatprep.subr.mxu0 0.0
  %761 = vmatpush1.msra.mxu0 %v738
  %762 = vmatprep.subr.mxu0 0.0
  %763 = vmatpush1.msra.mxu0 %v739
  %764 = vmatprep.subr.mxu0 0.0
  %765 = vmatpush1.msra.mxu0 %v740
  %766 = vmatprep.subr.mxu0 0.0
  %767 = vmatpush1.msra.mxu0 %v741
  %768 = vmatprep.subr.mxu0 0.0
  %769 = vmatpush1.msra.mxu0 %v742
  %770 = vmatprep.subr.mxu0 0.0
  %771 = vmatpush1.msra.mxu0 %v743
  %772 = vmatprep.subr.mxu0 0.0
  %773 = vmatpush1.msra.mxu0 %v744
  %774 = vmatprep.subr.mxu0 0.0
  %775 = vmatpush1.msra.mxu0 %v745
  %776 = vmatprep.subr.mxu0 0.0
  %777 = vmatpush1.msra.mxu0 %v746
  %778 = vmatprep.subr.mxu0 0.0
  %779 = vmatpush1.msra.mxu0 %v747
  %780 = vmatprep.subr.mxu0 0.0
  %781 = vmatpush1.msra.mxu0 0.0
  %782 = vmatprep.subr.mxu0 0.0
  %783 = vmatpush1.msra.mxu0 0.0
  %784 = vmatprep.subr.mxu0 0.0
  %785 = vmatpush1.msra.mxu0 0.0
  %786 = vmatprep.subr.mxu0 0.0
  %787 = vmatpush1.msra.mxu0 0.0
  %788 = vmatprep.subr.mxu0 0.0
  %789 = vmatpush1.msra.mxu0 0.0
  %790 = vmatprep.subr.mxu0 0.0
  %791 = vmatpush1.msra.mxu0 0.0
  %792 = vmatprep.subr.mxu0 0.0
  %793 = vmatpush1.msra.mxu0 0.0
  %794 = vmatprep.subr.mxu0 0.0
  %795 = vmatpush1.msra.mxu0 0.0
  %796 = vmatprep.subr.mxu0 0.0
  %797 = vmatpush1.msra.mxu0 0.0
  %798 = vmatprep.subr.mxu0 0.0
  %799 = vmatpush1.msra.mxu0 0.0
  %800 = vmatprep.subr.mxu0 0.0
  %801 = vmatpush1.msra.mxu0 0.0
  %802 = vmatprep.subr.mxu0 0.0
  %803 = vmatpush1.msra.mxu0 0.0
  %804 = vmatprep.subr.mxu0 0.0
  %805 = vmatpush1.msra.mxu0 0.0
  %806 = vmatprep.subr.mxu0 0.0
  %807 = vmatpush1.msra.mxu0 0.0
  %808 = vmatprep.subr.mxu0 0.0
  %809 = vmatpush1.msra.mxu0 0.0
  %810 = vmatprep.subr.mxu0 0.0
  %811 = vmatpush1.msra.mxu0 0.0
  %812 = vmatprep.mubr.f32.mxu0 0.0
  %813 = vmatmul.mubr.f32.gmra.mrb[0].mxu0 1.0
  %v814 = vpop.f32.mrb[0].mxu0
  %v815 = vadd.f32 0.0, %v814
  %v816 = vpop.f32.mrb[0].mxu0
  %817 = vdwg.mxu0
  %v818 = vmul.f32 %v729, 0.0078125
  %v819 = vmul.f32 %v815, 0.0078125
  %v820 = vmul.f32 %v818, %v818
  %v821 = vsub.f32 %v819, %v820
  %v822 = vmax.f32 %v821, 0.0
  %v823 = vadd.f32 %v822, 1e-05
  %v824 = vrsqrt.pop %v823
  %v825 = vlaneseq
  %v826 = vshrl.u32 %v825, 7
  %v827 = vsub.s32 0, %v826
  %v828 = vrot.slane %v818, %v827
  %v829 = vsub.f32 %v598, %v828
  %v830 = vsub.f32 %v601, %v828
  %v831 = vsub.f32 %v606, %v828
  %v832 = vsub.f32 %v609, %v828
  %v833 = vsub.f32 %v614, %v828
  %v834 = vsub.f32 %v617, %v828
  %v835 = vsub.f32 %v622, %v828
  %v836 = vsub.f32 %v625, %v828
  %v837 = vsub.f32 %v630, %v828
  %v838 = vsub.f32 %v633, %v828
  %v839 = vsub.f32 %v638, %v828
  %v840 = vsub.f32 %v641, %v828
  %v841 = vsub.f32 %v646, %v828
  %v842 = vsub.f32 %v649, %v828
  %v843 = vsub.f32 %v654, %v828
  %v844 = vsub.f32 %v657, %v828
  %v845 = vmul.f32 %v824, %v660
  %v846 = vlaneseq
  %v847 = vshrl.u32 %v846, 7
  %v848 = vsub.s32 0, %v847
  %v849 = vrot.slane %v845, %v848
  %v850 = vmul.f32 %v829, %v849
  %v851 = vmul.f32 %v830, %v849
  %v852 = vmul.f32 %v831, %v849
  %v853 = vmul.f32 %v832, %v849
  %v854 = vmul.f32 %v833, %v849
  %v855 = vmul.f32 %v834, %v849
  %v856 = vmul.f32 %v835, %v849
  %v857 = vmul.f32 %v836, %v849
  %v858 = vmul.f32 %v837, %v849
  %v859 = vmul.f32 %v838, %v849
  %v860 = vmul.f32 %v839, %v849
  %v861 = vmul.f32 %v840, %v849
  %v862 = vmul.f32 %v841, %v849
  %v863 = vmul.f32 %v842, %v849
  %v864 = vmul.f32 %v843, %v849
  %v865 = vmul.f32 %v844, %v849
  %v867 = vlaneseq
  %v868 = vshrl.u32 %v867, 7
  %v869 = vsub.s32 0, %v868
  %v870 = vrot.slane %v661, %v869
  %v872 = vadd.f32 %v850, %v870
  %v873 = vadd.f32 %v851, %v870
  %v874 = vadd.f32 %v852, %v870
  %v875 = vadd.f32 %v853, %v870
  %v876 = vadd.f32 %v854, %v870
  %v877 = vadd.f32 %v855, %v870
  %v878 = vadd.f32 %v856, %v870
  %v879 = vadd.f32 %v857, %v870
  %v880 = vadd.f32 %v858, %v870
  %v881 = vadd.f32 %v859, %v870
  %v882 = vadd.f32 %v860, %v870
  %v883 = vadd.f32 %v861, %v870
  %v884 = vadd.f32 %v862, %v870
  %v885 = vadd.f32 %v863, %v870
  %v886 = vadd.f32 %v864, %v870
  %v887 = vadd.f32 %v865, %v870
  %vm888 = vcmp.ge.f32.partialorder %v872, 0.0
  %vm889 = vcmp.ge.f32.partialorder %v873, 0.0
  %vm890 = vcmp.ge.f32.partialorder %v874, 0.0
  %vm891 = vcmp.ge.f32.partialorder %v875, 0.0
  %vm892 = vcmp.ge.f32.partialorder %v876, 0.0
  %vm893 = vcmp.ge.f32.partialorder %v877, 0.0
  %vm894 = vcmp.ge.f32.partialorder %v878, 0.0
  %vm895 = vcmp.ge.f32.partialorder %v879, 0.0
  %vm896 = vcmp.ge.f32.partialorder %v880, 0.0
  %vm897 = vcmp.ge.f32.partialorder %v881, 0.0
  %vm898 = vcmp.ge.f32.partialorder %v882, 0.0
  %vm899 = vcmp.ge.f32.partialorder %v883, 0.0
  %vm900 = vcmp.ge.f32.partialorder %v884, 0.0
  %vm901 = vcmp.ge.f32.partialorder %v885, 0.0
  %vm902 = vcmp.ge.f32.partialorder %v886, 0.0
  %vm903 = vcmp.ge.f32.partialorder %v887, 0.0
  %v904 = vmul.f32 %v872, 0.2
  %v905 = vmul.f32 %v873, 0.2
  %v906 = vmul.f32 %v874, 0.2
  %v907 = vmul.f32 %v875, 0.2
  %v908 = vmul.f32 %v876, 0.2
  %v909 = vmul.f32 %v877, 0.2
  %v910 = vmul.f32 %v878, 0.2
  %v911 = vmul.f32 %v879, 0.2
  %v912 = vmul.f32 %v880, 0.2
  %v913 = vmul.f32 %v881, 0.2
  %v914 = vmul.f32 %v882, 0.2
  %v915 = vmul.f32 %v883, 0.2
  %v916 = vmul.f32 %v884, 0.2
  %v917 = vmul.f32 %v885, 0.2
  %v918 = vmul.f32 %v886, 0.2
  %v919 = vmul.f32 %v887, 0.2
  %v920 = vsel %vm888, %v872, %v904
  %v921 = vsel %vm889, %v873, %v905
  %v922 = vsel %vm890, %v874, %v906
  %v923 = vsel %vm891, %v875, %v907
  %v924 = vsel %vm892, %v876, %v908
  %v925 = vsel %vm893, %v877, %v909
  %v926 = vsel %vm894, %v878, %v910
  %v927 = vsel %vm895, %v879, %v911
  %v928 = vsel %vm896, %v880, %v912
  %v929 = vsel %vm897, %v881, %v913
  %v930 = vsel %vm898, %v882, %v914
  %v931 = vsel %vm899, %v883, %v915
  %v932 = vsel %vm900, %v884, %v916
  %v933 = vsel %vm901, %v885, %v917
  %v934 = vsel %vm902, %v886, %v918
  %v935 = vsel %vm903, %v887, %v919
  %v936 = vpack.c.bf16 %v921, %v920
  %v937 = vpack.c.bf16 %v923, %v922
  %v938 = vpack.c.bf16 %v925, %v924
  %v939 = vpack.c.bf16 %v927, %v926
  %v940 = vpack.c.bf16 %v929, %v928
  %v941 = vpack.c.bf16 %v931, %v930
  %v942 = vpack.c.bf16 %v933, %v932
  %v943 = vpack.c.bf16 %v935, %v934
  %v952 = vunpack.c.l.b16 %v936
  %v953 = vunpack.c.h.b16 %v936
  %v954 = vunpack.c.l.b16 %v937
  %v955 = vunpack.c.h.b16 %v937
  %v956 = vunpack.c.l.b16 %v938
  %v957 = vunpack.c.h.b16 %v938
  %v958 = vunpack.c.l.b16 %v939
  %v959 = vunpack.c.h.b16 %v939
  %v960 = vunpack.c.l.b16 %v940
  %v961 = vunpack.c.h.b16 %v940
  %v962 = vunpack.c.l.b16 %v941
  %v963 = vunpack.c.h.b16 %v941
  %v964 = vunpack.c.l.b16 %v942
  %v965 = vunpack.c.h.b16 %v942
  %v966 = vunpack.c.l.b16 %v943
  %v967 = vunpack.c.h.b16 %v943
  %v968 = vpack.c.b16 %v952, %v952
  %v969 = vpack.c.b16 %v953, %v953
  %v970 = vpack.c.b16 %v954, %v954
  %v971 = vpack.c.b16 %v955, %v955
  %v972 = vpack.c.b16 %v956, %v956
  %v973 = vpack.c.b16 %v957, %v957
  %v974 = vpack.c.b16 %v958, %v958
  %v975 = vpack.c.b16 %v959, %v959
  %v976 = vpack.c.b16 %v960, %v960
  %v977 = vpack.c.b16 %v961, %v961
  %v978 = vpack.c.b16 %v962, %v962
  %v979 = vpack.c.b16 %v963, %v963
  %v980 = vpack.c.b16 %v964, %v964
  %v981 = vpack.c.b16 %v965, %v965
  %v982 = vpack.c.b16 %v966, %v966
  %v983 = vpack.c.b16 %v967, %v967
  %1000 = vst [vmem:[%s4] sm:$0xf] %v968
  %1001 = vst [vmem:[%s4 + $0x4] sm:$0xf] %v969
  %1002 = vst [vmem:[%s4 + $0x8] sm:$0xf] %v970
  %1003 = vst [vmem:[%s4 + $0xc] sm:$0xf] %v971
  %1004 = vst [vmem:[%s4 + $0x10] sm:$0xf] %v972
  %1005 = vst [vmem:[%s4 + $0x14] sm:$0xf] %v973
  %1006 = vst [vmem:[%s4 + $0x18] sm:$0xf] %v974
  %1007 = vst [vmem:[%s4 + $0x1c] sm:$0xf] %v975
  %1008 = vst [vmem:[%s4 + $0x20] sm:$0xf] %v976
  %1009 = vst [vmem:[%s4 + $0x24] sm:$0xf] %v977
  %1010 = vst [vmem:[%s4 + $0x28] sm:$0xf] %v978
  %1011 = vst [vmem:[%s4 + $0x2c] sm:$0xf] %v979
  %1012 = vst [vmem:[%s4 + $0x30] sm:$0xf] %v980
  %1013 = vst [vmem:[%s4 + $0x34] sm:$0xf] %v981
  %1014 = vst [vmem:[%s4 + $0x38] sm:$0xf] %v982
  %1015 = vst [vmem:[%s4 + $0x3c] sm:$0xf] %v983
  // Predicated region
  $region18: #{encoder_v3_pallas.6} parent=0 // pred_check
    _
  $region19: #{encoder_v3_pallas.6} parent=0 // pred_check_branch
    %1017 = sbr.rel (0) target = $region21
  $region20: #{encoder_v3_pallas.6} parent=0 // pred_region
    _
  $region21: #{encoder_v3_pallas.6} parent=0 // pred_fallthru
    _
  // Predicated region
  $region22: #{encoder_v3_pallas.6} parent=0 // pred_check
    _
  $region23: #{encoder_v3_pallas.6} parent=0 // pred_check_branch
    %1019 = sbr.rel (0) target = $region25
  $region24: #{encoder_v3_pallas.6} parent=0 // pred_region
    _
  $region25: #{encoder_v3_pallas.6} parent=0 // pred_fallthru
    _

// kernel: encoder_v3_pallas.7
$region0: #{encoder_v3_pallas.7}
  #allocation0 [shape = 'u32[]', space=smem, size = 0x4, offset = 0x4, fixed_abs, tag = 'smem constant byte address 0x4 - core index']
  #allocation1 [shape = 'u32[144,128]{1,0:T(1,128)}', space=vmem, size = 0x12000, scoped, tag = 'internal scratch']
  #allocation2 [shape = 'bf16[32,128]{1,0:T(16,128)(2,1)}', space=vmem, size = 0x2000, scoped, tag = 'scratch operand']
  %s0 = inlined_call_operand.vmem [shape: bf16[32,1024], index: 0, kind: input, shape index: {}]
  %s1 = inlined_call_operand.vmem [shape: bf16[1024,128], index: 1, kind: input, shape index: {}]
  %s2 = inlined_call_operand.vmem [shape: f32[1,128], index: 2, kind: input, shape index: {}]
  %s3 = inlined_call_operand.vmem [shape: f32[1,128], index: 3, kind: input, shape index: {}]
  %s4 = inlined_call_operand.vmem [shape: bf16[16,128,128], index: 4, kind: input, shape index: {}]
  %s5 = inlined_call_operand.vmem [shape: f32[1,128], index: 5, kind: input, shape index: {}]
  %s6 = inlined_call_operand.hbm [shape: f32[2,128], index: 6, kind: output, shape index: {}]
  %s7 = sld [smem:[#allocation0]]
  $region34: #{encoder_v3_pallas.7} parent=0
    _
  %s9 = ssub.s32 1, %s7
  %s10 = scalar_select 0, %s9, %s7
  $region1: #{encoder_v3_pallas.7} parent=0
    #allocation3 [shape = 'u8[1024]{0}', space=vmem, size = 0x400, scoped, tag = 'output window, operand 0, single buffered']
    #allocation4 [shape = 's32[1]{0}', space=sflag, size = 0x4, scoped, tag = 'scoped memory for encoder_v3_pallas.7']
    %11 = vsyncpa [#allocation4], 0
    // Predicated region
    $region2: #{encoder_v3_pallas.7} parent=1 // pred_check
      _
    $region3: #{encoder_v3_pallas.7} parent=1 // pred_check_branch
      %13 = sbr.rel (0) target = $region5
    $region4: #{encoder_v3_pallas.7} parent=1 // pred_region
      _
    $region5: #{encoder_v3_pallas.7} parent=1 // pred_fallthru
      _
    // Predicated region
    $region6: #{encoder_v3_pallas.7} parent=1 // pred_check
      _
    $region7: #{encoder_v3_pallas.7} parent=1 // pred_check_branch
      %15 = sbr.rel (0) target = $region9
    $region8: #{encoder_v3_pallas.7} parent=1 // pred_region
      _
    $region9: #{encoder_v3_pallas.7} parent=1 // pred_fallthru
      _
    // Predicated region
    $region10: #{encoder_v3_pallas.7} parent=1 // pred_check
      _
    $region11: #{encoder_v3_pallas.7} parent=1 // pred_check_branch
      %17 = sbr.rel (0) target = $region13
    $region12: #{encoder_v3_pallas.7} parent=1 // pred_region
      _
    $region13: #{encoder_v3_pallas.7} parent=1 // pred_fallthru
      _
    // Predicated region
    $region14: #{encoder_v3_pallas.7} parent=1 // pred_check
      _
    $region15: #{encoder_v3_pallas.7} parent=1 // pred_check_branch
      %19 = sbr.rel (0) target = $region17
    $region16: #{encoder_v3_pallas.7} parent=1 // pred_region
      _
    $region17: #{encoder_v3_pallas.7} parent=1 // pred_fallthru
      _
    // Predicated region
    $region18: #{encoder_v3_pallas.7} parent=1 // pred_check
      _
    $region19: #{encoder_v3_pallas.7} parent=1 // pred_check_branch
      %21 = sbr.rel (0) target = $region21
    $region20: #{encoder_v3_pallas.7} parent=1 // pred_region
      _
    $region21: #{encoder_v3_pallas.7} parent=1 // pred_fallthru
      _
    // Predicated region
    $region22: #{encoder_v3_pallas.7} parent=1 // pred_check
      _
    $region23: #{encoder_v3_pallas.7} parent=1 // pred_check_branch
      %23 = sbr.rel (0) target = $region25
    $region24: #{encoder_v3_pallas.7} parent=1 // pred_region
      _
    $region25: #{encoder_v3_pallas.7} parent=1 // pred_fallthru
      _
    %v25 = vld [vmem:[%s0] sm:$0xff]
    %v26 = vld [vmem:[%s0 + $0x8] sm:$0xff]
    %v27 = vld [vmem:[%s0 + $0x10] sm:$0xff]
    %v28 = vld [vmem:[%s0 + $0x18] sm:$0xff]
    %v29 = vld [vmem:[%s0 + $0x20] sm:$0xff]
    %v30 = vld [vmem:[%s0 + $0x28] sm:$0xff]
    %v31 = vld [vmem:[%s0 + $0x30] sm:$0xff]
    %v32 = vld [vmem:[%s0 + $0x38] sm:$0xff]
    %v33 = vld [vmem:[%s0 + $0x40] sm:$0xff]
    %v34 = vld [vmem:[%s0 + $0x48] sm:$0xff]
    %v35 = vld [vmem:[%s0 + $0x50] sm:$0xff]
    %v36 = vld [vmem:[%s0 + $0x58] sm:$0xff]
    %v37 = vld [vmem:[%s0 + $0x60] sm:$0xff]
    %v38 = vld [vmem:[%s0 + $0x68] sm:$0xff]
    %v39 = vld [vmem:[%s0 + $0x70] sm:$0xff]
    %v40 = vld [vmem:[%s0 + $0x78] sm:$0xff]
    %v41 = vld [vmem:[%s1] sm:$0xf]
    %v42 = vld [vmem:[%s1 + $0x4] sm:$0xf]
    %v43 = vld [vmem:[%s1 + $0x8] sm:$0xf]
    %v44 = vld [vmem:[%s1 + $0xc] sm:$0xf]
    %v45 = vld [vmem:[%s1 + $0x10] sm:$0xf]
    %v46 = vld [vmem:[%s1 + $0x14] sm:$0xf]
    %v47 = vld [vmem:[%s1 + $0x18] sm:$0xf]
    %v48 = vld [vmem:[%s1 + $0x1c] sm:$0xf]
    %v49 = vld [vmem:[%s1 + $0x20] sm:$0xf]
    %v50 = vld [vmem:[%s1 + $0x24] sm:$0xf]
    %v51 = vld [vmem:[%s1 + $0x28] sm:$0xf]
    %v52 = vld [vmem:[%s1 + $0x2c] sm:$0xf]
    %v53 = vld [vmem:[%s1 + $0x30] sm:$0xf]
    %v54 = vld [vmem:[%s1 + $0x34] sm:$0xf]
    %v55 = vld [vmem:[%s1 + $0x38] sm:$0xf]
    %v56 = vld [vmem:[%s1 + $0x3c] sm:$0xf]
    %v57 = vld [vmem:[%s1 + $0x40] sm:$0xf]
    %v58 = vld [vmem:[%s1 + $0x44] sm:$0xf]
    %v59 = vld [vmem:[%s1 + $0x48] sm:$0xf]
    %v60 = vld [vmem:[%s1 + $0x4c] sm:$0xf]
    %v61 = vld [vmem:[%s1 + $0x50] sm:$0xf]
    %v62 = vld [vmem:[%s1 + $0x54] sm:$0xf]
    %v63 = vld [vmem:[%s1 + $0x58] sm:$0xf]
    %v64 = vld [vmem:[%s1 + $0x5c] sm:$0xf]
    %v65 = vld [vmem:[%s1 + $0x60] sm:$0xf]
    %v66 = vld [vmem:[%s1 + $0x64] sm:$0xf]
    %v67 = vld [vmem:[%s1 + $0x68] sm:$0xf]
    %v68 = vld [vmem:[%s1 + $0x6c] sm:$0xf]
    %v69 = vld [vmem:[%s1 + $0x70] sm:$0xf]
    %v70 = vld [vmem:[%s1 + $0x74] sm:$0xf]
    %v71 = vld [vmem:[%s1 + $0x78] sm:$0xf]
    %v72 = vld [vmem:[%s1 + $0x7c] sm:$0xf]
    %v73 = vld [vmem:[%s1 + $0x80] sm:$0xf]
    %v74 = vld [vmem:[%s1 + $0x84] sm:$0xf]
    %v75 = vld [vmem:[%s1 + $0x88] sm:$0xf]
    %v76 = vld [vmem:[%s1 + $0x8c] sm:$0xf]
    %v77 = vld [vmem:[%s1 + $0x90] sm:$0xf]
    %v78 = vld [vmem:[%s1 + $0x94] sm:$0xf]
    %v79 = vld [vmem:[%s1 + $0x98] sm:$0xf]
    %v80 = vld [vmem:[%s1 + $0x9c] sm:$0xf]
    %v81 = vld [vmem:[%s1 + $0xa0] sm:$0xf]
    %v82 = vld [vmem:[%s1 + $0xa4] sm:$0xf]
    %v83 = vld [vmem:[%s1 + $0xa8] sm:$0xf]
    %v84 = vld [vmem:[%s1 + $0xac] sm:$0xf]
    %v85 = vld [vmem:[%s1 + $0xb0] sm:$0xf]
    %v86 = vld [vmem:[%s1 + $0xb4] sm:$0xf]
    %v87 = vld [vmem:[%s1 + $0xb8] sm:$0xf]
    %v88 = vld [vmem:[%s1 + $0xbc] sm:$0xf]
    %v89 = vld [vmem:[%s1 + $0xc0] sm:$0xf]
    %v90 = vld [vmem:[%s1 + $0xc4] sm:$0xf]
    %v91 = vld [vmem:[%s1 + $0xc8] sm:$0xf]
    %v92 = vld [vmem:[%s1 + $0xcc] sm:$0xf]
    %v93 = vld [vmem:[%s1 + $0xd0] sm:$0xf]
    %v94 = vld [vmem:[%s1 + $0xd4] sm:$0xf]
    %v95 = vld [vmem:[%s1 + $0xd8] sm:$0xf]
    %v96 = vld [vmem:[%s1 + $0xdc] sm:$0xf]
    %v97 = vld [vmem:[%s1 + $0xe0] sm:$0xf]
    %v98 = vld [vmem:[%s1 + $0xe4] sm:$0xf]
    %v99 = vld [vmem:[%s1 + $0xe8] sm:$0xf]
    %v100 = vld [vmem:[%s1 + $0xec] sm:$0xf]
    %v101 = vld [vmem:[%s1 + $0xf0] sm:$0xf]
    %v102 = vld [vmem:[%s1 + $0xf4] sm:$0xf]
    %v103 = vld [vmem:[%s1 + $0xf8] sm:$0xf]
    %v104 = vld [vmem:[%s1 + $0xfc] sm:$0xf]
    %v105 = vld [vmem:[%s1 + $0x100] sm:$0xf]
    %v106 = vld [vmem:[%s1 + $0x104] sm:$0xf]
    %v107 = vld [vmem:[%s1 + $0x108] sm:$0xf]
    %v108 = vld [vmem:[%s1 + $0x10c] sm:$0xf]
    %v109 = vld [vmem:[%s1 + $0x110] sm:$0xf]
    %v110 = vld [vmem:[%s1 + $0x114] sm:$0xf]
    %v111 = vld [vmem:[%s1 + $0x118] sm:$0xf]
    %v112 = vld [vmem:[%s1 + $0x11c] sm:$0xf]
    %v113 = vld [vmem:[%s1 + $0x120] sm:$0xf]
    %v114 = vld [vmem:[%s1 + $0x124] sm:$0xf]
    %v115 = vld [vmem:[%s1 + $0x128] sm:$0xf]
    %v116 = vld [vmem:[%s1 + $0x12c] sm:$0xf]
    %v117 = vld [vmem:[%s1 + $0x130] sm:$0xf]
    %v118 = vld [vmem:[%s1 + $0x134] sm:$0xf]
    %v119 = vld [vmem:[%s1 + $0x138] sm:$0xf]
    %v120 = vld [vmem:[%s1 + $0x13c] sm:$0xf]
    %v121 = vld [vmem:[%s1 + $0x140] sm:$0xf]
    %v122 = vld [vmem:[%s1 + $0x144] sm:$0xf]
    %v123 = vld [vmem:[%s1 + $0x148] sm:$0xf]
    %v124 = vld [vmem:[%s1 + $0x14c] sm:$0xf]
    %v125 = vld [vmem:[%s1 + $0x150] sm:$0xf]
    %v126 = vld [vmem:[%s1 + $0x154] sm:$0xf]
    %v127 = vld [vmem:[%s1 + $0x158] sm:$0xf]
    %v128 = vld [vmem:[%s1 + $0x15c] sm:$0xf]
    %v129 = vld [vmem:[%s1 + $0x160] sm:$0xf]
    %v130 = vld [vmem:[%s1 + $0x164] sm:$0xf]
    %v131 = vld [vmem:[%s1 + $0x168] sm:$0xf]
    %v132 = vld [vmem:[%s1 + $0x16c] sm:$0xf]
    %v133 = vld [vmem:[%s1 + $0x170] sm:$0xf]
    %v134 = vld [vmem:[%s1 + $0x174] sm:$0xf]
    %v135 = vld [vmem:[%s1 + $0x178] sm:$0xf]
    %v136 = vld [vmem:[%s1 + $0x17c] sm:$0xf]
    %v137 = vld [vmem:[%s1 + $0x180] sm:$0xf]
    %v138 = vld [vmem:[%s1 + $0x184] sm:$0xf]
    %v139 = vld [vmem:[%s1 + $0x188] sm:$0xf]
    %v140 = vld [vmem:[%s1 + $0x18c] sm:$0xf]
    %v141 = vld [vmem:[%s1 + $0x190] sm:$0xf]
    %v142 = vld [vmem:[%s1 + $0x194] sm:$0xf]
    %v143 = vld [vmem:[%s1 + $0x198] sm:$0xf]
    %v144 = vld [vmem:[%s1 + $0x19c] sm:$0xf]
    %v145 = vld [vmem:[%s1 + $0x1a0] sm:$0xf]
    %v146 = vld [vmem:[%s1 + $0x1a4] sm:$0xf]
    %v147 = vld [vmem:[%s1 + $0x1a8] sm:$0xf]
    %v148 = vld [vmem:[%s1 + $0x1ac] sm:$0xf]
    %v149 = vld [vmem:[%s1 + $0x1b0] sm:$0xf]
    %v150 = vld [vmem:[%s1 + $0x1b4] sm:$0xf]
    %v151 = vld [vmem:[%s1 + $0x1b8] sm:$0xf]
    %v152 = vld [vmem:[%s1 + $0x1bc] sm:$0xf]
    %v153 = vld [vmem:[%s1 + $0x1c0] sm:$0xf]
    %v154 = vld [vmem:[%s1 + $0x1c4] sm:$0xf]
    %v155 = vld [vmem:[%s1 + $0x1c8] sm:$0xf]
    %v156 = vld [vmem:[%s1 + $0x1cc] sm:$0xf]
    %v157 = vld [vmem:[%s1 + $0x1d0] sm:$0xf]
    %v158 = vld [vmem:[%s1 + $0x1d4] sm:$0xf]
    %v159 = vld [vmem:[%s1 + $0x1d8] sm:$0xf]
    %v160 = vld [vmem:[%s1 + $0x1dc] sm:$0xf]
    %v161 = vld [vmem:[%s1 + $0x1e0] sm:$0xf]
    %v162 = vld [vmem:[%s1 + $0x1e4] sm:$0xf]
    %v163 = vld [vmem:[%s1 + $0x1e8] sm:$0xf]
    %v164 = vld [vmem:[%s1 + $0x1ec] sm:$0xf]
    %v165 = vld [vmem:[%s1 + $0x1f0] sm:$0xf]
    %v166 = vld [vmem:[%s1 + $0x1f4] sm:$0xf]
    %v167 = vld [vmem:[%s1 + $0x1f8] sm:$0xf]
    %v168 = vld [vmem:[%s1 + $0x1fc] sm:$0xf]
    %v185 = vunpack.c.l.b16 %v25
    %v186 = vunpack.c.h.b16 %v25
    %v187 = vunpack.c.l.b16 %v26
    %v188 = vunpack.c.h.b16 %v26
    %v189 = vunpack.c.l.b16 %v27
    %v190 = vunpack.c.h.b16 %v27
    %v191 = vunpack.c.l.b16 %v28
    %v192 = vunpack.c.h.b16 %v28
    %v193 = vunpack.c.l.b16 %v29
    %v194 = vunpack.c.h.b16 %v29
    %v195 = vunpack.c.l.b16 %v30
    %v196 = vunpack.c.h.b16 %v30
    %v197 = vunpack.c.l.b16 %v31
    %v198 = vunpack.c.h.b16 %v31
    %v199 = vunpack.c.l.b16 %v32
    %v200 = vunpack.c.h.b16 %v32
    %v201 = vunpack.c.l.b16 %v33
    %v202 = vunpack.c.h.b16 %v33
    %v203 = vunpack.c.l.b16 %v34
    %v204 = vunpack.c.h.b16 %v34
    %v205 = vunpack.c.l.b16 %v35
    %v206 = vunpack.c.h.b16 %v35
    %v207 = vunpack.c.l.b16 %v36
    %v208 = vunpack.c.h.b16 %v36
    %v209 = vunpack.c.l.b16 %v37
    %v210 = vunpack.c.h.b16 %v37
    %v211 = vunpack.c.l.b16 %v38
    %v212 = vunpack.c.h.b16 %v38
    %v213 = vunpack.c.l.b16 %v39
    %v214 = vunpack.c.h.b16 %v39
    %v215 = vunpack.c.l.b16 %v40
    %v216 = vunpack.c.h.b16 %v40
    %v217 = vpack.c.b16 %v193, %v185
    %v218 = vpack.c.b16 %v194, %v186
    %v219 = vpack.c.b16 %v195, %v187
    %v220 = vpack.c.b16 %v196, %v188
    %v221 = vpack.c.b16 %v197, %v189
    %v222 = vpack.c.b16 %v198, %v190
    %v223 = vpack.c.b16 %v199, %v191
    %v224 = vpack.c.b16 %v200, %v192
    %v225 = vpack.c.b16 %v209, %v201
    %v226 = vpack.c.b16 %v210, %v202
    %v227 = vpack.c.b16 %v211, %v203
    %v228 = vpack.c.b16 %v212, %v204
    %v229 = vpack.c.b16 %v213, %v205
    %v230 = vpack.c.b16 %v214, %v206
    %v231 = vpack.c.b16 %v215, %v207
    %v232 = vpack.c.b16 %v216, %v208
    %v377 = vunpack.c.l.b16 %v41
    %v378 = vunpack.c.l.b16 %v42
    %v379 = vunpack.c.l.b16 %v43
    %v380 = vunpack.c.l.b16 %v44
    %v381 = vunpack.c.l.b16 %v45
    %v382 = vunpack.c.l.b16 %v46
    %v383 = vunpack.c.l.b16 %v47
    %v384 = vunpack.c.l.b16 %v48
    %v385 = vunpack.c.l.b16 %v49
    %v386 = vunpack.c.l.b16 %v50
    %v387 = vunpack.c.l.b16 %v51
    %v388 = vunpack.c.l.b16 %v52
    %v389 = vunpack.c.l.b16 %v53
    %v390 = vunpack.c.l.b16 %v54
    %v391 = vunpack.c.l.b16 %v55
    %v392 = vunpack.c.l.b16 %v56
    %v393 = vunpack.c.l.b16 %v57
    %v394 = vunpack.c.l.b16 %v58
    %v395 = vunpack.c.l.b16 %v59
    %v396 = vunpack.c.l.b16 %v60
    %v397 = vunpack.c.l.b16 %v61
    %v398 = vunpack.c.l.b16 %v62
    %v399 = vunpack.c.l.b16 %v63
    %v400 = vunpack.c.l.b16 %v64
    %v401 = vunpack.c.l.b16 %v65
    %v402 = vunpack.c.l.b16 %v66
    %v403 = vunpack.c.l.b16 %v67
    %v404 = vunpack.c.l.b16 %v68
    %v405 = vunpack.c.l.b16 %v69
    %v406 = vunpack.c.l.b16 %v70
    %v407 = vunpack.c.l.b16 %v71
    %v408 = vunpack.c.l.b16 %v72
    %v409 = vunpack.c.l.b16 %v73
    %v410 = vunpack.c.l.b16 %v74
    %v411 = vunpack.c.l.b16 %v75
    %v412 = vunpack.c.l.b16 %v76
    %v413 = vunpack.c.l.b16 %v77
    %v414 = vunpack.c.l.b16 %v78
    %v415 = vunpack.c.l.b16 %v79
    %v416 = vunpack.c.l.b16 %v80
    %v417 = vunpack.c.l.b16 %v81
    %v418 = vunpack.c.l.b16 %v82
    %v419 = vunpack.c.l.b16 %v83
    %v420 = vunpack.c.l.b16 %v84
    %v421 = vunpack.c.l.b16 %v85
    %v422 = vunpack.c.l.b16 %v86
    %v423 = vunpack.c.l.b16 %v87
    %v424 = vunpack.c.l.b16 %v88
    %v425 = vunpack.c.l.b16 %v89
    %v426 = vunpack.c.l.b16 %v90
    %v427 = vunpack.c.l.b16 %v91
    %v428 = vunpack.c.l.b16 %v92
    %v429 = vunpack.c.l.b16 %v93
    %v430 = vunpack.c.l.b16 %v94
    %v431 = vunpack.c.l.b16 %v95
    %v432 = vunpack.c.l.b16 %v96
    %v433 = vunpack.c.l.b16 %v97
    %v434 = vunpack.c.l.b16 %v98
    %v435 = vunpack.c.l.b16 %v99
    %v436 = vunpack.c.l.b16 %v100
    %v437 = vunpack.c.l.b16 %v101
    %v438 = vunpack.c.l.b16 %v102
    %v439 = vunpack.c.l.b16 %v103
    %v440 = vunpack.c.l.b16 %v104
    %v441 = vunpack.c.l.b16 %v105
    %v442 = vunpack.c.l.b16 %v106
    %v443 = vunpack.c.l.b16 %v107
    %v444 = vunpack.c.l.b16 %v108
    %v445 = vunpack.c.l.b16 %v109
    %v446 = vunpack.c.l.b16 %v110
    %v447 = vunpack.c.l.b16 %v111
    %v448 = vunpack.c.l.b16 %v112
    %v449 = vunpack.c.l.b16 %v113
    %v450 = vunpack.c.l.b16 %v114
    %v451 = vunpack.c.l.b16 %v115
    %v452 = vunpack.c.l.b16 %v116
    %v453 = vunpack.c.l.b16 %v117
    %v454 = vunpack.c.l.b16 %v118
    %v455 = vunpack.c.l.b16 %v119
    %v456 = vunpack.c.l.b16 %v120
    %v457 = vunpack.c.l.b16 %v121
    %v458 = vunpack.c.l.b16 %v122
    %v459 = vunpack.c.l.b16 %v123
    %v460 = vunpack.c.l.b16 %v124
    %v461 = vunpack.c.l.b16 %v125
    %v462 = vunpack.c.l.b16 %v126
    %v463 = vunpack.c.l.b16 %v127
    %v464 = vunpack.c.l.b16 %v128
    %v465 = vunpack.c.l.b16 %v129
    %v466 = vunpack.c.l.b16 %v130
    %v467 = vunpack.c.l.b16 %v131
    %v468 = vunpack.c.l.b16 %v132
    %v469 = vunpack.c.l.b16 %v133
    %v470 = vunpack.c.l.b16 %v134
    %v471 = vunpack.c.l.b16 %v135
    %v472 = vunpack.c.l.b16 %v136
    %v473 = vunpack.c.l.b16 %v137
    %v474 = vunpack.c.l.b16 %v138
    %v475 = vunpack.c.l.b16 %v139
    %v476 = vunpack.c.l.b16 %v140
    %v477 = vunpack.c.l.b16 %v141
    %v478 = vunpack.c.l.b16 %v142
    %v479 = vunpack.c.l.b16 %v143
    %v480 = vunpack.c.l.b16 %v144
    %v481 = vunpack.c.l.b16 %v145
    %v482 = vunpack.c.l.b16 %v146
    %v483 = vunpack.c.l.b16 %v147
    %v484 = vunpack.c.l.b16 %v148
    %v485 = vunpack.c.l.b16 %v149
    %v486 = vunpack.c.l.b16 %v150
    %v487 = vunpack.c.l.b16 %v151
    %v488 = vunpack.c.l.b16 %v152
    %v489 = vunpack.c.l.b16 %v153
    %v490 = vunpack.c.l.b16 %v154
    %v491 = vunpack.c.l.b16 %v155
    %v492 = vunpack.c.l.b16 %v156
    %v493 = vunpack.c.l.b16 %v157
    %v494 = vunpack.c.l.b16 %v158
    %v495 = vunpack.c.l.b16 %v159
    %v496 = vunpack.c.l.b16 %v160
    %v497 = vunpack.c.l.b16 %v161
    %v498 = vunpack.c.l.b16 %v162
    %v499 = vunpack.c.l.b16 %v163
    %v500 = vunpack.c.l.b16 %v164
    %v501 = vunpack.c.l.b16 %v165
    %v502 = vunpack.c.l.b16 %v166
    %v503 = vunpack.c.l.b16 %v167
    %v504 = vunpack.c.l.b16 %v168
    %v505 = vpack.c.b16 %v378, %v377
    %v506 = vpack.c.b16 %v380, %v379
    %v507 = vpack.c.b16 %v382, %v381
    %v508 = vpack.c.b16 %v384, %v383
    %v509 = vpack.c.b16 %v386, %v385
    %v510 = vpack.c.b16 %v388, %v387
    %v511 = vpack.c.b16 %v390, %v389
    %v512 = vpack.c.b16 %v392, %v391
    %v513 = vpack.c.b16 %v394, %v393
    %v514 = vpack.c.b16 %v396, %v395
    %v515 = vpack.c.b16 %v398, %v397
    %v516 = vpack.c.b16 %v400, %v399
    %v517 = vpack.c.b16 %v402, %v401
    %v518 = vpack.c.b16 %v404, %v403
    %v519 = vpack.c.b16 %v406, %v405
    %v520 = vpack.c.b16 %v408, %v407
    %v521 = vpack.c.b16 %v410, %v409
    %v522 = vpack.c.b16 %v412, %v411
    %v523 = vpack.c.b16 %v414, %v413
    %v524 = vpack.c.b16 %v416, %v415
    %v525 = vpack.c.b16 %v418, %v417
    %v526 = vpack.c.b16 %v420, %v419
    %v527 = vpack.c.b16 %v422, %v421
    %v528 = vpack.c.b16 %v424, %v423
    %v529 = vpack.c.b16 %v426, %v425
    %v530 = vpack.c.b16 %v428, %v427
    %v531 = vpack.c.b16 %v430, %v429
    %v532 = vpack.c.b16 %v432, %v431
    %v533 = vpack.c.b16 %v434, %v433
    %v534 = vpack.c.b16 %v436, %v435
    %v535 = vpack.c.b16 %v438, %v437
    %v536 = vpack.c.b16 %v440, %v439
    %v537 = vpack.c.b16 %v442, %v441
    %v538 = vpack.c.b16 %v444, %v443
    %v539 = vpack.c.b16 %v446, %v445
    %v540 = vpack.c.b16 %v448, %v447
    %v541 = vpack.c.b16 %v450, %v449
    %v542 = vpack.c.b16 %v452, %v451
    %v543 = vpack.c.b16 %v454, %v453
    %v544 = vpack.c.b16 %v456, %v455
    %v545 = vpack.c.b16 %v458, %v457
    %v546 = vpack.c.b16 %v460, %v459
    %v547 = vpack.c.b16 %v462, %v461
    %v548 = vpack.c.b16 %v464, %v463
    %v549 = vpack.c.b16 %v466, %v465
    %v550 = vpack.c.b16 %v468, %v467
    %v551 = vpack.c.b16 %v470, %v469
    %v552 = vpack.c.b16 %v472, %v471
    %v553 = vpack.c.b16 %v474, %v473
    %v554 = vpack.c.b16 %v476, %v475
    %v555 = vpack.c.b16 %v478, %v477
    %v556 = vpack.c.b16 %v480, %v479
    %v557 = vpack.c.b16 %v482, %v481
    %v558 = vpack.c.b16 %v484, %v483
    %v559 = vpack.c.b16 %v486, %v485
    %v560 = vpack.c.b16 %v488, %v487
    %v561 = vpack.c.b16 %v490, %v489
    %v562 = vpack.c.b16 %v492, %v491
    %v563 = vpack.c.b16 %v494, %v493
    %v564 = vpack.c.b16 %v496, %v495
    %v565 = vpack.c.b16 %v498, %v497
    %v566 = vpack.c.b16 %v500, %v499
    %v567 = vpack.c.b16 %v502, %v501
    %v568 = vpack.c.b16 %v504, %v503
    %633 = vmatprep.subr.bf16.mxu0 0
    %634 = vmatpush1.bf16.msra.mxu0 %v505
    %635 = vmatprep.subr.bf16.mxu0 0
    %636 = vmatpush1.bf16.msra.mxu0 %v506
    %637 = vmatprep.subr.bf16.mxu0 0
    %638 = vmatpush1.bf16.msra.mxu0 %v507
    %639 = vmatprep.subr.bf16.mxu0 0
    %640 = vmatpush1.bf16.msra.mxu0 %v508
    %641 = vmatprep.subr.bf16.mxu0 0
    %642 = vmatpush1.bf16.msra.mxu0 %v509
    %643 = vmatprep.subr.bf16.mxu0 0
    %644 = vmatpush1.bf16.msra.mxu0 %v510
    %645 = vmatprep.subr.bf16.mxu0 0
    %646 = vmatpush1.bf16.msra.mxu0 %v511
    %647 = vmatprep.subr.bf16.mxu0 0
    %648 = vmatpush1.bf16.msra.mxu0 %v512
    %649 = vmatprep.subr.bf16.mxu0 0
    %650 = vmatpush1.bf16.msra.mxu0 %v513
    %651 = vmatprep.subr.bf16.mxu0 0
    %652 = vmatpush1.bf16.msra.mxu0 %v514
    %653 = vmatprep.subr.bf16.mxu0 0
    %654 = vmatpush1.bf16.msra.mxu0 %v515
    %655 = vmatprep.subr.bf16.mxu0 0
    %656 = vmatpush1.bf16.msra.mxu0 %v516
    %657 = vmatprep.subr.bf16.mxu0 0
    %658 = vmatpush1.bf16.msra.mxu0 %v517
    %659 = vmatprep.subr.bf16.mxu0 0
    %660 = vmatpush1.bf16.msra.mxu0 %v518
    %661 = vmatprep.subr.bf16.mxu0 0
    %662 = vmatpush1.bf16.msra.mxu0 %v519
    %663 = vmatprep.subr.bf16.mxu0 0
    %664 = vmatpush1.bf16.msra.mxu0 %v520
    %665 = vmatprep.mubr.bf16.mxu0 %v218
    %666 = vmatmul.mubr.bf16.gmra.mrb[0].mxu0 %v217
    %v667 = vpop.f32.mrb[0].mxu0
    %v668 = vadd.f32 0.0, %v667
    %v669 = vpop.f32.mrb[0].mxu0
    %v670 = vpop.f32.mrb[0].mxu0
    %v671 = vadd.f32 0.0, %v670
    %v672 = vpop.f32.mrb[0].mxu0
    %673 = vmatprep.mubr.bf16.mxu0 %v226
    %674 = vmatmul.mubr.bf16.gmra.mrb[0].mxu0 %v225
    %v675 = vpop.f32.mrb[0].mxu0
    %v676 = vadd.f32 0.0, %v675
    %v677 = vpop.f32.mrb[0].mxu0
    %v678 = vpop.f32.mrb[0].mxu0
    %v679 = vadd.f32 0.0, %v678
    %v680 = vpop.f32.mrb[0].mxu0
    %681 = vdwg.mxu0
    %682 = vmatprep.subr.bf16.mxu0 0
    %683 = vmatpush1.bf16.msra.mxu0 %v521
    %684 = vmatprep.subr.bf16.mxu0 0
    %685 = vmatpush1.bf16.msra.mxu0 %v522
    %686 = vmatprep.subr.bf16.mxu0 0
    %687 = vmatpush1.bf16.msra.mxu0 %v523
    %688 = vmatprep.subr.bf16.mxu0 0
    %689 = vmatpush1.bf16.msra.mxu0 %v524
    %690 = vmatprep.subr.bf16.mxu0 0
    %691 = vmatpush1.bf16.msra.mxu0 %v525
    %692 = vmatprep.subr.bf16.mxu0 0
    %693 = vmatpush1.bf16.msra.mxu0 %v526
    %694 = vmatprep.subr.bf16.mxu0 0
    %695 = vmatpush1.bf16.msra.mxu0 %v527
    %696 = vmatprep.subr.bf16.mxu0 0
    %697 = vmatpush1.bf16.msra.mxu0 %v528
    %698 = vmatprep.subr.bf16.mxu0 0
    %699 = vmatpush1.bf16.msra.mxu0 %v529
    %700 = vmatprep.subr.bf16.mxu0 0
    %701 = vmatpush1.bf16.msra.mxu0 %v530
    %702 = vmatprep.subr.bf16.mxu0 0
    %703 = vmatpush1.bf16.msra.mxu0 %v531
    %704 = vmatprep.subr.bf16.mxu0 0
    %705 = vmatpush1.bf16.msra.mxu0 %v532
    %706 = vmatprep.subr.bf16.mxu0 0
    %707 = vmatpush1.bf16.msra.mxu0 %v533
    %708 = vmatprep.subr.bf16.mxu0 0
    %709 = vmatpush1.bf16.msra.mxu0 %v534
    %710 = vmatprep.subr.bf16.mxu0 0
    %711 = vmatpush1.bf16.msra.mxu0 %v535
    %712 = vmatprep.subr.bf16.mxu0 0
    %713 = vmatpush1.bf16.msra.mxu0 %v536
    %714 = vmatprep.mubr.bf16.mxu0 %v220
    %715 = vmatmul.mubr.bf16.gmra.mrb[0].mxu0 %v219
    %v716 = vpop.f32.mrb[0].mxu0
    %v717 = vadd.f32 %v668, %v716
    %v718 = vpop.f32.mrb[0].mxu0
    %v719 = vpop.f32.mrb[0].mxu0
    %v720 = vadd.f32 %v671, %v719
    %v721 = vpop.f32.mrb[0].mxu0
    %722 = vmatprep.mubr.bf16.mxu0 %v228
    %723 = vmatmul.mubr.bf16.gmra.mrb[0].mxu0 %v227
    %v724 = vpop.f32.mrb[0].mxu0
    %v725 = vadd.f32 %v676, %v724
    %v726 = vpop.f32.mrb[0].mxu0
    %v727 = vpop.f32.mrb[0].mxu0
    %v728 = vadd.f32 %v679, %v727
    %v729 = vpop.f32.mrb[0].mxu0
    %730 = vdwg.mxu0
    %731 = vmatprep.subr.bf16.mxu0 0
    %732 = vmatpush1.bf16.msra.mxu0 %v537
    %733 = vmatprep.subr.bf16.mxu0 0
    %734 = vmatpush1.bf16.msra.mxu0 %v538
    %735 = vmatprep.subr.bf16.mxu0 0
    %736 = vmatpush1.bf16.msra.mxu0 %v539
    %737 = vmatprep.subr.bf16.mxu0 0
    %738 = vmatpush1.bf16.msra.mxu0 %v540
    %739 = vmatprep.subr.bf16.mxu0 0
    %740 = vmatpush1.bf16.msra.mxu0 %v541
    %741 = vmatprep.subr.bf16.mxu0 0
    %742 = vmatpush1.bf16.msra.mxu0 %v542
    %743 = vmatprep.subr.bf16.mxu0 0
    %744 = vmatpush1.bf16.msra.mxu0 %v543
    %745 = vmatprep.subr.bf16.mxu0 0
    %746 = vmatpush1.bf16.msra.mxu0 %v544
    %747 = vmatprep.subr.bf16.mxu0 0
    %748 = vmatpush1.bf16.msra.mxu0 %v545
    %749 = vmatprep.subr.bf16.mxu0 0
    %750 = vmatpush1.bf16.msra.mxu0 %v546
    %751 = vmatprep.subr.bf16.mxu0 0
    %752 = vmatpush1.bf16.msra.mxu0 %v547
    %753 = vmatprep.subr.bf16.mxu0 0
    %754 = vmatpush1.bf16.msra.mxu0 %v548
    %755 = vmatprep.subr.bf16.mxu0 0
    %756 = vmatpush1.bf16.msra.mxu0 %v549
    %757 = vmatprep.subr.bf16.mxu0 0
    %758 = vmatpush1.bf16.msra.mxu0 %v550
    %759 = vmatprep.subr.bf16.mxu0 0
    %760 = vmatpush1.bf16.msra.mxu0 %v551
    %761 = vmatprep.subr.bf16.mxu0 0
    %762 = vmatpush1.bf16.msra.mxu0 %v552
    %763 = vmatprep.mubr.bf16.mxu0 %v222
    %764 = vmatmul.mubr.bf16.gmra.mrb[0].mxu0 %v221
    %v765 = vpop.f32.mrb[0].mxu0
    %v766 = vadd.f32 %v717, %v765
    %v767 = vpop.f32.mrb[0].mxu0
    %v768 = vpop.f32.mrb[0].mxu0
    %v769 = vadd.f32 %v720, %v768
    %v770 = vpop.f32.mrb[0].mxu0
    %771 = vmatprep.mubr.bf16.mxu0 %v230
    %772 = vmatmul.mubr.bf16.gmra.mrb[0].mxu0 %v229
    %v773 = vpop.f32.mrb[0].mxu0
    %v774 = vadd.f32 %v725, %v773
    %v775 = vpop.f32.mrb[0].mxu0
    %v776 = vpop.f32.mrb[0].mxu0
    %v777 = vadd.f32 %v728, %v776
    %v778 = vpop.f32.mrb[0].mxu0
    %779 = vdwg.mxu0
    %780 = vmatprep.subr.bf16.mxu0 0
    %781 = vmatpush1.bf16.msra.mxu0 %v553
    %782 = vmatprep.subr.bf16.mxu0 0
    %783 = vmatpush1.bf16.msra.mxu0 %v554
    %784 = vmatprep.subr.bf16.mxu0 0
    %785 = vmatpush1.bf16.msra.mxu0 %v555
    %786 = vmatprep.subr.bf16.mxu0 0
    %787 = vmatpush1.bf16.msra.mxu0 %v556
    %788 = vmatprep.subr.bf16.mxu0 0
    %789 = vmatpush1.bf16.msra.mxu0 %v557
    %790 = vmatprep.subr.bf16.mxu0 0
    %791 = vmatpush1.bf16.msra.mxu0 %v558
    %792 = vmatprep.subr.bf16.mxu0 0
    %793 = vmatpush1.bf16.msra.mxu0 %v559
    %794 = vmatprep.subr.bf16.mxu0 0
    %795 = vmatpush1.bf16.msra.mxu0 %v560
    %796 = vmatprep.subr.bf16.mxu0 0
    %797 = vmatpush1.bf16.msra.mxu0 %v561
    %798 = vmatprep.subr.bf16.mxu0 0
    %799 = vmatpush1.bf16.msra.mxu0 %v562
    %800 = vmatprep.subr.bf16.mxu0 0
    %801 = vmatpush1.bf16.msra.mxu0 %v563
    %802 = vmatprep.subr.bf16.mxu0 0
    %803 = vmatpush1.bf16.msra.mxu0 %v564
    %804 = vmatprep.subr.bf16.mxu0 0
    %805 = vmatpush1.bf16.msra.mxu0 %v565
    %806 = vmatprep.subr.bf16.mxu0 0
    %807 = vmatpush1.bf16.msra.mxu0 %v566
    %808 = vmatprep.subr.bf16.mxu0 0
    %809 = vmatpush1.bf16.msra.mxu0 %v567
    %810 = vmatprep.subr.bf16.mxu0 0
    %811 = vmatpush1.bf16.msra.mxu0 %v568
    %812 = vmatprep.mubr.bf16.mxu0 %v224
    %813 = vmatmul.mubr.bf16.gmra.mrb[0].mxu0 %v223
    %v814 = vpop.f32.mrb[0].mxu0
    %v815 = vadd.f32 %v766, %v814
    %v816 = vpop.f32.mrb[0].mxu0
    %v817 = vpop.f32.mrb[0].mxu0
    %v818 = vadd.f32 %v769, %v817
    %v819 = vpop.f32.mrb[0].mxu0
    %820 = vmatprep.mubr.bf16.mxu0 %v232
    %821 = vmatmul.mubr.bf16.gmra.mrb[0].mxu0 %v231
    %v822 = vpop.f32.mrb[0].mxu0
    %v823 = vadd.f32 %v774, %v822
    %v824 = vpop.f32.mrb[0].mxu0
    %v825 = vpop.f32.mrb[0].mxu0
    %v826 = vadd.f32 %v777, %v825
    %v827 = vpop.f32.mrb[0].mxu0
    %828 = vdwg.mxu0
    %v829 = vld [vmem:[%s2] sm:$0x1]
    %v830 = vld [vmem:[%s3] sm:$0x1]
    %vm831 = vcmask 261120
    %v833 = vsel %vm831, 1.0, 0
    %835 = vmatprep.subr.mxu0 0.0
    %836 = vmatpush1.msra.mxu0 %v815
    %837 = vmatprep.subr.mxu0 0.0
    %838 = vmatpush1.msra.mxu0 %v818
    %839 = vmatprep.subr.mxu0 0.0
    %840 = vmatpush1.msra.mxu0 %v823
    %841 = vmatprep.subr.mxu0 0.0
    %842 = vmatpush1.msra.mxu0 %v826
    %843 = vmatprep.subr.mxu0 0.0
    %844 = vmatpush1.msra.mxu0 0.0
    %845 = vmatprep.subr.mxu0 0.0
    %846 = vmatpush1.msra.mxu0 0.0
    %847 = vmatprep.subr.mxu0 0.0
    %848 = vmatpush1.msra.mxu0 0.0
    %849 = vmatprep.subr.mxu0 0.0
    %850 = vmatpush1.msra.mxu0 0.0
    %851 = vmatprep.subr.mxu0 0.0
    %852 = vmatpush1.msra.mxu0 0.0
    %853 = vmatprep.subr.mxu0 0.0
    %854 = vmatpush1.msra.mxu0 0.0
    %855 = vmatprep.subr.mxu0 0.0
    %856 = vmatpush1.msra.mxu0 0.0
    %857 = vmatprep.subr.mxu0 0.0
    %858 = vmatpush1.msra.mxu0 0.0
    %859 = vmatprep.subr.mxu0 0.0
    %860 = vmatpush1.msra.mxu0 0.0
    %861 = vmatprep.subr.mxu0 0.0
    %862 = vmatpush1.msra.mxu0 0.0
    %863 = vmatprep.subr.mxu0 0.0
    %864 = vmatpush1.msra.mxu0 0.0
    %865 = vmatprep.subr.mxu0 0.0
    %866 = vmatpush1.msra.mxu0 0.0
    %867 = vmatprep.subr.mxu0 0.0
    %868 = vmatpush1.msra.mxu0 0.0
    %869 = vmatprep.subr.mxu0 0.0
    %870 = vmatpush1.msra.mxu0 0.0
    %871 = vmatprep.subr.mxu0 0.0
    %872 = vmatpush1.msra.mxu0 0.0
    %873 = vmatprep.subr.mxu0 0.0
    %874 = vmatpush1.msra.mxu0 0.0
    %875 = vmatprep.subr.mxu0 0.0
    %876 = vmatpush1.msra.mxu0 0.0
    %877 = vmatprep.subr.mxu0 0.0
    %878 = vmatpush1.msra.mxu0 0.0
    %879 = vmatprep.subr.mxu0 0.0
    %880 = vmatpush1.msra.mxu0 0.0
    %881 = vmatprep.subr.mxu0 0.0
    %882 = vmatpush1.msra.mxu0 0.0
    %883 = vmatprep.subr.mxu0 0.0
    %884 = vmatpush1.msra.mxu0 0.0
    %885 = vmatprep.subr.mxu0 0.0
    %886 = vmatpush1.msra.mxu0 0.0
    %887 = vmatprep.subr.mxu0 0.0
    %888 = vmatpush1.msra.mxu0 0.0
    %889 = vmatprep.subr.mxu0 0.0
    %890 = vmatpush1.msra.mxu0 0.0
    %891 = vmatprep.subr.mxu0 0.0
    %892 = vmatpush1.msra.mxu0 0.0
    %893 = vmatprep.subr.mxu0 0.0
    %894 = vmatpush1.msra.mxu0 0.0
    %895 = vmatprep.subr.mxu0 0.0
    %896 = vmatpush1.msra.mxu0 0.0
    %897 = vmatprep.subr.mxu0 0.0
    %898 = vmatpush1.msra.mxu0 0.0
    %899 = vmatprep.mubr.f32.mxu0 0.0
    %900 = vmatmul.mubr.f32.gmra.mrb[0].mxu0 %v833
    %v901 = vpop.f32.mrb[0].mxu0
    %v902 = vadd.f32 0.0, %v901
    %v903 = vpop.f32.mrb[0].mxu0
    %904 = vdwg.mxu0
    %v905 = vmul.f32 %v815, %v815
    %v906 = vmul.f32 %v818, %v818
    %v907 = vmul.f32 %v823, %v823
    %v908 = vmul.f32 %v826, %v826
    %909 = vmatprep.subr.mxu0 0.0
    %910 = vmatpush1.msra.mxu0 %v905
    %911 = vmatprep.subr.mxu0 0.0
    %912 = vmatpush1.msra.mxu0 %v906
    %913 = vmatprep.subr.mxu0 0.0
    %914 = vmatpush1.msra.mxu0 %v907
    %915 = vmatprep.subr.mxu0 0.0
    %916 = vmatpush1.msra.mxu0 %v908
    %917 = vmatprep.subr.mxu0 0.0
    %918 = vmatpush1.msra.mxu0 0.0
    %919 = vmatprep.subr.mxu0 0.0
    %920 = vmatpush1.msra.mxu0 0.0
    %921 = vmatprep.subr.mxu0 0.0
    %922 = vmatpush1.msra.mxu0 0.0
    %923 = vmatprep.subr.mxu0 0.0
    %924 = vmatpush1.msra.mxu0 0.0
    %925 = vmatprep.subr.mxu0 0.0
    %926 = vmatpush1.msra.mxu0 0.0
    %927 = vmatprep.subr.mxu0 0.0
    %928 = vmatpush1.msra.mxu0 0.0
    %929 = vmatprep.subr.mxu0 0.0
    %930 = vmatpush1.msra.mxu0 0.0
    %931 = vmatprep.subr.mxu0 0.0
    %932 = vmatpush1.msra.mxu0 0.0
    %933 = vmatprep.subr.mxu0 0.0
    %934 = vmatpush1.msra.mxu0 0.0
    %935 = vmatprep.subr.mxu0 0.0
    %936 = vmatpush1.msra.mxu0 0.0
    %937 = vmatprep.subr.mxu0 0.0
    %938 = vmatpush1.msra.mxu0 0.0
    %939 = vmatprep.subr.mxu0 0.0
    %940 = vmatpush1.msra.mxu0 0.0
    %941 = vmatprep.subr.mxu0 0.0
    %942 = vmatpush1.msra.mxu0 0.0
    %943 = vmatprep.subr.mxu0 0.0
    %944 = vmatpush1.msra.mxu0 0.0
    %945 = vmatprep.subr.mxu0 0.0
    %946 = vmatpush1.msra.mxu0 0.0
    %947 = vmatprep.subr.mxu0 0.0
    %948 = vmatpush1.msra.mxu0 0.0
    %949 = vmatprep.subr.mxu0 0.0
    %950 = vmatpush1.msra.mxu0 0.0
    %951 = vmatprep.subr.mxu0 0.0
    %952 = vmatpush1.msra.mxu0 0.0
    %953 = vmatprep.subr.mxu0 0.0
    %954 = vmatpush1.msra.mxu0 0.0
    %955 = vmatprep.subr.mxu0 0.0
    %956 = vmatpush1.msra.mxu0 0.0
    %957 = vmatprep.subr.mxu0 0.0
    %958 = vmatpush1.msra.mxu0 0.0
    %959 = vmatprep.subr.mxu0 0.0
    %960 = vmatpush1.msra.mxu0 0.0
    %961 = vmatprep.subr.mxu0 0.0
    %962 = vmatpush1.msra.mxu0 0.0
    %963 = vmatprep.subr.mxu0 0.0
    %964 = vmatpush1.msra.mxu0 0.0
    %965 = vmatprep.subr.mxu0 0.0
    %966 = vmatpush1.msra.mxu0 0.0
    %967 = vmatprep.subr.mxu0 0.0
    %968 = vmatpush1.msra.mxu0 0.0
    %969 = vmatprep.subr.mxu0 0.0
    %970 = vmatpush1.msra.mxu0 0.0
    %971 = vmatprep.subr.mxu0 0.0
    %972 = vmatpush1.msra.mxu0 0.0
    %973 = vmatprep.mubr.f32.mxu0 0.0
    %974 = vmatmul.mubr.f32.gmra.mrb[0].mxu0 %v833
    %v975 = vpop.f32.mrb[0].mxu0
    %v976 = vadd.f32 0.0, %v975
    %v977 = vpop.f32.mrb[0].mxu0
    %978 = vdwg.mxu0
    %v979 = vmul.f32 %v902, 0.03125
    %v980 = vmul.f32 %v976, 0.03125
    %v981 = vmul.f32 %v979, %v979
    %v982 = vsub.f32 %v980, %v981
    %v983 = vmax.f32 %v982, 0.0
    %v984 = vadd.f32 %v983, 1e-05
    %v985 = vrsqrt.pop %v984
    %v986 = vlaneseq
    %v987 = vshrl.u32 %v986, 7
    %v988 = vsub.s32 0, %v987
    %v989 = vrot.slane %v979, %v988
    %v990 = vsub.f32 %v815, %v989
    %v991 = vsub.f32 %v818, %v989
    %v992 = vsub.f32 %v823, %v989
    %v993 = vsub.f32 %v826, %v989
    %v994 = vmul.f32 %v985, %v829
    %v995 = vlaneseq
    %v996 = vshrl.u32 %v995, 7
    %v997 = vsub.s32 0, %v996
    %v998 = vrot.slane %v994, %v997
    %v999 = vmul.f32 %v990, %v998
    %v1000 = vmul.f32 %v991, %v998
    %v1001 = vmul.f32 %v992, %v998
    %v1002 = vmul.f32 %v993, %v998
    %v1004 = vlaneseq
    %v1005 = vshrl.u32 %v1004, 7
    %v1006 = vsub.s32 0, %v1005
    %v1007 = vrot.slane %v830, %v1006
    %v1009 = vadd.f32 %v999, %v1007
    %v1010 = vadd.f32 %v1000, %v1007
    %v1011 = vadd.f32 %v1001, %v1007
    %v1012 = vadd.f32 %v1002, %v1007
    %vm1013 = vcmp.ge.f32.partialorder %v1009, 0.0
    %vm1014 = vcmp.ge.f32.partialorder %v1010, 0.0
    %vm1015 = vcmp.ge.f32.partialorder %v1011, 0.0
    %vm1016 = vcmp.ge.f32.partialorder %v1012, 0.0
    %v1017 = vmul.f32 %v1009, 0.2
    %v1018 = vmul.f32 %v1010, 0.2
    %v1019 = vmul.f32 %v1011, 0.2
    %v1020 = vmul.f32 %v1012, 0.2
    %v1021 = vsel %vm1013, %v1009, %v1017
    %v1022 = vsel %vm1014, %v1010, %v1018
    %v1023 = vsel %vm1015, %v1011, %v1019
    %v1024 = vsel %vm1016, %v1012, %v1020
    %v1025 = vpack.c.bf16 %v1022, %v1021
    %v1026 = vpack.c.bf16 %v1024, %v1023
    %1027 = vst [vmem:[#allocation2] sm:$0xff] %v1025
    %1028 = vst [vmem:[#allocation2 + $0x8] sm:$0xff] %v1026
    %v1029 = vld [vmem:[%s5] sm:$0x1]
    %v1030 = vld [vmem:[%s4] sm:$0xf]
    %v1031 = vld [vmem:[%s4 + $0x4] sm:$0xf]
    %v1032 = vld [vmem:[%s4 + $0x8] sm:$0xf]
    %v1033 = vld [vmem:[%s4 + $0xc] sm:$0xf]
    %v1034 = vld [vmem:[%s4 + $0x10] sm:$0xf]
    %v1035 = vld [vmem:[%s4 + $0x14] sm:$0xf]
    %v1036 = vld [vmem:[%s4 + $0x18] sm:$0xf]
    %v1037 = vld [vmem:[%s4 + $0x1c] sm:$0xf]
    %v1038 = vld [vmem:[%s4 + $0x20] sm:$0xf]
    %v1039 = vld [vmem:[%s4 + $0x24] sm:$0xf]
    %v1040 = vld [vmem:[%s4 + $0x28] sm:$0xf]
    %v1041 = vld [vmem:[%s4 + $0x2c] sm:$0xf]
    %v1042 = vld [vmem:[%s4 + $0x30] sm:$0xf]
    %v1043 = vld [vmem:[%s4 + $0x34] sm:$0xf]
    %v1044 = vld [vmem:[%s4 + $0x38] sm:$0xf]
    %v1045 = vld [vmem:[%s4 + $0x3c] sm:$0xf]
    %v1046 = vld [vmem:[#allocation2] sm:$0x1]
    %v1063 = vunpack.c.l.b16 %v1030
    %v1064 = vunpack.c.l.b16 %v1031
    %v1065 = vunpack.c.l.b16 %v1032
    %v1066 = vunpack.c.l.b16 %v1033
    %v1067 = vunpack.c.l.b16 %v1034
    %v1068 = vunpack.c.l.b16 %v1035
    %v1069 = vunpack.c.l.b16 %v1036
    %v1070 = vunpack.c.l.b16 %v1037
    %v1071 = vunpack.c.l.b16 %v1038
    %v1072 = vunpack.c.l.b16 %v1039
    %v1073 = vunpack.c.l.b16 %v1040
    %v1074 = vunpack.c.l.b16 %v1041
    %v1075 = vunpack.c.l.b16 %v1042
    %v1076 = vunpack.c.l.b16 %v1043
    %v1077 = vunpack.c.l.b16 %v1044
    %v1078 = vunpack.c.l.b16 %v1045
    %v1079 = vpack.c.b16 %v1064, %v1063
    %v1080 = vpack.c.b16 %v1066, %v1065
    %v1081 = vpack.c.b16 %v1068, %v1067
    %v1082 = vpack.c.b16 %v1070, %v1069
    %v1083 = vpack.c.b16 %v1072, %v1071
    %v1084 = vpack.c.b16 %v1074, %v1073
    %v1085 = vpack.c.b16 %v1076, %v1075
    %v1086 = vpack.c.b16 %v1078, %v1077
    %1095 = vmatprep.subr.bf16.mxu0 0
    %1096 = vmatpush1.bf16.msra.mxu0 %v1079
    %1097 = vmatprep.subr.bf16.mxu0 0
    %1098 = vmatpush1.bf16.msra.mxu0 %v1080
    %1099 = vmatprep.subr.bf16.mxu0 0
    %1100 = vmatpush1.bf16.msra.mxu0 %v1081
    %1101 = vmatprep.subr.bf16.mxu0 0
    %1102 = vmatpush1.bf16.msra.mxu0 %v1082
    %1103 = vmatprep.subr.bf16.mxu0 0
    %1104 = vmatpush1.bf16.msra.mxu0 %v1083
    %1105 = vmatprep.subr.bf16.mxu0 0
    %1106 = vmatpush1.bf16.msra.mxu0 %v1084
    %1107 = vmatprep.subr.bf16.mxu0 0
    %1108 = vmatpush1.bf16.msra.mxu0 %v1085
    %1109 = vmatprep.subr.bf16.mxu0 0
    %1110 = vmatpush1.bf16.msra.mxu0 %v1086
    %1111 = vmatprep.subr.bf16.mxu0 0
    %1112 = vmatpush1.bf16.msra.mxu0 0
    %1113 = vmatprep.subr.bf16.mxu0 0
    %1114 = vmatpush1.bf16.msra.mxu0 0
    %1115 = vmatprep.subr.bf16.mxu0 0
    %1116 = vmatpush1.bf16.msra.mxu0 0
    %1117 = vmatprep.subr.bf16.mxu0 0
    %1118 = vmatpush1.bf16.msra.mxu0 0
    %1119 = vmatprep.subr.bf16.mxu0 0
    %1120 = vmatpush1.bf16.msra.mxu0 0
    %1121 = vmatprep.subr.bf16.mxu0 0
    %1122 = vmatpush1.bf16.msra.mxu0 0
    %1123 = vmatprep.subr.bf16.mxu0 0
    %1124 = vmatpush1.bf16.msra.mxu0 0
    %1125 = vmatprep.subr.bf16.mxu0 0
    %1126 = vmatpush1.bf16.msra.mxu0 0
    %1127 = vmatprep.mubr.bf16.mxu0 0
    %1128 = vmatmul.mubr.bf16.gmra.mrb[0].mxu0 %v1046
    %v1129 = vpop.f32.mrb[0].mxu0
    %v1130 = vadd.f32 0.0, %v1129
    %v1131 = vpop.f32.mrb[0].mxu0
    %v1132 = vpop.f32.mrb[0].mxu0
    %v1133 = vpop.f32.mrb[0].mxu0
    %1134 = vdwg.mxu0
    %v1135 = vadd.f32 %v1029, %v1130
    %v1136 = vld [vmem:[#allocation2 + $0x8] sm:$0x1]
    %1137 = vmatprep.subr.bf16.mxu0 0
    %1138 = vmatpush1.bf16.msra.mxu0 %v1079
    %1139 = vmatprep.subr.bf16.mxu0 0
    %1140 = vmatpush1.bf16.msra.mxu0 %v1080
    %1141 = vmatprep.subr.bf16.mxu0 0
    %1142 = vmatpush1.bf16.msra.mxu0 %v1081
    %1143 = vmatprep.subr.bf16.mxu0 0
    %1144 = vmatpush1.bf16.msra.mxu0 %v1082
    %1145 = vmatprep.subr.bf16.mxu0 0
    %1146 = vmatpush1.bf16.msra.mxu0 %v1083
    %1147 = vmatprep.subr.bf16.mxu0 0
    %1148 = vmatpush1.bf16.msra.mxu0 %v1084
    %1149 = vmatprep.subr.bf16.mxu0 0
    %1150 = vmatpush1.bf16.msra.mxu0 %v1085
    %1151 = vmatprep.subr.bf16.mxu0 0
    %1152 = vmatpush1.bf16.msra.mxu0 %v1086
    %1153 = vmatprep.subr.bf16.mxu0 0
    %1154 = vmatpush1.bf16.msra.mxu0 0
    %1155 = vmatprep.subr.bf16.mxu0 0
    %1156 = vmatpush1.bf16.msra.mxu0 0
    %1157 = vmatprep.subr.bf16.mxu0 0
    %1158 = vmatpush1.bf16.msra.mxu0 0
    %1159 = vmatprep.subr.bf16.mxu0 0
    %1160 = vmatpush1.bf16.msra.mxu0 0
    %1161 = vmatprep.subr.bf16.mxu0 0
    %1162 = vmatpush1.bf16.msra.mxu0 0
    %1163 = vmatprep.subr.bf16.mxu0 0
    %1164 = vmatpush1.bf16.msra.mxu0 0
    %1165 = vmatprep.subr.bf16.mxu0 0
    %1166 = vmatpush1.bf16.msra.mxu0 0
    %1167 = vmatprep.subr.bf16.mxu0 0
    %1168 = vmatpush1.bf16.msra.mxu0 0
    %1169 = vmatprep.mubr.bf16.mxu0 0
    %1170 = vmatmul.mubr.bf16.gmra.mrb[0].mxu0 %v1136
    %v1171 = vpop.f32.mrb[0].mxu0
    %v1172 = vadd.f32 0.0, %v1171
    %v1173 = vpop.f32.mrb[0].mxu0
    %v1174 = vpop.f32.mrb[0].mxu0
    %v1175 = vpop.f32.mrb[0].mxu0
    %1176 = vdwg.mxu0
    %v1177 = vadd.f32 %v1029, %v1172
    %s1178 = scalar_lea.vmem %s4, 64
    %v1179 = vld [vmem:[%s1178] sm:$0xf]
    %v1180 = vld [vmem:[%s1178 + $0x4] sm:$0xf]
    %v1181 = vld [vmem:[%s1178 + $0x8] sm:$0xf]
    %v1182 = vld [vmem:[%s1178 + $0xc] sm:$0xf]
    %v1183 = vld [vmem:[%s1178 + $0x10] sm:$0xf]
    %v1184 = vld [vmem:[%s1178 + $0x14] sm:$0xf]
    %v1185 = vld [vmem:[%s1178 + $0x18] sm:$0xf]
    %v1186 = vld [vmem:[%s1178 + $0x1c] sm:$0xf]
    %v1187 = vld [vmem:[%s1178 + $0x20] sm:$0xf]
    %v1188 = vld [vmem:[%s1178 + $0x24] sm:$0xf]
    %v1189 = vld [vmem:[%s1178 + $0x28] sm:$0xf]
    %v1190 = vld [vmem:[%s1178 + $0x2c] sm:$0xf]
    %v1191 = vld [vmem:[%s1178 + $0x30] sm:$0xf]
    %v1192 = vld [vmem:[%s1178 + $0x34] sm:$0xf]
    %v1193 = vld [vmem:[%s1178 + $0x38] sm:$0xf]
    %v1194 = vld [vmem:[%s1178 + $0x3c] sm:$0xf]
    %v1196 = vshrl.u32 %v1046, 16
    %v1215 = vunpack.c.l.b16 %v1179
    %v1216 = vunpack.c.l.b16 %v1180
    %v1217 = vunpack.c.l.b16 %v1181
    %v1218 = vunpack.c.l.b16 %v1182
    %v1219 = vunpack.c.l.b16 %v1183
    %v1220 = vunpack.c.l.b16 %v1184
    %v1221 = vunpack.c.l.b16 %v1185
    %v1222 = vunpack.c.l.b16 %v1186
    %v1223 = vunpack.c.l.b16 %v1187
    %v1224 = vunpack.c.l.b16 %v1188
    %v1225 = vunpack.c.l.b16 %v1189
    %v1226 = vunpack.c.l.b16 %v1190
    %v1227 = vunpack.c.l.b16 %v1191
    %v1228 = vunpack.c.l.b16 %v1192
    %v1229 = vunpack.c.l.b16 %v1193
    %v1230 = vunpack.c.l.b16 %v1194
    %v1231 = vpack.c.b16 %v1216, %v1215
    %v1232 = vpack.c.b16 %v1218, %v1217
    %v1233 = vpack.c.b16 %v1220, %v1219
    %v1234 = vpack.c.b16 %v1222, %v1221
    %v1235 = vpack.c.b16 %v1224, %v1223
    %v1236 = vpack.c.b16 %v1226, %v1225
    %v1237 = vpack.c.b16 %v1228, %v1227
    %v1238 = vpack.c.b16 %v1230, %v1229
    %1247 = vmatprep.subr.bf16.mxu0 0
    %1248 = vmatpush1.bf16.msra.mxu0 %v1231
    %1249 = vmatprep.subr.bf16.mxu0 0
    %1250 = vmatpush1.bf16.msra.mxu0 %v1232
    %1251 = vmatprep.subr.bf16.mxu0 0
    %1252 = vmatpush1.bf16.msra.mxu0 %v1233
    %1253 = vmatprep.subr.bf16.mxu0 0
    %1254 = vmatpush1.bf16.msra.mxu0 %v1234
    %1255 = vmatprep.subr.bf16.mxu0 0
    %1256 = vmatpush1.bf16.msra.mxu0 %v1235
    %1257 = vmatprep.subr.bf16.mxu0 0
    %1258 = vmatpush1.bf16.msra.mxu0 %v1236
    %1259 = vmatprep.subr.bf16.mxu0 0
    %1260 = vmatpush1.bf16.msra.mxu0 %v1237
    %1261 = vmatprep.subr.bf16.mxu0 0
    %1262 = vmatpush1.bf16.msra.mxu0 %v1238
    %1263 = vmatprep.subr.bf16.mxu0 0
    %1264 = vmatpush1.bf16.msra.mxu0 0
    %1265 = vmatprep.subr.bf16.mxu0 0
    %1266 = vmatpush1.bf16.msra.mxu0 0
    %1267 = vmatprep.subr.bf16.mxu0 0
    %1268 = vmatpush1.bf16.msra.mxu0 0
    %1269 = vmatprep.subr.bf16.mxu0 0
    %1270 = vmatpush1.bf16.msra.mxu0 0
    %1271 = vmatprep.subr.bf16.mxu0 0
    %1272 = vmatpush1.bf16.msra.mxu0 0
    %1273 = vmatprep.subr.bf16.mxu0 0
    %1274 = vmatpush1.bf16.msra.mxu0 0
    %1275 = vmatprep.subr.bf16.mxu0 0
    %1276 = vmatpush1.bf16.msra.mxu0 0
    %1277 = vmatprep.subr.bf16.mxu0 0
    %1278 = vmatpush1.bf16.msra.mxu0 0
    %1279 = vmatprep.mubr.bf16.mxu0 0
    %1280 = vmatmul.mubr.bf16.gmra.mrb[0].mxu0 %v1196
    %v1281 = vpop.f32.mrb[0].mxu0
    %v1282 = vadd.f32 0.0, %v1281
    %v1283 = vpop.f32.mrb[0].mxu0
    %v1284 = vpop.f32.mrb[0].mxu0
    %v1285 = vpop.f32.mrb[0].mxu0
    %1286 = vdwg.mxu0
    %v1287 = vadd.f32 %v1135, %v1282
    %v1289 = vshrl.u32 %v1136, 16
    %1292 = vmatprep.subr.bf16.mxu0 0
    %1293 = vmatpush1.bf16.msra.mxu0 %v1231
    %1294 = vmatprep.subr.bf16.mxu0 0
    %1295 = vmatpush1.bf16.msra.mxu0 %v1232
    %1296 = vmatprep.subr.bf16.mxu0 0
    %1297 = vmatpush1.bf16.msra.mxu0 %v1233
    %1298 = vmatprep.subr.bf16.mxu0 0
    %1299 = vmatpush1.bf16.msra.mxu0 %v1234
    %1300 = vmatprep.subr.bf16.mxu0 0
    %1301 = vmatpush1.bf16.msra.mxu0 %v1235
    %1302 = vmatprep.subr.bf16.mxu0 0
    %1303 = vmatpush1.bf16.msra.mxu0 %v1236
    %1304 = vmatprep.subr.bf16.mxu0 0
    %1305 = vmatpush1.bf16.msra.mxu0 %v1237
    %1306 = vmatprep.subr.bf16.mxu0 0
    %1307 = vmatpush1.bf16.msra.mxu0 %v1238
    %1308 = vmatprep.subr.bf16.mxu0 0
    %1309 = vmatpush1.bf16.msra.mxu0 0
    %1310 = vmatprep.subr.bf16.mxu0 0
    %1311 = vmatpush1.bf16.msra.mxu0 0
    %1312 = vmatprep.subr.bf16.mxu0 0
    %1313 = vmatpush1.bf16.msra.mxu0 0
    %1314 = vmatprep.subr.bf16.mxu0 0
    %1315 = vmatpush1.bf16.msra.mxu0 0
    %1316 = vmatprep.subr.bf16.mxu0 0
    %1317 = vmatpush1.bf16.msra.mxu0 0
    %1318 = vmatprep.subr.bf16.mxu0 0
    %1319 = vmatpush1.bf16.msra.mxu0 0
    %1320 = vmatprep.subr.bf16.mxu0 0
    %1321 = vmatpush1.bf16.msra.mxu0 0
    %1322 = vmatprep.subr.bf16.mxu0 0
    %1323 = vmatpush1.bf16.msra.mxu0 0
    %1324 = vmatprep.mubr.bf16.mxu0 0
    %1325 = vmatmul.mubr.bf16.gmra.mrb[0].mxu0 %v1289
    %v1326 = vpop.f32.mrb[0].mxu0
    %v1327 = vadd.f32 0.0, %v1326
    %v1328 = vpop.f32.mrb[0].mxu0
    %v1329 = vpop.f32.mrb[0].mxu0
    %v1330 = vpop.f32.mrb[0].mxu0
    %1331 = vdwg.mxu0
    %v1332 = vadd.f32 %v1177, %v1327
    %s1333 = scalar_lea.vmem %s4, 128
    %v1334 = vld [vmem:[%s1333] sm:$0xf]
    %v1335 = vld [vmem:[%s1333 + $0x4] sm:$0xf]
    %v1336 = vld [vmem:[%s1333 + $0x8] sm:$0xf]
    %v1337 = vld [vmem:[%s1333 + $0xc] sm:$0xf]
    %v1338 = vld [vmem:[%s1333 + $0x10] sm:$0xf]
    %v1339 = vld [vmem:[%s1333 + $0x14] sm:$0xf]
    %v1340 = vld [vmem:[%s1333 + $0x18] sm:$0xf]
    %v1341 = vld [vmem:[%s1333 + $0x1c] sm:$0xf]
    %v1342 = vld [vmem:[%s1333 + $0x20] sm:$0xf]
    %v1343 = vld [vmem:[%s1333 + $0x24] sm:$0xf]
    %v1344 = vld [vmem:[%s1333 + $0x28] sm:$0xf]
    %v1345 = vld [vmem:[%s1333 + $0x2c] sm:$0xf]
    %v1346 = vld [vmem:[%s1333 + $0x30] sm:$0xf]
    %v1347 = vld [vmem:[%s1333 + $0x34] sm:$0xf]
    %v1348 = vld [vmem:[%s1333 + $0x38] sm:$0xf]
    %v1349 = vld [vmem:[%s1333 + $0x3c] sm:$0xf]
    %v1350 = vld [vmem:[#allocation2] sm:$0x2]
    %v1352 = vrot.slane %v1350, 1
    %v1370 = vunpack.c.l.b16 %v1334
    %v1371 = vunpack.c.l.b16 %v1335
    %v1372 = vunpack.c.l.b16 %v1336
    %v1373 = vunpack.c.l.b16 %v1337
    %v1374 = vunpack.c.l.b16 %v1338
    %v1375 = vunpack.c.l.b16 %v1339
    %v1376 = vunpack.c.l.b16 %v1340
    %v1377 = vunpack.c.l.b16 %v1341
    %v1378 = vunpack.c.l.b16 %v1342
    %v1379 = vunpack.c.l.b16 %v1343
    %v1380 = vunpack.c.l.b16 %v1344
    %v1381 = vunpack.c.l.b16 %v1345
    %v1382 = vunpack.c.l.b16 %v1346
    %v1383 = vunpack.c.l.b16 %v1347
    %v1384 = vunpack.c.l.b16 %v1348
    %v1385 = vunpack.c.l.b16 %v1349
    %v1386 = vpack.c.b16 %v1371, %v1370
    %v1387 = vpack.c.b16 %v1373, %v1372
    %v1388 = vpack.c.b16 %v1375, %v1374
    %v1389 = vpack.c.b16 %v1377, %v1376
    %v1390 = vpack.c.b16 %v1379, %v1378
    %v1391 = vpack.c.b16 %v1381, %v1380
    %v1392 = vpack.c.b16 %v1383, %v1382
    %v1393 = vpack.c.b16 %v1385, %v1384
    %1402 = vmatprep.subr.bf16.mxu0 0
    %1403 = vmatpush1.bf16.msra.mxu0 %v1386
    %1404 = vmatprep.subr.bf16.mxu0 0
    %1405 = vmatpush1.bf16.msra.mxu0 %v1387
    %1406 = vmatprep.subr.bf16.mxu0 0
    %1407 = vmatpush1.bf16.msra.mxu0 %v1388
    %1408 = vmatprep.subr.bf16.mxu0 0
    %1409 = vmatpush1.bf16.msra.mxu0 %v1389
    %1410 = vmatprep.subr.bf16.mxu0 0
    %1411 = vmatpush1.bf16.msra.mxu0 %v1390
    %1412 = vmatprep.subr.bf16.mxu0 0
    %1413 = vmatpush1.bf16.msra.mxu0 %v1391
    %1414 = vmatprep.subr.bf16.mxu0 0
    %1415 = vmatpush1.bf16.msra.mxu0 %v1392
    %1416 = vmatprep.subr.bf16.mxu0 0
    %1417 = vmatpush1.bf16.msra.mxu0 %v1393
    %1418 = vmatprep.subr.bf16.mxu0 0
    %1419 = vmatpush1.bf16.msra.mxu0 0
    %1420 = vmatprep.subr.bf16.mxu0 0
    %1421 = vmatpush1.bf16.msra.mxu0 0
    %1422 = vmatprep.subr.bf16.mxu0 0
    %1423 = vmatpush1.bf16.msra.mxu0 0
    %1424 = vmatprep.subr.bf16.mxu0 0
    %1425 = vmatpush1.bf16.msra.mxu0 0
    %1426 = vmatprep.subr.bf16.mxu0 0
    %1427 = vmatpush1.bf16.msra.mxu0 0
    %1428 = vmatprep.subr.bf16.mxu0 0
    %1429 = vmatpush1.bf16.msra.mxu0 0
    %1430 = vmatprep.subr.bf16.mxu0 0
    %1431 = vmatpush1.bf16.msra.mxu0 0
    %1432 = vmatprep.subr.bf16.mxu0 0
    %1433 = vmatpush1.bf16.msra.mxu0 0
    %1434 = vmatprep.mubr.bf16.mxu0 0
    %1435 = vmatmul.mubr.bf16.gmra.mrb[0].mxu0 %v1352
    %v1436 = vpop.f32.mrb[0].mxu0
    %v1437 = vadd.f32 0.0, %v1436
    %v1438 = vpop.f32.mrb[0].mxu0
    %v1439 = vpop.f32.mrb[0].mxu0
    %v1440 = vpop.f32.mrb[0].mxu0
    %1441 = vdwg.mxu0
    %v1442 = vadd.f32 %v1287, %v1437
    %v1443 = vld [vmem:[#allocation2 + $0x8] sm:$0x2]
    %v1445 = vrot.slane %v1443, 1
    %1447 = vmatprep.subr.bf16.mxu0 0
    %1448 = vmatpush1.bf16.msra.mxu0 %v1386
    %1449 = vmatprep.subr.bf16.mxu0 0
    %1450 = vmatpush1.bf16.msra.mxu0 %v1387
    %1451 = vmatprep.subr.bf16.mxu0 0
    %1452 = vmatpush1.bf16.msra.mxu0 %v1388
    %1453 = vmatprep.subr.bf16.mxu0 0
    %1454 = vmatpush1.bf16.msra.mxu0 %v1389
    %1455 = vmatprep.subr.bf16.mxu0 0
    %1456 = vmatpush1.bf16.msra.mxu0 %v1390
    %1457 = vmatprep.subr.bf16.mxu0 0
    %1458 = vmatpush1.bf16.msra.mxu0 %v1391
    %1459 = vmatprep.subr.bf16.mxu0 0
    %1460 = vmatpush1.bf16.msra.mxu0 %v1392
    %1461 = vmatprep.subr.bf16.mxu0 0
    %1462 = vmatpush1.bf16.msra.mxu0 %v1393
    %1463 = vmatprep.subr.bf16.mxu0 0
    %1464 = vmatpush1.bf16.msra.mxu0 0
    %1465 = vmatprep.subr.bf16.mxu0 0
    %1466 = vmatpush1.bf16.msra.mxu0 0
    %1467 = vmatprep.subr.bf16.mxu0 0
    %1468 = vmatpush1.bf16.msra.mxu0 0
    %1469 = vmatprep.subr.bf16.mxu0 0
    %1470 = vmatpush1.bf16.msra.mxu0 0
    %1471 = vmatprep.subr.bf16.mxu0 0
    %1472 = vmatpush1.bf16.msra.mxu0 0
    %1473 = vmatprep.subr.bf16.mxu0 0
    %1474 = vmatpush1.bf16.msra.mxu0 0
    %1475 = vmatprep.subr.bf16.mxu0 0
    %1476 = vmatpush1.bf16.msra.mxu0 0
    %1477 = vmatprep.subr.bf16.mxu0 0
    %1478 = vmatpush1.bf16.msra.mxu0 0
    %1479 = vmatprep.mubr.bf16.mxu0 0
    %1480 = vmatmul.mubr.bf16.gmra.mrb[0].mxu0 %v1445
    %v1481 = vpop.f32.mrb[0].mxu0
    %v1482 = vadd.f32 0.0, %v1481
    %v1483 = vpop.f32.mrb[0].mxu0
    %v1484 = vpop.f32.mrb[0].mxu0
    %v1485 = vpop.f32.mrb[0].mxu0
    %1486 = vdwg.mxu0
    %v1487 = vadd.f32 %v1332, %v1482
    %s1488 = scalar_lea.vmem %s4, 192
    %v1489 = vld [vmem:[%s1488] sm:$0xf]
    %v1490 = vld [vmem:[%s1488 + $0x4] sm:$0xf]
    %v1491 = vld [vmem:[%s1488 + $0x8] sm:$0xf]
    %v1492 = vld [vmem:[%s1488 + $0xc] sm:$0xf]
    %v1493 = vld [vmem:[%s1488 + $0x10] sm:$0xf]
    %v1494 = vld [vmem:[%s1488 + $0x14] sm:$0xf]
    %v1495 = vld [vmem:[%s1488 + $0x18] sm:$0xf]
    %v1496 = vld [vmem:[%s1488 + $0x1c] sm:$0xf]
    %v1497 = vld [vmem:[%s1488 + $0x20] sm:$0xf]
    %v1498 = vld [vmem:[%s1488 + $0x24] sm:$0xf]
    %v1499 = vld [vmem:[%s1488 + $0x28] sm:$0xf]
    %v1500 = vld [vmem:[%s1488 + $0x2c] sm:$0xf]
    %v1501 = vld [vmem:[%s1488 + $0x30] sm:$0xf]
    %v1502 = vld [vmem:[%s1488 + $0x34] sm:$0xf]
    %v1503 = vld [vmem:[%s1488 + $0x38] sm:$0xf]
    %v1504 = vld [vmem:[%s1488 + $0x3c] sm:$0xf]
    %v1506 = vshrl.u32 %v1350, 16
    %v1508 = vrot.slane %v1506, 1
    %v1526 = vunpack.c.l.b16 %v1489
    %v1527 = vunpack.c.l.b16 %v1490
    %v1528 = vunpack.c.l.b16 %v1491
    %v1529 = vunpack.c.l.b16 %v1492
    %v1530 = vunpack.c.l.b16 %v1493
    %v1531 = vunpack.c.l.b16 %v1494
    %v1532 = vunpack.c.l.b16 %v1495
    %v1533 = vunpack.c.l.b16 %v1496
    %v1534 = vunpack.c.l.b16 %v1497
    %v1535 = vunpack.c.l.b16 %v1498
    %v1536 = vunpack.c.l.b16 %v1499
    %v1537 = vunpack.c.l.b16 %v1500
    %v1538 = vunpack.c.l.b16 %v1501
    %v1539 = vunpack.c.l.b16 %v1502
    %v1540 = vunpack.c.l.b16 %v1503
    %v1541 = vunpack.c.l.b16 %v1504
    %v1542 = vpack.c.b16 %v1527, %v1526
    %v1543 = vpack.c.b16 %v1529, %v1528
    %v1544 = vpack.c.b16 %v1531, %v1530
    %v1545 = vpack.c.b16 %v1533, %v1532
    %v1546 = vpack.c.b16 %v1535, %v1534
    %v1547 = vpack.c.b16 %v1537, %v1536
    %v1548 = vpack.c.b16 %v1539, %v1538
    %v1549 = vpack.c.b16 %v1541, %v1540
    %1558 = vmatprep.subr.bf16.mxu0 0
    %1559 = vmatpush1.bf16.msra.mxu0 %v1542
    %1560 = vmatprep.subr.bf16.mxu0 0
    %1561 = vmatpush1.bf16.msra.mxu0 %v1543
    %1562 = vmatprep.subr.bf16.mxu0 0
    %1563 = vmatpush1.bf16.msra.mxu0 %v1544
    %1564 = vmatprep.subr.bf16.mxu0 0
    %1565 = vmatpush1.bf16.msra.mxu0 %v1545
    %1566 = vmatprep.subr.bf16.mxu0 0
    %1567 = vmatpush1.bf16.msra.mxu0 %v1546
    %1568 = vmatprep.subr.bf16.mxu0 0
    %1569 = vmatpush1.bf16.msra.mxu0 %v1547
    %1570 = vmatprep.subr.bf16.mxu0 0
    %1571 = vmatpush1.bf16.msra.mxu0 %v1548
    %1572 = vmatprep.subr.bf16.mxu0 0
    %1573 = vmatpush1.bf16.msra.mxu0 %v1549
    %1574 = vmatprep.subr.bf16.mxu0 0
    %1575 = vmatpush1.bf16.msra.mxu0 0
    %1576 = vmatprep.subr.bf16.mxu0 0
    %1577 = vmatpush1.bf16.msra.mxu0 0
    %1578 = vmatprep.subr.bf16.mxu0 0
    %1579 = vmatpush1.bf16.msra.mxu0 0
    %1580 = vmatprep.subr.bf16.mxu0 0
    %1581 = vmatpush1.bf16.msra.mxu0 0
    %1582 = vmatprep.subr.bf16.mxu0 0
    %1583 = vmatpush1.bf16.msra.mxu0 0
    %1584 = vmatprep.subr.bf16.mxu0 0
    %1585 = vmatpush1.bf16.msra.mxu0 0
    %1586 = vmatprep.subr.bf16.mxu0 0
    %1587 = vmatpush1.bf16.msra.mxu0 0
    %1588 = vmatprep.subr.bf16.mxu0 0
    %1589 = vmatpush1.bf16.msra.mxu0 0
    %1590 = vmatprep.mubr.bf16.mxu0 0
    %1591 = vmatmul.mubr.bf16.gmra.mrb[0].mxu0 %v1508
    %v1592 = vpop.f32.mrb[0].mxu0
    %v1593 = vadd.f32 0.0, %v1592
    %v1594 = vpop.f32.mrb[0].mxu0
    %v1595 = vpop.f32.mrb[0].mxu0
    %v1596 = vpop.f32.mrb[0].mxu0
    %1597 = vdwg.mxu0
    %v1598 = vadd.f32 %v1442, %v1593
    %v1600 = vshrl.u32 %v1443, 16
    %v1602 = vrot.slane %v1600, 1
    %1604 = vmatprep.subr.bf16.mxu0 0
    %1605 = vmatpush1.bf16.msra.mxu0 %v1542
    %1606 = vmatprep.subr.bf16.mxu0 0
    %1607 = vmatpush1.bf16.msra.mxu0 %v1543
    %1608 = vmatprep.subr.bf16.mxu0 0
    %1609 = vmatpush1.bf16.msra.mxu0 %v1544
    %1610 = vmatprep.subr.bf16.mxu0 0
    %1611 = vmatpush1.bf16.msra.mxu0 %v1545
    %1612 = vmatprep.subr.bf16.mxu0 0
    %1613 = vmatpush1.bf16.msra.mxu0 %v1546
    %1614 = vmatprep.subr.bf16.mxu0 0
    %1615 = vmatpush1.bf16.msra.mxu0 %v1547
    %1616 = vmatprep.subr.bf16.mxu0 0
    %1617 = vmatpush1.bf16.msra.mxu0 %v1548
    %1618 = vmatprep.subr.bf16.mxu0 0
    %1619 = vmatpush1.bf16.msra.mxu0 %v1549
    %1620 = vmatprep.subr.bf16.mxu0 0
    %1621 = vmatpush1.bf16.msra.mxu0 0
    %1622 = vmatprep.subr.bf16.mxu0 0
    %1623 = vmatpush1.bf16.msra.mxu0 0
    %1624 = vmatprep.subr.bf16.mxu0 0
    %1625 = vmatpush1.bf16.msra.mxu0 0
    %1626 = vmatprep.subr.bf16.mxu0 0
    %1627 = vmatpush1.bf16.msra.mxu0 0
    %1628 = vmatprep.subr.bf16.mxu0 0
    %1629 = vmatpush1.bf16.msra.mxu0 0
    %1630 = vmatprep.subr.bf16.mxu0 0
    %1631 = vmatpush1.bf16.msra.mxu0 0
    %1632 = vmatprep.subr.bf16.mxu0 0
    %1633 = vmatpush1.bf16.msra.mxu0 0
    %1634 = vmatprep.subr.bf16.mxu0 0
    %1635 = vmatpush1.bf16.msra.mxu0 0
    %1636 = vmatprep.mubr.bf16.mxu0 0
    %1637 = vmatmul.mubr.bf16.gmra.mrb[0].mxu0 %v1602
    %v1638 = vpop.f32.mrb[0].mxu0
    %v1639 = vadd.f32 0.0, %v1638
    %v1640 = vpop.f32.mrb[0].mxu0
    %v1641 = vpop.f32.mrb[0].mxu0
    %v1642 = vpop.f32.mrb[0].mxu0
    %1643 = vdwg.mxu0
    %v1644 = vadd.f32 %v1487, %v1639
    %s1645 = scalar_lea.vmem %s4, 256
    %v1646 = vld [vmem:[%s1645] sm:$0xf]
    %v1647 = vld [vmem:[%s1645 + $0x4] sm:$0xf]
    %v1648 = vld [vmem:[%s1645 + $0x8] sm:$0xf]
    %v1649 = vld [vmem:[%s1645 + $0xc] sm:$0xf]
    %v1650 = vld [vmem:[%s1645 + $0x10] sm:$0xf]
    %v1651 = vld [vmem:[%s1645 + $0x14] sm:$0xf]
    %v1652 = vld [vmem:[%s1645 + $0x18] sm:$0xf]
    %v1653 = vld [vmem:[%s1645 + $0x1c] sm:$0xf]
    %v1654 = vld [vmem:[%s1645 + $0x20] sm:$0xf]
    %v1655 = vld [vmem:[%s1645 + $0x24] sm:$0xf]
    %v1656 = vld [vmem:[%s1645 + $0x28] sm:$0xf]
    %v1657 = vld [vmem:[%s1645 + $0x2c] sm:$0xf]
    %v1658 = vld [vmem:[%s1645 + $0x30] sm:$0xf]
    %v1659 = vld [vmem:[%s1645 + $0x34] sm:$0xf]
    %v1660 = vld [vmem:[%s1645 + $0x38] sm:$0xf]
    %v1661 = vld [vmem:[%s1645 + $0x3c] sm:$0xf]
    %v1662 = vld [vmem:[#allocation2] sm:$0x4]
    %v1664 = vrot.slane %v1662, 2
    %v1682 = vunpack.c.l.b16 %v1646
    %v1683 = vunpack.c.l.b16 %v1647
    %v1684 = vunpack.c.l.b16 %v1648
    %v1685 = vunpack.c.l.b16 %v1649
    %v1686 = vunpack.c.l.b16 %v1650
    %v1687 = vunpack.c.l.b16 %v1651
    %v1688 = vunpack.c.l.b16 %v1652
    %v1689 = vunpack.c.l.b16 %v1653
    %v1690 = vunpack.c.l.b16 %v1654
    %v1691 = vunpack.c.l.b16 %v1655
    %v1692 = vunpack.c.l.b16 %v1656
    %v1693 = vunpack.c.l.b16 %v1657
    %v1694 = vunpack.c.l.b16 %v1658
    %v1695 = vunpack.c.l.b16 %v1659
    %v1696 = vunpack.c.l.b16 %v1660
    %v1697 = vunpack.c.l.b16 %v1661
    %v1698 = vpack.c.b16 %v1683, %v1682
    %v1699 = vpack.c.b16 %v1685, %v1684
    %v1700 = vpack.c.b16 %v1687, %v1686
    %v1701 = vpack.c.b16 %v1689, %v1688
    %v1702 = vpack.c.b16 %v1691, %v1690
    %v1703 = vpack.c.b16 %v1693, %v1692
    %v1704 = vpack.c.b16 %v1695, %v1694
    %v1705 = vpack.c.b16 %v1697, %v1696
    %1714 = vmatprep.subr.bf16.mxu0 0
    %1715 = vmatpush1.bf16.msra.mxu0 %v1698
    %1716 = vmatprep.subr.bf16.mxu0 0
    %1717 = vmatpush1.bf16.msra.mxu0 %v1699
    %1718 = vmatprep.subr.bf16.mxu0 0
    %1719 = vmatpush1.bf16.msra.mxu0 %v1700
    %1720 = vmatprep.subr.bf16.mxu0 0
    %1721 = vmatpush1.bf16.msra.mxu0 %v1701
    %1722 = vmatprep.subr.bf16.mxu0 0
    %1723 = vmatpush1.bf16.msra.mxu0 %v1702
    %1724 = vmatprep.subr.bf16.mxu0 0
    %1725 = vmatpush1.bf16.msra.mxu0 %v1703
    %1726 = vmatprep.subr.bf16.mxu0 0
    %1727 = vmatpush1.bf16.msra.mxu0 %v1704
    %1728 = vmatprep.subr.bf16.mxu0 0
    %1729 = vmatpush1.bf16.msra.mxu0 %v1705
    %1730 = vmatprep.subr.bf16.mxu0 0
    %1731 = vmatpush1.bf16.msra.mxu0 0
    %1732 = vmatprep.subr.bf16.mxu0 0
    %1733 = vmatpush1.bf16.msra.mxu0 0
    %1734 = vmatprep.subr.bf16.mxu0 0
    %1735 = vmatpush1.bf16.msra.mxu0 0
    %1736 = vmatprep.subr.bf16.mxu0 0
    %1737 = vmatpush1.bf16.msra.mxu0 0
    %1738 = vmatprep.subr.bf16.mxu0 0
    %1739 = vmatpush1.bf16.msra.mxu0 0
    %1740 = vmatprep.subr.bf16.mxu0 0
    %1741 = vmatpush1.bf16.msra.mxu0 0
    %1742 = vmatprep.subr.bf16.mxu0 0
    %1743 = vmatpush1.bf16.msra.mxu0 0
    %1744 = vmatprep.subr.bf16.mxu0 0
    %1745 = vmatpush1.bf16.msra.mxu0 0
    %1746 = vmatprep.mubr.bf16.mxu0 0
    %1747 = vmatmul.mubr.bf16.gmra.mrb[0].mxu0 %v1664
    %v1748 = vpop.f32.mrb[0].mxu0
    %v1749 = vadd.f32 0.0, %v1748
    %v1750 = vpop.f32.mrb[0].mxu0
    %v1751 = vpop.f32.mrb[0].mxu0
    %v1752 = vpop.f32.mrb[0].mxu0
    %1753 = vdwg.mxu0
    %v1754 = vadd.f32 %v1598, %v1749
    %v1755 = vld [vmem:[#allocation2 + $0x8] sm:$0x4]
    %v1757 = vrot.slane %v1755, 2
    %1759 = vmatprep.subr.bf16.mxu0 0
    %1760 = vmatpush1.bf16.msra.mxu0 %v1698
    %1761 = vmatprep.subr.bf16.mxu0 0
    %1762 = vmatpush1.bf16.msra.mxu0 %v1699
    %1763 = vmatprep.subr.bf16.mxu0 0
    %1764 = vmatpush1.bf16.msra.mxu0 %v1700
    %1765 = vmatprep.subr.bf16.mxu0 0
    %1766 = vmatpush1.bf16.msra.mxu0 %v1701
    %1767 = vmatprep.subr.bf16.mxu0 0
    %1768 = vmatpush1.bf16.msra.mxu0 %v1702
    %1769 = vmatprep.subr.bf16.mxu0 0
    %1770 = vmatpush1.bf16.msra.mxu0 %v1703
    %1771 = vmatprep.subr.bf16.mxu0 0
    %1772 = vmatpush1.bf16.msra.mxu0 %v1704
    %1773 = vmatprep.subr.bf16.mxu0 0
    %1774 = vmatpush1.bf16.msra.mxu0 %v1705
    %1775 = vmatprep.subr.bf16.mxu0 0
    %1776 = vmatpush1.bf16.msra.mxu0 0
    %1777 = vmatprep.subr.bf16.mxu0 0
    %1778 = vmatpush1.bf16.msra.mxu0 0
    %1779 = vmatprep.subr.bf16.mxu0 0
    %1780 = vmatpush1.bf16.msra.mxu0 0
    %1781 = vmatprep.subr.bf16.mxu0 0
    %1782 = vmatpush1.bf16.msra.mxu0 0
    %1783 = vmatprep.subr.bf16.mxu0 0
    %1784 = vmatpush1.bf16.msra.mxu0 0
    %1785 = vmatprep.subr.bf16.mxu0 0
    %1786 = vmatpush1.bf16.msra.mxu0 0
    %1787 = vmatprep.subr.bf16.mxu0 0
    %1788 = vmatpush1.bf16.msra.mxu0 0
    %1789 = vmatprep.subr.bf16.mxu0 0
    %1790 = vmatpush1.bf16.msra.mxu0 0
    %1791 = vmatprep.mubr.bf16.mxu0 0
    %1792 = vmatmul.mubr.bf16.gmra.mrb[0].mxu0 %v1757
    %v1793 = vpop.f32.mrb[0].mxu0
    %v1794 = vadd.f32 0.0, %v1793
    %v1795 = vpop.f32.mrb[0].mxu0
    %v1796 = vpop.f32.mrb[0].mxu0
    %v1797 = vpop.f32.mrb[0].mxu0
    %1798 = vdwg.mxu0
    %v1799 = vadd.f32 %v1644, %v1794
    %s1800 = scalar_lea.vmem %s4, 320
    %v1801 = vld [vmem:[%s1800] sm:$0xf]
    %v1802 = vld [vmem:[%s1800 + $0x4] sm:$0xf]
    %v1803 = vld [vmem:[%s1800 + $0x8] sm:$0xf]
    %v1804 = vld [vmem:[%s1800 + $0xc] sm:$0xf]
    %v1805 = vld [vmem:[%s1800 + $0x10] sm:$0xf]
    %v1806 = vld [vmem:[%s1800 + $0x14] sm:$0xf]
    %v1807 = vld [vmem:[%s1800 + $0x18] sm:$0xf]
    %v1808 = vld [vmem:[%s1800 + $0x1c] sm:$0xf]
    %v1809 = vld [vmem:[%s1800 + $0x20] sm:$0xf]
    %v1810 = vld [vmem:[%s1800 + $0x24] sm:$0xf]
    %v1811 = vld [vmem:[%s1800 + $0x28] sm:$0xf]
    %v1812 = vld [vmem:[%s1800 + $0x2c] sm:$0xf]
    %v1813 = vld [vmem:[%s1800 + $0x30] sm:$0xf]
    %v1814 = vld [vmem:[%s1800 + $0x34] sm:$0xf]
    %v1815 = vld [vmem:[%s1800 + $0x38] sm:$0xf]
    %v1816 = vld [vmem:[%s1800 + $0x3c] sm:$0xf]
    %v1818 = vshrl.u32 %v1662, 16
    %v1820 = vrot.slane %v1818, 2
    %v1838 = vunpack.c.l.b16 %v1801
    %v1839 = vunpack.c.l.b16 %v1802
    %v1840 = vunpack.c.l.b16 %v1803
    %v1841 = vunpack.c.l.b16 %v1804
    %v1842 = vunpack.c.l.b16 %v1805
    %v1843 = vunpack.c.l.b16 %v1806
    %v1844 = vunpack.c.l.b16 %v1807
    %v1845 = vunpack.c.l.b16 %v1808
    %v1846 = vunpack.c.l.b16 %v1809
    %v1847 = vunpack.c.l.b16 %v1810
    %v1848 = vunpack.c.l.b16 %v1811
    %v1849 = vunpack.c.l.b16 %v1812
    %v1850 = vunpack.c.l.b16 %v1813
    %v1851 = vunpack.c.l.b16 %v1814
    %v1852 = vunpack.c.l.b16 %v1815
    %v1853 = vunpack.c.l.b16 %v1816
    %v1854 = vpack.c.b16 %v1839, %v1838
    %v1855 = vpack.c.b16 %v1841, %v1840
    %v1856 = vpack.c.b16 %v1843, %v1842
    %v1857 = vpack.c.b16 %v1845, %v1844
    %v1858 = vpack.c.b16 %v1847, %v1846
    %v1859 = vpack.c.b16 %v1849, %v1848
    %v1860 = vpack.c.b16 %v1851, %v1850
    %v1861 = vpack.c.b16 %v1853, %v1852
    %1870 = vmatprep.subr.bf16.mxu0 0
    %1871 = vmatpush1.bf16.msra.mxu0 %v1854
    %1872 = vmatprep.subr.bf16.mxu0 0
    %1873 = vmatpush1.bf16.msra.mxu0 %v1855
    %1874 = vmatprep.subr.bf16.mxu0 0
    %1875 = vmatpush1.bf16.msra.mxu0 %v1856
    %1876 = vmatprep.subr.bf16.mxu0 0
    %1877 = vmatpush1.bf16.msra.mxu0 %v1857
    %1878 = vmatprep.subr.bf16.mxu0 0
    %1879 = vmatpush1.bf16.msra.mxu0 %v1858
    %1880 = vmatprep.subr.bf16.mxu0 0
    %1881 = vmatpush1.bf16.msra.mxu0 %v1859
    %1882 = vmatprep.subr.bf16.mxu0 0
    %1883 = vmatpush1.bf16.msra.mxu0 %v1860
    %1884 = vmatprep.subr.bf16.mxu0 0
    %1885 = vmatpush1.bf16.msra.mxu0 %v1861
    %1886 = vmatprep.subr.bf16.mxu0 0
    %1887 = vmatpush1.bf16.msra.mxu0 0
    %1888 = vmatprep.subr.bf16.mxu0 0
    %1889 = vmatpush1.bf16.msra.mxu0 0
    %1890 = vmatprep.subr.bf16.mxu0 0
    %1891 = vmatpush1.bf16.msra.mxu0 0
    %1892 = vmatprep.subr.bf16.mxu0 0
    %1893 = vmatpush1.bf16.msra.mxu0 0
    %1894 = vmatprep.subr.bf16.mxu0 0
    %1895 = vmatpush1.bf16.msra.mxu0 0
    %1896 = vmatprep.subr.bf16.mxu0 0
    %1897 = vmatpush1.bf16.msra.mxu0 0
    %1898 = vmatprep.subr.bf16.mxu0 0
    %1899 = vmatpush1.bf16.msra.mxu0 0
    %1900 = vmatprep.subr.bf16.mxu0 0
    %1901 = vmatpush1.bf16.msra.mxu0 0
    %1902 = vmatprep.mubr.bf16.mxu0 0
    %1903 = vmatmul.mubr.bf16.gmra.mrb[0].mxu0 %v1820
    %v1904 = vpop.f32.mrb[0].mxu0
    %v1905 = vadd.f32 0.0, %v1904
    %v1906 = vpop.f32.mrb[0].mxu0
    %v1907 = vpop.f32.mrb[0].mxu0
    %v1908 = vpop.f32.mrb[0].mxu0
    %1909 = vdwg.mxu0
    %v1910 = vadd.f32 %v1754, %v1905
    %v1912 = vshrl.u32 %v1755, 16
    %v1914 = vrot.slane %v1912, 2
    %1916 = vmatprep.subr.bf16.mxu0 0
    %1917 = vmatpush1.bf16.msra.mxu0 %v1854
    %1918 = vmatprep.subr.bf16.mxu0 0
    %1919 = vmatpush1.bf16.msra.mxu0 %v1855
    %1920 = vmatprep.subr.bf16.mxu0 0
    %1921 = vmatpush1.bf16.msra.mxu0 %v1856
    %1922 = vmatprep.subr.bf16.mxu0 0
    %1923 = vmatpush1.bf16.msra.mxu0 %v1857
    %1924 = vmatprep.subr.bf16.mxu0 0
    %1925 = vmatpush1.bf16.msra.mxu0 %v1858
    %1926 = vmatprep.subr.bf16.mxu0 0
    %1927 = vmatpush1.bf16.msra.mxu0 %v1859
    %1928 = vmatprep.subr.bf16.mxu0 0
    %1929 = vmatpush1.bf16.msra.mxu0 %v1860
    %1930 = vmatprep.subr.bf16.mxu0 0
    %1931 = vmatpush1.bf16.msra.mxu0 %v1861
    %1932 = vmatprep.subr.bf16.mxu0 0
    %1933 = vmatpush1.bf16.msra.mxu0 0
    %1934 = vmatprep.subr.bf16.mxu0 0
    %1935 = vmatpush1.bf16.msra.mxu0 0
    %1936 = vmatprep.subr.bf16.mxu0 0
    %1937 = vmatpush1.bf16.msra.mxu0 0
    %1938 = vmatprep.subr.bf16.mxu0 0
    %1939 = vmatpush1.bf16.msra.mxu0 0
    %1940 = vmatprep.subr.bf16.mxu0 0
    %1941 = vmatpush1.bf16.msra.mxu0 0
    %1942 = vmatprep.subr.bf16.mxu0 0
    %1943 = vmatpush1.bf16.msra.mxu0 0
    %1944 = vmatprep.subr.bf16.mxu0 0
    %1945 = vmatpush1.bf16.msra.mxu0 0
    %1946 = vmatprep.subr.bf16.mxu0 0
    %1947 = vmatpush1.bf16.msra.mxu0 0
    %1948 = vmatprep.mubr.bf16.mxu0 0
    %1949 = vmatmul.mubr.bf16.gmra.mrb[0].mxu0 %v1914
    %v1950 = vpop.f32.mrb[0].mxu0
    %v1951 = vadd.f32 0.0, %v1950
    %v1952 = vpop.f32.mrb[0].mxu0
    %v1953 = vpop.f32.mrb[0].mxu0
    %v1954 = vpop.f32.mrb[0].mxu0
    %1955 = vdwg.mxu0
    %v1956 = vadd.f32 %v1799, %v1951
    %s1957 = scalar_lea.vmem %s4, 384
    %v1958 = vld [vmem:[%s1957] sm:$0xf]
    %v1959 = vld [vmem:[%s1957 + $0x4] sm:$0xf]
    %v1960 = vld [vmem:[%s1957 + $0x8] sm:$0xf]
    %v1961 = vld [vmem:[%s1957 + $0xc] sm:$0xf]
    %v1962 = vld [vmem:[%s1957 + $0x10] sm:$0xf]
    %v1963 = vld [vmem:[%s1957 + $0x14] sm:$0xf]
    %v1964 = vld [vmem:[%s1957 + $0x18] sm:$0xf]
    %v1965 = vld [vmem:[%s1957 + $0x1c] sm:$0xf]
    %v1966 = vld [vmem:[%s1957 + $0x20] sm:$0xf]
    %v1967 = vld [vmem:[%s1957 + $0x24] sm:$0xf]
    %v1968 = vld [vmem:[%s1957 + $0x28] sm:$0xf]
    %v1969 = vld [vmem:[%s1957 + $0x2c] sm:$0xf]
    %v1970 = vld [vmem:[%s1957 + $0x30] sm:$0xf]
    %v1971 = vld [vmem:[%s1957 + $0x34] sm:$0xf]
    %v1972 = vld [vmem:[%s1957 + $0x38] sm:$0xf]
    %v1973 = vld [vmem:[%s1957 + $0x3c] sm:$0xf]
    %v1974 = vld [vmem:[#allocation2] sm:$0x8]
    %v1976 = vrot.slane %v1974, 3
    %v1994 = vunpack.c.l.b16 %v1958
    %v1995 = vunpack.c.l.b16 %v1959
    %v1996 = vunpack.c.l.b16 %v1960
    %v1997 = vunpack.c.l.b16 %v1961
    %v1998 = vunpack.c.l.b16 %v1962
    %v1999 = vunpack.c.l.b16 %v1963
    %v2000 = vunpack.c.l.b16 %v1964
    %v2001 = vunpack.c.l.b16 %v1965
    %v2002 = vunpack.c.l.b16 %v1966
    %v2003 = vunpack.c.l.b16 %v1967
    %v2004 = vunpack.c.l.b16 %v1968
    %v2005 = vunpack.c.l.b16 %v1969
    %v2006 = vunpack.c.l.b16 %v1970
    %v2007 = vunpack.c.l.b16 %v1971
    %v2008 = vunpack.c.l.b16 %v1972
    %v2009 = vunpack.c.l.b16 %v1973
    %v2010 = vpack.c.b16 %v1995, %v1994
    %v2011 = vpack.c.b16 %v1997, %v1996
    %v2012 = vpack.c.b16 %v1999, %v1998
    %v2013 = vpack.c.b16 %v2001, %v2000
    %v2014 = vpack.c.b16 %v2003, %v2002
    %v2015 = vpack.c.b16 %v2005, %v2004
    %v2016 = vpack.c.b16 %v2007, %v2006
    %v2017 = vpack.c.b16 %v2009, %v2008
    %2026 = vmatprep.subr.bf16.mxu0 0
    %2027 = vmatpush1.bf16.msra.mxu0 %v2010
    %2028 = vmatprep.subr.bf16.mxu0 0
    %2029 = vmatpush1.bf16.msra.mxu0 %v2011
    %2030 = vmatprep.subr.bf16.mxu0 0
    %2031 = vmatpush1.bf16.msra.mxu0 %v2012
    %2032 = vmatprep.subr.bf16.mxu0 0
    %2033 = vmatpush1.bf16.msra.mxu0 %v2013
    %2034 = vmatprep.subr.bf16.mxu0 0
    %2035 = vmatpush1.bf16.msra.mxu0 %v2014
    %2036 = vmatprep.subr.bf16.mxu0 0
    %2037 = vmatpush1.bf16.msra.mxu0 %v2015
    %2038 = vmatprep.subr.bf16.mxu0 0
    %2039 = vmatpush1.bf16.msra.mxu0 %v2016
    %2040 = vmatprep.subr.bf16.mxu0 0
    %2041 = vmatpush1.bf16.msra.mxu0 %v2017
    %2042 = vmatprep.subr.bf16.mxu0 0
    %2043 = vmatpush1.bf16.msra.mxu0 0
    %2044 = vmatprep.subr.bf16.mxu0 0
    %2045 = vmatpush1.bf16.msra.mxu0 0
    %2046 = vmatprep.subr.bf16.mxu0 0
    %2047 = vmatpush1.bf16.msra.mxu0 0
    %2048 = vmatprep.subr.bf16.mxu0 0
    %2049 = vmatpush1.bf16.msra.mxu0 0
    %2050 = vmatprep.subr.bf16.mxu0 0
    %2051 = vmatpush1.bf16.msra.mxu0 0
    %2052 = vmatprep.subr.bf16.mxu0 0
    %2053 = vmatpush1.bf16.msra.mxu0 0
    %2054 = vmatprep.subr.bf16.mxu0 0
    %2055 = vmatpush1.bf16.msra.mxu0 0
    %2056 = vmatprep.subr.bf16.mxu0 0
    %2057 = vmatpush1.bf16.msra.mxu0 0
    %2058 = vmatprep.mubr.bf16.mxu0 0
    %2059 = vmatmul.mubr.bf16.gmra.mrb[0].mxu0 %v1976
    %v2060 = vpop.f32.mrb[0].mxu0
    %v2061 = vadd.f32 0.0, %v2060
    %v2062 = vpop.f32.mrb[0].mxu0
    %v2063 = vpop.f32.mrb[0].mxu0
    %v2064 = vpop.f32.mrb[0].mxu0
    %2065 = vdwg.mxu0
    %v2066 = vadd.f32 %v1910, %v2061
    %v2067 = vld [vmem:[#allocation2 + $0x8] sm:$0x8]
    %v2069 = vrot.slane %v2067, 3
    %2071 = vmatprep.subr.bf16.mxu0 0
    %2072 = vmatpush1.bf16.msra.mxu0 %v2010
    %2073 = vmatprep.subr.bf16.mxu0 0
    %2074 = vmatpush1.bf16.msra.mxu0 %v2011
    %2075 = vmatprep.subr.bf16.mxu0 0
    %2076 = vmatpush1.bf16.msra.mxu0 %v2012
    %2077 = vmatprep.subr.bf16.mxu0 0
    %2078 = vmatpush1.bf16.msra.mxu0 %v2013
    %2079 = vmatprep.subr.bf16.mxu0 0
    %2080 = vmatpush1.bf16.msra.mxu0 %v2014
    %2081 = vmatprep.subr.bf16.mxu0 0
    %2082 = vmatpush1.bf16.msra.mxu0 %v2015
    %2083 = vmatprep.subr.bf16.mxu0 0
    %2084 = vmatpush1.bf16.msra.mxu0 %v2016
    %2085 = vmatprep.subr.bf16.mxu0 0
    %2086 = vmatpush1.bf16.msra.mxu0 %v2017
    %2087 = vmatprep.subr.bf16.mxu0 0
    %2088 = vmatpush1.bf16.msra.mxu0 0
    %2089 = vmatprep.subr.bf16.mxu0 0
    %2090 = vmatpush1.bf16.msra.mxu0 0
    %2091 = vmatprep.subr.bf16.mxu0 0
    %2092 = vmatpush1.bf16.msra.mxu0 0
    %2093 = vmatprep.subr.bf16.mxu0 0
    %2094 = vmatpush1.bf16.msra.mxu0 0
    %2095 = vmatprep.subr.bf16.mxu0 0
    %2096 = vmatpush1.bf16.msra.mxu0 0
    %2097 = vmatprep.subr.bf16.mxu0 0
    %2098 = vmatpush1.bf16.msra.mxu0 0
    %2099 = vmatprep.subr.bf16.mxu0 0
    %2100 = vmatpush1.bf16.msra.mxu0 0
    %2101 = vmatprep.subr.bf16.mxu0 0
    %2102 = vmatpush1.bf16.msra.mxu0 0
    %2103 = vmatprep.mubr.bf16.mxu0 0
    %2104 = vmatmul.mubr.bf16.gmra.mrb[0].mxu0 %v2069
    %v2105 = vpop.f32.mrb[0].mxu0
    %v2106 = vadd.f32 0.0, %v2105
    %v2107 = vpop.f32.mrb[0].mxu0
    %v2108 = vpop.f32.mrb[0].mxu0
    %v2109 = vpop.f32.mrb[0].mxu0
    %2110 = vdwg.mxu0
    %v2111 = vadd.f32 %v1956, %v2106
    %s2112 = scalar_lea.vmem %s4, 448
    %v2113 = vld [vmem:[%s2112] sm:$0xf]
    %v2114 = vld [vmem:[%s2112 + $0x4] sm:$0xf]
    %v2115 = vld [vmem:[%s2112 + $0x8] sm:$0xf]
    %v2116 = vld [vmem:[%s2112 + $0xc] sm:$0xf]
    %v2117 = vld [vmem:[%s2112 + $0x10] sm:$0xf]
    %v2118 = vld [vmem:[%s2112 + $0x14] sm:$0xf]
    %v2119 = vld [vmem:[%s2112 + $0x18] sm:$0xf]
    %v2120 = vld [vmem:[%s2112 + $0x1c] sm:$0xf]
    %v2121 = vld [vmem:[%s2112 + $0x20] sm:$0xf]
    %v2122 = vld [vmem:[%s2112 + $0x24] sm:$0xf]
    %v2123 = vld [vmem:[%s2112 + $0x28] sm:$0xf]
    %v2124 = vld [vmem:[%s2112 + $0x2c] sm:$0xf]
    %v2125 = vld [vmem:[%s2112 + $0x30] sm:$0xf]
    %v2126 = vld [vmem:[%s2112 + $0x34] sm:$0xf]
    %v2127 = vld [vmem:[%s2112 + $0x38] sm:$0xf]
    %v2128 = vld [vmem:[%s2112 + $0x3c] sm:$0xf]
    %v2130 = vshrl.u32 %v1974, 16
    %v2132 = vrot.slane %v2130, 3
    %v2150 = vunpack.c.l.b16 %v2113
    %v2151 = vunpack.c.l.b16 %v2114
    %v2152 = vunpack.c.l.b16 %v2115
    %v2153 = vunpack.c.l.b16 %v2116
    %v2154 = vunpack.c.l.b16 %v2117
    %v2155 = vunpack.c.l.b16 %v2118
    %v2156 = vunpack.c.l.b16 %v2119
    %v2157 = vunpack.c.l.b16 %v2120
    %v2158 = vunpack.c.l.b16 %v2121
    %v2159 = vunpack.c.l.b16 %v2122
    %v2160 = vunpack.c.l.b16 %v2123
    %v2161 = vunpack.c.l.b16 %v2124
    %v2162 = vunpack.c.l.b16 %v2125
    %v2163 = vunpack.c.l.b16 %v2126
    %v2164 = vunpack.c.l.b16 %v2127
    %v2165 = vunpack.c.l.b16 %v2128
    %v2166 = vpack.c.b16 %v2151, %v2150
    %v2167 = vpack.c.b16 %v2153, %v2152
    %v2168 = vpack.c.b16 %v2155, %v2154
    %v2169 = vpack.c.b16 %v2157, %v2156
    %v2170 = vpack.c.b16 %v2159, %v2158
    %v2171 = vpack.c.b16 %v2161, %v2160
    %v2172 = vpack.c.b16 %v2163, %v2162
    %v2173 = vpack.c.b16 %v2165, %v2164
    %2182 = vmatprep.subr.bf16.mxu0 0
    %2183 = vmatpush1.bf16.msra.mxu0 %v2166
    %2184 = vmatprep.subr.bf16.mxu0 0
    %2185 = vmatpush1.bf16.msra.mxu0 %v2167
    %2186 = vmatprep.subr.bf16.mxu0 0
    %2187 = vmatpush1.bf16.msra.mxu0 %v2168
    %2188 = vmatprep.subr.bf16.mxu0 0
    %2189 = vmatpush1.bf16.msra.mxu0 %v2169
    %2190 = vmatprep.subr.bf16.mxu0 0
    %2191 = vmatpush1.bf16.msra.mxu0 %v2170
    %2192 = vmatprep.subr.bf16.mxu0 0
    %2193 = vmatpush1.bf16.msra.mxu0 %v2171
    %2194 = vmatprep.subr.bf16.mxu0 0
    %2195 = vmatpush1.bf16.msra.mxu0 %v2172
    %2196 = vmatprep.subr.bf16.mxu0 0
    %2197 = vmatpush1.bf16.msra.mxu0 %v2173
    %2198 = vmatprep.subr.bf16.mxu0 0
    %2199 = vmatpush1.bf16.msra.mxu0 0
    %2200 = vmatprep.subr.bf16.mxu0 0
    %2201 = vmatpush1.bf16.msra.mxu0 0
    %2202 = vmatprep.subr.bf16.mxu0 0
    %2203 = vmatpush1.bf16.msra.mxu0 0
    %2204 = vmatprep.subr.bf16.mxu0 0
    %2205 = vmatpush1.bf16.msra.mxu0 0
    %2206 = vmatprep.subr.bf16.mxu0 0
    %2207 = vmatpush1.bf16.msra.mxu0 0
    %2208 = vmatprep.subr.bf16.mxu0 0
    %2209 = vmatpush1.bf16.msra.mxu0 0
    %2210 = vmatprep.subr.bf16.mxu0 0
    %2211 = vmatpush1.bf16.msra.mxu0 0
    %2212 = vmatprep.subr.bf16.mxu0 0
    %2213 = vmatpush1.bf16.msra.mxu0 0
    %2214 = vmatprep.mubr.bf16.mxu0 0
    %2215 = vmatmul.mubr.bf16.gmra.mrb[0].mxu0 %v2132
    %v2216 = vpop.f32.mrb[0].mxu0
    %v2217 = vadd.f32 0.0, %v2216
    %v2218 = vpop.f32.mrb[0].mxu0
    %v2219 = vpop.f32.mrb[0].mxu0
    %v2220 = vpop.f32.mrb[0].mxu0
    %2221 = vdwg.mxu0
    %v2222 = vadd.f32 %v2066, %v2217
    %v2224 = vshrl.u32 %v2067, 16
    %v2226 = vrot.slane %v2224, 3
    %2228 = vmatprep.subr.bf16.mxu0 0
    %2229 = vmatpush1.bf16.msra.mxu0 %v2166
    %2230 = vmatprep.subr.bf16.mxu0 0
    %2231 = vmatpush1.bf16.msra.mxu0 %v2167
    %2232 = vmatprep.subr.bf16.mxu0 0
    %2233 = vmatpush1.bf16.msra.mxu0 %v2168
    %2234 = vmatprep.subr.bf16.mxu0 0
    %2235 = vmatpush1.bf16.msra.mxu0 %v2169
    %2236 = vmatprep.subr.bf16.mxu0 0
    %2237 = vmatpush1.bf16.msra.mxu0 %v2170
    %2238 = vmatprep.subr.bf16.mxu0 0
    %2239 = vmatpush1.bf16.msra.mxu0 %v2171
    %2240 = vmatprep.subr.bf16.mxu0 0
    %2241 = vmatpush1.bf16.msra.mxu0 %v2172
    %2242 = vmatprep.subr.bf16.mxu0 0
    %2243 = vmatpush1.bf16.msra.mxu0 %v2173
    %2244 = vmatprep.subr.bf16.mxu0 0
    %2245 = vmatpush1.bf16.msra.mxu0 0
    %2246 = vmatprep.subr.bf16.mxu0 0
    %2247 = vmatpush1.bf16.msra.mxu0 0
    %2248 = vmatprep.subr.bf16.mxu0 0
    %2249 = vmatpush1.bf16.msra.mxu0 0
    %2250 = vmatprep.subr.bf16.mxu0 0
    %2251 = vmatpush1.bf16.msra.mxu0 0
    %2252 = vmatprep.subr.bf16.mxu0 0
    %2253 = vmatpush1.bf16.msra.mxu0 0
    %2254 = vmatprep.subr.bf16.mxu0 0
    %2255 = vmatpush1.bf16.msra.mxu0 0
    %2256 = vmatprep.subr.bf16.mxu0 0
    %2257 = vmatpush1.bf16.msra.mxu0 0
    %2258 = vmatprep.subr.bf16.mxu0 0
    %2259 = vmatpush1.bf16.msra.mxu0 0
    %2260 = vmatprep.mubr.bf16.mxu0 0
    %2261 = vmatmul.mubr.bf16.gmra.mrb[0].mxu0 %v2226
    %v2262 = vpop.f32.mrb[0].mxu0
    %v2263 = vadd.f32 0.0, %v2262
    %v2264 = vpop.f32.mrb[0].mxu0
    %v2265 = vpop.f32.mrb[0].mxu0
    %v2266 = vpop.f32.mrb[0].mxu0
    %2267 = vdwg.mxu0
    %v2268 = vadd.f32 %v2111, %v2263
    %s2269 = scalar_lea.vmem %s4, 512
    %v2270 = vld [vmem:[%s2269] sm:$0xf]
    %v2271 = vld [vmem:[%s2269 + $0x4] sm:$0xf]
    %v2272 = vld [vmem:[%s2269 + $0x8] sm:$0xf]
    %v2273 = vld [vmem:[%s2269 + $0xc] sm:$0xf]
    %v2274 = vld [vmem:[%s2269 + $0x10] sm:$0xf]
    %v2275 = vld [vmem:[%s2269 + $0x14] sm:$0xf]
    %v2276 = vld [vmem:[%s2269 + $0x18] sm:$0xf]
    %v2277 = vld [vmem:[%s2269 + $0x1c] sm:$0xf]
    %v2278 = vld [vmem:[%s2269 + $0x20] sm:$0xf]
    %v2279 = vld [vmem:[%s2269 + $0x24] sm:$0xf]
    %v2280 = vld [vmem:[%s2269 + $0x28] sm:$0xf]
    %v2281 = vld [vmem:[%s2269 + $0x2c] sm:$0xf]
    %v2282 = vld [vmem:[%s2269 + $0x30] sm:$0xf]
    %v2283 = vld [vmem:[%s2269 + $0x34] sm:$0xf]
    %v2284 = vld [vmem:[%s2269 + $0x38] sm:$0xf]
    %v2285 = vld [vmem:[%s2269 + $0x3c] sm:$0xf]
    %v2286 = vld [vmem:[#allocation2] sm:$0x10]
    %v2288 = vrot.slane %v2286, 4
    %v2306 = vunpack.c.l.b16 %v2270
    %v2307 = vunpack.c.l.b16 %v2271
    %v2308 = vunpack.c.l.b16 %v2272
    %v2309 = vunpack.c.l.b16 %v2273
    %v2310 = vunpack.c.l.b16 %v2274
    %v2311 = vunpack.c.l.b16 %v2275
    %v2312 = vunpack.c.l.b16 %v2276
    %v2313 = vunpack.c.l.b16 %v2277
    %v2314 = vunpack.c.l.b16 %v2278
    %v2315 = vunpack.c.l.b16 %v2279
    %v2316 = vunpack.c.l.b16 %v2280
    %v2317 = vunpack.c.l.b16 %v2281
    %v2318 = vunpack.c.l.b16 %v2282
    %v2319 = vunpack.c.l.b16 %v2283
    %v2320 = vunpack.c.l.b16 %v2284
    %v2321 = vunpack.c.l.b16 %v2285
    %v2322 = vpack.c.b16 %v2307, %v2306
    %v2323 = vpack.c.b16 %v2309, %v2308
    %v2324 = vpack.c.b16 %v2311, %v2310
    %v2325 = vpack.c.b16 %v2313, %v2312
    %v2326 = vpack.c.b16 %v2315, %v2314
    %v2327 = vpack.c.b16 %v2317, %v2316
    %v2328 = vpack.c.b16 %v2319, %v2318
    %v2329 = vpack.c.b16 %v2321, %v2320
    %2338 = vmatprep.subr.bf16.mxu0 0
    %2339 = vmatpush1.bf16.msra.mxu0 %v2322
    %2340 = vmatprep.subr.bf16.mxu0 0
    %2341 = vmatpush1.bf16.msra.mxu0 %v2323
    %2342 = vmatprep.subr.bf16.mxu0 0
    %2343 = vmatpush1.bf16.msra.mxu0 %v2324
    %2344 = vmatprep.subr.bf16.mxu0 0
    %2345 = vmatpush1.bf16.msra.mxu0 %v2325
    %2346 = vmatprep.subr.bf16.mxu0 0
    %2347 = vmatpush1.bf16.msra.mxu0 %v2326
    %2348 = vmatprep.subr.bf16.mxu0 0
    %2349 = vmatpush1.bf16.msra.mxu0 %v2327
    %2350 = vmatprep.subr.bf16.mxu0 0
    %2351 = vmatpush1.bf16.msra.mxu0 %v2328
    %2352 = vmatprep.subr.bf16.mxu0 0
    %2353 = vmatpush1.bf16.msra.mxu0 %v2329
    %2354 = vmatprep.subr.bf16.mxu0 0
    %2355 = vmatpush1.bf16.msra.mxu0 0
    %2356 = vmatprep.subr.bf16.mxu0 0
    %2357 = vmatpush1.bf16.msra.mxu0 0
    %2358 = vmatprep.subr.bf16.mxu0 0
    %2359 = vmatpush1.bf16.msra.mxu0 0
    %2360 = vmatprep.subr.bf16.mxu0 0
    %2361 = vmatpush1.bf16.msra.mxu0 0
    %2362 = vmatprep.subr.bf16.mxu0 0
    %2363 = vmatpush1.bf16.msra.mxu0 0
    %2364 = vmatprep.subr.bf16.mxu0 0
    %2365 = vmatpush1.bf16.msra.mxu0 0
    %2366 = vmatprep.subr.bf16.mxu0 0
    %2367 = vmatpush1.bf16.msra.mxu0 0
    %2368 = vmatprep.subr.bf16.mxu0 0
    %2369 = vmatpush1.bf16.msra.mxu0 0
    %2370 = vmatprep.mubr.bf16.mxu0 0
    %2371 = vmatmul.mubr.bf16.gmra.mrb[0].mxu0 %v2288
    %v2372 = vpop.f32.mrb[0].mxu0
    %v2373 = vadd.f32 0.0, %v2372
    %v2374 = vpop.f32.mrb[0].mxu0
    %v2375 = vpop.f32.mrb[0].mxu0
    %v2376 = vpop.f32.mrb[0].mxu0
    %2377 = vdwg.mxu0
    %v2378 = vadd.f32 %v2222, %v2373
    %v2379 = vld [vmem:[#allocation2 + $0x8] sm:$0x10]
    %v2381 = vrot.slane %v2379, 4
    %2383 = vmatprep.subr.bf16.mxu0 0
    %2384 = vmatpush1.bf16.msra.mxu0 %v2322
    %2385 = vmatprep.subr.bf16.mxu0 0
    %2386 = vmatpush1.bf16.msra.mxu0 %v2323
    %2387 = vmatprep.subr.bf16.mxu0 0
    %2388 = vmatpush1.bf16.msra.mxu0 %v2324
    %2389 = vmatprep.subr.bf16.mxu0 0
    %2390 = vmatpush1.bf16.msra.mxu0 %v2325
    %2391 = vmatprep.subr.bf16.mxu0 0
    %2392 = vmatpush1.bf16.msra.mxu0 %v2326
    %2393 = vmatprep.subr.bf16.mxu0 0
    %2394 = vmatpush1.bf16.msra.mxu0 %v2327
    %2395 = vmatprep.subr.bf16.mxu0 0
    %2396 = vmatpush1.bf16.msra.mxu0 %v2328
    %2397 = vmatprep.subr.bf16.mxu0 0
    %2398 = vmatpush1.bf16.msra.mxu0 %v2329
    %2399 = vmatprep.subr.bf16.mxu0 0
    %2400 = vmatpush1.bf16.msra.mxu0 0
    %2401 = vmatprep.subr.bf16.mxu0 0
    %2402 = vmatpush1.bf16.msra.mxu0 0
    %2403 = vmatprep.subr.bf16.mxu0 0
    %2404 = vmatpush1.bf16.msra.mxu0 0
    %2405 = vmatprep.subr.bf16.mxu0 0
    %2406 = vmatpush1.bf16.msra.mxu0 0
    %2407 = vmatprep.subr.bf16.mxu0 0
    %2408 = vmatpush1.bf16.msra.mxu0 0
    %2409 = vmatprep.subr.bf16.mxu0 0
    %2410 = vmatpush1.bf16.msra.mxu0 0
    %2411 = vmatprep.subr.bf16.mxu0 0
    %2412 = vmatpush1.bf16.msra.mxu0 0
    %2413 = vmatprep.subr.bf16.mxu0 0
    %2414 = vmatpush1.bf16.msra.mxu0 0
    %2415 = vmatprep.mubr.bf16.mxu0 0
    %2416 = vmatmul.mubr.bf16.gmra.mrb[0].mxu0 %v2381
    %v2417 = vpop.f32.mrb[0].mxu0
    %v2418 = vadd.f32 0.0, %v2417
    %v2419 = vpop.f32.mrb[0].mxu0
    %v2420 = vpop.f32.mrb[0].mxu0
    %v2421 = vpop.f32.mrb[0].mxu0
    %2422 = vdwg.mxu0
    %v2423 = vadd.f32 %v2268, %v2418
    %s2424 = scalar_lea.vmem %s4, 576
    %v2425 = vld [vmem:[%s2424] sm:$0xf]
    %v2426 = vld [vmem:[%s2424 + $0x4] sm:$0xf]
    %v2427 = vld [vmem:[%s2424 + $0x8] sm:$0xf]
    %v2428 = vld [vmem:[%s2424 + $0xc] sm:$0xf]
    %v2429 = vld [vmem:[%s2424 + $0x10] sm:$0xf]
    %v2430 = vld [vmem:[%s2424 + $0x14] sm:$0xf]
    %v2431 = vld [vmem:[%s2424 + $0x18] sm:$0xf]
    %v2432 = vld [vmem:[%s2424 + $0x1c] sm:$0xf]
    %v2433 = vld [vmem:[%s2424 + $0x20] sm:$0xf]
    %v2434 = vld [vmem:[%s2424 + $0x24] sm:$0xf]
    %v2435 = vld [vmem:[%s2424 + $0x28] sm:$0xf]
    %v2436 = vld [vmem:[%s2424 + $0x2c] sm:$0xf]
    %v2437 = vld [vmem:[%s2424 + $0x30] sm:$0xf]
    %v2438 = vld [vmem:[%s2424 + $0x34] sm:$0xf]
    %v2439 = vld [vmem:[%s2424 + $0x38] sm:$0xf]
    %v2440 = vld [vmem:[%s2424 + $0x3c] sm:$0xf]
    %v2442 = vshrl.u32 %v2286, 16
    %v2444 = vrot.slane %v2442, 4
    %v2462 = vunpack.c.l.b16 %v2425
    %v2463 = vunpack.c.l.b16 %v2426
    %v2464 = vunpack.c.l.b16 %v2427
    %v2465 = vunpack.c.l.b16 %v2428
    %v2466 = vunpack.c.l.b16 %v2429
    %v2467 = vunpack.c.l.b16 %v2430
    %v2468 = vunpack.c.l.b16 %v2431
    %v2469 = vunpack.c.l.b16 %v2432
    %v2470 = vunpack.c.l.b16 %v2433
    %v2471 = vunpack.c.l.b16 %v2434
    %v2472 = vunpack.c.l.b16 %v2435
    %v2473 = vunpack.c.l.b16 %v2436
    %v2474 = vunpack.c.l.b16 %v2437
    %v2475 = vunpack.c.l.b16 %v2438
    %v2476 = vunpack.c.l.b16 %v2439
    %v2477 = vunpack.c.l.b16 %v2440
    %v2478 = vpack.c.b16 %v2463, %v2462
    %v2479 = vpack.c.b16 %v2465, %v2464
    %v2480 = vpack.c.b16 %v2467, %v2466
    %v2481 = vpack.c.b16 %v2469, %v2468
    %v2482 = vpack.c.b16 %v2471, %v2470
    %v2483 = vpack.c.b16 %v2473, %v2472
    %v2484 = vpack.c.b16 %v2475, %v2474
    %v2485 = vpack.c.b16 %v2477, %v2476
    %2494 = vmatprep.subr.bf16.mxu0 0
    %2495 = vmatpush1.bf16.msra.mxu0 %v2478
    %2496 = vmatprep.subr.bf16.mxu0 0
    %2497 = vmatpush1.bf16.msra.mxu0 %v2479
    %2498 = vmatprep.subr.bf16.mxu0 0
    %2499 = vmatpush1.bf16.msra.mxu0 %v2480
    %2500 = vmatprep.subr.bf16.mxu0 0
    %2501 = vmatpush1.bf16.msra.mxu0 %v2481
    %2502 = vmatprep.subr.bf16.mxu0 0
    %2503 = vmatpush1.bf16.msra.mxu0 %v2482
    %2504 = vmatprep.subr.bf16.mxu0 0
    %2505 = vmatpush1.bf16.msra.mxu0 %v2483
    %2506 = vmatprep.subr.bf16.mxu0 0
    %2507 = vmatpush1.bf16.msra.mxu0 %v2484
    %2508 = vmatprep.subr.bf16.mxu0 0
    %2509 = vmatpush1.bf16.msra.mxu0 %v2485
    %2510 = vmatprep.subr.bf16.mxu0 0
    %2511 = vmatpush1.bf16.msra.mxu0 0
    %2512 = vmatprep.subr.bf16.mxu0 0
    %2513 = vmatpush1.bf16.msra.mxu0 0
    %2514 = vmatprep.subr.bf16.mxu0 0
    %2515 = vmatpush1.bf16.msra.mxu0 0
    %2516 = vmatprep.subr.bf16.mxu0 0
    %2517 = vmatpush1.bf16.msra.mxu0 0
    %2518 = vmatprep.subr.bf16.mxu0 0
    %2519 = vmatpush1.bf16.msra.mxu0 0
    %2520 = vmatprep.subr.bf16.mxu0 0
    %2521 = vmatpush1.bf16.msra.mxu0 0
    %2522 = vmatprep.subr.bf16.mxu0 0
    %2523 = vmatpush1.bf16.msra.mxu0 0
    %2524 = vmatprep.subr.bf16.mxu0 0
    %2525 = vmatpush1.bf16.msra.mxu0 0
    %2526 = vmatprep.mubr.bf16.mxu0 0
    %2527 = vmatmul.mubr.bf16.gmra.mrb[0].mxu0 %v2444
    %v2528 = vpop.f32.mrb[0].mxu0
    %v2529 = vadd.f32 0.0, %v2528
    %v2530 = vpop.f32.mrb[0].mxu0
    %v2531 = vpop.f32.mrb[0].mxu0
    %v2532 = vpop.f32.mrb[0].mxu0
    %2533 = vdwg.mxu0
    %v2534 = vadd.f32 %v2378, %v2529
    %v2536 = vshrl.u32 %v2379, 16
    %v2538 = vrot.slane %v2536, 4
    %2540 = vmatprep.subr.bf16.mxu0 0
    %2541 = vmatpush1.bf16.msra.mxu0 %v2478
    %2542 = vmatprep.subr.bf16.mxu0 0
    %2543 = vmatpush1.bf16.msra.mxu0 %v2479
    %2544 = vmatprep.subr.bf16.mxu0 0
    %2545 = vmatpush1.bf16.msra.mxu0 %v2480
    %2546 = vmatprep.subr.bf16.mxu0 0
    %2547 = vmatpush1.bf16.msra.mxu0 %v2481
    %2548 = vmatprep.subr.bf16.mxu0 0
    %2549 = vmatpush1.bf16.msra.mxu0 %v2482
    %2550 = vmatprep.subr.bf16.mxu0 0
    %2551 = vmatpush1.bf16.msra.mxu0 %v2483
    %2552 = vmatprep.subr.bf16.mxu0 0
    %2553 = vmatpush1.bf16.msra.mxu0 %v2484
    %2554 = vmatprep.subr.bf16.mxu0 0
    %2555 = vmatpush1.bf16.msra.mxu0 %v2485
    %2556 = vmatprep.subr.bf16.mxu0 0
    %2557 = vmatpush1.bf16.msra.mxu0 0
    %2558 = vmatprep.subr.bf16.mxu0 0
    %2559 = vmatpush1.bf16.msra.mxu0 0
    %2560 = vmatprep.subr.bf16.mxu0 0
    %2561 = vmatpush1.bf16.msra.mxu0 0
    %2562 = vmatprep.subr.bf16.mxu0 0
    %2563 = vmatpush1.bf16.msra.mxu0 0
    %2564 = vmatprep.subr.bf16.mxu0 0
    %2565 = vmatpush1.bf16.msra.mxu0 0
    %2566 = vmatprep.subr.bf16.mxu0 0
    %2567 = vmatpush1.bf16.msra.mxu0 0
    %2568 = vmatprep.subr.bf16.mxu0 0
    %2569 = vmatpush1.bf16.msra.mxu0 0
    %2570 = vmatprep.subr.bf16.mxu0 0
    %2571 = vmatpush1.bf16.msra.mxu0 0
    %2572 = vmatprep.mubr.bf16.mxu0 0
    %2573 = vmatmul.mubr.bf16.gmra.mrb[0].mxu0 %v2538
    %v2574 = vpop.f32.mrb[0].mxu0
    %v2575 = vadd.f32 0.0, %v2574
    %v2576 = vpop.f32.mrb[0].mxu0
    %v2577 = vpop.f32.mrb[0].mxu0
    %v2578 = vpop.f32.mrb[0].mxu0
    %2579 = vdwg.mxu0
    %v2580 = vadd.f32 %v2423, %v2575
    %s2581 = scalar_lea.vmem %s4, 640
    %v2582 = vld [vmem:[%s2581] sm:$0xf]
    %v2583 = vld [vmem:[%s2581 + $0x4] sm:$0xf]
    %v2584 = vld [vmem:[%s2581 + $0x8] sm:$0xf]
    %v2585 = vld [vmem:[%s2581 + $0xc] sm:$0xf]
    %v2586 = vld [vmem:[%s2581 + $0x10] sm:$0xf]
    %v2587 = vld [vmem:[%s2581 + $0x14] sm:$0xf]
    %v2588 = vld [vmem:[%s2581 + $0x18] sm:$0xf]
    %v2589 = vld [vmem:[%s2581 + $0x1c] sm:$0xf]
    %v2590 = vld [vmem:[%s2581 + $0x20] sm:$0xf]
    %v2591 = vld [vmem:[%s2581 + $0x24] sm:$0xf]
    %v2592 = vld [vmem:[%s2581 + $0x28] sm:$0xf]
    %v2593 = vld [vmem:[%s2581 + $0x2c] sm:$0xf]
    %v2594 = vld [vmem:[%s2581 + $0x30] sm:$0xf]
    %v2595 = vld [vmem:[%s2581 + $0x34] sm:$0xf]
    %v2596 = vld [vmem:[%s2581 + $0x38] sm:$0xf]
    %v2597 = vld [vmem:[%s2581 + $0x3c] sm:$0xf]
    %v2598 = vld [vmem:[#allocation2] sm:$0x20]
    %v2600 = vrot.slane %v2598, 5
    %v2618 = vunpack.c.l.b16 %v2582
    %v2619 = vunpack.c.l.b16 %v2583
    %v2620 = vunpack.c.l.b16 %v2584
    %v2621 = vunpack.c.l.b16 %v2585
    %v2622 = vunpack.c.l.b16 %v2586
    %v2623 = vunpack.c.l.b16 %v2587
    %v2624 = vunpack.c.l.b16 %v2588
    %v2625 = vunpack.c.l.b16 %v2589
    %v2626 = vunpack.c.l.b16 %v2590
    %v2627 = vunpack.c.l.b16 %v2591
    %v2628 = vunpack.c.l.b16 %v2592
    %v2629 = vunpack.c.l.b16 %v2593
    %v2630 = vunpack.c.l.b16 %v2594
    %v2631 = vunpack.c.l.b16 %v2595
    %v2632 = vunpack.c.l.b16 %v2596
    %v2633 = vunpack.c.l.b16 %v2597
    %v2634 = vpack.c.b16 %v2619, %v2618
    %v2635 = vpack.c.b16 %v2621, %v2620
    %v2636 = vpack.c.b16 %v2623, %v2622
    %v2637 = vpack.c.b16 %v2625, %v2624
    %v2638 = vpack.c.b16 %v2627, %v2626
    %v2639 = vpack.c.b16 %v2629, %v2628
    %v2640 = vpack.c.b16 %v2631, %v2630
    %v2641 = vpack.c.b16 %v2633, %v2632
    %2650 = vmatprep.subr.bf16.mxu0 0
    %2651 = vmatpush1.bf16.msra.mxu0 %v2634
    %2652 = vmatprep.subr.bf16.mxu0 0
    %2653 = vmatpush1.bf16.msra.mxu0 %v2635
    %2654 = vmatprep.subr.bf16.mxu0 0
    %2655 = vmatpush1.bf16.msra.mxu0 %v2636
    %2656 = vmatprep.subr.bf16.mxu0 0
    %2657 = vmatpush1.bf16.msra.mxu0 %v2637
    %2658 = vmatprep.subr.bf16.mxu0 0
    %2659 = vmatpush1.bf16.msra.mxu0 %v2638
    %2660 = vmatprep.subr.bf16.mxu0 0
    %2661 = vmatpush1.bf16.msra.mxu0 %v2639
    %2662 = vmatprep.subr.bf16.mxu0 0
    %2663 = vmatpush1.bf16.msra.mxu0 %v2640
    %2664 = vmatprep.subr.bf16.mxu0 0
    %2665 = vmatpush1.bf16.msra.mxu0 %v2641
    %2666 = vmatprep.subr.bf16.mxu0 0
    %2667 = vmatpush1.bf16.msra.mxu0 0
    %2668 = vmatprep.subr.bf16.mxu0 0
    %2669 = vmatpush1.bf16.msra.mxu0 0
    %2670 = vmatprep.subr.bf16.mxu0 0
    %2671 = vmatpush1.bf16.msra.mxu0 0
    %2672 = vmatprep.subr.bf16.mxu0 0
    %2673 = vmatpush1.bf16.msra.mxu0 0
    %2674 = vmatprep.subr.bf16.mxu0 0
    %2675 = vmatpush1.bf16.msra.mxu0 0
    %2676 = vmatprep.subr.bf16.mxu0 0
    %2677 = vmatpush1.bf16.msra.mxu0 0
    %2678 = vmatprep.subr.bf16.mxu0 0
    %2679 = vmatpush1.bf16.msra.mxu0 0
    %2680 = vmatprep.subr.bf16.mxu0 0
    %2681 = vmatpush1.bf16.msra.mxu0 0
    %2682 = vmatprep.mubr.bf16.mxu0 0
    %2683 = vmatmul.mubr.bf16.gmra.mrb[0].mxu0 %v2600
    %v2684 = vpop.f32.mrb[0].mxu0
    %v2685 = vadd.f32 0.0, %v2684
    %v2686 = vpop.f32.mrb[0].mxu0
    %v2687 = vpop.f32.mrb[0].mxu0
    %v2688 = vpop.f32.mrb[0].mxu0
    %2689 = vdwg.mxu0
    %v2690 = vadd.f32 %v2534, %v2685
    %v2691 = vld [vmem:[#allocation2 + $0x8] sm:$0x20]
    %v2693 = vrot.slane %v2691, 5
    %2695 = vmatprep.subr.bf16.mxu0 0
    %2696 = vmatpush1.bf16.msra.mxu0 %v2634
    %2697 = vmatprep.subr.bf16.mxu0 0
    %2698 = vmatpush1.bf16.msra.mxu0 %v2635
    %2699 = vmatprep.subr.bf16.mxu0 0
    %2700 = vmatpush1.bf16.msra.mxu0 %v2636
    %2701 = vmatprep.subr.bf16.mxu0 0
    %2702 = vmatpush1.bf16.msra.mxu0 %v2637
    %2703 = vmatprep.subr.bf16.mxu0 0
    %2704 = vmatpush1.bf16.msra.mxu0 %v2638
    %2705 = vmatprep.subr.bf16.mxu0 0
    %2706 = vmatpush1.bf16.msra.mxu0 %v2639
    %2707 = vmatprep.subr.bf16.mxu0 0
    %2708 = vmatpush1.bf16.msra.mxu0 %v2640
    %2709 = vmatprep.subr.bf16.mxu0 0
    %2710 = vmatpush1.bf16.msra.mxu0 %v2641
    %2711 = vmatprep.subr.bf16.mxu0 0
    %2712 = vmatpush1.bf16.msra.mxu0 0
    %2713 = vmatprep.subr.bf16.mxu0 0
    %2714 = vmatpush1.bf16.msra.mxu0 0
    %2715 = vmatprep.subr.bf16.mxu0 0
    %2716 = vmatpush1.bf16.msra.mxu0 0
    %2717 = vmatprep.subr.bf16.mxu0 0
    %2718 = vmatpush1.bf16.msra.mxu0 0
    %2719 = vmatprep.subr.bf16.mxu0 0
    %2720 = vmatpush1.bf16.msra.mxu0 0
    %2721 = vmatprep.subr.bf16.mxu0 0
    %2722 = vmatpush1.bf16.msra.mxu0 0
    %2723 = vmatprep.subr.bf16.mxu0 0
    %2724 = vmatpush1.bf16.msra.mxu0 0
    %2725 = vmatprep.subr.bf16.mxu0 0
    %2726 = vmatpush1.bf16.msra.mxu0 0
    %2727 = vmatprep.mubr.bf16.mxu0 0
    %2728 = vmatmul.mubr.bf16.gmra.mrb[0].mxu0 %v2693
    %v2729 = vpop.f32.mrb[0].mxu0
    %v2730 = vadd.f32 0.0, %v2729
    %v2731 = vpop.f32.mrb[0].mxu0
    %v2732 = vpop.f32.mrb[0].mxu0
    %v2733 = vpop.f32.mrb[0].mxu0
    %2734 = vdwg.mxu0
    %v2735 = vadd.f32 %v2580, %v2730
    %s2736 = scalar_lea.vmem %s4, 704
    %v2737 = vld [vmem:[%s2736] sm:$0xf]
    %v2738 = vld [vmem:[%s2736 + $0x4] sm:$0xf]
    %v2739 = vld [vmem:[%s2736 + $0x8] sm:$0xf]
    %v2740 = vld [vmem:[%s2736 + $0xc] sm:$0xf]
    %v2741 = vld [vmem:[%s2736 + $0x10] sm:$0xf]
    %v2742 = vld [vmem:[%s2736 + $0x14] sm:$0xf]
    %v2743 = vld [vmem:[%s2736 + $0x18] sm:$0xf]
    %v2744 = vld [vmem:[%s2736 + $0x1c] sm:$0xf]
    %v2745 = vld [vmem:[%s2736 + $0x20] sm:$0xf]
    %v2746 = vld [vmem:[%s2736 + $0x24] sm:$0xf]
    %v2747 = vld [vmem:[%s2736 + $0x28] sm:$0xf]
    %v2748 = vld [vmem:[%s2736 + $0x2c] sm:$0xf]
    %v2749 = vld [vmem:[%s2736 + $0x30] sm:$0xf]
    %v2750 = vld [vmem:[%s2736 + $0x34] sm:$0xf]
    %v2751 = vld [vmem:[%s2736 + $0x38] sm:$0xf]
    %v2752 = vld [vmem:[%s2736 + $0x3c] sm:$0xf]
    %v2754 = vshrl.u32 %v2598, 16
    %v2756 = vrot.slane %v2754, 5
    %v2774 = vunpack.c.l.b16 %v2737
    %v2775 = vunpack.c.l.b16 %v2738
    %v2776 = vunpack.c.l.b16 %v2739
    %v2777 = vunpack.c.l.b16 %v2740
    %v2778 = vunpack.c.l.b16 %v2741
    %v2779 = vunpack.c.l.b16 %v2742
    %v2780 = vunpack.c.l.b16 %v2743
    %v2781 = vunpack.c.l.b16 %v2744
    %v2782 = vunpack.c.l.b16 %v2745
    %v2783 = vunpack.c.l.b16 %v2746
    %v2784 = vunpack.c.l.b16 %v2747
    %v2785 = vunpack.c.l.b16 %v2748
    %v2786 = vunpack.c.l.b16 %v2749
    %v2787 = vunpack.c.l.b16 %v2750
    %v2788 = vunpack.c.l.b16 %v2751
    %v2789 = vunpack.c.l.b16 %v2752
    %v2790 = vpack.c.b16 %v2775, %v2774
    %v2791 = vpack.c.b16 %v2777, %v2776
    %v2792 = vpack.c.b16 %v2779, %v2778
    %v2793 = vpack.c.b16 %v2781, %v2780
    %v2794 = vpack.c.b16 %v2783, %v2782
    %v2795 = vpack.c.b16 %v2785, %v2784
    %v2796 = vpack.c.b16 %v2787, %v2786
    %v2797 = vpack.c.b16 %v2789, %v2788
    %2806 = vmatprep.subr.bf16.mxu0 0
    %2807 = vmatpush1.bf16.msra.mxu0 %v2790
    %2808 = vmatprep.subr.bf16.mxu0 0
    %2809 = vmatpush1.bf16.msra.mxu0 %v2791
    %2810 = vmatprep.subr.bf16.mxu0 0
    %2811 = vmatpush1.bf16.msra.mxu0 %v2792
    %2812 = vmatprep.subr.bf16.mxu0 0
    %2813 = vmatpush1.bf16.msra.mxu0 %v2793
    %2814 = vmatprep.subr.bf16.mxu0 0
    %2815 = vmatpush1.bf16.msra.mxu0 %v2794
    %2816 = vmatprep.subr.bf16.mxu0 0
    %2817 = vmatpush1.bf16.msra.mxu0 %v2795
    %2818 = vmatprep.subr.bf16.mxu0 0
    %2819 = vmatpush1.bf16.msra.mxu0 %v2796
    %2820 = vmatprep.subr.bf16.mxu0 0
    %2821 = vmatpush1.bf16.msra.mxu0 %v2797
    %2822 = vmatprep.subr.bf16.mxu0 0
    %2823 = vmatpush1.bf16.msra.mxu0 0
    %2824 = vmatprep.subr.bf16.mxu0 0
    %2825 = vmatpush1.bf16.msra.mxu0 0
    %2826 = vmatprep.subr.bf16.mxu0 0
    %2827 = vmatpush1.bf16.msra.mxu0 0
    %2828 = vmatprep.subr.bf16.mxu0 0
    %2829 = vmatpush1.bf16.msra.mxu0 0
    %2830 = vmatprep.subr.bf16.mxu0 0
    %2831 = vmatpush1.bf16.msra.mxu0 0
    %2832 = vmatprep.subr.bf16.mxu0 0
    %2833 = vmatpush1.bf16.msra.mxu0 0
    %2834 = vmatprep.subr.bf16.mxu0 0
    %2835 = vmatpush1.bf16.msra.mxu0 0
    %2836 = vmatprep.subr.bf16.mxu0 0
    %2837 = vmatpush1.bf16.msra.mxu0 0
    %2838 = vmatprep.mubr.bf16.mxu0 0
    %2839 = vmatmul.mubr.bf16.gmra.mrb[0].mxu0 %v2756
    %v2840 = vpop.f32.mrb[0].mxu0
    %v2841 = vadd.f32 0.0, %v2840
    %v2842 = vpop.f32.mrb[0].mxu0
    %v2843 = vpop.f32.mrb[0].mxu0
    %v2844 = vpop.f32.mrb[0].mxu0
    %2845 = vdwg.mxu0
    %v2846 = vadd.f32 %v2690, %v2841
    %v2848 = vshrl.u32 %v2691, 16
    %v2850 = vrot.slane %v2848, 5
    %2852 = vmatprep.subr.bf16.mxu0 0
    %2853 = vmatpush1.bf16.msra.mxu0 %v2790
    %2854 = vmatprep.subr.bf16.mxu0 0
    %2855 = vmatpush1.bf16.msra.mxu0 %v2791
    %2856 = vmatprep.subr.bf16.mxu0 0
    %2857 = vmatpush1.bf16.msra.mxu0 %v2792
    %2858 = vmatprep.subr.bf16.mxu0 0
    %2859 = vmatpush1.bf16.msra.mxu0 %v2793
    %2860 = vmatprep.subr.bf16.mxu0 0
    %2861 = vmatpush1.bf16.msra.mxu0 %v2794
    %2862 = vmatprep.subr.bf16.mxu0 0
    %2863 = vmatpush1.bf16.msra.mxu0 %v2795
    %2864 = vmatprep.subr.bf16.mxu0 0
    %2865 = vmatpush1.bf16.msra.mxu0 %v2796
    %2866 = vmatprep.subr.bf16.mxu0 0
    %2867 = vmatpush1.bf16.msra.mxu0 %v2797
    %2868 = vmatprep.subr.bf16.mxu0 0
    %2869 = vmatpush1.bf16.msra.mxu0 0
    %2870 = vmatprep.subr.bf16.mxu0 0
    %2871 = vmatpush1.bf16.msra.mxu0 0
    %2872 = vmatprep.subr.bf16.mxu0 0
    %2873 = vmatpush1.bf16.msra.mxu0 0
    %2874 = vmatprep.subr.bf16.mxu0 0
    %2875 = vmatpush1.bf16.msra.mxu0 0
    %2876 = vmatprep.subr.bf16.mxu0 0
    %2877 = vmatpush1.bf16.msra.mxu0 0
    %2878 = vmatprep.subr.bf16.mxu0 0
    %2879 = vmatpush1.bf16.msra.mxu0 0
    %2880 = vmatprep.subr.bf16.mxu0 0
    %2881 = vmatpush1.bf16.msra.mxu0 0
    %2882 = vmatprep.subr.bf16.mxu0 0
    %2883 = vmatpush1.bf16.msra.mxu0 0
    %2884 = vmatprep.mubr.bf16.mxu0 0
    %2885 = vmatmul.mubr.bf16.gmra.mrb[0].mxu0 %v2850
    %v2886 = vpop.f32.mrb[0].mxu0
    %v2887 = vadd.f32 0.0, %v2886
    %v2888 = vpop.f32.mrb[0].mxu0
    %v2889 = vpop.f32.mrb[0].mxu0
    %v2890 = vpop.f32.mrb[0].mxu0
    %2891 = vdwg.mxu0
    %v2892 = vadd.f32 %v2735, %v2887
    %s2893 = scalar_lea.vmem %s4, 768
    %v2894 = vld [vmem:[%s2893] sm:$0xf]
    %v2895 = vld [vmem:[%s2893 + $0x4] sm:$0xf]
    %v2896 = vld [vmem:[%s2893 + $0x8] sm:$0xf]
    %v2897 = vld [vmem:[%s2893 + $0xc] sm:$0xf]
    %v2898 = vld [vmem:[%s2893 + $0x10] sm:$0xf]
    %v2899 = vld [vmem:[%s2893 + $0x14] sm:$0xf]
    %v2900 = vld [vmem:[%s2893 + $0x18] sm:$0xf]
    %v2901 = vld [vmem:[%s2893 + $0x1c] sm:$0xf]
    %v2902 = vld [vmem:[%s2893 + $0x20] sm:$0xf]
    %v2903 = vld [vmem:[%s2893 + $0x24] sm:$0xf]
    %v2904 = vld [vmem:[%s2893 + $0x28] sm:$0xf]
    %v2905 = vld [vmem:[%s2893 + $0x2c] sm:$0xf]
    %v2906 = vld [vmem:[%s2893 + $0x30] sm:$0xf]
    %v2907 = vld [vmem:[%s2893 + $0x34] sm:$0xf]
    %v2908 = vld [vmem:[%s2893 + $0x38] sm:$0xf]
    %v2909 = vld [vmem:[%s2893 + $0x3c] sm:$0xf]
    %v2910 = vld [vmem:[#allocation2] sm:$0x40]
    %v2912 = vrot.slane %v2910, 6
    %v2930 = vunpack.c.l.b16 %v2894
    %v2931 = vunpack.c.l.b16 %v2895
    %v2932 = vunpack.c.l.b16 %v2896
    %v2933 = vunpack.c.l.b16 %v2897
    %v2934 = vunpack.c.l.b16 %v2898
    %v2935 = vunpack.c.l.b16 %v2899
    %v2936 = vunpack.c.l.b16 %v2900
    %v2937 = vunpack.c.l.b16 %v2901
    %v2938 = vunpack.c.l.b16 %v2902
    %v2939 = vunpack.c.l.b16 %v2903
    %v2940 = vunpack.c.l.b16 %v2904
    %v2941 = vunpack.c.l.b16 %v2905
    %v2942 = vunpack.c.l.b16 %v2906
    %v2943 = vunpack.c.l.b16 %v2907
    %v2944 = vunpack.c.l.b16 %v2908
    %v2945 = vunpack.c.l.b16 %v2909
    %v2946 = vpack.c.b16 %v2931, %v2930
    %v2947 = vpack.c.b16 %v2933, %v2932
    %v2948 = vpack.c.b16 %v2935, %v2934
    %v2949 = vpack.c.b16 %v2937, %v2936
    %v2950 = vpack.c.b16 %v2939, %v2938
    %v2951 = vpack.c.b16 %v2941, %v2940
    %v2952 = vpack.c.b16 %v2943, %v2942
    %v2953 = vpack.c.b16 %v2945, %v2944
    %2962 = vmatprep.subr.bf16.mxu0 0
    %2963 = vmatpush1.bf16.msra.mxu0 %v2946
    %2964 = vmatprep.subr.bf16.mxu0 0
    %2965 = vmatpush1.bf16.msra.mxu0 %v2947
    %2966 = vmatprep.subr.bf16.mxu0 0
    %2967 = vmatpush1.bf16.msra.mxu0 %v2948
    %2968 = vmatprep.subr.bf16.mxu0 0
    %2969 = vmatpush1.bf16.msra.mxu0 %v2949
    %2970 = vmatprep.subr.bf16.mxu0 0
    %2971 = vmatpush1.bf16.msra.mxu0 %v2950
    %2972 = vmatprep.subr.bf16.mxu0 0
    %2973 = vmatpush1.bf16.msra.mxu0 %v2951
    %2974 = vmatprep.subr.bf16.mxu0 0
    %2975 = vmatpush1.bf16.msra.mxu0 %v2952
    %2976 = vmatprep.subr.bf16.mxu0 0
    %2977 = vmatpush1.bf16.msra.mxu0 %v2953
    %2978 = vmatprep.subr.bf16.mxu0 0
    %2979 = vmatpush1.bf16.msra.mxu0 0
    %2980 = vmatprep.subr.bf16.mxu0 0
    %2981 = vmatpush1.bf16.msra.mxu0 0
    %2982 = vmatprep.subr.bf16.mxu0 0
    %2983 = vmatpush1.bf16.msra.mxu0 0
    %2984 = vmatprep.subr.bf16.mxu0 0
    %2985 = vmatpush1.bf16.msra.mxu0 0
    %2986 = vmatprep.subr.bf16.mxu0 0
    %2987 = vmatpush1.bf16.msra.mxu0 0
    %2988 = vmatprep.subr.bf16.mxu0 0
    %2989 = vmatpush1.bf16.msra.mxu0 0
    %2990 = vmatprep.subr.bf16.mxu0 0
    %2991 = vmatpush1.bf16.msra.mxu0 0
    %2992 = vmatprep.subr.bf16.mxu0 0
    %2993 = vmatpush1.bf16.msra.mxu0 0
    %2994 = vmatprep.mubr.bf16.mxu0 0
    %2995 = vmatmul.mubr.bf16.gmra.mrb[0].mxu0 %v2912
    %v2996 = vpop.f32.mrb[0].mxu0
    %v2997 = vadd.f32 0.0, %v2996
    %v2998 = vpop.f32.mrb[0].mxu0
    %v2999 = vpop.f32.mrb[0].mxu0
    %v3000 = vpop.f32.mrb[0].mxu0
    %3001 = vdwg.mxu0
    %v3002 = vadd.f32 %v2846, %v2997
    %v3003 = vld [vmem:[#allocation2 + $0x8] sm:$0x40]
    %v3005 = vrot.slane %v3003, 6
    %3007 = vmatprep.subr.bf16.mxu0 0
    %3008 = vmatpush1.bf16.msra.mxu0 %v2946
    %3009 = vmatprep.subr.bf16.mxu0 0
    %3010 = vmatpush1.bf16.msra.mxu0 %v2947
    %3011 = vmatprep.subr.bf16.mxu0 0
    %3012 = vmatpush1.bf16.msra.mxu0 %v2948
    %3013 = vmatprep.subr.bf16.mxu0 0
    %3014 = vmatpush1.bf16.msra.mxu0 %v2949
    %3015 = vmatprep.subr.bf16.mxu0 0
    %3016 = vmatpush1.bf16.msra.mxu0 %v2950
    %3017 = vmatprep.subr.bf16.mxu0 0
    %3018 = vmatpush1.bf16.msra.mxu0 %v2951
    %3019 = vmatprep.subr.bf16.mxu0 0
    %3020 = vmatpush1.bf16.msra.mxu0 %v2952
    %3021 = vmatprep.subr.bf16.mxu0 0
    %3022 = vmatpush1.bf16.msra.mxu0 %v2953
    %3023 = vmatprep.subr.bf16.mxu0 0
    %3024 = vmatpush1.bf16.msra.mxu0 0
    %3025 = vmatprep.subr.bf16.mxu0 0
    %3026 = vmatpush1.bf16.msra.mxu0 0
    %3027 = vmatprep.subr.bf16.mxu0 0
    %3028 = vmatpush1.bf16.msra.mxu0 0
    %3029 = vmatprep.subr.bf16.mxu0 0
    %3030 = vmatpush1.bf16.msra.mxu0 0
    %3031 = vmatprep.subr.bf16.mxu0 0
    %3032 = vmatpush1.bf16.msra.mxu0 0
    %3033 = vmatprep.subr.bf16.mxu0 0
    %3034 = vmatpush1.bf16.msra.mxu0 0
    %3035 = vmatprep.subr.bf16.mxu0 0
    %3036 = vmatpush1.bf16.msra.mxu0 0
    %3037 = vmatprep.subr.bf16.mxu0 0
    %3038 = vmatpush1.bf16.msra.mxu0 0
    %3039 = vmatprep.mubr.bf16.mxu0 0
    %3040 = vmatmul.mubr.bf16.gmra.mrb[0].mxu0 %v3005
    %v3041 = vpop.f32.mrb[0].mxu0
    %v3042 = vadd.f32 0.0, %v3041
    %v3043 = vpop.f32.mrb[0].mxu0
    %v3044 = vpop.f32.mrb[0].mxu0
    %v3045 = vpop.f32.mrb[0].mxu0
    %3046 = vdwg.mxu0
    %v3047 = vadd.f32 %v2892, %v3042
    %s3048 = scalar_lea.vmem %s4, 832
    %v3049 = vld [vmem:[%s3048] sm:$0xf]
    %v3050 = vld [vmem:[%s3048 + $0x4] sm:$0xf]
    %v3051 = vld [vmem:[%s3048 + $0x8] sm:$0xf]
    %v3052 = vld [vmem:[%s3048 + $0xc] sm:$0xf]
    %v3053 = vld [vmem:[%s3048 + $0x10] sm:$0xf]
    %v3054 = vld [vmem:[%s3048 + $0x14] sm:$0xf]
    %v3055 = vld [vmem:[%s3048 + $0x18] sm:$0xf]
    %v3056 = vld [vmem:[%s3048 + $0x1c] sm:$0xf]
    %v3057 = vld [vmem:[%s3048 + $0x20] sm:$0xf]
    %v3058 = vld [vmem:[%s3048 + $0x24] sm:$0xf]
    %v3059 = vld [vmem:[%s3048 + $0x28] sm:$0xf]
    %v3060 = vld [vmem:[%s3048 + $0x2c] sm:$0xf]
    %v3061 = vld [vmem:[%s3048 + $0x30] sm:$0xf]
    %v3062 = vld [vmem:[%s3048 + $0x34] sm:$0xf]
    %v3063 = vld [vmem:[%s3048 + $0x38] sm:$0xf]
    %v3064 = vld [vmem:[%s3048 + $0x3c] sm:$0xf]
    %v3066 = vshrl.u32 %v2910, 16
    %v3068 = vrot.slane %v3066, 6
    %v3086 = vunpack.c.l.b16 %v3049
    %v3087 = vunpack.c.l.b16 %v3050
    %v3088 = vunpack.c.l.b16 %v3051
    %v3089 = vunpack.c.l.b16 %v3052
    %v3090 = vunpack.c.l.b16 %v3053
    %v3091 = vunpack.c.l.b16 %v3054
    %v3092 = vunpack.c.l.b16 %v3055
    %v3093 = vunpack.c.l.b16 %v3056
    %v3094 = vunpack.c.l.b16 %v3057
    %v3095 = vunpack.c.l.b16 %v3058
    %v3096 = vunpack.c.l.b16 %v3059
    %v3097 = vunpack.c.l.b16 %v3060
    %v3098 = vunpack.c.l.b16 %v3061
    %v3099 = vunpack.c.l.b16 %v3062
    %v3100 = vunpack.c.l.b16 %v3063
    %v3101 = vunpack.c.l.b16 %v3064
    %v3102 = vpack.c.b16 %v3087, %v3086
    %v3103 = vpack.c.b16 %v3089, %v3088
    %v3104 = vpack.c.b16 %v3091, %v3090
    %v3105 = vpack.c.b16 %v3093, %v3092
    %v3106 = vpack.c.b16 %v3095, %v3094
    %v3107 = vpack.c.b16 %v3097, %v3096
    %v3108 = vpack.c.b16 %v3099, %v3098
    %v3109 = vpack.c.b16 %v3101, %v3100
    %3118 = vmatprep.subr.bf16.mxu0 0
    %3119 = vmatpush1.bf16.msra.mxu0 %v3102
    %3120 = vmatprep.subr.bf16.mxu0 0
    %3121 = vmatpush1.bf16.msra.mxu0 %v3103
    %3122 = vmatprep.subr.bf16.mxu0 0
    %3123 = vmatpush1.bf16.msra.mxu0 %v3104
    %3124 = vmatprep.subr.bf16.mxu0 0
    %3125 = vmatpush1.bf16.msra.mxu0 %v3105
    %3126 = vmatprep.subr.bf16.mxu0 0
    %3127 = vmatpush1.bf16.msra.mxu0 %v3106
    %3128 = vmatprep.subr.bf16.mxu0 0
    %3129 = vmatpush1.bf16.msra.mxu0 %v3107
    %3130 = vmatprep.subr.bf16.mxu0 0
    %3131 = vmatpush1.bf16.msra.mxu0 %v3108
    %3132 = vmatprep.subr.bf16.mxu0 0
    %3133 = vmatpush1.bf16.msra.mxu0 %v3109
    %3134 = vmatprep.subr.bf16.mxu0 0
    %3135 = vmatpush1.bf16.msra.mxu0 0
    %3136 = vmatprep.subr.bf16.mxu0 0
    %3137 = vmatpush1.bf16.msra.mxu0 0
    %3138 = vmatprep.subr.bf16.mxu0 0
    %3139 = vmatpush1.bf16.msra.mxu0 0
    %3140 = vmatprep.subr.bf16.mxu0 0
    %3141 = vmatpush1.bf16.msra.mxu0 0
    %3142 = vmatprep.subr.bf16.mxu0 0
    %3143 = vmatpush1.bf16.msra.mxu0 0
    %3144 = vmatprep.subr.bf16.mxu0 0
    %3145 = vmatpush1.bf16.msra.mxu0 0
    %3146 = vmatprep.subr.bf16.mxu0 0
    %3147 = vmatpush1.bf16.msra.mxu0 0
    %3148 = vmatprep.subr.bf16.mxu0 0
    %3149 = vmatpush1.bf16.msra.mxu0 0
    %3150 = vmatprep.mubr.bf16.mxu0 0
    %3151 = vmatmul.mubr.bf16.gmra.mrb[0].mxu0 %v3068
    %v3152 = vpop.f32.mrb[0].mxu0
    %v3153 = vadd.f32 0.0, %v3152
    %v3154 = vpop.f32.mrb[0].mxu0
    %v3155 = vpop.f32.mrb[0].mxu0
    %v3156 = vpop.f32.mrb[0].mxu0
    %3157 = vdwg.mxu0
    %v3158 = vadd.f32 %v3002, %v3153
    %v3160 = vshrl.u32 %v3003, 16
    %v3162 = vrot.slane %v3160, 6
    %3164 = vmatprep.subr.bf16.mxu0 0
    %3165 = vmatpush1.bf16.msra.mxu0 %v3102
    %3166 = vmatprep.subr.bf16.mxu0 0
    %3167 = vmatpush1.bf16.msra.mxu0 %v3103
    %3168 = vmatprep.subr.bf16.mxu0 0
    %3169 = vmatpush1.bf16.msra.mxu0 %v3104
    %3170 = vmatprep.subr.bf16.mxu0 0
    %3171 = vmatpush1.bf16.msra.mxu0 %v3105
    %3172 = vmatprep.subr.bf16.mxu0 0
    %3173 = vmatpush1.bf16.msra.mxu0 %v3106
    %3174 = vmatprep.subr.bf16.mxu0 0
    %3175 = vmatpush1.bf16.msra.mxu0 %v3107
    %3176 = vmatprep.subr.bf16.mxu0 0
    %3177 = vmatpush1.bf16.msra.mxu0 %v3108
    %3178 = vmatprep.subr.bf16.mxu0 0
    %3179 = vmatpush1.bf16.msra.mxu0 %v3109
    %3180 = vmatprep.subr.bf16.mxu0 0
    %3181 = vmatpush1.bf16.msra.mxu0 0
    %3182 = vmatprep.subr.bf16.mxu0 0
    %3183 = vmatpush1.bf16.msra.mxu0 0
    %3184 = vmatprep.subr.bf16.mxu0 0
    %3185 = vmatpush1.bf16.msra.mxu0 0
    %3186 = vmatprep.subr.bf16.mxu0 0
    %3187 = vmatpush1.bf16.msra.mxu0 0
    %3188 = vmatprep.subr.bf16.mxu0 0
    %3189 = vmatpush1.bf16.msra.mxu0 0
    %3190 = vmatprep.subr.bf16.mxu0 0
    %3191 = vmatpush1.bf16.msra.mxu0 0
    %3192 = vmatprep.subr.bf16.mxu0 0
    %3193 = vmatpush1.bf16.msra.mxu0 0
    %3194 = vmatprep.subr.bf16.mxu0 0
    %3195 = vmatpush1.bf16.msra.mxu0 0
    %3196 = vmatprep.mubr.bf16.mxu0 0
    %3197 = vmatmul.mubr.bf16.gmra.mrb[0].mxu0 %v3162
    %v3198 = vpop.f32.mrb[0].mxu0
    %v3199 = vadd.f32 0.0, %v3198
    %v3200 = vpop.f32.mrb[0].mxu0
    %v3201 = vpop.f32.mrb[0].mxu0
    %v3202 = vpop.f32.mrb[0].mxu0
    %3203 = vdwg.mxu0
    %v3204 = vadd.f32 %v3047, %v3199
    %s3205 = scalar_lea.vmem %s4, 896
    %v3206 = vld [vmem:[%s3205] sm:$0xf]
    %v3207 = vld [vmem:[%s3205 + $0x4] sm:$0xf]
    %v3208 = vld [vmem:[%s3205 + $0x8] sm:$0xf]
    %v3209 = vld [vmem:[%s3205 + $0xc] sm:$0xf]
    %v3210 = vld [vmem:[%s3205 + $0x10] sm:$0xf]
    %v3211 = vld [vmem:[%s3205 + $0x14] sm:$0xf]
    %v3212 = vld [vmem:[%s3205 + $0x18] sm:$0xf]
    %v3213 = vld [vmem:[%s3205 + $0x1c] sm:$0xf]
    %v3214 = vld [vmem:[%s3205 + $0x20] sm:$0xf]
    %v3215 = vld [vmem:[%s3205 + $0x24] sm:$0xf]
    %v3216 = vld [vmem:[%s3205 + $0x28] sm:$0xf]
    %v3217 = vld [vmem:[%s3205 + $0x2c] sm:$0xf]
    %v3218 = vld [vmem:[%s3205 + $0x30] sm:$0xf]
    %v3219 = vld [vmem:[%s3205 + $0x34] sm:$0xf]
    %v3220 = vld [vmem:[%s3205 + $0x38] sm:$0xf]
    %v3221 = vld [vmem:[%s3205 + $0x3c] sm:$0xf]
    %v3222 = vld [vmem:[#allocation2] sm:$0x80]
    %v3224 = vrot.slane %v3222, 7
    %v3242 = vunpack.c.l.b16 %v3206
    %v3243 = vunpack.c.l.b16 %v3207
    %v3244 = vunpack.c.l.b16 %v3208
    %v3245 = vunpack.c.l.b16 %v3209
    %v3246 = vunpack.c.l.b16 %v3210
    %v3247 = vunpack.c.l.b16 %v3211
    %v3248 = vunpack.c.l.b16 %v3212
    %v3249 = vunpack.c.l.b16 %v3213
    %v3250 = vunpack.c.l.b16 %v3214
    %v3251 = vunpack.c.l.b16 %v3215
    %v3252 = vunpack.c.l.b16 %v3216
    %v3253 = vunpack.c.l.b16 %v3217
    %v3254 = vunpack.c.l.b16 %v3218
    %v3255 = vunpack.c.l.b16 %v3219
    %v3256 = vunpack.c.l.b16 %v3220
    %v3257 = vunpack.c.l.b16 %v3221
    %v3258 = vpack.c.b16 %v3243, %v3242
    %v3259 = vpack.c.b16 %v3245, %v3244
    %v3260 = vpack.c.b16 %v3247, %v3246
    %v3261 = vpack.c.b16 %v3249, %v3248
    %v3262 = vpack.c.b16 %v3251, %v3250
    %v3263 = vpack.c.b16 %v3253, %v3252
    %v3264 = vpack.c.b16 %v3255, %v3254
    %v3265 = vpack.c.b16 %v3257, %v3256
    %3274 = vmatprep.subr.bf16.mxu0 0
    %3275 = vmatpush1.bf16.msra.mxu0 %v3258
    %3276 = vmatprep.subr.bf16.mxu0 0
    %3277 = vmatpush1.bf16.msra.mxu0 %v3259
    %3278 = vmatprep.subr.bf16.mxu0 0
    %3279 = vmatpush1.bf16.msra.mxu0 %v3260
    %3280 = vmatprep.subr.bf16.mxu0 0
    %3281 = vmatpush1.bf16.msra.mxu0 %v3261
    %3282 = vmatprep.subr.bf16.mxu0 0
    %3283 = vmatpush1.bf16.msra.mxu0 %v3262
    %3284 = vmatprep.subr.bf16.mxu0 0
    %3285 = vmatpush1.bf16.msra.mxu0 %v3263
    %3286 = vmatprep.subr.bf16.mxu0 0
    %3287 = vmatpush1.bf16.msra.mxu0 %v3264
    %3288 = vmatprep.subr.bf16.mxu0 0
    %3289 = vmatpush1.bf16.msra.mxu0 %v3265
    %3290 = vmatprep.subr.bf16.mxu0 0
    %3291 = vmatpush1.bf16.msra.mxu0 0
    %3292 = vmatprep.subr.bf16.mxu0 0
    %3293 = vmatpush1.bf16.msra.mxu0 0
    %3294 = vmatprep.subr.bf16.mxu0 0
    %3295 = vmatpush1.bf16.msra.mxu0 0
    %3296 = vmatprep.subr.bf16.mxu0 0
    %3297 = vmatpush1.bf16.msra.mxu0 0
    %3298 = vmatprep.subr.bf16.mxu0 0
    %3299 = vmatpush1.bf16.msra.mxu0 0
    %3300 = vmatprep.subr.bf16.mxu0 0
    %3301 = vmatpush1.bf16.msra.mxu0 0
    %3302 = vmatprep.subr.bf16.mxu0 0
    %3303 = vmatpush1.bf16.msra.mxu0 0
    %3304 = vmatprep.subr.bf16.mxu0 0
    %3305 = vmatpush1.bf16.msra.mxu0 0
    %3306 = vmatprep.mubr.bf16.mxu0 0
    %3307 = vmatmul.mubr.bf16.gmra.mrb[0].mxu0 %v3224
    %v3308 = vpop.f32.mrb[0].mxu0
    %v3309 = vadd.f32 0.0, %v3308
    %v3310 = vpop.f32.mrb[0].mxu0
    %v3311 = vpop.f32.mrb[0].mxu0
    %v3312 = vpop.f32.mrb[0].mxu0
    %3313 = vdwg.mxu0
    %v3314 = vadd.f32 %v3158, %v3309
    %v3315 = vld [vmem:[#allocation2 + $0x8] sm:$0x80]
    %v3317 = vrot.slane %v3315, 7
    %3319 = vmatprep.subr.bf16.mxu0 0
    %3320 = vmatpush1.bf16.msra.mxu0 %v3258
    %3321 = vmatprep.subr.bf16.mxu0 0
    %3322 = vmatpush1.bf16.msra.mxu0 %v3259
    %3323 = vmatprep.subr.bf16.mxu0 0
    %3324 = vmatpush1.bf16.msra.mxu0 %v3260
    %3325 = vmatprep.subr.bf16.mxu0 0
    %3326 = vmatpush1.bf16.msra.mxu0 %v3261
    %3327 = vmatprep.subr.bf16.mxu0 0
    %3328 = vmatpush1.bf16.msra.mxu0 %v3262
    %3329 = vmatprep.subr.bf16.mxu0 0
    %3330 = vmatpush1.bf16.msra.mxu0 %v3263
    %3331 = vmatprep.subr.bf16.mxu0 0
    %3332 = vmatpush1.bf16.msra.mxu0 %v3264
    %3333 = vmatprep.subr.bf16.mxu0 0
    %3334 = vmatpush1.bf16.msra.mxu0 %v3265
    %3335 = vmatprep.subr.bf16.mxu0 0
    %3336 = vmatpush1.bf16.msra.mxu0 0
    %3337 = vmatprep.subr.bf16.mxu0 0
    %3338 = vmatpush1.bf16.msra.mxu0 0
    %3339 = vmatprep.subr.bf16.mxu0 0
    %3340 = vmatpush1.bf16.msra.mxu0 0
    %3341 = vmatprep.subr.bf16.mxu0 0
    %3342 = vmatpush1.bf16.msra.mxu0 0
    %3343 = vmatprep.subr.bf16.mxu0 0
    %3344 = vmatpush1.bf16.msra.mxu0 0
    %3345 = vmatprep.subr.bf16.mxu0 0
    %3346 = vmatpush1.bf16.msra.mxu0 0
    %3347 = vmatprep.subr.bf16.mxu0 0
    %3348 = vmatpush1.bf16.msra.mxu0 0
    %3349 = vmatprep.subr.bf16.mxu0 0
    %3350 = vmatpush1.bf16.msra.mxu0 0
    %3351 = vmatprep.mubr.bf16.mxu0 0
    %3352 = vmatmul.mubr.bf16.gmra.mrb[0].mxu0 %v3317
    %v3353 = vpop.f32.mrb[0].mxu0
    %v3354 = vadd.f32 0.0, %v3353
    %v3355 = vpop.f32.mrb[0].mxu0
    %v3356 = vpop.f32.mrb[0].mxu0
    %v3357 = vpop.f32.mrb[0].mxu0
    %3358 = vdwg.mxu0
    %v3359 = vadd.f32 %v3204, %v3354
    %s3360 = scalar_lea.vmem %s4, 960
    %v3361 = vld [vmem:[%s3360] sm:$0xf]
    %v3362 = vld [vmem:[%s3360 + $0x4] sm:$0xf]
    %v3363 = vld [vmem:[%s3360 + $0x8] sm:$0xf]
    %v3364 = vld [vmem:[%s3360 + $0xc] sm:$0xf]
    %v3365 = vld [vmem:[%s3360 + $0x10] sm:$0xf]
    %v3366 = vld [vmem:[%s3360 + $0x14] sm:$0xf]
    %v3367 = vld [vmem:[%s3360 + $0x18] sm:$0xf]
    %v3368 = vld [vmem:[%s3360 + $0x1c] sm:$0xf]
    %v3369 = vld [vmem:[%s3360 + $0x20] sm:$0xf]
    %v3370 = vld [vmem:[%s3360 + $0x24] sm:$0xf]
    %v3371 = vld [vmem:[%s3360 + $0x28] sm:$0xf]
    %v3372 = vld [vmem:[%s3360 + $0x2c] sm:$0xf]
    %v3373 = vld [vmem:[%s3360 + $0x30] sm:$0xf]
    %v3374 = vld [vmem:[%s3360 + $0x34] sm:$0xf]
    %v3375 = vld [vmem:[%s3360 + $0x38] sm:$0xf]
    %v3376 = vld [vmem:[%s3360 + $0x3c] sm:$0xf]
    %v3378 = vshrl.u32 %v3222, 16
    %v3380 = vrot.slane %v3378, 7
    %v3398 = vunpack.c.l.b16 %v3361
    %v3399 = vunpack.c.l.b16 %v3362
    %v3400 = vunpack.c.l.b16 %v3363
    %v3401 = vunpack.c.l.b16 %v3364
    %v3402 = vunpack.c.l.b16 %v3365
    %v3403 = vunpack.c.l.b16 %v3366
    %v3404 = vunpack.c.l.b16 %v3367
    %v3405 = vunpack.c.l.b16 %v3368
    %v3406 = vunpack.c.l.b16 %v3369
    %v3407 = vunpack.c.l.b16 %v3370
    %v3408 = vunpack.c.l.b16 %v3371
    %v3409 = vunpack.c.l.b16 %v3372
    %v3410 = vunpack.c.l.b16 %v3373
    %v3411 = vunpack.c.l.b16 %v3374
    %v3412 = vunpack.c.l.b16 %v3375
    %v3413 = vunpack.c.l.b16 %v3376
    %v3414 = vpack.c.b16 %v3399, %v3398
    %v3415 = vpack.c.b16 %v3401, %v3400
    %v3416 = vpack.c.b16 %v3403, %v3402
    %v3417 = vpack.c.b16 %v3405, %v3404
    %v3418 = vpack.c.b16 %v3407, %v3406
    %v3419 = vpack.c.b16 %v3409, %v3408
    %v3420 = vpack.c.b16 %v3411, %v3410
    %v3421 = vpack.c.b16 %v3413, %v3412
    %3430 = vmatprep.subr.bf16.mxu0 0
    %3431 = vmatpush1.bf16.msra.mxu0 %v3414
    %3432 = vmatprep.subr.bf16.mxu0 0
    %3433 = vmatpush1.bf16.msra.mxu0 %v3415
    %3434 = vmatprep.subr.bf16.mxu0 0
    %3435 = vmatpush1.bf16.msra.mxu0 %v3416
    %3436 = vmatprep.subr.bf16.mxu0 0
    %3437 = vmatpush1.bf16.msra.mxu0 %v3417
    %3438 = vmatprep.subr.bf16.mxu0 0
    %3439 = vmatpush1.bf16.msra.mxu0 %v3418
    %3440 = vmatprep.subr.bf16.mxu0 0
    %3441 = vmatpush1.bf16.msra.mxu0 %v3419
    %3442 = vmatprep.subr.bf16.mxu0 0
    %3443 = vmatpush1.bf16.msra.mxu0 %v3420
    %3444 = vmatprep.subr.bf16.mxu0 0
    %3445 = vmatpush1.bf16.msra.mxu0 %v3421
    %3446 = vmatprep.subr.bf16.mxu0 0
    %3447 = vmatpush1.bf16.msra.mxu0 0
    %3448 = vmatprep.subr.bf16.mxu0 0
    %3449 = vmatpush1.bf16.msra.mxu0 0
    %3450 = vmatprep.subr.bf16.mxu0 0
    %3451 = vmatpush1.bf16.msra.mxu0 0
    %3452 = vmatprep.subr.bf16.mxu0 0
    %3453 = vmatpush1.bf16.msra.mxu0 0
    %3454 = vmatprep.subr.bf16.mxu0 0
    %3455 = vmatpush1.bf16.msra.mxu0 0
    %3456 = vmatprep.subr.bf16.mxu0 0
    %3457 = vmatpush1.bf16.msra.mxu0 0
    %3458 = vmatprep.subr.bf16.mxu0 0
    %3459 = vmatpush1.bf16.msra.mxu0 0
    %3460 = vmatprep.subr.bf16.mxu0 0
    %3461 = vmatpush1.bf16.msra.mxu0 0
    %3462 = vmatprep.mubr.bf16.mxu0 0
    %3463 = vmatmul.mubr.bf16.gmra.mrb[0].mxu0 %v3380
    %v3464 = vpop.f32.mrb[0].mxu0
    %v3465 = vadd.f32 0.0, %v3464
    %v3466 = vpop.f32.mrb[0].mxu0
    %v3467 = vpop.f32.mrb[0].mxu0
    %v3468 = vpop.f32.mrb[0].mxu0
    %3469 = vdwg.mxu0
    %v3470 = vadd.f32 %v3314, %v3465
    %v3472 = vshrl.u32 %v3315, 16
    %v3474 = vrot.slane %v3472, 7
    %3476 = vmatprep.subr.bf16.mxu0 0
    %3477 = vmatpush1.bf16.msra.mxu0 %v3414
    %3478 = vmatprep.subr.bf16.mxu0 0
    %3479 = vmatpush1.bf16.msra.mxu0 %v3415
    %3480 = vmatprep.subr.bf16.mxu0 0
    %3481 = vmatpush1.bf16.msra.mxu0 %v3416
    %3482 = vmatprep.subr.bf16.mxu0 0
    %3483 = vmatpush1.bf16.msra.mxu0 %v3417
    %3484 = vmatprep.subr.bf16.mxu0 0
    %3485 = vmatpush1.bf16.msra.mxu0 %v3418
    %3486 = vmatprep.subr.bf16.mxu0 0
    %3487 = vmatpush1.bf16.msra.mxu0 %v3419
    %3488 = vmatprep.subr.bf16.mxu0 0
    %3489 = vmatpush1.bf16.msra.mxu0 %v3420
    %3490 = vmatprep.subr.bf16.mxu0 0
    %3491 = vmatpush1.bf16.msra.mxu0 %v3421
    %3492 = vmatprep.subr.bf16.mxu0 0
    %3493 = vmatpush1.bf16.msra.mxu0 0
    %3494 = vmatprep.subr.bf16.mxu0 0
    %3495 = vmatpush1.bf16.msra.mxu0 0
    %3496 = vmatprep.subr.bf16.mxu0 0
    %3497 = vmatpush1.bf16.msra.mxu0 0
    %3498 = vmatprep.subr.bf16.mxu0 0
    %3499 = vmatpush1.bf16.msra.mxu0 0
    %3500 = vmatprep.subr.bf16.mxu0 0
    %3501 = vmatpush1.bf16.msra.mxu0 0
    %3502 = vmatprep.subr.bf16.mxu0 0
    %3503 = vmatpush1.bf16.msra.mxu0 0
    %3504 = vmatprep.subr.bf16.mxu0 0
    %3505 = vmatpush1.bf16.msra.mxu0 0
    %3506 = vmatprep.subr.bf16.mxu0 0
    %3507 = vmatpush1.bf16.msra.mxu0 0
    %3508 = vmatprep.mubr.bf16.mxu0 0
    %3509 = vmatmul.mubr.bf16.gmra.mrb[0].mxu0 %v3474
    %v3510 = vpop.f32.mrb[0].mxu0
    %v3511 = vadd.f32 0.0, %v3510
    %v3512 = vpop.f32.mrb[0].mxu0
    %v3513 = vpop.f32.mrb[0].mxu0
    %v3514 = vpop.f32.mrb[0].mxu0
    %3515 = vdwg.mxu0
    %v3516 = vadd.f32 %v3359, %v3511
    %3517 = vst [vmem:[#allocation3] sm:$0x1] %v3470
    %3518 = vst [vmem:[#allocation3 + $0x1] sm:$0x1] %v3516
    // Predicated region
    $region26: #{encoder_v3_pallas.7} parent=1 // pred_check
      _
    $region27: #{encoder_v3_pallas.7} parent=1 // pred_check_branch
      %3520 = sbr.rel (0) target = $region29
    $region28: #{encoder_v3_pallas.7} parent=1 // pred_region
      %s3522 = ssub.s32 32, 32
      %3523 = vsyncadd [#allocation4], %s3522
      %s3525 = sshll.u32 [#allocation3], 4
      %s3526 = int_to_ptr.vmem [resolvable:$true] %s3525
      %3528 = dma.vmem_to_hbm [thread:$0]  %s3526, 32, %s6, [#allocation4]
    $region29: #{encoder_v3_pallas.7} parent=1 // pred_fallthru
      _
    // Predicated region
    $region30: #{encoder_v3_pallas.7} parent=1 // pred_check
      _
    $region31: #{encoder_v3_pallas.7} parent=1 // pred_check_branch
      %3530 = sbr.rel (0) target = $region33
    $region32: #{encoder_v3_pallas.7} parent=1 // pred_region
      %3531 = dma.done [#allocation4], 32
    $region33: #{encoder_v3_pallas.7} parent=1 // pred_fallthru
      _
    %3532 = vsyncpa [#allocation4], 1

</llo_original>
